<compile_context>
chip_gen: v7x
topology: tpu7x:2x2x1
jax: 0.10.0
libtpu: 0.0.40
codegen_flags: <defaults>
</compile_context>

<pallas_src>
import functools
import math

import jax
import jax.numpy as jnp
from jax import lax
from jax.experimental import pallas as pl
from jax.experimental.pallas import tpu as pltpu


# ----------------------------- in-kernel math helpers -----------------------------

def _layernorm(x, g, b, eps):
    m = jnp.mean(x, axis=-1, keepdims=True)
    c = x - m
    v = jnp.mean(c * c, axis=-1, keepdims=True)
    return c * lax.rsqrt(v + eps) * g + b


_SQRT1_2 = 0.7071067811865476


def _erf_f32(x):
    # Abramowitz & Stegun 7.1.26 rational approximation, max abs error ~1.5e-7 (~f32 eps).
    # TODO(synk): switch to lax.erf if/when an exact erf lowering is available in Mosaic.
    t = 1.0 / (1.0 + 0.3275911 * jnp.abs(x))
    poly = t * (0.254829592 + t * (-0.284496736 + t * (1.421413741
                + t * (-1.453152027 + t * 1.061405429))))
    y = 1.0 - poly * jnp.exp(-x * x)
    return jnp.where(x >= 0.0, y, -y)


def _gelu_erf(x):
    # nn.GELU() exact form: 0.5 * x * (1 + erf(x / sqrt(2)))
    return 0.5 * x * (1.0 + _erf_f32(x * _SQRT1_2))


# ----------------------------- fused forward kernel -----------------------------

def _vit_fc_kernel(patches_ref, conv_w_ref, conv_b_ref, cls_ref, pos_ref,
                   ln1_g_ref, ln1_b_ref, qkv_w_ref, qkv_b_ref, out_w_ref, out_b_ref,
                   ln2_g_ref, ln2_b_ref, mlp_w1_ref, mlp_b1_ref, mlp_w2_ref, mlp_b2_ref,
                   lnf_g_ref, lnf_b_ref, pw1_ref, pw2_ref,
                   o_ref, asm_ref,
                   *, B, S, Np, D, nh, dh, num_layers, eps):
    f32 = jnp.float32
    scale = 1.0 / math.sqrt(dh)

    # --- encoder.conv_proj: Conv2d(1, D, kernel=p, stride=p) == patch matmul (MXU) ---
    emb = jnp.dot(patches_ref[...], conv_w_ref[...], preferred_element_type=f32)
    emb = emb + conv_b_ref[...]                                    # (B*Np, D)

    # --- prepend class token + positional embedding; assemble token matrix in VMEM ---
    cls_row = cls_ref[...] + pos_ref[0:1, :]                       # (1, D)
    for b in range(B):
        r0 = b * S
        asm_ref[r0:r0 + 1, :] = cls_row
        asm_ref[r0 + 1:r0 + S, :] = emb[b * Np:(b + 1) * Np, :] + pos_ref[1:S, :]
    x = asm_ref[...]                                               # (B*S, D) tokens
    # TODO(synk): encoder-internal nn.Dropout layers are identity at inference.

    # --- transformer encoder layers (fully unrolled; all activations stay in VMEM) ---
    for l in range(num_layers):
        # pre-norm multi-head self-attention
        y = _layernorm(x, ln1_g_ref[l:l + 1], ln1_b_ref[l:l + 1], eps)
        qkv = jnp.dot(y, qkv_w_ref[l], preferred_element_type=f32) + qkv_b_ref[l:l + 1]
        w_out = out_w_ref[l]                                       # (D, D)
        for b in range(B):
            r0 = b * S
            acc = None
            for h in range(nh):
                c = h * dh
                q = qkv[r0:r0 + S, c:c + dh]                       # (S, dh)
                k = qkv[r0:r0 + S, D + c:D + c + dh]               # (S, dh)
                v = qkv[r0:r0 + S, 2 * D + c:2 * D + c + dh]       # (S, dh)
                s = lax.dot_general(q, k, (((1,), (1,)), ((), ())),
                                    preferred_element_type=f32) * scale
                s = s - jnp.max(s, axis=-1, keepdims=True)
                p = jnp.exp(s)
                p = p / jnp.sum(p, axis=-1, keepdims=True)
                o_bh = jnp.dot(p, v, preferred_element_type=f32)   # (S, dh)
                # Fold the output projection into the head loop:
                #   concat_h(O_h) @ W_out == sum_h O_h @ W_out[h*dh:(h+1)*dh, :]
                contrib = jnp.dot(o_bh, w_out[c:c + dh, :], preferred_element_type=f32)
                acc = contrib if acc is None else acc + contrib
            asm_ref[r0:r0 + S, :] = acc                            # full-lane-width store
        x = x + asm_ref[...] + out_b_ref[l:l + 1]

        # pre-norm MLP: Linear -> GELU(erf) -> Linear
        y = _layernorm(x, ln2_g_ref[l:l + 1], ln2_b_ref[l:l + 1], eps)
        hdn = jnp.dot(y, mlp_w1_ref[l], preferred_element_type=f32) + mlp_b1_ref[l:l + 1]
        hdn = _gelu_erf(hdn)
        x = x + jnp.dot(hdn, mlp_w2_ref[l], preferred_element_type=f32) + mlp_b2_ref[l:l + 1]

    # --- final encoder LayerNorm; encoder.head = Identity -> h_i = class-token rows ---
    x = _layernorm(x, lnf_g_ref[...], lnf_b_ref[...], eps)

    # --- projector: Linear(D,D, no bias) -> Dropout(identity) -> Linear(D, classes, no bias)
    # (Applied to all rows - negligible extra work at this size; only class-token rows
    #  are written to the lane-dense output.)
    # TODO(synk): projector nn.Dropout(0.2) is identity at inference (no masking).
    z = jnp.dot(x, pw1_ref[...], preferred_element_type=f32)       # (B*S, D)
    out = jnp.dot(z, pw2_ref[...], preferred_element_type=f32)     # (B*S, Npad) lane-dense
    for b in range(B):
        o_ref[b:b + 1, :] = out[b * S:b * S + 1, :]


# ----------------------------- parameters -----------------------------

def init_params(key, *, image_size, patch_size, in_channels, hidden_dim,
                mlp_dim, num_heads, num_layers, numclasses):
    n_patches = (image_size // patch_size) ** 2
    seq_len = n_patches + 1
    keys = jax.random.split(key, 5 + num_layers)

    def nrm(k, shape, std=0.02):
        return (std * jax.random.normal(k, shape)).astype(jnp.float32)

    lkeys = [jax.random.split(keys[5 + l], 4) for l in range(num_layers)]
    L = num_layers
    params = dict(
        # conv_proj (Conv2d, kernel==stride) reshaped to a patch-embedding matmul:
        # expected layout (C*p*p, D) == torch weight.reshape(D, C*p*p).T
        conv_w=nrm(keys[0], (in_channels * patch_size * patch_size, hidden_dim)),
        conv_b=jnp.zeros((hidden_dim,), jnp.float32),
        class_token=nrm(keys[1], (1, 1, hidden_dim)),
        pos_embedding=nrm(keys[2], (1, seq_len, hidden_dim)),
        ln_g=jnp.ones((hidden_dim,), jnp.float32),
        ln_b=jnp.zeros((hidden_dim,), jnp.float32),
        # per-layer weights stacked on a leading (num_layers,) axis (single fused kernel)
        ln1_g=jnp.ones((L, hidden_dim), jnp.float32),
        ln1_b=jnp.zeros((L, hidden_dim), jnp.float32),
        qkv_w=jnp.stack([nrm(lkeys[l][0], (hidden_dim, 3 * hidden_dim)) for l in range(L)]),
        qkv_b=jnp.zeros((L, 3 * hidden_dim), jnp.float32),
        out_w=jnp.stack([nrm(lkeys[l][1], (hidden_dim, hidden_dim)) for l in range(L)]),
        out_b=jnp.zeros((L, hidden_dim), jnp.float32),
        ln2_g=jnp.ones((L, hidden_dim), jnp.float32),
        ln2_b=jnp.zeros((L, hidden_dim), jnp.float32),
        mlp_w1=jnp.stack([nrm(lkeys[l][2], (hidden_dim, mlp_dim)) for l in range(L)]),
        mlp_b1=jnp.zeros((L, mlp_dim), jnp.float32),
        mlp_w2=jnp.stack([nrm(lkeys[l][3], (mlp_dim, hidden_dim)) for l in range(L)]),
        mlp_b2=jnp.zeros((L, hidden_dim), jnp.float32),
        # projector: Linear(n_features, n_features, bias=False) -> Dropout -> Linear(n_features, numclasses, bias=False)
        proj_w1=nrm(keys[3], (hidden_dim, hidden_dim)),
        proj_w2=nrm(keys[4], (hidden_dim, numclasses)),
    )
    return params


# ----------------------------- forward wrapper -----------------------------

def simclr_vit_fc_forward(params, x, *, patch_size, num_heads):
    B, C, H, W = x.shape
    D = params["conv_w"].shape[1]
    p = patch_size
    Hp, Wp = H // p, W // p
    Np = Hp * Wp
    S = Np + 1
    nh = num_heads
    dh = D // nh
    L = params["qkv_w"].shape[0]
    numclasses = params["proj_w2"].shape[1]
    Npad = max(128, ((numclasses + 127) // 128) * 128)

    # Input layout plumbing (XLA): Conv2d(kernel=stride=p) patch extraction.
    patches = x.reshape(B, C, Hp, p, Wp, p).transpose(0, 2, 4, 1, 3, 5)
    patches = patches.reshape(B * Np, C * p * p)

    # Lane-pad the final projection weight so the kernel's only HBM store is lane-dense.
    pw2 = jnp.zeros((D, Npad), jnp.float32).at[:, :numclasses].set(params["proj_w2"])

    kernel = functools.partial(
        _vit_fc_kernel, B=B, S=S, Np=Np, D=D, nh=nh, dh=dh, num_layers=L, eps=1e-6)

    out_padded = pl.pallas_call(
        kernel,
        out_shape=jax.ShapeDtypeStruct((B, Npad), jnp.float32),
        scratch_shapes=[pltpu.VMEM((B * S, D), jnp.float32)],
    )(patches,
      params["conv_w"], params["conv_b"].reshape(1, D),
      params["class_token"].reshape(1, D), params["pos_embedding"].reshape(S, D),
      params["ln1_g"], params["ln1_b"], params["qkv_w"], params["qkv_b"],
      params["out_w"], params["out_b"], params["ln2_g"], params["ln2_b"],
      params["mlp_w1"], params["mlp_b1"], params["mlp_w2"], params["mlp_b2"],
      params["ln_g"].reshape(1, D), params["ln_b"].reshape(1, D),
      params["proj_w1"], pw2)

    return out_padded[:, :numclasses]


# ----------------------------- main -----------------------------

if __name__ == "__main__":
    key = jax.random.PRNGKey(0)
    pkey, xkey = jax.random.split(key)

    B, C, H, W = 2, 1, 16, 16        # in_channels=1 as in the module's conv_proj
    patch_size = 8
    hidden_dim = 32                  # == n_features (ViT width == encoder output dim)
    mlp_dim = 64
    num_heads = 4
    num_layers = 2
    numclasses = 8

    params = init_params(
        pkey, image_size=H, patch_size=patch_size, in_channels=C,
        hidden_dim=hidden_dim, mlp_dim=mlp_dim, num_heads=num_heads,
        num_layers=num_layers, numclasses=numclasses)

    x = jax.random.normal(xkey, (B, C, H, W), jnp.float32)

    fwd = jax.jit(functools.partial(simclr_vit_fc_forward,
                                    patch_size=patch_size, num_heads=num_heads))
    out = jax.block_until_ready(fwd(params, x))

    assert out.shape == (B, numclasses) and out.dtype == jnp.float32
    assert bool(jnp.all(jnp.isfinite(out)))
    print("KERNEL_OK")
</pallas_src>

<mosaic_0001>
module attributes {stable_mosaic.version = 11 : i64} {
  func.func @_vit_fc_kernel(%arg0: memref<8x64xf32, #tpu.memory_space<vmem>>, %arg1: memref<64x32xf32, #tpu.memory_space<vmem>>, %arg2: memref<1x32xf32, #tpu.memory_space<vmem>>, %arg3: memref<1x32xf32, #tpu.memory_space<vmem>>, %arg4: memref<5x32xf32, #tpu.memory_space<vmem>>, %arg5: memref<2x32xf32, #tpu.memory_space<vmem>>, %arg6: memref<2x32xf32, #tpu.memory_space<vmem>>, %arg7: memref<2x32x96xf32, #tpu.memory_space<vmem>>, %arg8: memref<2x96xf32, #tpu.memory_space<vmem>>, %arg9: memref<2x32x32xf32, #tpu.memory_space<vmem>>, %arg10: memref<2x32xf32, #tpu.memory_space<vmem>>, %arg11: memref<2x32xf32, #tpu.memory_space<vmem>>, %arg12: memref<2x32xf32, #tpu.memory_space<vmem>>, %arg13: memref<2x32x64xf32, #tpu.memory_space<vmem>>, %arg14: memref<2x64xf32, #tpu.memory_space<vmem>>, %arg15: memref<2x64x32xf32, #tpu.memory_space<vmem>>, %arg16: memref<2x32xf32, #tpu.memory_space<vmem>>, %arg17: memref<1x32xf32, #tpu.memory_space<vmem>>, %arg18: memref<1x32xf32, #tpu.memory_space<vmem>>, %arg19: memref<32x32xf32, #tpu.memory_space<vmem>>, %arg20: memref<32x128xf32, #tpu.memory_space<vmem>>, %arg21: memref<2x128xf32, #tpu.memory_space<vmem>>, %arg22: memref<10x32xf32, #tpu.memory_space<vmem>>) attributes {dimension_semantics = [], scalar_prefetch = 0 : i64, scratch_operands = 1 : i64, tpu.core_type = #tpu.core_type<tc>} {
    %c0 = arith.constant 0 : index
    %c0_0 = arith.constant 0 : index
    %0 = vector.load %arg0[%c0, %c0_0] : memref<8x64xf32, #tpu.memory_space<vmem>>, vector<8x64xf32>
    %c0_1 = arith.constant 0 : index
    %c0_2 = arith.constant 0 : index
    %1 = vector.load %arg1[%c0_1, %c0_2] : memref<64x32xf32, #tpu.memory_space<vmem>>, vector<64x32xf32>
    %cst = arith.constant dense<0.000000e+00> : vector<8x32xf32>
    %2 = tpu.matmul %0, %1, %cst {dimension_numbers = #tpu.dot_dimension_numbers<[1], [0], [0], [1], [0, 0, 1, 1], [], []>} : vector<8x64xf32>, vector<64x32xf32>, vector<8x32xf32> -> vector<8x32xf32>
    %c0_3 = arith.constant 0 : index
    %c0_4 = arith.constant 0 : index
    %3 = vector.load %arg2[%c0_3, %c0_4] : memref<1x32xf32, #tpu.memory_space<vmem>>, vector<1x32xf32>
    %4 = vector.broadcast %3 : vector<1x32xf32> to vector<8x32xf32>
    %5 = arith.addf %2, %4 : vector<8x32xf32>
    %c0_5 = arith.constant 0 : index
    %c0_6 = arith.constant 0 : index
    %6 = vector.load %arg3[%c0_5, %c0_6] : memref<1x32xf32, #tpu.memory_space<vmem>>, vector<1x32xf32>
    %c0_7 = arith.constant 0 : index
    %c0_8 = arith.constant 0 : index
    %7 = vector.load %arg4[%c0_7, %c0_8] : memref<5x32xf32, #tpu.memory_space<vmem>>, vector<1x32xf32>
    %8 = arith.addf %6, %7 : vector<1x32xf32>
    %c0_9 = arith.constant 0 : index
    %c0_10 = arith.constant 0 : index
    %9 = vector.load %arg22[%c0_9, %c0_10] : memref<10x32xf32, #tpu.memory_space<vmem>>, vector<1x32xf32>
    tpu.vector_store %arg22[%c0_9, %c0_10], %8 {strides = array<i32>} : memref<10x32xf32, #tpu.memory_space<vmem>>, vector<1x32xf32>,
    %10 = vector.extract_strided_slice %5 {offsets = [0, 0], sizes = [4, 32], strides = [1, 1]} : vector<8x32xf32> to vector<4x32xf32>
    %c1 = arith.constant 1 : index
    %c0_11 = arith.constant 0 : index
    %11 = vector.load %arg4[%c1, %c0_11] : memref<5x32xf32, #tpu.memory_space<vmem>>, vector<4x32xf32>
    %12 = arith.addf %10, %11 : vector<4x32xf32>
    %c1_12 = arith.constant 1 : index
    %c0_13 = arith.constant 0 : index
    %13 = vector.load %arg22[%c1_12, %c0_13] : memref<10x32xf32, #tpu.memory_space<vmem>>, vector<4x32xf32>
    tpu.vector_store %arg22[%c1_12, %c0_13], %12 {strides = array<i32>} : memref<10x32xf32, #tpu.memory_space<vmem>>, vector<4x32xf32>,
    %c5 = arith.constant 5 : index
    %c0_14 = arith.constant 0 : index
    %14 = vector.load %arg22[%c5, %c0_14] : memref<10x32xf32, #tpu.memory_space<vmem>>, vector<1x32xf32>
    tpu.vector_store %arg22[%c5, %c0_14], %8 {strides = array<i32>} : memref<10x32xf32, #tpu.memory_space<vmem>>, vector<1x32xf32>,
    %15 = vector.extract_strided_slice %5 {offsets = [4, 0], sizes = [4, 32], strides = [1, 1]} : vector<8x32xf32> to vector<4x32xf32>
    %c1_15 = arith.constant 1 : index
    %c0_16 = arith.constant 0 : index
    %16 = vector.load %arg4[%c1_15, %c0_16] : memref<5x32xf32, #tpu.memory_space<vmem>>, vector<4x32xf32>
    %17 = arith.addf %15, %16 : vector<4x32xf32>
    %c6 = arith.constant 6 : index
    %c0_17 = arith.constant 0 : index
    %18 = vector.load %arg22[%c6, %c0_17] : memref<10x32xf32, #tpu.memory_space<vmem>>, vector<4x32xf32>
    tpu.vector_store %arg22[%c6, %c0_17], %17 {strides = array<i32>} : memref<10x32xf32, #tpu.memory_space<vmem>>, vector<4x32xf32>,
    %c0_18 = arith.constant 0 : index
    %c0_19 = arith.constant 0 : index
    %19 = vector.load %arg22[%c0_18, %c0_19] : memref<10x32xf32, #tpu.memory_space<vmem>>, vector<10x32xf32>
    %c0_20 = arith.constant 0 : index
    %c0_21 = arith.constant 0 : index
    %20 = vector.load %arg5[%c0_20, %c0_21] : memref<2x32xf32, #tpu.memory_space<vmem>>, vector<1x32xf32>
    %c0_22 = arith.constant 0 : index
    %c0_23 = arith.constant 0 : index
    %21 = vector.load %arg6[%c0_22, %c0_23] : memref<2x32xf32, #tpu.memory_space<vmem>>, vector<1x32xf32>
    %cst_24 = arith.constant dense<0.000000e+00> : vector<10xf32>
    %22 = vector.multi_reduction <add>, %19, %cst_24 [1] : vector<10x32xf32> to vector<10xf32>
    %23 = vector.shape_cast %22 : vector<10xf32> to vector<10x1xf32>
    %cst_25 = arith.constant 3.200000e+01 : f32
    %24 = vector.broadcast %cst_25 : f32 to vector<10x1xf32>
    %25 = arith.divf %23, %24 : vector<10x1xf32>
    %26 = vector.broadcast %25 : vector<10x1xf32> to vector<10x32xf32>
    %27 = arith.subf %19, %26 : vector<10x32xf32>
    %28 = arith.mulf %27, %27 : vector<10x32xf32>
    %cst_26 = arith.constant dense<0.000000e+00> : vector<10xf32>
    %29 = vector.multi_reduction <add>, %28, %cst_26 [1] : vector<10x32xf32> to vector<10xf32>
    %30 = vector.shape_cast %29 : vector<10xf32> to vector<10x1xf32>
    %cst_27 = arith.constant 3.200000e+01 : f32
    %31 = vector.broadcast %cst_27 : f32 to vector<10x1xf32>
    %32 = arith.divf %30, %31 : vector<10x1xf32>
    %cst_28 = arith.constant 9.99999997E-7 : f32
    %33 = vector.broadcast %cst_28 : f32 to vector<10x1xf32>
    %34 = arith.addf %32, %33 : vector<10x1xf32>
    %35 = math.rsqrt %34 : vector<10x1xf32>
    %36 = vector.broadcast %35 : vector<10x1xf32> to vector<10x32xf32>
    %37 = arith.mulf %27, %36 : vector<10x32xf32>
    %38 = vector.broadcast %20 : vector<1x32xf32> to vector<10x32xf32>
    %39 = arith.mulf %37, %38 : vector<10x32xf32>
    %40 = vector.broadcast %21 : vector<1x32xf32> to vector<10x32xf32>
    %41 = arith.addf %39, %40 : vector<10x32xf32>
    %c0_29 = arith.constant 0 : index
    %c0_30 = arith.constant 0 : index
    %c0_31 = arith.constant 0 : index
    %42 = vector.load %arg7[%c0_29, %c0_30, %c0_31] : memref<2x32x96xf32, #tpu.memory_space<vmem>>, vector<1x32x96xf32>
    %43 = vector.shape_cast %42 : vector<1x32x96xf32> to vector<32x96xf32>
    %cst_32 = arith.constant dense<0.000000e+00> : vector<10x96xf32>
    %44 = tpu.matmul %41, %43, %cst_32 {dimension_numbers = #tpu.dot_dimension_numbers<[1], [0], [0], [1], [0, 0, 1, 1], [], []>} : vector<10x32xf32>, vector<32x96xf32>, vector<10x96xf32> -> vector<10x96xf32>
    %c0_33 = arith.constant 0 : index
    %c0_34 = arith.constant 0 : index
    %45 = vector.load %arg8[%c0_33, %c0_34] : memref<2x96xf32, #tpu.memory_space<vmem>>, vector<1x96xf32>
    %46 = vector.broadcast %45 : vector<1x96xf32> to vector<10x96xf32>
    %47 = arith.addf %44, %46 : vector<10x96xf32>
    %c0_35 = arith.constant 0 : index
    %c0_36 = arith.constant 0 : index
    %c0_37 = arith.constant 0 : index
    %48 = vector.load %arg9[%c0_35, %c0_36, %c0_37] : memref<2x32x32xf32, #tpu.memory_space<vmem>>, vector<1x32x32xf32>
    %49 = vector.shape_cast %48 : vector<1x32x32xf32> to vector<32x32xf32>
    %50 = vector.extract_strided_slice %47 {offsets = [0, 0], sizes = [5, 8], strides = [1, 1]} : vector<10x96xf32> to vector<5x8xf32>
    %51 = vector.extract_strided_slice %47 {offsets = [0, 32], sizes = [5, 8], strides = [1, 1]} : vector<10x96xf32> to vector<5x8xf32>
    %52 = vector.extract_strided_slice %47 {offsets = [0, 64], sizes = [5, 8], strides = [1, 1]} : vector<10x96xf32> to vector<5x8xf32>
    %cst_38 = arith.constant dense<0.000000e+00> : vector<5x5xf32>
    %53 = tpu.matmul %50, %51, %cst_38 {dimension_numbers = #tpu.dot_dimension_numbers<[1], [1], [0], [0], [0, 0, 1, 0], [], []>} : vector<5x8xf32>, vector<5x8xf32>, vector<5x5xf32> -> vector<5x5xf32>
    %cst_39 = arith.constant 0.353553385 : f32
    %54 = vector.broadcast %cst_39 : f32 to vector<5x5xf32>
    %55 = arith.mulf %53, %54 : vector<5x5xf32>
    %cst_40 = arith.constant dense<0xFF800000> : vector<5xf32>
    %56 = vector.multi_reduction <maximumf>, %55, %cst_40 [1] : vector<5x5xf32> to vector<5xf32>
    %57 = vector.shape_cast %56 : vector<5xf32> to vector<5x1xf32>
    %58 = vector.broadcast %57 : vector<5x1xf32> to vector<5x5xf32>
    %59 = arith.subf %55, %58 : vector<5x5xf32>
    %60 = math.exp %59 : vector<5x5xf32>
    %cst_41 = arith.constant dense<0.000000e+00> : vector<5xf32>
    %61 = vector.multi_reduction <add>, %60, %cst_41 [1] : vector<5x5xf32> to vector<5xf32>
    %62 = vector.shape_cast %61 : vector<5xf32> to vector<5x1xf32>
    %63 = vector.broadcast %62 : vector<5x1xf32> to vector<5x5xf32>
    %64 = arith.divf %60, %63 : vector<5x5xf32>
    %cst_42 = arith.constant dense<0.000000e+00> : vector<5x8xf32>
    %65 = tpu.matmul %64, %52, %cst_42 {dimension_numbers = #tpu.dot_dimension_numbers<[1], [0], [0], [1], [0, 0, 1, 1], [], []>} : vector<5x5xf32>, vector<5x8xf32>, vector<5x8xf32> -> vector<5x8xf32>
    %66 = vector.extract_strided_slice %49 {offsets = [0, 0], sizes = [8, 32], strides = [1, 1]} : vector<32x32xf32> to vector<8x32xf32>
    %cst_43 = arith.constant dense<0.000000e+00> : vector<5x32xf32>
    %67 = tpu.matmul %65, %66, %cst_43 {dimension_numbers = #tpu.dot_dimension_numbers<[1], [0], [0], [1], [0, 0, 1, 1], [], []>} : vector<5x8xf32>, vector<8x32xf32>, vector<5x32xf32> -> vector<5x32xf32>
    %68 = vector.extract_strided_slice %47 {offsets = [0, 8], sizes = [5, 8], strides = [1, 1]} : vector<10x96xf32> to vector<5x8xf32>
    %69 = vector.extract_strided_slice %47 {offsets = [0, 40], sizes = [5, 8], strides = [1, 1]} : vector<10x96xf32> to vector<5x8xf32>
    %70 = vector.extract_strided_slice %47 {offsets = [0, 72], sizes = [5, 8], strides = [1, 1]} : vector<10x96xf32> to vector<5x8xf32>
    %cst_44 = arith.constant dense<0.000000e+00> : vector<5x5xf32>
    %71 = tpu.matmul %68, %69, %cst_44 {dimension_numbers = #tpu.dot_dimension_numbers<[1], [1], [0], [0], [0, 0, 1, 0], [], []>} : vector<5x8xf32>, vector<5x8xf32>, vector<5x5xf32> -> vector<5x5xf32>
    %cst_45 = arith.constant 0.353553385 : f32
    %72 = vector.broadcast %cst_45 : f32 to vector<5x5xf32>
    %73 = arith.mulf %71, %72 : vector<5x5xf32>
    %cst_46 = arith.constant dense<0xFF800000> : vector<5xf32>
    %74 = vector.multi_reduction <maximumf>, %73, %cst_46 [1] : vector<5x5xf32> to vector<5xf32>
    %75 = vector.shape_cast %74 : vector<5xf32> to vector<5x1xf32>
    %76 = vector.broadcast %75 : vector<5x1xf32> to vector<5x5xf32>
    %77 = arith.subf %73, %76 : vector<5x5xf32>
    %78 = math.exp %77 : vector<5x5xf32>
    %cst_47 = arith.constant dense<0.000000e+00> : vector<5xf32>
    %79 = vector.multi_reduction <add>, %78, %cst_47 [1] : vector<5x5xf32> to vector<5xf32>
    %80 = vector.shape_cast %79 : vector<5xf32> to vector<5x1xf32>
    %81 = vector.broadcast %80 : vector<5x1xf32> to vector<5x5xf32>
    %82 = arith.divf %78, %81 : vector<5x5xf32>
    %cst_48 = arith.constant dense<0.000000e+00> : vector<5x8xf32>
    %83 = tpu.matmul %82, %70, %cst_48 {dimension_numbers = #tpu.dot_dimension_numbers<[1], [0], [0], [1], [0, 0, 1, 1], [], []>} : vector<5x5xf32>, vector<5x8xf32>, vector<5x8xf32> -> vector<5x8xf32>
    %84 = vector.extract_strided_slice %49 {offsets = [8, 0], sizes = [8, 32], strides = [1, 1]} : vector<32x32xf32> to vector<8x32xf32>
    %cst_49 = arith.constant dense<0.000000e+00> : vector<5x32xf32>
    %85 = tpu.matmul %83, %84, %cst_49 {dimension_numbers = #tpu.dot_dimension_numbers<[1], [0], [0], [1], [0, 0, 1, 1], [], []>} : vector<5x8xf32>, vector<8x32xf32>, vector<5x32xf32> -> vector<5x32xf32>
    %86 = arith.addf %67, %85 : vector<5x32xf32>
    %87 = vector.extract_strided_slice %47 {offsets = [0, 16], sizes = [5, 8], strides = [1, 1]} : vector<10x96xf32> to vector<5x8xf32>
    %88 = vector.extract_strided_slice %47 {offsets = [0, 48], sizes = [5, 8], strides = [1, 1]} : vector<10x96xf32> to vector<5x8xf32>
    %89 = vector.extract_strided_slice %47 {offsets = [0, 80], sizes = [5, 8], strides = [1, 1]} : vector<10x96xf32> to vector<5x8xf32>
    %cst_50 = arith.constant dense<0.000000e+00> : vector<5x5xf32>
    %90 = tpu.matmul %87, %88, %cst_50 {dimension_numbers = #tpu.dot_dimension_numbers<[1], [1], [0], [0], [0, 0, 1, 0], [], []>} : vector<5x8xf32>, vector<5x8xf32>, vector<5x5xf32> -> vector<5x5xf32>
    %cst_51 = arith.constant 0.353553385 : f32
    %91 = vector.broadcast %cst_51 : f32 to vector<5x5xf32>
    %92 = arith.mulf %90, %91 : vector<5x5xf32>
    %cst_52 = arith.constant dense<0xFF800000> : vector<5xf32>
    %93 = vector.multi_reduction <maximumf>, %92, %cst_52 [1] : vector<5x5xf32> to vector<5xf32>
    %94 = vector.shape_cast %93 : vector<5xf32> to vector<5x1xf32>
    %95 = vector.broadcast %94 : vector<5x1xf32> to vector<5x5xf32>
    %96 = arith.subf %92, %95 : vector<5x5xf32>
    %97 = math.exp %96 : vector<5x5xf32>
    %cst_53 = arith.constant dense<0.000000e+00> : vector<5xf32>
    %98 = vector.multi_reduction <add>, %97, %cst_53 [1] : vector<5x5xf32> to vector<5xf32>
    %99 = vector.shape_cast %98 : vector<5xf32> to vector<5x1xf32>
    %100 = vector.broadcast %99 : vector<5x1xf32> to vector<5x5xf32>
    %101 = arith.divf %97, %100 : vector<5x5xf32>
    %cst_54 = arith.constant dense<0.000000e+00> : vector<5x8xf32>
    %102 = tpu.matmul %101, %89, %cst_54 {dimension_numbers = #tpu.dot_dimension_numbers<[1], [0], [0], [1], [0, 0, 1, 1], [], []>} : vector<5x5xf32>, vector<5x8xf32>, vector<5x8xf32> -> vector<5x8xf32>
    %103 = vector.extract_strided_slice %49 {offsets = [16, 0], sizes = [8, 32], strides = [1, 1]} : vector<32x32xf32> to vector<8x32xf32>
    %cst_55 = arith.constant dense<0.000000e+00> : vector<5x32xf32>
    %104 = tpu.matmul %102, %103, %cst_55 {dimension_numbers = #tpu.dot_dimension_numbers<[1], [0], [0], [1], [0, 0, 1, 1], [], []>} : vector<5x8xf32>, vector<8x32xf32>, vector<5x32xf32> -> vector<5x32xf32>
    %105 = arith.addf %86, %104 : vector<5x32xf32>
    %106 = vector.extract_strided_slice %47 {offsets = [0, 24], sizes = [5, 8], strides = [1, 1]} : vector<10x96xf32> to vector<5x8xf32>
    %107 = vector.extract_strided_slice %47 {offsets = [0, 56], sizes = [5, 8], strides = [1, 1]} : vector<10x96xf32> to vector<5x8xf32>
    %108 = vector.extract_strided_slice %47 {offsets = [0, 88], sizes = [5, 8], strides = [1, 1]} : vector<10x96xf32> to vector<5x8xf32>
    %cst_56 = arith.constant dense<0.000000e+00> : vector<5x5xf32>
    %109 = tpu.matmul %106, %107, %cst_56 {dimension_numbers = #tpu.dot_dimension_numbers<[1], [1], [0], [0], [0, 0, 1, 0], [], []>} : vector<5x8xf32>, vector<5x8xf32>, vector<5x5xf32> -> vector<5x5xf32>
    %cst_57 = arith.constant 0.353553385 : f32
    %110 = vector.broadcast %cst_57 : f32 to vector<5x5xf32>
    %111 = arith.mulf %109, %110 : vector<5x5xf32>
    %cst_58 = arith.constant dense<0xFF800000> : vector<5xf32>
    %112 = vector.multi_reduction <maximumf>, %111, %cst_58 [1] : vector<5x5xf32> to vector<5xf32>
    %113 = vector.shape_cast %112 : vector<5xf32> to vector<5x1xf32>
    %114 = vector.broadcast %113 : vector<5x1xf32> to vector<5x5xf32>
    %115 = arith.subf %111, %114 : vector<5x5xf32>
    %116 = math.exp %115 : vector<5x5xf32>
    %cst_59 = arith.constant dense<0.000000e+00> : vector<5xf32>
    %117 = vector.multi_reduction <add>, %116, %cst_59 [1] : vector<5x5xf32> to vector<5xf32>
    %118 = vector.shape_cast %117 : vector<5xf32> to vector<5x1xf32>
    %119 = vector.broadcast %118 : vector<5x1xf32> to vector<5x5xf32>
    %120 = arith.divf %116, %119 : vector<5x5xf32>
    %cst_60 = arith.constant dense<0.000000e+00> : vector<5x8xf32>
    %121 = tpu.matmul %120, %108, %cst_60 {dimension_numbers = #tpu.dot_dimension_numbers<[1], [0], [0], [1], [0, 0, 1, 1], [], []>} : vector<5x5xf32>, vector<5x8xf32>, vector<5x8xf32> -> vector<5x8xf32>
    %122 = vector.extract_strided_slice %49 {offsets = [24, 0], sizes = [8, 32], strides = [1, 1]} : vector<32x32xf32> to vector<8x32xf32>
    %cst_61 = arith.constant dense<0.000000e+00> : vector<5x32xf32>
    %123 = tpu.matmul %121, %122, %cst_61 {dimension_numbers = #tpu.dot_dimension_numbers<[1], [0], [0], [1], [0, 0, 1, 1], [], []>} : vector<5x8xf32>, vector<8x32xf32>, vector<5x32xf32> -> vector<5x32xf32>
    %124 = arith.addf %105, %123 : vector<5x32xf32>
    %c0_62 = arith.constant 0 : index
    %c0_63 = arith.constant 0 : index
    %125 = vector.load %arg22[%c0_62, %c0_63] : memref<10x32xf32, #tpu.memory_space<vmem>>, vector<5x32xf32>
    tpu.vector_store %arg22[%c0_62, %c0_63], %124 {strides = array<i32>} : memref<10x32xf32, #tpu.memory_space<vmem>>, vector<5x32xf32>,
    %126 = vector.extract_strided_slice %47 {offsets = [5, 0], sizes = [5, 8], strides = [1, 1]} : vector<10x96xf32> to vector<5x8xf32>
    %127 = vector.extract_strided_slice %47 {offsets = [5, 32], sizes = [5, 8], strides = [1, 1]} : vector<10x96xf32> to vector<5x8xf32>
    %128 = vector.extract_strided_slice %47 {offsets = [5, 64], sizes = [5, 8], strides = [1, 1]} : vector<10x96xf32> to vector<5x8xf32>
    %cst_64 = arith.constant dense<0.000000e+00> : vector<5x5xf32>
    %129 = tpu.matmul %126, %127, %cst_64 {dimension_numbers = #tpu.dot_dimension_numbers<[1], [1], [0], [0], [0, 0, 1, 0], [], []>} : vector<5x8xf32>, vector<5x8xf32>, vector<5x5xf32> -> vector<5x5xf32>
    %cst_65 = arith.constant 0.353553385 : f32
    %130 = vector.broadcast %cst_65 : f32 to vector<5x5xf32>
    %131 = arith.mulf %129, %130 : vector<5x5xf32>
    %cst_66 = arith.constant dense<0xFF800000> : vector<5xf32>
    %132 = vector.multi_reduction <maximumf>, %131, %cst_66 [1] : vector<5x5xf32> to vector<5xf32>
    %133 = vector.shape_cast %132 : vector<5xf32> to vector<5x1xf32>
    %134 = vector.broadcast %133 : vector<5x1xf32> to vector<5x5xf32>
    %135 = arith.subf %131, %134 : vector<5x5xf32>
    %136 = math.exp %135 : vector<5x5xf32>
    %cst_67 = arith.constant dense<0.000000e+00> : vector<5xf32>
    %137 = vector.multi_reduction <add>, %136, %cst_67 [1] : vector<5x5xf32> to vector<5xf32>
    %138 = vector.shape_cast %137 : vector<5xf32> to vector<5x1xf32>
    %139 = vector.broadcast %138 : vector<5x1xf32> to vector<5x5xf32>
    %140 = arith.divf %136, %139 : vector<5x5xf32>
    %cst_68 = arith.constant dense<0.000000e+00> : vector<5x8xf32>
    %141 = tpu.matmul %140, %128, %cst_68 {dimension_numbers = #tpu.dot_dimension_numbers<[1], [0], [0], [1], [0, 0, 1, 1], [], []>} : vector<5x5xf32>, vector<5x8xf32>, vector<5x8xf32> -> vector<5x8xf32>
    %142 = vector.extract_strided_slice %49 {offsets = [0, 0], sizes = [8, 32], strides = [1, 1]} : vector<32x32xf32> to vector<8x32xf32>
    %cst_69 = arith.constant dense<0.000000e+00> : vector<5x32xf32>
    %143 = tpu.matmul %141, %142, %cst_69 {dimension_numbers = #tpu.dot_dimension_numbers<[1], [0], [0], [1], [0, 0, 1, 1], [], []>} : vector<5x8xf32>, vector<8x32xf32>, vector<5x32xf32> -> vector<5x32xf32>
    %144 = vector.extract_strided_slice %47 {offsets = [5, 8], sizes = [5, 8], strides = [1, 1]} : vector<10x96xf32> to vector<5x8xf32>
    %145 = vector.extract_strided_slice %47 {offsets = [5, 40], sizes = [5, 8], strides = [1, 1]} : vector<10x96xf32> to vector<5x8xf32>
    %146 = vector.extract_strided_slice %47 {offsets = [5, 72], sizes = [5, 8], strides = [1, 1]} : vector<10x96xf32> to vector<5x8xf32>
    %cst_70 = arith.constant dense<0.000000e+00> : vector<5x5xf32>
    %147 = tpu.matmul %144, %145, %cst_70 {dimension_numbers = #tpu.dot_dimension_numbers<[1], [1], [0], [0], [0, 0, 1, 0], [], []>} : vector<5x8xf32>, vector<5x8xf32>, vector<5x5xf32> -> vector<5x5xf32>
    %cst_71 = arith.constant 0.353553385 : f32
    %148 = vector.broadcast %cst_71 : f32 to vector<5x5xf32>
    %149 = arith.mulf %147, %148 : vector<5x5xf32>
    %cst_72 = arith.constant dense<0xFF800000> : vector<5xf32>
    %150 = vector.multi_reduction <maximumf>, %149, %cst_72 [1] : vector<5x5xf32> to vector<5xf32>
    %151 = vector.shape_cast %150 : vector<5xf32> to vector<5x1xf32>
    %152 = vector.broadcast %151 : vector<5x1xf32> to vector<5x5xf32>
    %153 = arith.subf %149, %152 : vector<5x5xf32>
    %154 = math.exp %153 : vector<5x5xf32>
    %cst_73 = arith.constant dense<0.000000e+00> : vector<5xf32>
    %155 = vector.multi_reduction <add>, %154, %cst_73 [1] : vector<5x5xf32> to vector<5xf32>
    %156 = vector.shape_cast %155 : vector<5xf32> to vector<5x1xf32>
    %157 = vector.broadcast %156 : vector<5x1xf32> to vector<5x5xf32>
    %158 = arith.divf %154, %157 : vector<5x5xf32>
    %cst_74 = arith.constant dense<0.000000e+00> : vector<5x8xf32>
    %159 = tpu.matmul %158, %146, %cst_74 {dimension_numbers = #tpu.dot_dimension_numbers<[1], [0], [0], [1], [0, 0, 1, 1], [], []>} : vector<5x5xf32>, vector<5x8xf32>, vector<5x8xf32> -> vector<5x8xf32>
    %160 = vector.extract_strided_slice %49 {offsets = [8, 0], sizes = [8, 32], strides = [1, 1]} : vector<32x32xf32> to vector<8x32xf32>
    %cst_75 = arith.constant dense<0.000000e+00> : vector<5x32xf32>
    %161 = tpu.matmul %159, %160, %cst_75 {dimension_numbers = #tpu.dot_dimension_numbers<[1], [0], [0], [1], [0, 0, 1, 1], [], []>} : vector<5x8xf32>, vector<8x32xf32>, vector<5x32xf32> -> vector<5x32xf32>
    %162 = arith.addf %143, %161 : vector<5x32xf32>
    %163 = vector.extract_strided_slice %47 {offsets = [5, 16], sizes = [5, 8], strides = [1, 1]} : vector<10x96xf32> to vector<5x8xf32>
    %164 = vector.extract_strided_slice %47 {offsets = [5, 48], sizes = [5, 8], strides = [1, 1]} : vector<10x96xf32> to vector<5x8xf32>
    %165 = vector.extract_strided_slice %47 {offsets = [5, 80], sizes = [5, 8], strides = [1, 1]} : vector<10x96xf32> to vector<5x8xf32>
    %cst_76 = arith.constant dense<0.000000e+00> : vector<5x5xf32>
    %166 = tpu.matmul %163, %164, %cst_76 {dimension_numbers = #tpu.dot_dimension_numbers<[1], [1], [0], [0], [0, 0, 1, 0], [], []>} : vector<5x8xf32>, vector<5x8xf32>, vector<5x5xf32> -> vector<5x5xf32>
    %cst_77 = arith.constant 0.353553385 : f32
    %167 = vector.broadcast %cst_77 : f32 to vector<5x5xf32>
    %168 = arith.mulf %166, %167 : vector<5x5xf32>
    %cst_78 = arith.constant dense<0xFF800000> : vector<5xf32>
    %169 = vector.multi_reduction <maximumf>, %168, %cst_78 [1] : vector<5x5xf32> to vector<5xf32>
    %170 = vector.shape_cast %169 : vector<5xf32> to vector<5x1xf32>
    %171 = vector.broadcast %170 : vector<5x1xf32> to vector<5x5xf32>
    %172 = arith.subf %168, %171 : vector<5x5xf32>
    %173 = math.exp %172 : vector<5x5xf32>
    %cst_79 = arith.constant dense<0.000000e+00> : vector<5xf32>
    %174 = vector.multi_reduction <add>, %173, %cst_79 [1] : vector<5x5xf32> to vector<5xf32>
    %175 = vector.shape_cast %174 : vector<5xf32> to vector<5x1xf32>
    %176 = vector.broadcast %175 : vector<5x1xf32> to vector<5x5xf32>
    %177 = arith.divf %173, %176 : vector<5x5xf32>
    %cst_80 = arith.constant dense<0.000000e+00> : vector<5x8xf32>
    %178 = tpu.matmul %177, %165, %cst_80 {dimension_numbers = #tpu.dot_dimension_numbers<[1], [0], [0], [1], [0, 0, 1, 1], [], []>} : vector<5x5xf32>, vector<5x8xf32>, vector<5x8xf32> -> vector<5x8xf32>
    %179 = vector.extract_strided_slice %49 {offsets = [16, 0], sizes = [8, 32], strides = [1, 1]} : vector<32x32xf32> to vector<8x32xf32>
    %cst_81 = arith.constant dense<0.000000e+00> : vector<5x32xf32>
    %180 = tpu.matmul %178, %179, %cst_81 {dimension_numbers = #tpu.dot_dimension_numbers<[1], [0], [0], [1], [0, 0, 1, 1], [], []>} : vector<5x8xf32>, vector<8x32xf32>, vector<5x32xf32> -> vector<5x32xf32>
    %181 = arith.addf %162, %180 : vector<5x32xf32>
    %182 = vector.extract_strided_slice %47 {offsets = [5, 24], sizes = [5, 8], strides = [1, 1]} : vector<10x96xf32> to vector<5x8xf32>
    %183 = vector.extract_strided_slice %47 {offsets = [5, 56], sizes = [5, 8], strides = [1, 1]} : vector<10x96xf32> to vector<5x8xf32>
    %184 = vector.extract_strided_slice %47 {offsets = [5, 88], sizes = [5, 8], strides = [1, 1]} : vector<10x96xf32> to vector<5x8xf32>
    %cst_82 = arith.constant dense<0.000000e+00> : vector<5x5xf32>
    %185 = tpu.matmul %182, %183, %cst_82 {dimension_numbers = #tpu.dot_dimension_numbers<[1], [1], [0], [0], [0, 0, 1, 0], [], []>} : vector<5x8xf32>, vector<5x8xf32>, vector<5x5xf32> -> vector<5x5xf32>
    %cst_83 = arith.constant 0.353553385 : f32
    %186 = vector.broadcast %cst_83 : f32 to vector<5x5xf32>
    %187 = arith.mulf %185, %186 : vector<5x5xf32>
    %cst_84 = arith.constant dense<0xFF800000> : vector<5xf32>
    %188 = vector.multi_reduction <maximumf>, %187, %cst_84 [1] : vector<5x5xf32> to vector<5xf32>
    %189 = vector.shape_cast %188 : vector<5xf32> to vector<5x1xf32>
    %190 = vector.broadcast %189 : vector<5x1xf32> to vector<5x5xf32>
    %191 = arith.subf %187, %190 : vector<5x5xf32>
    %192 = math.exp %191 : vector<5x5xf32>
    %cst_85 = arith.constant dense<0.000000e+00> : vector<5xf32>
    %193 = vector.multi_reduction <add>, %192, %cst_85 [1] : vector<5x5xf32> to vector<5xf32>
    %194 = vector.shape_cast %193 : vector<5xf32> to vector<5x1xf32>
    %195 = vector.broadcast %194 : vector<5x1xf32> to vector<5x5xf32>
    %196 = arith.divf %192, %195 : vector<5x5xf32>
    %cst_86 = arith.constant dense<0.000000e+00> : vector<5x8xf32>
    %197 = tpu.matmul %196, %184, %cst_86 {dimension_numbers = #tpu.dot_dimension_numbers<[1], [0], [0], [1], [0, 0, 1, 1], [], []>} : vector<5x5xf32>, vector<5x8xf32>, vector<5x8xf32> -> vector<5x8xf32>
    %198 = vector.extract_strided_slice %49 {offsets = [24, 0], sizes = [8, 32], strides = [1, 1]} : vector<32x32xf32> to vector<8x32xf32>
    %cst_87 = arith.constant dense<0.000000e+00> : vector<5x32xf32>
    %199 = tpu.matmul %197, %198, %cst_87 {dimension_numbers = #tpu.dot_dimension_numbers<[1], [0], [0], [1], [0, 0, 1, 1], [], []>} : vector<5x8xf32>, vector<8x32xf32>, vector<5x32xf32> -> vector<5x32xf32>
    %200 = arith.addf %181, %199 : vector<5x32xf32>
    %c5_88 = arith.constant 5 : index
    %c0_89 = arith.constant 0 : index
    %201 = vector.load %arg22[%c5_88, %c0_89] : memref<10x32xf32, #tpu.memory_space<vmem>>, vector<5x32xf32>
    tpu.vector_store %arg22[%c5_88, %c0_89], %200 {strides = array<i32>} : memref<10x32xf32, #tpu.memory_space<vmem>>, vector<5x32xf32>,
    %c0_90 = arith.constant 0 : index
    %c0_91 = arith.constant 0 : index
    %202 = vector.load %arg22[%c0_90, %c0_91] : memref<10x32xf32, #tpu.memory_space<vmem>>, vector<10x32xf32>
    %203 = arith.addf %19, %202 : vector<10x32xf32>
    %c0_92 = arith.constant 0 : index
    %c0_93 = arith.constant 0 : index
    %204 = vector.load %arg10[%c0_92, %c0_93] : memref<2x32xf32, #tpu.memory_space<vmem>>, vector<1x32xf32>
    %205 = vector.broadcast %204 : vector<1x32xf32> to vector<10x32xf32>
    %206 = arith.addf %203, %205 : vector<10x32xf32>
    %c0_94 = arith.constant 0 : index
    %c0_95 = arith.constant 0 : index
    %207 = vector.load %arg11[%c0_94, %c0_95] : memref<2x32xf32, #tpu.memory_space<vmem>>, vector<1x32xf32>
    %c0_96 = arith.constant 0 : index
    %c0_97 = arith.constant 0 : index
    %208 = vector.load %arg12[%c0_96, %c0_97] : memref<2x32xf32, #tpu.memory_space<vmem>>, vector<1x32xf32>
    %cst_98 = arith.constant dense<0.000000e+00> : vector<10xf32>
    %209 = vector.multi_reduction <add>, %206, %cst_98 [1] : vector<10x32xf32> to vector<10xf32>
    %210 = vector.shape_cast %209 : vector<10xf32> to vector<10x1xf32>
    %cst_99 = arith.constant 3.200000e+01 : f32
    %211 = vector.broadcast %cst_99 : f32 to vector<10x1xf32>
    %212 = arith.divf %210, %211 : vector<10x1xf32>
    %213 = vector.broadcast %212 : vector<10x1xf32> to vector<10x32xf32>
    %214 = arith.subf %206, %213 : vector<10x32xf32>
    %215 = arith.mulf %214, %214 : vector<10x32xf32>
    %cst_100 = arith.constant dense<0.000000e+00> : vector<10xf32>
    %216 = vector.multi_reduction <add>, %215, %cst_100 [1] : vector<10x32xf32> to vector<10xf32>
    %217 = vector.shape_cast %216 : vector<10xf32> to vector<10x1xf32>
    %cst_101 = arith.constant 3.200000e+01 : f32
    %218 = vector.broadcast %cst_101 : f32 to vector<10x1xf32>
    %219 = arith.divf %217, %218 : vector<10x1xf32>
    %cst_102 = arith.constant 9.99999997E-7 : f32
    %220 = vector.broadcast %cst_102 : f32 to vector<10x1xf32>
    %221 = arith.addf %219, %220 : vector<10x1xf32>
    %222 = math.rsqrt %221 : vector<10x1xf32>
    %223 = vector.broadcast %222 : vector<10x1xf32> to vector<10x32xf32>
    %224 = arith.mulf %214, %223 : vector<10x32xf32>
    %225 = vector.broadcast %207 : vector<1x32xf32> to vector<10x32xf32>
    %226 = arith.mulf %224, %225 : vector<10x32xf32>
    %227 = vector.broadcast %208 : vector<1x32xf32> to vector<10x32xf32>
    %228 = arith.addf %226, %227 : vector<10x32xf32>
    %c0_103 = arith.constant 0 : index
    %c0_104 = arith.constant 0 : index
    %c0_105 = arith.constant 0 : index
    %229 = vector.load %arg13[%c0_103, %c0_104, %c0_105] : memref<2x32x64xf32, #tpu.memory_space<vmem>>, vector<1x32x64xf32>
    %230 = vector.shape_cast %229 : vector<1x32x64xf32> to vector<32x64xf32>
    %cst_106 = arith.constant dense<0.000000e+00> : vector<10x64xf32>
    %231 = tpu.matmul %228, %230, %cst_106 {dimension_numbers = #tpu.dot_dimension_numbers<[1], [0], [0], [1], [0, 0, 1, 1], [], []>} : vector<10x32xf32>, vector<32x64xf32>, vector<10x64xf32> -> vector<10x64xf32>
    %c0_107 = arith.constant 0 : index
    %c0_108 = arith.constant 0 : index
    %232 = vector.load %arg14[%c0_107, %c0_108] : memref<2x64xf32, #tpu.memory_space<vmem>>, vector<1x64xf32>
    %233 = vector.broadcast %232 : vector<1x64xf32> to vector<10x64xf32>
    %234 = arith.addf %231, %233 : vector<10x64xf32>
    %cst_109 = arith.constant 5.000000e-01 : f32
    %235 = vector.broadcast %cst_109 : f32 to vector<10x64xf32>
    %236 = arith.mulf %235, %234 : vector<10x64xf32>
    %cst_110 = arith.constant 0.707106769 : f32
    %237 = vector.broadcast %cst_110 : f32 to vector<10x64xf32>
    %238 = arith.mulf %234, %237 : vector<10x64xf32>
    %239 = math.absf %238 : vector<10x64xf32>
    %cst_111 = arith.constant 0.327591091 : f32
    %240 = vector.broadcast %cst_111 : f32 to vector<10x64xf32>
    %241 = arith.mulf %240, %239 : vector<10x64xf32>
    %cst_112 = arith.constant 1.000000e+00 : f32
    %242 = vector.broadcast %cst_112 : f32 to vector<10x64xf32>
    %243 = arith.addf %242, %241 : vector<10x64xf32>
    %cst_113 = arith.constant 1.000000e+00 : f32
    %244 = vector.broadcast %cst_113 : f32 to vector<10x64xf32>
    %245 = arith.divf %244, %243 : vector<10x64xf32>
    %cst_114 = arith.constant 1.06140542 : f32
    %246 = vector.broadcast %cst_114 : f32 to vector<10x64xf32>
    %247 = arith.mulf %245, %246 : vector<10x64xf32>
    %cst_115 = arith.constant -1.45315206 : f32
    %248 = vector.broadcast %cst_115 : f32 to vector<10x64xf32>
    %249 = arith.addf %248, %247 : vector<10x64xf32>
    %250 = arith.mulf %245, %249 : vector<10x64xf32>
    %cst_116 = arith.constant 1.42141378 : f32
    %251 = vector.broadcast %cst_116 : f32 to vector<10x64xf32>
    %252 = arith.addf %251, %250 : vector<10x64xf32>
    %253 = arith.mulf %245, %252 : vector<10x64xf32>
    %cst_117 = arith.constant -0.284496725 : f32
    %254 = vector.broadcast %cst_117 : f32 to vector<10x64xf32>
    %255 = arith.addf %254, %253 : vector<10x64xf32>
    %256 = arith.mulf %245, %255 : vector<10x64xf32>
    %cst_118 = arith.constant 0.254829586 : f32
    %257 = vector.broadcast %cst_118 : f32 to vector<10x64xf32>
    %258 = arith.addf %257, %256 : vector<10x64xf32>
    %259 = arith.mulf %245, %258 : vector<10x64xf32>
    %cst_119 = arith.constant 0.000000e+00 : f32
    %260 = vector.broadcast %cst_119 : f32 to vector<10x64xf32>
    %261 = arith.subf %260, %238 : vector<10x64xf32>
    %262 = arith.mulf %261, %238 : vector<10x64xf32>
    %263 = math.exp %262 : vector<10x64xf32>
    %264 = arith.mulf %259, %263 : vector<10x64xf32>
    %cst_120 = arith.constant 1.000000e+00 : f32
    %265 = vector.broadcast %cst_120 : f32 to vector<10x64xf32>
    %266 = arith.subf %265, %264 : vector<10x64xf32>
    %cst_121 = arith.constant 0.000000e+00 : f32
    %267 = vector.broadcast %cst_121 : f32 to vector<10x64xf32>
    %268 = arith.cmpf oge, %238, %267 : vector<10x64xf32>
    %cst_122 = arith.constant 0.000000e+00 : f32
    %269 = vector.broadcast %cst_122 : f32 to vector<10x64xf32>
    %270 = arith.subf %269, %266 : vector<10x64xf32>
    %271 = arith.select %268, %266, %270 : vector<10x64xi1>, vector<10x64xf32>
    %cst_123 = arith.constant 1.000000e+00 : f32
    %272 = vector.broadcast %cst_123 : f32 to vector<10x64xf32>
    %273 = arith.addf %272, %271 : vector<10x64xf32>
    %274 = arith.mulf %236, %273 : vector<10x64xf32>
    %c0_124 = arith.constant 0 : index
    %c0_125 = arith.constant 0 : index
    %c0_126 = arith.constant 0 : index
    %275 = vector.load %arg15[%c0_124, %c0_125, %c0_126] : memref<2x64x32xf32, #tpu.memory_space<vmem>>, vector<1x64x32xf32>
    %276 = vector.shape_cast %275 : vector<1x64x32xf32> to vector<64x32xf32>
    %cst_127 = arith.constant dense<0.000000e+00> : vector<10x32xf32>
    %277 = tpu.matmul %274, %276, %cst_127 {dimension_numbers = #tpu.dot_dimension_numbers<[1], [0], [0], [1], [0, 0, 1, 1], [], []>} : vector<10x64xf32>, vector<64x32xf32>, vector<10x32xf32> -> vector<10x32xf32>
    %278 = arith.addf %206, %277 : vector<10x32xf32>
    %c0_128 = arith.constant 0 : index
    %c0_129 = arith.constant 0 : index
    %279 = vector.load %arg16[%c0_128, %c0_129] : memref<2x32xf32, #tpu.memory_space<vmem>>, vector<1x32xf32>
    %280 = vector.broadcast %279 : vector<1x32xf32> to vector<10x32xf32>
    %281 = arith.addf %278, %280 : vector<10x32xf32>
    %c1_130 = arith.constant 1 : index
    %c0_131 = arith.constant 0 : index
    %282 = vector.load %arg5[%c1_130, %c0_131] : memref<2x32xf32, #tpu.memory_space<vmem>>, vector<1x32xf32>
    %c1_132 = arith.constant 1 : index
    %c0_133 = arith.constant 0 : index
    %283 = vector.load %arg6[%c1_132, %c0_133] : memref<2x32xf32, #tpu.memory_space<vmem>>, vector<1x32xf32>
    %cst_134 = arith.constant dense<0.000000e+00> : vector<10xf32>
    %284 = vector.multi_reduction <add>, %281, %cst_134 [1] : vector<10x32xf32> to vector<10xf32>
    %285 = vector.shape_cast %284 : vector<10xf32> to vector<10x1xf32>
    %cst_135 = arith.constant 3.200000e+01 : f32
    %286 = vector.broadcast %cst_135 : f32 to vector<10x1xf32>
    %287 = arith.divf %285, %286 : vector<10x1xf32>
    %288 = vector.broadcast %287 : vector<10x1xf32> to vector<10x32xf32>
    %289 = arith.subf %281, %288 : vector<10x32xf32>
    %290 = arith.mulf %289, %289 : vector<10x32xf32>
    %cst_136 = arith.constant dense<0.000000e+00> : vector<10xf32>
    %291 = vector.multi_reduction <add>, %290, %cst_136 [1] : vector<10x32xf32> to vector<10xf32>
    %292 = vector.shape_cast %291 : vector<10xf32> to vector<10x1xf32>
    %cst_137 = arith.constant 3.200000e+01 : f32
    %293 = vector.broadcast %cst_137 : f32 to vector<10x1xf32>
    %294 = arith.divf %292, %293 : vector<10x1xf32>
    %cst_138 = arith.constant 9.99999997E-7 : f32
    %295 = vector.broadcast %cst_138 : f32 to vector<10x1xf32>
    %296 = arith.addf %294, %295 : vector<10x1xf32>
    %297 = math.rsqrt %296 : vector<10x1xf32>
    %298 = vector.broadcast %297 : vector<10x1xf32> to vector<10x32xf32>
    %299 = arith.mulf %289, %298 : vector<10x32xf32>
    %300 = vector.broadcast %282 : vector<1x32xf32> to vector<10x32xf32>
    %301 = arith.mulf %299, %300 : vector<10x32xf32>
    %302 = vector.broadcast %283 : vector<1x32xf32> to vector<10x32xf32>
    %303 = arith.addf %301, %302 : vector<10x32xf32>
    %c1_139 = arith.constant 1 : index
    %c0_140 = arith.constant 0 : index
    %c0_141 = arith.constant 0 : index
    %304 = vector.load %arg7[%c1_139, %c0_140, %c0_141] : memref<2x32x96xf32, #tpu.memory_space<vmem>>, vector<1x32x96xf32>
    %305 = vector.shape_cast %304 : vector<1x32x96xf32> to vector<32x96xf32>
    %cst_142 = arith.constant dense<0.000000e+00> : vector<10x96xf32>
    %306 = tpu.matmul %303, %305, %cst_142 {dimension_numbers = #tpu.dot_dimension_numbers<[1], [0], [0], [1], [0, 0, 1, 1], [], []>} : vector<10x32xf32>, vector<32x96xf32>, vector<10x96xf32> -> vector<10x96xf32>
    %c1_143 = arith.constant 1 : index
    %c0_144 = arith.constant 0 : index
    %307 = vector.load %arg8[%c1_143, %c0_144] : memref<2x96xf32, #tpu.memory_space<vmem>>, vector<1x96xf32>
    %308 = vector.broadcast %307 : vector<1x96xf32> to vector<10x96xf32>
    %309 = arith.addf %306, %308 : vector<10x96xf32>
    %c1_145 = arith.constant 1 : index
    %c0_146 = arith.constant 0 : index
    %c0_147 = arith.constant 0 : index
    %310 = vector.load %arg9[%c1_145, %c0_146, %c0_147] : memref<2x32x32xf32, #tpu.memory_space<vmem>>, vector<1x32x32xf32>
    %311 = vector.shape_cast %310 : vector<1x32x32xf32> to vector<32x32xf32>
    %312 = vector.extract_strided_slice %309 {offsets = [0, 0], sizes = [5, 8], strides = [1, 1]} : vector<10x96xf32> to vector<5x8xf32>
    %313 = vector.extract_strided_slice %309 {offsets = [0, 32], sizes = [5, 8], strides = [1, 1]} : vector<10x96xf32> to vector<5x8xf32>
    %314 = vector.extract_strided_slice %309 {offsets = [0, 64], sizes = [5, 8], strides = [1, 1]} : vector<10x96xf32> to vector<5x8xf32>
    %cst_148 = arith.constant dense<0.000000e+00> : vector<5x5xf32>
    %315 = tpu.matmul %312, %313, %cst_148 {dimension_numbers = #tpu.dot_dimension_numbers<[1], [1], [0], [0], [0, 0, 1, 0], [], []>} : vector<5x8xf32>, vector<5x8xf32>, vector<5x5xf32> -> vector<5x5xf32>
    %cst_149 = arith.constant 0.353553385 : f32
    %316 = vector.broadcast %cst_149 : f32 to vector<5x5xf32>
    %317 = arith.mulf %315, %316 : vector<5x5xf32>
    %cst_150 = arith.constant dense<0xFF800000> : vector<5xf32>
    %318 = vector.multi_reduction <maximumf>, %317, %cst_150 [1] : vector<5x5xf32> to vector<5xf32>
    %319 = vector.shape_cast %318 : vector<5xf32> to vector<5x1xf32>
    %320 = vector.broadcast %319 : vector<5x1xf32> to vector<5x5xf32>
    %321 = arith.subf %317, %320 : vector<5x5xf32>
    %322 = math.exp %321 : vector<5x5xf32>
    %cst_151 = arith.constant dense<0.000000e+00> : vector<5xf32>
    %323 = vector.multi_reduction <add>, %322, %cst_151 [1] : vector<5x5xf32> to vector<5xf32>
    %324 = vector.shape_cast %323 : vector<5xf32> to vector<5x1xf32>
    %325 = vector.broadcast %324 : vector<5x1xf32> to vector<5x5xf32>
    %326 = arith.divf %322, %325 : vector<5x5xf32>
    %cst_152 = arith.constant dense<0.000000e+00> : vector<5x8xf32>
    %327 = tpu.matmul %326, %314, %cst_152 {dimension_numbers = #tpu.dot_dimension_numbers<[1], [0], [0], [1], [0, 0, 1, 1], [], []>} : vector<5x5xf32>, vector<5x8xf32>, vector<5x8xf32> -> vector<5x8xf32>
    %328 = vector.extract_strided_slice %311 {offsets = [0, 0], sizes = [8, 32], strides = [1, 1]} : vector<32x32xf32> to vector<8x32xf32>
    %cst_153 = arith.constant dense<0.000000e+00> : vector<5x32xf32>
    %329 = tpu.matmul %327, %328, %cst_153 {dimension_numbers = #tpu.dot_dimension_numbers<[1], [0], [0], [1], [0, 0, 1, 1], [], []>} : vector<5x8xf32>, vector<8x32xf32>, vector<5x32xf32> -> vector<5x32xf32>
    %330 = vector.extract_strided_slice %309 {offsets = [0, 8], sizes = [5, 8], strides = [1, 1]} : vector<10x96xf32> to vector<5x8xf32>
    %331 = vector.extract_strided_slice %309 {offsets = [0, 40], sizes = [5, 8], strides = [1, 1]} : vector<10x96xf32> to vector<5x8xf32>
    %332 = vector.extract_strided_slice %309 {offsets = [0, 72], sizes = [5, 8], strides = [1, 1]} : vector<10x96xf32> to vector<5x8xf32>
    %cst_154 = arith.constant dense<0.000000e+00> : vector<5x5xf32>
    %333 = tpu.matmul %330, %331, %cst_154 {dimension_numbers = #tpu.dot_dimension_numbers<[1], [1], [0], [0], [0, 0, 1, 0], [], []>} : vector<5x8xf32>, vector<5x8xf32>, vector<5x5xf32> -> vector<5x5xf32>
    %cst_155 = arith.constant 0.353553385 : f32
    %334 = vector.broadcast %cst_155 : f32 to vector<5x5xf32>
    %335 = arith.mulf %333, %334 : vector<5x5xf32>
    %cst_156 = arith.constant dense<0xFF800000> : vector<5xf32>
    %336 = vector.multi_reduction <maximumf>, %335, %cst_156 [1] : vector<5x5xf32> to vector<5xf32>
    %337 = vector.shape_cast %336 : vector<5xf32> to vector<5x1xf32>
    %338 = vector.broadcast %337 : vector<5x1xf32> to vector<5x5xf32>
    %339 = arith.subf %335, %338 : vector<5x5xf32>
    %340 = math.exp %339 : vector<5x5xf32>
    %cst_157 = arith.constant dense<0.000000e+00> : vector<5xf32>
    %341 = vector.multi_reduction <add>, %340, %cst_157 [1] : vector<5x5xf32> to vector<5xf32>
    %342 = vector.shape_cast %341 : vector<5xf32> to vector<5x1xf32>
    %343 = vector.broadcast %342 : vector<5x1xf32> to vector<5x5xf32>
    %344 = arith.divf %340, %343 : vector<5x5xf32>
    %cst_158 = arith.constant dense<0.000000e+00> : vector<5x8xf32>
    %345 = tpu.matmul %344, %332, %cst_158 {dimension_numbers = #tpu.dot_dimension_numbers<[1], [0], [0], [1], [0, 0, 1, 1], [], []>} : vector<5x5xf32>, vector<5x8xf32>, vector<5x8xf32> -> vector<5x8xf32>
    %346 = vector.extract_strided_slice %311 {offsets = [8, 0], sizes = [8, 32], strides = [1, 1]} : vector<32x32xf32> to vector<8x32xf32>
    %cst_159 = arith.constant dense<0.000000e+00> : vector<5x32xf32>
    %347 = tpu.matmul %345, %346, %cst_159 {dimension_numbers = #tpu.dot_dimension_numbers<[1], [0], [0], [1], [0, 0, 1, 1], [], []>} : vector<5x8xf32>, vector<8x32xf32>, vector<5x32xf32> -> vector<5x32xf32>
    %348 = arith.addf %329, %347 : vector<5x32xf32>
    %349 = vector.extract_strided_slice %309 {offsets = [0, 16], sizes = [5, 8], strides = [1, 1]} : vector<10x96xf32> to vector<5x8xf32>
    %350 = vector.extract_strided_slice %309 {offsets = [0, 48], sizes = [5, 8], strides = [1, 1]} : vector<10x96xf32> to vector<5x8xf32>
    %351 = vector.extract_strided_slice %309 {offsets = [0, 80], sizes = [5, 8], strides = [1, 1]} : vector<10x96xf32> to vector<5x8xf32>
    %cst_160 = arith.constant dense<0.000000e+00> : vector<5x5xf32>
    %352 = tpu.matmul %349, %350, %cst_160 {dimension_numbers = #tpu.dot_dimension_numbers<[1], [1], [0], [0], [0, 0, 1, 0], [], []>} : vector<5x8xf32>, vector<5x8xf32>, vector<5x5xf32> -> vector<5x5xf32>
    %cst_161 = arith.constant 0.353553385 : f32
    %353 = vector.broadcast %cst_161 : f32 to vector<5x5xf32>
    %354 = arith.mulf %352, %353 : vector<5x5xf32>
    %cst_162 = arith.constant dense<0xFF800000> : vector<5xf32>
    %355 = vector.multi_reduction <maximumf>, %354, %cst_162 [1] : vector<5x5xf32> to vector<5xf32>
    %356 = vector.shape_cast %355 : vector<5xf32> to vector<5x1xf32>
    %357 = vector.broadcast %356 : vector<5x1xf32> to vector<5x5xf32>
    %358 = arith.subf %354, %357 : vector<5x5xf32>
    %359 = math.exp %358 : vector<5x5xf32>
    %cst_163 = arith.constant dense<0.000000e+00> : vector<5xf32>
    %360 = vector.multi_reduction <add>, %359, %cst_163 [1] : vector<5x5xf32> to vector<5xf32>
    %361 = vector.shape_cast %360 : vector<5xf32> to vector<5x1xf32>
    %362 = vector.broadcast %361 : vector<5x1xf32> to vector<5x5xf32>
    %363 = arith.divf %359, %362 : vector<5x5xf32>
    %cst_164 = arith.constant dense<0.000000e+00> : vector<5x8xf32>
    %364 = tpu.matmul %363, %351, %cst_164 {dimension_numbers = #tpu.dot_dimension_numbers<[1], [0], [0], [1], [0, 0, 1, 1], [], []>} : vector<5x5xf32>, vector<5x8xf32>, vector<5x8xf32> -> vector<5x8xf32>
    %365 = vector.extract_strided_slice %311 {offsets = [16, 0], sizes = [8, 32], strides = [1, 1]} : vector<32x32xf32> to vector<8x32xf32>
    %cst_165 = arith.constant dense<0.000000e+00> : vector<5x32xf32>
    %366 = tpu.matmul %364, %365, %cst_165 {dimension_numbers = #tpu.dot_dimension_numbers<[1], [0], [0], [1], [0, 0, 1, 1], [], []>} : vector<5x8xf32>, vector<8x32xf32>, vector<5x32xf32> -> vector<5x32xf32>
    %367 = arith.addf %348, %366 : vector<5x32xf32>
    %368 = vector.extract_strided_slice %309 {offsets = [0, 24], sizes = [5, 8], strides = [1, 1]} : vector<10x96xf32> to vector<5x8xf32>
    %369 = vector.extract_strided_slice %309 {offsets = [0, 56], sizes = [5, 8], strides = [1, 1]} : vector<10x96xf32> to vector<5x8xf32>
    %370 = vector.extract_strided_slice %309 {offsets = [0, 88], sizes = [5, 8], strides = [1, 1]} : vector<10x96xf32> to vector<5x8xf32>
    %cst_166 = arith.constant dense<0.000000e+00> : vector<5x5xf32>
    %371 = tpu.matmul %368, %369, %cst_166 {dimension_numbers = #tpu.dot_dimension_numbers<[1], [1], [0], [0], [0, 0, 1, 0], [], []>} : vector<5x8xf32>, vector<5x8xf32>, vector<5x5xf32> -> vector<5x5xf32>
    %cst_167 = arith.constant 0.353553385 : f32
    %372 = vector.broadcast %cst_167 : f32 to vector<5x5xf32>
    %373 = arith.mulf %371, %372 : vector<5x5xf32>
    %cst_168 = arith.constant dense<0xFF800000> : vector<5xf32>
    %374 = vector.multi_reduction <maximumf>, %373, %cst_168 [1] : vector<5x5xf32> to vector<5xf32>
    %375 = vector.shape_cast %374 : vector<5xf32> to vector<5x1xf32>
    %376 = vector.broadcast %375 : vector<5x1xf32> to vector<5x5xf32>
    %377 = arith.subf %373, %376 : vector<5x5xf32>
    %378 = math.exp %377 : vector<5x5xf32>
    %cst_169 = arith.constant dense<0.000000e+00> : vector<5xf32>
    %379 = vector.multi_reduction <add>, %378, %cst_169 [1] : vector<5x5xf32> to vector<5xf32>
    %380 = vector.shape_cast %379 : vector<5xf32> to vector<5x1xf32>
    %381 = vector.broadcast %380 : vector<5x1xf32> to vector<5x5xf32>
    %382 = arith.divf %378, %381 : vector<5x5xf32>
    %cst_170 = arith.constant dense<0.000000e+00> : vector<5x8xf32>
    %383 = tpu.matmul %382, %370, %cst_170 {dimension_numbers = #tpu.dot_dimension_numbers<[1], [0], [0], [1], [0, 0, 1, 1], [], []>} : vector<5x5xf32>, vector<5x8xf32>, vector<5x8xf32> -> vector<5x8xf32>
    %384 = vector.extract_strided_slice %311 {offsets = [24, 0], sizes = [8, 32], strides = [1, 1]} : vector<32x32xf32> to vector<8x32xf32>
    %cst_171 = arith.constant dense<0.000000e+00> : vector<5x32xf32>
    %385 = tpu.matmul %383, %384, %cst_171 {dimension_numbers = #tpu.dot_dimension_numbers<[1], [0], [0], [1], [0, 0, 1, 1], [], []>} : vector<5x8xf32>, vector<8x32xf32>, vector<5x32xf32> -> vector<5x32xf32>
    %386 = arith.addf %367, %385 : vector<5x32xf32>
    %c0_172 = arith.constant 0 : index
    %c0_173 = arith.constant 0 : index
    %387 = vector.load %arg22[%c0_172, %c0_173] : memref<10x32xf32, #tpu.memory_space<vmem>>, vector<5x32xf32>
    tpu.vector_store %arg22[%c0_172, %c0_173], %386 {strides = array<i32>} : memref<10x32xf32, #tpu.memory_space<vmem>>, vector<5x32xf32>,
    %388 = vector.extract_strided_slice %309 {offsets = [5, 0], sizes = [5, 8], strides = [1, 1]} : vector<10x96xf32> to vector<5x8xf32>
    %389 = vector.extract_strided_slice %309 {offsets = [5, 32], sizes = [5, 8], strides = [1, 1]} : vector<10x96xf32> to vector<5x8xf32>
    %390 = vector.extract_strided_slice %309 {offsets = [5, 64], sizes = [5, 8], strides = [1, 1]} : vector<10x96xf32> to vector<5x8xf32>
    %cst_174 = arith.constant dense<0.000000e+00> : vector<5x5xf32>
    %391 = tpu.matmul %388, %389, %cst_174 {dimension_numbers = #tpu.dot_dimension_numbers<[1], [1], [0], [0], [0, 0, 1, 0], [], []>} : vector<5x8xf32>, vector<5x8xf32>, vector<5x5xf32> -> vector<5x5xf32>
    %cst_175 = arith.constant 0.353553385 : f32
    %392 = vector.broadcast %cst_175 : f32 to vector<5x5xf32>
    %393 = arith.mulf %391, %392 : vector<5x5xf32>
    %cst_176 = arith.constant dense<0xFF800000> : vector<5xf32>
    %394 = vector.multi_reduction <maximumf>, %393, %cst_176 [1] : vector<5x5xf32> to vector<5xf32>
    %395 = vector.shape_cast %394 : vector<5xf32> to vector<5x1xf32>
    %396 = vector.broadcast %395 : vector<5x1xf32> to vector<5x5xf32>
    %397 = arith.subf %393, %396 : vector<5x5xf32>
    %398 = math.exp %397 : vector<5x5xf32>
    %cst_177 = arith.constant dense<0.000000e+00> : vector<5xf32>
    %399 = vector.multi_reduction <add>, %398, %cst_177 [1] : vector<5x5xf32> to vector<5xf32>
    %400 = vector.shape_cast %399 : vector<5xf32> to vector<5x1xf32>
    %401 = vector.broadcast %400 : vector<5x1xf32> to vector<5x5xf32>
    %402 = arith.divf %398, %401 : vector<5x5xf32>
    %cst_178 = arith.constant dense<0.000000e+00> : vector<5x8xf32>
    %403 = tpu.matmul %402, %390, %cst_178 {dimension_numbers = #tpu.dot_dimension_numbers<[1], [0], [0], [1], [0, 0, 1, 1], [], []>} : vector<5x5xf32>, vector<5x8xf32>, vector<5x8xf32> -> vector<5x8xf32>
    %404 = vector.extract_strided_slice %311 {offsets = [0, 0], sizes = [8, 32], strides = [1, 1]} : vector<32x32xf32> to vector<8x32xf32>
    %cst_179 = arith.constant dense<0.000000e+00> : vector<5x32xf32>
    %405 = tpu.matmul %403, %404, %cst_179 {dimension_numbers = #tpu.dot_dimension_numbers<[1], [0], [0], [1], [0, 0, 1, 1], [], []>} : vector<5x8xf32>, vector<8x32xf32>, vector<5x32xf32> -> vector<5x32xf32>
    %406 = vector.extract_strided_slice %309 {offsets = [5, 8], sizes = [5, 8], strides = [1, 1]} : vector<10x96xf32> to vector<5x8xf32>
    %407 = vector.extract_strided_slice %309 {offsets = [5, 40], sizes = [5, 8], strides = [1, 1]} : vector<10x96xf32> to vector<5x8xf32>
    %408 = vector.extract_strided_slice %309 {offsets = [5, 72], sizes = [5, 8], strides = [1, 1]} : vector<10x96xf32> to vector<5x8xf32>
    %cst_180 = arith.constant dense<0.000000e+00> : vector<5x5xf32>
    %409 = tpu.matmul %406, %407, %cst_180 {dimension_numbers = #tpu.dot_dimension_numbers<[1], [1], [0], [0], [0, 0, 1, 0], [], []>} : vector<5x8xf32>, vector<5x8xf32>, vector<5x5xf32> -> vector<5x5xf32>
    %cst_181 = arith.constant 0.353553385 : f32
    %410 = vector.broadcast %cst_181 : f32 to vector<5x5xf32>
    %411 = arith.mulf %409, %410 : vector<5x5xf32>
    %cst_182 = arith.constant dense<0xFF800000> : vector<5xf32>
    %412 = vector.multi_reduction <maximumf>, %411, %cst_182 [1] : vector<5x5xf32> to vector<5xf32>
    %413 = vector.shape_cast %412 : vector<5xf32> to vector<5x1xf32>
    %414 = vector.broadcast %413 : vector<5x1xf32> to vector<5x5xf32>
    %415 = arith.subf %411, %414 : vector<5x5xf32>
    %416 = math.exp %415 : vector<5x5xf32>
    %cst_183 = arith.constant dense<0.000000e+00> : vector<5xf32>
    %417 = vector.multi_reduction <add>, %416, %cst_183 [1] : vector<5x5xf32> to vector<5xf32>
    %418 = vector.shape_cast %417 : vector<5xf32> to vector<5x1xf32>
    %419 = vector.broadcast %418 : vector<5x1xf32> to vector<5x5xf32>
    %420 = arith.divf %416, %419 : vector<5x5xf32>
    %cst_184 = arith.constant dense<0.000000e+00> : vector<5x8xf32>
    %421 = tpu.matmul %420, %408, %cst_184 {dimension_numbers = #tpu.dot_dimension_numbers<[1], [0], [0], [1], [0, 0, 1, 1], [], []>} : vector<5x5xf32>, vector<5x8xf32>, vector<5x8xf32> -> vector<5x8xf32>
    %422 = vector.extract_strided_slice %311 {offsets = [8, 0], sizes = [8, 32], strides = [1, 1]} : vector<32x32xf32> to vector<8x32xf32>
    %cst_185 = arith.constant dense<0.000000e+00> : vector<5x32xf32>
    %423 = tpu.matmul %421, %422, %cst_185 {dimension_numbers = #tpu.dot_dimension_numbers<[1], [0], [0], [1], [0, 0, 1, 1], [], []>} : vector<5x8xf32>, vector<8x32xf32>, vector<5x32xf32> -> vector<5x32xf32>
    %424 = arith.addf %405, %423 : vector<5x32xf32>
    %425 = vector.extract_strided_slice %309 {offsets = [5, 16], sizes = [5, 8], strides = [1, 1]} : vector<10x96xf32> to vector<5x8xf32>
    %426 = vector.extract_strided_slice %309 {offsets = [5, 48], sizes = [5, 8], strides = [1, 1]} : vector<10x96xf32> to vector<5x8xf32>
    %427 = vector.extract_strided_slice %309 {offsets = [5, 80], sizes = [5, 8], strides = [1, 1]} : vector<10x96xf32> to vector<5x8xf32>
    %cst_186 = arith.constant dense<0.000000e+00> : vector<5x5xf32>
    %428 = tpu.matmul %425, %426, %cst_186 {dimension_numbers = #tpu.dot_dimension_numbers<[1], [1], [0], [0], [0, 0, 1, 0], [], []>} : vector<5x8xf32>, vector<5x8xf32>, vector<5x5xf32> -> vector<5x5xf32>
    %cst_187 = arith.constant 0.353553385 : f32
    %429 = vector.broadcast %cst_187 : f32 to vector<5x5xf32>
    %430 = arith.mulf %428, %429 : vector<5x5xf32>
    %cst_188 = arith.constant dense<0xFF800000> : vector<5xf32>
    %431 = vector.multi_reduction <maximumf>, %430, %cst_188 [1] : vector<5x5xf32> to vector<5xf32>
    %432 = vector.shape_cast %431 : vector<5xf32> to vector<5x1xf32>
    %433 = vector.broadcast %432 : vector<5x1xf32> to vector<5x5xf32>
    %434 = arith.subf %430, %433 : vector<5x5xf32>
    %435 = math.exp %434 : vector<5x5xf32>
    %cst_189 = arith.constant dense<0.000000e+00> : vector<5xf32>
    %436 = vector.multi_reduction <add>, %435, %cst_189 [1] : vector<5x5xf32> to vector<5xf32>
    %437 = vector.shape_cast %436 : vector<5xf32> to vector<5x1xf32>
    %438 = vector.broadcast %437 : vector<5x1xf32> to vector<5x5xf32>
    %439 = arith.divf %435, %438 : vector<5x5xf32>
    %cst_190 = arith.constant dense<0.000000e+00> : vector<5x8xf32>
    %440 = tpu.matmul %439, %427, %cst_190 {dimension_numbers = #tpu.dot_dimension_numbers<[1], [0], [0], [1], [0, 0, 1, 1], [], []>} : vector<5x5xf32>, vector<5x8xf32>, vector<5x8xf32> -> vector<5x8xf32>
    %441 = vector.extract_strided_slice %311 {offsets = [16, 0], sizes = [8, 32], strides = [1, 1]} : vector<32x32xf32> to vector<8x32xf32>
    %cst_191 = arith.constant dense<0.000000e+00> : vector<5x32xf32>
    %442 = tpu.matmul %440, %441, %cst_191 {dimension_numbers = #tpu.dot_dimension_numbers<[1], [0], [0], [1], [0, 0, 1, 1], [], []>} : vector<5x8xf32>, vector<8x32xf32>, vector<5x32xf32> -> vector<5x32xf32>
    %443 = arith.addf %424, %442 : vector<5x32xf32>
    %444 = vector.extract_strided_slice %309 {offsets = [5, 24], sizes = [5, 8], strides = [1, 1]} : vector<10x96xf32> to vector<5x8xf32>
    %445 = vector.extract_strided_slice %309 {offsets = [5, 56], sizes = [5, 8], strides = [1, 1]} : vector<10x96xf32> to vector<5x8xf32>
    %446 = vector.extract_strided_slice %309 {offsets = [5, 88], sizes = [5, 8], strides = [1, 1]} : vector<10x96xf32> to vector<5x8xf32>
    %cst_192 = arith.constant dense<0.000000e+00> : vector<5x5xf32>
    %447 = tpu.matmul %444, %445, %cst_192 {dimension_numbers = #tpu.dot_dimension_numbers<[1], [1], [0], [0], [0, 0, 1, 0], [], []>} : vector<5x8xf32>, vector<5x8xf32>, vector<5x5xf32> -> vector<5x5xf32>
    %cst_193 = arith.constant 0.353553385 : f32
    %448 = vector.broadcast %cst_193 : f32 to vector<5x5xf32>
    %449 = arith.mulf %447, %448 : vector<5x5xf32>
    %cst_194 = arith.constant dense<0xFF800000> : vector<5xf32>
    %450 = vector.multi_reduction <maximumf>, %449, %cst_194 [1] : vector<5x5xf32> to vector<5xf32>
    %451 = vector.shape_cast %450 : vector<5xf32> to vector<5x1xf32>
    %452 = vector.broadcast %451 : vector<5x1xf32> to vector<5x5xf32>
    %453 = arith.subf %449, %452 : vector<5x5xf32>
    %454 = math.exp %453 : vector<5x5xf32>
    %cst_195 = arith.constant dense<0.000000e+00> : vector<5xf32>
    %455 = vector.multi_reduction <add>, %454, %cst_195 [1] : vector<5x5xf32> to vector<5xf32>
    %456 = vector.shape_cast %455 : vector<5xf32> to vector<5x1xf32>
    %457 = vector.broadcast %456 : vector<5x1xf32> to vector<5x5xf32>
    %458 = arith.divf %454, %457 : vector<5x5xf32>
    %cst_196 = arith.constant dense<0.000000e+00> : vector<5x8xf32>
    %459 = tpu.matmul %458, %446, %cst_196 {dimension_numbers = #tpu.dot_dimension_numbers<[1], [0], [0], [1], [0, 0, 1, 1], [], []>} : vector<5x5xf32>, vector<5x8xf32>, vector<5x8xf32> -> vector<5x8xf32>
    %460 = vector.extract_strided_slice %311 {offsets = [24, 0], sizes = [8, 32], strides = [1, 1]} : vector<32x32xf32> to vector<8x32xf32>
    %cst_197 = arith.constant dense<0.000000e+00> : vector<5x32xf32>
    %461 = tpu.matmul %459, %460, %cst_197 {dimension_numbers = #tpu.dot_dimension_numbers<[1], [0], [0], [1], [0, 0, 1, 1], [], []>} : vector<5x8xf32>, vector<8x32xf32>, vector<5x32xf32> -> vector<5x32xf32>
    %462 = arith.addf %443, %461 : vector<5x32xf32>
    %c5_198 = arith.constant 5 : index
    %c0_199 = arith.constant 0 : index
    %463 = vector.load %arg22[%c5_198, %c0_199] : memref<10x32xf32, #tpu.memory_space<vmem>>, vector<5x32xf32>
    tpu.vector_store %arg22[%c5_198, %c0_199], %462 {strides = array<i32>} : memref<10x32xf32, #tpu.memory_space<vmem>>, vector<5x32xf32>,
    %c0_200 = arith.constant 0 : index
    %c0_201 = arith.constant 0 : index
    %464 = vector.load %arg22[%c0_200, %c0_201] : memref<10x32xf32, #tpu.memory_space<vmem>>, vector<10x32xf32>
    %465 = arith.addf %281, %464 : vector<10x32xf32>
    %c1_202 = arith.constant 1 : index
    %c0_203 = arith.constant 0 : index
    %466 = vector.load %arg10[%c1_202, %c0_203] : memref<2x32xf32, #tpu.memory_space<vmem>>, vector<1x32xf32>
    %467 = vector.broadcast %466 : vector<1x32xf32> to vector<10x32xf32>
    %468 = arith.addf %465, %467 : vector<10x32xf32>
    %c1_204 = arith.constant 1 : index
    %c0_205 = arith.constant 0 : index
    %469 = vector.load %arg11[%c1_204, %c0_205] : memref<2x32xf32, #tpu.memory_space<vmem>>, vector<1x32xf32>
    %c1_206 = arith.constant 1 : index
    %c0_207 = arith.constant 0 : index
    %470 = vector.load %arg12[%c1_206, %c0_207] : memref<2x32xf32, #tpu.memory_space<vmem>>, vector<1x32xf32>
    %cst_208 = arith.constant dense<0.000000e+00> : vector<10xf32>
    %471 = vector.multi_reduction <add>, %468, %cst_208 [1] : vector<10x32xf32> to vector<10xf32>
    %472 = vector.shape_cast %471 : vector<10xf32> to vector<10x1xf32>
    %cst_209 = arith.constant 3.200000e+01 : f32
    %473 = vector.broadcast %cst_209 : f32 to vector<10x1xf32>
    %474 = arith.divf %472, %473 : vector<10x1xf32>
    %475 = vector.broadcast %474 : vector<10x1xf32> to vector<10x32xf32>
    %476 = arith.subf %468, %475 : vector<10x32xf32>
    %477 = arith.mulf %476, %476 : vector<10x32xf32>
    %cst_210 = arith.constant dense<0.000000e+00> : vector<10xf32>
    %478 = vector.multi_reduction <add>, %477, %cst_210 [1] : vector<10x32xf32> to vector<10xf32>
    %479 = vector.shape_cast %478 : vector<10xf32> to vector<10x1xf32>
    %cst_211 = arith.constant 3.200000e+01 : f32
    %480 = vector.broadcast %cst_211 : f32 to vector<10x1xf32>
    %481 = arith.divf %479, %480 : vector<10x1xf32>
    %cst_212 = arith.constant 9.99999997E-7 : f32
    %482 = vector.broadcast %cst_212 : f32 to vector<10x1xf32>
    %483 = arith.addf %481, %482 : vector<10x1xf32>
    %484 = math.rsqrt %483 : vector<10x1xf32>
    %485 = vector.broadcast %484 : vector<10x1xf32> to vector<10x32xf32>
    %486 = arith.mulf %476, %485 : vector<10x32xf32>
    %487 = vector.broadcast %469 : vector<1x32xf32> to vector<10x32xf32>
    %488 = arith.mulf %486, %487 : vector<10x32xf32>
    %489 = vector.broadcast %470 : vector<1x32xf32> to vector<10x32xf32>
    %490 = arith.addf %488, %489 : vector<10x32xf32>
    %c1_213 = arith.constant 1 : index
    %c0_214 = arith.constant 0 : index
    %c0_215 = arith.constant 0 : index
    %491 = vector.load %arg13[%c1_213, %c0_214, %c0_215] : memref<2x32x64xf32, #tpu.memory_space<vmem>>, vector<1x32x64xf32>
    %492 = vector.shape_cast %491 : vector<1x32x64xf32> to vector<32x64xf32>
    %cst_216 = arith.constant dense<0.000000e+00> : vector<10x64xf32>
    %493 = tpu.matmul %490, %492, %cst_216 {dimension_numbers = #tpu.dot_dimension_numbers<[1], [0], [0], [1], [0, 0, 1, 1], [], []>} : vector<10x32xf32>, vector<32x64xf32>, vector<10x64xf32> -> vector<10x64xf32>
    %c1_217 = arith.constant 1 : index
    %c0_218 = arith.constant 0 : index
    %494 = vector.load %arg14[%c1_217, %c0_218] : memref<2x64xf32, #tpu.memory_space<vmem>>, vector<1x64xf32>
    %495 = vector.broadcast %494 : vector<1x64xf32> to vector<10x64xf32>
    %496 = arith.addf %493, %495 : vector<10x64xf32>
    %cst_219 = arith.constant 5.000000e-01 : f32
    %497 = vector.broadcast %cst_219 : f32 to vector<10x64xf32>
    %498 = arith.mulf %497, %496 : vector<10x64xf32>
    %cst_220 = arith.constant 0.707106769 : f32
    %499 = vector.broadcast %cst_220 : f32 to vector<10x64xf32>
    %500 = arith.mulf %496, %499 : vector<10x64xf32>
    %501 = math.absf %500 : vector<10x64xf32>
    %cst_221 = arith.constant 0.327591091 : f32
    %502 = vector.broadcast %cst_221 : f32 to vector<10x64xf32>
    %503 = arith.mulf %502, %501 : vector<10x64xf32>
    %cst_222 = arith.constant 1.000000e+00 : f32
    %504 = vector.broadcast %cst_222 : f32 to vector<10x64xf32>
    %505 = arith.addf %504, %503 : vector<10x64xf32>
    %cst_223 = arith.constant 1.000000e+00 : f32
    %506 = vector.broadcast %cst_223 : f32 to vector<10x64xf32>
    %507 = arith.divf %506, %505 : vector<10x64xf32>
    %cst_224 = arith.constant 1.06140542 : f32
    %508 = vector.broadcast %cst_224 : f32 to vector<10x64xf32>
    %509 = arith.mulf %507, %508 : vector<10x64xf32>
    %cst_225 = arith.constant -1.45315206 : f32
    %510 = vector.broadcast %cst_225 : f32 to vector<10x64xf32>
    %511 = arith.addf %510, %509 : vector<10x64xf32>
    %512 = arith.mulf %507, %511 : vector<10x64xf32>
    %cst_226 = arith.constant 1.42141378 : f32
    %513 = vector.broadcast %cst_226 : f32 to vector<10x64xf32>
    %514 = arith.addf %513, %512 : vector<10x64xf32>
    %515 = arith.mulf %507, %514 : vector<10x64xf32>
    %cst_227 = arith.constant -0.284496725 : f32
    %516 = vector.broadcast %cst_227 : f32 to vector<10x64xf32>
    %517 = arith.addf %516, %515 : vector<10x64xf32>
    %518 = arith.mulf %507, %517 : vector<10x64xf32>
    %cst_228 = arith.constant 0.254829586 : f32
    %519 = vector.broadcast %cst_228 : f32 to vector<10x64xf32>
    %520 = arith.addf %519, %518 : vector<10x64xf32>
    %521 = arith.mulf %507, %520 : vector<10x64xf32>
    %cst_229 = arith.constant 0.000000e+00 : f32
    %522 = vector.broadcast %cst_229 : f32 to vector<10x64xf32>
    %523 = arith.subf %522, %500 : vector<10x64xf32>
    %524 = arith.mulf %523, %500 : vector<10x64xf32>
    %525 = math.exp %524 : vector<10x64xf32>
    %526 = arith.mulf %521, %525 : vector<10x64xf32>
    %cst_230 = arith.constant 1.000000e+00 : f32
    %527 = vector.broadcast %cst_230 : f32 to vector<10x64xf32>
    %528 = arith.subf %527, %526 : vector<10x64xf32>
    %cst_231 = arith.constant 0.000000e+00 : f32
    %529 = vector.broadcast %cst_231 : f32 to vector<10x64xf32>
    %530 = arith.cmpf oge, %500, %529 : vector<10x64xf32>
    %cst_232 = arith.constant 0.000000e+00 : f32
    %531 = vector.broadcast %cst_232 : f32 to vector<10x64xf32>
    %532 = arith.subf %531, %528 : vector<10x64xf32>
    %533 = arith.select %530, %528, %532 : vector<10x64xi1>, vector<10x64xf32>
    %cst_233 = arith.constant 1.000000e+00 : f32
    %534 = vector.broadcast %cst_233 : f32 to vector<10x64xf32>
    %535 = arith.addf %534, %533 : vector<10x64xf32>
    %536 = arith.mulf %498, %535 : vector<10x64xf32>
    %c1_234 = arith.constant 1 : index
    %c0_235 = arith.constant 0 : index
    %c0_236 = arith.constant 0 : index
    %537 = vector.load %arg15[%c1_234, %c0_235, %c0_236] : memref<2x64x32xf32, #tpu.memory_space<vmem>>, vector<1x64x32xf32>
    %538 = vector.shape_cast %537 : vector<1x64x32xf32> to vector<64x32xf32>
    %cst_237 = arith.constant dense<0.000000e+00> : vector<10x32xf32>
    %539 = tpu.matmul %536, %538, %cst_237 {dimension_numbers = #tpu.dot_dimension_numbers<[1], [0], [0], [1], [0, 0, 1, 1], [], []>} : vector<10x64xf32>, vector<64x32xf32>, vector<10x32xf32> -> vector<10x32xf32>
    %540 = arith.addf %468, %539 : vector<10x32xf32>
    %c1_238 = arith.constant 1 : index
    %c0_239 = arith.constant 0 : index
    %541 = vector.load %arg16[%c1_238, %c0_239] : memref<2x32xf32, #tpu.memory_space<vmem>>, vector<1x32xf32>
    %542 = vector.broadcast %541 : vector<1x32xf32> to vector<10x32xf32>
    %543 = arith.addf %540, %542 : vector<10x32xf32>
    %c0_240 = arith.constant 0 : index
    %c0_241 = arith.constant 0 : index
    %544 = vector.load %arg17[%c0_240, %c0_241] : memref<1x32xf32, #tpu.memory_space<vmem>>, vector<1x32xf32>
    %c0_242 = arith.constant 0 : index
    %c0_243 = arith.constant 0 : index
    %545 = vector.load %arg18[%c0_242, %c0_243] : memref<1x32xf32, #tpu.memory_space<vmem>>, vector<1x32xf32>
    %cst_244 = arith.constant dense<0.000000e+00> : vector<10xf32>
    %546 = vector.multi_reduction <add>, %543, %cst_244 [1] : vector<10x32xf32> to vector<10xf32>
    %547 = vector.shape_cast %546 : vector<10xf32> to vector<10x1xf32>
    %cst_245 = arith.constant 3.200000e+01 : f32
    %548 = vector.broadcast %cst_245 : f32 to vector<10x1xf32>
    %549 = arith.divf %547, %548 : vector<10x1xf32>
    %550 = vector.broadcast %549 : vector<10x1xf32> to vector<10x32xf32>
    %551 = arith.subf %543, %550 : vector<10x32xf32>
    %552 = arith.mulf %551, %551 : vector<10x32xf32>
    %cst_246 = arith.constant dense<0.000000e+00> : vector<10xf32>
    %553 = vector.multi_reduction <add>, %552, %cst_246 [1] : vector<10x32xf32> to vector<10xf32>
    %554 = vector.shape_cast %553 : vector<10xf32> to vector<10x1xf32>
    %cst_247 = arith.constant 3.200000e+01 : f32
    %555 = vector.broadcast %cst_247 : f32 to vector<10x1xf32>
    %556 = arith.divf %554, %555 : vector<10x1xf32>
    %cst_248 = arith.constant 9.99999997E-7 : f32
    %557 = vector.broadcast %cst_248 : f32 to vector<10x1xf32>
    %558 = arith.addf %556, %557 : vector<10x1xf32>
    %559 = math.rsqrt %558 : vector<10x1xf32>
    %560 = vector.broadcast %559 : vector<10x1xf32> to vector<10x32xf32>
    %561 = arith.mulf %551, %560 : vector<10x32xf32>
    %562 = vector.broadcast %544 : vector<1x32xf32> to vector<10x32xf32>
    %563 = arith.mulf %561, %562 : vector<10x32xf32>
    %564 = vector.broadcast %545 : vector<1x32xf32> to vector<10x32xf32>
    %565 = arith.addf %563, %564 : vector<10x32xf32>
    %c0_249 = arith.constant 0 : index
    %c0_250 = arith.constant 0 : index
    %566 = vector.load %arg19[%c0_249, %c0_250] : memref<32x32xf32, #tpu.memory_space<vmem>>, vector<32x32xf32>
    %cst_251 = arith.constant dense<0.000000e+00> : vector<10x32xf32>
    %567 = tpu.matmul %565, %566, %cst_251 {dimension_numbers = #tpu.dot_dimension_numbers<[1], [0], [0], [1], [0, 0, 1, 1], [], []>} : vector<10x32xf32>, vector<32x32xf32>, vector<10x32xf32> -> vector<10x32xf32>
    %c0_252 = arith.constant 0 : index
    %c0_253 = arith.constant 0 : index
    %568 = vector.load %arg20[%c0_252, %c0_253] : memref<32x128xf32, #tpu.memory_space<vmem>>, vector<32x128xf32>
    %cst_254 = arith.constant dense<0.000000e+00> : vector<10x128xf32>
    %569 = tpu.matmul %567, %568, %cst_254 {dimension_numbers = #tpu.dot_dimension_numbers<[1], [0], [0], [1], [0, 0, 1, 1], [], []>} : vector<10x32xf32>, vector<32x128xf32>, vector<10x128xf32> -> vector<10x128xf32>
    %570 = vector.extract_strided_slice %569 {offsets = [0, 0], sizes = [1, 128], strides = [1, 1]} : vector<10x128xf32> to vector<1x128xf32>
    %c0_255 = arith.constant 0 : index
    %c0_256 = arith.constant 0 : index
    %571 = vector.load %arg21[%c0_255, %c0_256] : memref<2x128xf32, #tpu.memory_space<vmem>>, vector<1x128xf32>
    tpu.vector_store %arg21[%c0_255, %c0_256], %570 {strides = array<i32>} : memref<2x128xf32, #tpu.memory_space<vmem>>, vector<1x128xf32>,
    %572 = vector.extract_strided_slice %569 {offsets = [5, 0], sizes = [1, 128], strides = [1, 1]} : vector<10x128xf32> to vector<1x128xf32>
    %c1_257 = arith.constant 1 : index
    %c0_258 = arith.constant 0 : index
    %573 = vector.load %arg21[%c1_257, %c0_258] : memref<2x128xf32, #tpu.memory_space<vmem>>, vector<1x128xf32>
    tpu.vector_store %arg21[%c1_257, %c0_258], %572 {strides = array<i32>} : memref<2x128xf32, #tpu.memory_space<vmem>>, vector<1x128xf32>,
    return
  }
}

</mosaic_0001>

<llo_original>
// kernel: simclr_vit_fc_forward.1
$region0: #{simclr_vit_fc_forward.1}
  #allocation0 [shape = 'u32[]', space=smem, size = 0x4, offset = 0x4, fixed_abs, tag = 'smem constant byte address 0x4 - core index']
  #allocation1 [shape = 'u32[144,128]{1,0:T(1,128)}', space=vmem, size = 0x12000, scoped, tag = 'internal scratch']
  #allocation2 [shape = 'f32[10,32]{1,0:T(8,128)}', space=vmem, size = 0x2000, scoped, tag = 'scratch operand']
  %s0 = inlined_call_operand.vmem [shape: f32[8,64], index: 0, kind: input, shape index: {}]
  %s1 = inlined_call_operand.vmem [shape: f32[64,32], index: 1, kind: input, shape index: {}]
  %s2 = inlined_call_operand.vmem [shape: f32[1,32], index: 2, kind: input, shape index: {}]
  %s3 = inlined_call_operand.vmem [shape: f32[1,32], index: 3, kind: input, shape index: {}]
  %s4 = inlined_call_operand.vmem [shape: f32[5,32], index: 4, kind: input, shape index: {}]
  %s5 = inlined_call_operand.vmem [shape: f32[2,32], index: 5, kind: input, shape index: {}]
  %s6 = inlined_call_operand.vmem [shape: f32[2,32], index: 6, kind: input, shape index: {}]
  %s7 = inlined_call_operand.vmem [shape: f32[2,32,96], index: 7, kind: input, shape index: {}]
  %s8 = inlined_call_operand.vmem [shape: f32[2,96], index: 8, kind: input, shape index: {}]
  %s9 = inlined_call_operand.vmem [shape: f32[2,32,32], index: 9, kind: input, shape index: {}]
  %s10 = inlined_call_operand.vmem [shape: f32[2,32], index: 10, kind: input, shape index: {}]
  %s11 = inlined_call_operand.vmem [shape: f32[2,32], index: 11, kind: input, shape index: {}]
  %s12 = inlined_call_operand.vmem [shape: f32[2,32], index: 12, kind: input, shape index: {}]
  %s13 = inlined_call_operand.vmem [shape: f32[2,32,64], index: 13, kind: input, shape index: {}]
  %s14 = inlined_call_operand.vmem [shape: f32[2,64], index: 14, kind: input, shape index: {}]
  %s15 = inlined_call_operand.vmem [shape: f32[2,64,32], index: 15, kind: input, shape index: {}]
  %s16 = inlined_call_operand.vmem [shape: f32[2,32], index: 16, kind: input, shape index: {}]
  %s17 = inlined_call_operand.vmem [shape: f32[1,32], index: 17, kind: input, shape index: {}]
  %s18 = inlined_call_operand.vmem [shape: f32[1,32], index: 18, kind: input, shape index: {}]
  %s19 = inlined_call_operand.vmem [shape: f32[32,32], index: 19, kind: input, shape index: {}]
  %s20 = inlined_call_operand.vmem [shape: f32[32,128], index: 20, kind: input, shape index: {}]
  %s21 = inlined_call_operand.hbm [shape: f32[2,128], index: 21, kind: output, shape index: {}]
  %s22 = sld [smem:[#allocation0]]
  $region94: #{simclr_vit_fc_forward.1} parent=0
    _
  %s24 = ssub.s32 1, %s22
  %s25 = scalar_select 0, %s24, %s22
  $region1: #{simclr_vit_fc_forward.1} parent=0
    #allocation3 [shape = 'u8[1024]{0}', space=vmem, size = 0x400, scoped, tag = 'output window, operand 0, single buffered']
    #allocation4 [shape = 's32[1]{0}', space=sflag, size = 0x4, scoped, tag = 'scoped memory for simclr_vit_fc_forward.1']
    %26 = vsyncpa [#allocation4], 0
    // Predicated region
    $region2: #{simclr_vit_fc_forward.1} parent=1 // pred_check
      _
    $region3: #{simclr_vit_fc_forward.1} parent=1 // pred_check_branch
      %28 = sbr.rel (0) target = $region5
    $region4: #{simclr_vit_fc_forward.1} parent=1 // pred_region
      _
    $region5: #{simclr_vit_fc_forward.1} parent=1 // pred_fallthru
      _
    // Predicated region
    $region6: #{simclr_vit_fc_forward.1} parent=1 // pred_check
      _
    $region7: #{simclr_vit_fc_forward.1} parent=1 // pred_check_branch
      %30 = sbr.rel (0) target = $region9
    $region8: #{simclr_vit_fc_forward.1} parent=1 // pred_region
      _
    $region9: #{simclr_vit_fc_forward.1} parent=1 // pred_fallthru
      _
    // Predicated region
    $region10: #{simclr_vit_fc_forward.1} parent=1 // pred_check
      _
    $region11: #{simclr_vit_fc_forward.1} parent=1 // pred_check_branch
      %32 = sbr.rel (0) target = $region13
    $region12: #{simclr_vit_fc_forward.1} parent=1 // pred_region
      _
    $region13: #{simclr_vit_fc_forward.1} parent=1 // pred_fallthru
      _
    // Predicated region
    $region14: #{simclr_vit_fc_forward.1} parent=1 // pred_check
      _
    $region15: #{simclr_vit_fc_forward.1} parent=1 // pred_check_branch
      %34 = sbr.rel (0) target = $region17
    $region16: #{simclr_vit_fc_forward.1} parent=1 // pred_region
      _
    $region17: #{simclr_vit_fc_forward.1} parent=1 // pred_fallthru
      _
    // Predicated region
    $region18: #{simclr_vit_fc_forward.1} parent=1 // pred_check
      _
    $region19: #{simclr_vit_fc_forward.1} parent=1 // pred_check_branch
      %36 = sbr.rel (0) target = $region21
    $region20: #{simclr_vit_fc_forward.1} parent=1 // pred_region
      _
    $region21: #{simclr_vit_fc_forward.1} parent=1 // pred_fallthru
      _
    // Predicated region
    $region22: #{simclr_vit_fc_forward.1} parent=1 // pred_check
      _
    $region23: #{simclr_vit_fc_forward.1} parent=1 // pred_check_branch
      %38 = sbr.rel (0) target = $region25
    $region24: #{simclr_vit_fc_forward.1} parent=1 // pred_region
      _
    $region25: #{simclr_vit_fc_forward.1} parent=1 // pred_fallthru
      _
    // Predicated region
    $region26: #{simclr_vit_fc_forward.1} parent=1 // pred_check
      _
    $region27: #{simclr_vit_fc_forward.1} parent=1 // pred_check_branch
      %40 = sbr.rel (0) target = $region29
    $region28: #{simclr_vit_fc_forward.1} parent=1 // pred_region
      _
    $region29: #{simclr_vit_fc_forward.1} parent=1 // pred_fallthru
      _
    // Predicated region
    $region30: #{simclr_vit_fc_forward.1} parent=1 // pred_check
      _
    $region31: #{simclr_vit_fc_forward.1} parent=1 // pred_check_branch
      %42 = sbr.rel (0) target = $region33
    $region32: #{simclr_vit_fc_forward.1} parent=1 // pred_region
      _
    $region33: #{simclr_vit_fc_forward.1} parent=1 // pred_fallthru
      _
    // Predicated region
    $region34: #{simclr_vit_fc_forward.1} parent=1 // pred_check
      _
    $region35: #{simclr_vit_fc_forward.1} parent=1 // pred_check_branch
      %44 = sbr.rel (0) target = $region37
    $region36: #{simclr_vit_fc_forward.1} parent=1 // pred_region
      _
    $region37: #{simclr_vit_fc_forward.1} parent=1 // pred_fallthru
      _
    // Predicated region
    $region38: #{simclr_vit_fc_forward.1} parent=1 // pred_check
      _
    $region39: #{simclr_vit_fc_forward.1} parent=1 // pred_check_branch
      %46 = sbr.rel (0) target = $region41
    $region40: #{simclr_vit_fc_forward.1} parent=1 // pred_region
      _
    $region41: #{simclr_vit_fc_forward.1} parent=1 // pred_fallthru
      _
    // Predicated region
    $region42: #{simclr_vit_fc_forward.1} parent=1 // pred_check
      _
    $region43: #{simclr_vit_fc_forward.1} parent=1 // pred_check_branch
      %48 = sbr.rel (0) target = $region45
    $region44: #{simclr_vit_fc_forward.1} parent=1 // pred_region
      _
    $region45: #{simclr_vit_fc_forward.1} parent=1 // pred_fallthru
      _
    // Predicated region
    $region46: #{simclr_vit_fc_forward.1} parent=1 // pred_check
      _
    $region47: #{simclr_vit_fc_forward.1} parent=1 // pred_check_branch
      %50 = sbr.rel (0) target = $region49
    $region48: #{simclr_vit_fc_forward.1} parent=1 // pred_region
      _
    $region49: #{simclr_vit_fc_forward.1} parent=1 // pred_fallthru
      _
    // Predicated region
    $region50: #{simclr_vit_fc_forward.1} parent=1 // pred_check
      _
    $region51: #{simclr_vit_fc_forward.1} parent=1 // pred_check_branch
      %52 = sbr.rel (0) target = $region53
    $region52: #{simclr_vit_fc_forward.1} parent=1 // pred_region
      _
    $region53: #{simclr_vit_fc_forward.1} parent=1 // pred_fallthru
      _
    // Predicated region
    $region54: #{simclr_vit_fc_forward.1} parent=1 // pred_check
      _
    $region55: #{simclr_vit_fc_forward.1} parent=1 // pred_check_branch
      %54 = sbr.rel (0) target = $region57
    $region56: #{simclr_vit_fc_forward.1} parent=1 // pred_region
      _
    $region57: #{simclr_vit_fc_forward.1} parent=1 // pred_fallthru
      _
    // Predicated region
    $region58: #{simclr_vit_fc_forward.1} parent=1 // pred_check
      _
    $region59: #{simclr_vit_fc_forward.1} parent=1 // pred_check_branch
      %56 = sbr.rel (0) target = $region61
    $region60: #{simclr_vit_fc_forward.1} parent=1 // pred_region
      _
    $region61: #{simclr_vit_fc_forward.1} parent=1 // pred_fallthru
      _
    // Predicated region
    $region62: #{simclr_vit_fc_forward.1} parent=1 // pred_check
      _
    $region63: #{simclr_vit_fc_forward.1} parent=1 // pred_check_branch
      %58 = sbr.rel (0) target = $region65
    $region64: #{simclr_vit_fc_forward.1} parent=1 // pred_region
      _
    $region65: #{simclr_vit_fc_forward.1} parent=1 // pred_fallthru
      _
    // Predicated region
    $region66: #{simclr_vit_fc_forward.1} parent=1 // pred_check
      _
    $region67: #{simclr_vit_fc_forward.1} parent=1 // pred_check_branch
      %60 = sbr.rel (0) target = $region69
    $region68: #{simclr_vit_fc_forward.1} parent=1 // pred_region
      _
    $region69: #{simclr_vit_fc_forward.1} parent=1 // pred_fallthru
      _
    // Predicated region
    $region70: #{simclr_vit_fc_forward.1} parent=1 // pred_check
      _
    $region71: #{simclr_vit_fc_forward.1} parent=1 // pred_check_branch
      %62 = sbr.rel (0) target = $region73
    $region72: #{simclr_vit_fc_forward.1} parent=1 // pred_region
      _
    $region73: #{simclr_vit_fc_forward.1} parent=1 // pred_fallthru
      _
    // Predicated region
    $region74: #{simclr_vit_fc_forward.1} parent=1 // pred_check
      _
    $region75: #{simclr_vit_fc_forward.1} parent=1 // pred_check_branch
      %64 = sbr.rel (0) target = $region77
    $region76: #{simclr_vit_fc_forward.1} parent=1 // pred_region
      _
    $region77: #{simclr_vit_fc_forward.1} parent=1 // pred_fallthru
      _
    // Predicated region
    $region78: #{simclr_vit_fc_forward.1} parent=1 // pred_check
      _
    $region79: #{simclr_vit_fc_forward.1} parent=1 // pred_check_branch
      %66 = sbr.rel (0) target = $region81
    $region80: #{simclr_vit_fc_forward.1} parent=1 // pred_region
      _
    $region81: #{simclr_vit_fc_forward.1} parent=1 // pred_fallthru
      _
    // Predicated region
    $region82: #{simclr_vit_fc_forward.1} parent=1 // pred_check
      _
    $region83: #{simclr_vit_fc_forward.1} parent=1 // pred_check_branch
      %68 = sbr.rel (0) target = $region85
    $region84: #{simclr_vit_fc_forward.1} parent=1 // pred_region
      _
    $region85: #{simclr_vit_fc_forward.1} parent=1 // pred_fallthru
      _
    %v69 = vld [vmem:[%s0] sm:$0xff]
    %v70 = vld [vmem:[%s1] sm:$0xff]
    %v71 = vld [vmem:[%s1 + $0x8] sm:$0xff]
    %v72 = vld [vmem:[%s1 + $0x10] sm:$0xff]
    %v73 = vld [vmem:[%s1 + $0x18] sm:$0xff]
    %v74 = vld [vmem:[%s1 + $0x20] sm:$0xff]
    %v75 = vld [vmem:[%s1 + $0x28] sm:$0xff]
    %v76 = vld [vmem:[%s1 + $0x30] sm:$0xff]
    %v77 = vld [vmem:[%s1 + $0x38] sm:$0xff]
    %v78 = vld [vmem:[%s2] sm:$0x1]
    %v80 = vlaneseq
    %v81 = vshrl.u32 %v80, 7
    %v82 = vsub.s32 0, %v81
    %v83 = vrot.slane %v78, %v82
    %vm85 = vcmask 523264
    %v87 = vsel %vm85, %v69, 0
    %89 = vmatprep.subr.mxu0 0.0
    %90 = vmatpush1.msra.mxu0 %v70
    %91 = vmatprep.subr.mxu0 0.0
    %92 = vmatpush1.msra.mxu0 %v71
    %93 = vmatprep.subr.mxu0 0.0
    %94 = vmatpush1.msra.mxu0 %v72
    %95 = vmatprep.subr.mxu0 0.0
    %96 = vmatpush1.msra.mxu0 %v73
    %97 = vmatprep.subr.mxu0 0.0
    %98 = vmatpush1.msra.mxu0 %v74
    %99 = vmatprep.subr.mxu0 0.0
    %100 = vmatpush1.msra.mxu0 %v75
    %101 = vmatprep.subr.mxu0 0.0
    %102 = vmatpush1.msra.mxu0 %v76
    %103 = vmatprep.subr.mxu0 0.0
    %104 = vmatpush1.msra.mxu0 %v77
    %105 = vmatprep.subr.mxu0 0.0
    %106 = vmatpush1.msra.mxu0 0.0
    %107 = vmatprep.subr.mxu0 0.0
    %108 = vmatpush1.msra.mxu0 0.0
    %109 = vmatprep.subr.mxu0 0.0
    %110 = vmatpush1.msra.mxu0 0.0
    %111 = vmatprep.subr.mxu0 0.0
    %112 = vmatpush1.msra.mxu0 0.0
    %113 = vmatprep.subr.mxu0 0.0
    %114 = vmatpush1.msra.mxu0 0.0
    %115 = vmatprep.subr.mxu0 0.0
    %116 = vmatpush1.msra.mxu0 0.0
    %117 = vmatprep.subr.mxu0 0.0
    %118 = vmatpush1.msra.mxu0 0.0
    %119 = vmatprep.subr.mxu0 0.0
    %120 = vmatpush1.msra.mxu0 0.0
    %121 = vmatprep.subr.mxu0 0.0
    %122 = vmatpush1.msra.mxu0 0.0
    %123 = vmatprep.subr.mxu0 0.0
    %124 = vmatpush1.msra.mxu0 0.0
    %125 = vmatprep.subr.mxu0 0.0
    %126 = vmatpush1.msra.mxu0 0.0
    %127 = vmatprep.subr.mxu0 0.0
    %128 = vmatpush1.msra.mxu0 0.0
    %129 = vmatprep.subr.mxu0 0.0
    %130 = vmatpush1.msra.mxu0 0.0
    %131 = vmatprep.subr.mxu0 0.0
    %132 = vmatpush1.msra.mxu0 0.0
    %133 = vmatprep.subr.mxu0 0.0
    %134 = vmatpush1.msra.mxu0 0.0
    %135 = vmatprep.subr.mxu0 0.0
    %136 = vmatpush1.msra.mxu0 0.0
    %137 = vmatprep.subr.mxu0 0.0
    %138 = vmatpush1.msra.mxu0 0.0
    %139 = vmatprep.subr.mxu0 0.0
    %140 = vmatpush1.msra.mxu0 0.0
    %141 = vmatprep.subr.mxu0 0.0
    %142 = vmatpush1.msra.mxu0 0.0
    %143 = vmatprep.subr.mxu0 0.0
    %144 = vmatpush1.msra.mxu0 0.0
    %145 = vmatprep.subr.mxu0 0.0
    %146 = vmatpush1.msra.mxu0 0.0
    %147 = vmatprep.subr.mxu0 0.0
    %148 = vmatpush1.msra.mxu0 0.0
    %149 = vmatprep.subr.mxu0 0.0
    %150 = vmatpush1.msra.mxu0 0.0
    %151 = vmatprep.subr.mxu0 0.0
    %152 = vmatpush1.msra.mxu0 0.0
    %153 = vmatprep.mubr.f32.mxu0 0.0
    %154 = vmatmul.mubr.f32.gmra.mrb[0].mxu0 %v87
    %v155 = vpop.f32.mrb[0].mxu0
    %v156 = vadd.f32 %v83, %v155
    %v157 = vpop.f32.mrb[0].mxu0
    %158 = vdwg.mxu0
    %v159 = vld [vmem:[%s3] sm:$0x1]
    %v160 = vld [vmem:[%s4] sm:$0x1]
    %v161 = vadd.f32 %v159, %v160
    %vm162 = vcmask 253952
    %163 = vst.msk [vmem:[#allocation2] sm:$0x1] %vm162, %v161
    %v164 = vld [vmem:[%s4 + $0x1] sm:$0xf]
    %v165 = vadd.f32 %v156, %v164
    %vm166 = vcmask 257024
    %167 = vst.msk [vmem:[#allocation2 + $0x1] sm:$0xf] %vm166, %v165
    %168 = vst.msk [vmem:[#allocation2 + $0x5] sm:$0x1] %vm162, %v161
    %v169 = vld [vmem:[%s4 + $0x1] sm:$0xf]
    %v171 = vrot.slane %v169, 4
    %v173 = vadd.f32 %v156, %v171
    %vm174 = vcmask 261124
    %175 = vst.msk [vmem:[#allocation2 + $0x2] sm:$0xf0] %vm174, %v173
    %v176 = vld [vmem:[#allocation2] sm:$0xff]
    %v177 = vld [vmem:[#allocation2 + $0x8] sm:$0x3]
    %v178 = vld [vmem:[%s5] sm:$0x1]
    %v179 = vld [vmem:[%s6] sm:$0x1]
    %vm180 = vcmask 261120
    %v181 = vsel %vm180, %v176, 0.0
    %182 = vadd.xlane.f32.xlu0 %v181
    %v183 = vpop.xlane.xlu0 %182
    %vm184 = vcmask 254976
    %v185 = vsel %vm184, %v177, 0.0
    %186 = vadd.xlane.f32.xlu0 %v185
    %v187 = vpop.xlane.xlu0 %186
    %v188 = vrcp.pop 32.0
    %v189 = vmul.f32 %v183, %v188
    %v190 = vmul.f32 %v187, %v188
    %v191 = vsub.f32 %v176, %v189
    %v192 = vsub.f32 %v177, %v190
    %v193 = vmul.f32 %v191, %v191
    %v194 = vmul.f32 %v192, %v192
    %v195 = vsel %vm180, %v193, 0.0
    %196 = vadd.xlane.f32.xlu0 %v195
    %v197 = vpop.xlane.xlu0 %196
    %v198 = vsel %vm184, %v194, 0.0
    %199 = vadd.xlane.f32.xlu0 %v198
    %v200 = vpop.xlane.xlu0 %199
    %v201 = vmul.f32 %v197, %v188
    %v202 = vmul.f32 %v200, %v188
    %v203 = vadd.f32 %v201, 1e-06
    %v204 = vadd.f32 %v202, 1e-06
    %v205 = vrsqrt.pop %v203
    %v206 = vrsqrt.pop %v204
    %v207 = vmul.f32 %v191, %v205
    %v208 = vmul.f32 %v192, %v206
    %v209 = vlaneseq
    %v210 = vshrl.u32 %v209, 7
    %v211 = vsub.s32 0, %v210
    %v212 = vrot.slane %v178, %v211
    %v213 = vmul.f32 %v207, %v212
    %v214 = vmul.f32 %v208, %v212
    %v215 = vlaneseq
    %v216 = vshrl.u32 %v215, 7
    %v217 = vsub.s32 0, %v216
    %v218 = vrot.slane %v179, %v217
    %v219 = vadd.f32 %v213, %v218
    %v220 = vadd.f32 %v214, %v218
    %v221 = vld [vmem:[%s7] sm:$0xff]
    %v222 = vld [vmem:[%s7 + $0x8] sm:$0xff]
    %v223 = vld [vmem:[%s7 + $0x10] sm:$0xff]
    %v224 = vld [vmem:[%s7 + $0x18] sm:$0xff]
    %v225 = vld [vmem:[%s8] sm:$0x1]
    %v226 = vlaneseq
    %v227 = vshrl.u32 %v226, 7
    %v228 = vsub.s32 0, %v227
    %v229 = vrot.slane %v225, %v228
    %v231 = vsel %vm180, %v219, 0
    %v234 = vsel %vm180, %v220, 0
    %236 = vmatprep.subr.mxu0 0.0
    %237 = vmatpush1.msra.mxu0 %v221
    %238 = vmatprep.subr.mxu0 0.0
    %239 = vmatpush1.msra.mxu0 %v222
    %240 = vmatprep.subr.mxu0 0.0
    %241 = vmatpush1.msra.mxu0 %v223
    %242 = vmatprep.subr.mxu0 0.0
    %243 = vmatpush1.msra.mxu0 %v224
    %244 = vmatprep.subr.mxu0 0.0
    %245 = vmatpush1.msra.mxu0 0.0
    %246 = vmatprep.subr.mxu0 0.0
    %247 = vmatpush1.msra.mxu0 0.0
    %248 = vmatprep.subr.mxu0 0.0
    %249 = vmatpush1.msra.mxu0 0.0
    %250 = vmatprep.subr.mxu0 0.0
    %251 = vmatpush1.msra.mxu0 0.0
    %252 = vmatprep.subr.mxu0 0.0
    %253 = vmatpush1.msra.mxu0 0.0
    %254 = vmatprep.subr.mxu0 0.0
    %255 = vmatpush1.msra.mxu0 0.0
    %256 = vmatprep.subr.mxu0 0.0
    %257 = vmatpush1.msra.mxu0 0.0
    %258 = vmatprep.subr.mxu0 0.0
    %259 = vmatpush1.msra.mxu0 0.0
    %260 = vmatprep.subr.mxu0 0.0
    %261 = vmatpush1.msra.mxu0 0.0
    %262 = vmatprep.subr.mxu0 0.0
    %263 = vmatpush1.msra.mxu0 0.0
    %264 = vmatprep.subr.mxu0 0.0
    %265 = vmatpush1.msra.mxu0 0.0
    %266 = vmatprep.subr.mxu0 0.0
    %267 = vmatpush1.msra.mxu0 0.0
    %268 = vmatprep.subr.mxu0 0.0
    %269 = vmatpush1.msra.mxu0 0.0
    %270 = vmatprep.subr.mxu0 0.0
    %271 = vmatpush1.msra.mxu0 0.0
    %272 = vmatprep.subr.mxu0 0.0
    %273 = vmatpush1.msra.mxu0 0.0
    %274 = vmatprep.subr.mxu0 0.0
    %275 = vmatpush1.msra.mxu0 0.0
    %276 = vmatprep.subr.mxu0 0.0
    %277 = vmatpush1.msra.mxu0 0.0
    %278 = vmatprep.subr.mxu0 0.0
    %279 = vmatpush1.msra.mxu0 0.0
    %280 = vmatprep.subr.mxu0 0.0
    %281 = vmatpush1.msra.mxu0 0.0
    %282 = vmatprep.subr.mxu0 0.0
    %283 = vmatpush1.msra.mxu0 0.0
    %284 = vmatprep.subr.mxu0 0.0
    %285 = vmatpush1.msra.mxu0 0.0
    %286 = vmatprep.subr.mxu0 0.0
    %287 = vmatpush1.msra.mxu0 0.0
    %288 = vmatprep.subr.mxu0 0.0
    %289 = vmatpush1.msra.mxu0 0.0
    %290 = vmatprep.subr.mxu0 0.0
    %291 = vmatpush1.msra.mxu0 0.0
    %292 = vmatprep.subr.mxu0 0.0
    %293 = vmatpush1.msra.mxu0 0.0
    %294 = vmatprep.subr.mxu0 0.0
    %295 = vmatpush1.msra.mxu0 0.0
    %296 = vmatprep.subr.mxu0 0.0
    %297 = vmatpush1.msra.mxu0 0.0
    %298 = vmatprep.subr.mxu0 0.0
    %299 = vmatpush1.msra.mxu0 0.0
    %300 = vmatprep.mubr.f32.mxu0 0.0
    %301 = vmatmul.mubr.f32.gmra.mrb[0].mxu0 %v231
    %v302 = vpop.f32.mrb[0].mxu0
    %v303 = vadd.f32 %v229, %v302
    %v304 = vpop.f32.mrb[0].mxu0
    %305 = vmatprep.mubr.f32.mxu0 0.0
    %306 = vmatmul.mubr.f32.gmra.mrb[0].mxu0 %v234
    %v307 = vpop.f32.mrb[0].mxu0
    %v308 = vadd.f32 %v229, %v307
    %v309 = vpop.f32.mrb[0].mxu0
    %310 = vdwg.mxu0
    %v311 = vld [vmem:[%s9] sm:$0xff]
    %v312 = vld [vmem:[%s9 + $0x8] sm:$0xff]
    %v313 = vld [vmem:[%s9 + $0x10] sm:$0xff]
    %v314 = vld [vmem:[%s9 + $0x18] sm:$0xff]
    %316 = vrot.lane.b32.xlu0 %v303, 96
    %v317 = vpop.permute.xlu0 %316
    %vm318 = vcmask 64512
    %v319 = vsel %vm318, %v303, 0
    %v321 = vsel %vm318, %v317, 0
    %323 = vmatprep.subr.mxu0 0.0
    %324 = vmatpush1.xpose.msra.mxu0 %v321
    %325 = vmatprep.subr.mxu0 0.0
    %326 = vmatpush1.xpose.msra.mxu0 0.0
    %327 = vmatprep.subr.mxu0 0.0
    %328 = vmatpush1.xpose.msra.mxu0 0.0
    %329 = vmatprep.subr.mxu0 0.0
    %330 = vmatpush1.xpose.msra.mxu0 0.0
    %331 = vmatprep.subr.mxu0 0.0
    %332 = vmatpush1.xpose.msra.mxu0 0.0
    %333 = vmatprep.subr.mxu0 0.0
    %334 = vmatpush1.xpose.msra.mxu0 0.0
    %335 = vmatprep.subr.mxu0 0.0
    %336 = vmatpush1.xpose.msra.mxu0 0.0
    %337 = vmatprep.subr.mxu0 0.0
    %338 = vmatpush1.xpose.msra.mxu0 0.0
    %339 = vmatprep.subr.mxu0 0.0
    %340 = vmatpush1.xpose.msra.mxu0 0.0
    %341 = vmatprep.subr.mxu0 0.0
    %342 = vmatpush1.xpose.msra.mxu0 0.0
    %343 = vmatprep.subr.mxu0 0.0
    %344 = vmatpush1.xpose.msra.mxu0 0.0
    %345 = vmatprep.subr.mxu0 0.0
    %346 = vmatpush1.xpose.msra.mxu0 0.0
    %347 = vmatprep.subr.mxu0 0.0
    %348 = vmatpush1.xpose.msra.mxu0 0.0
    %349 = vmatprep.subr.mxu0 0.0
    %350 = vmatpush1.xpose.msra.mxu0 0.0
    %351 = vmatprep.subr.mxu0 0.0
    %352 = vmatpush1.xpose.msra.mxu0 0.0
    %353 = vmatprep.subr.mxu0 0.0
    %354 = vmatpush1.xpose.msra.mxu0 0.0
    %355 = vmatprep.subr.mxu0 0.0
    %356 = vmatpush1.xpose.msra.mxu0 0.0
    %357 = vmatprep.subr.mxu0 0.0
    %358 = vmatpush1.xpose.msra.mxu0 0.0
    %359 = vmatprep.subr.mxu0 0.0
    %360 = vmatpush1.xpose.msra.mxu0 0.0
    %361 = vmatprep.subr.mxu0 0.0
    %362 = vmatpush1.xpose.msra.mxu0 0.0
    %363 = vmatprep.subr.mxu0 0.0
    %364 = vmatpush1.xpose.msra.mxu0 0.0
    %365 = vmatprep.subr.mxu0 0.0
    %366 = vmatpush1.xpose.msra.mxu0 0.0
    %367 = vmatprep.subr.mxu0 0.0
    %368 = vmatpush1.xpose.msra.mxu0 0.0
    %369 = vmatprep.subr.mxu0 0.0
    %370 = vmatpush1.xpose.msra.mxu0 0.0
    %371 = vmatprep.subr.mxu0 0.0
    %372 = vmatpush1.xpose.msra.mxu0 0.0
    %373 = vmatprep.subr.mxu0 0.0
    %374 = vmatpush1.xpose.msra.mxu0 0.0
    %375 = vmatprep.subr.mxu0 0.0
    %376 = vmatpush1.xpose.msra.mxu0 0.0
    %377 = vmatprep.subr.mxu0 0.0
    %378 = vmatpush1.xpose.msra.mxu0 0.0
    %379 = vmatprep.subr.mxu0 0.0
    %380 = vmatpush1.xpose.msra.mxu0 0.0
    %381 = vmatprep.subr.mxu0 0.0
    %382 = vmatpush1.xpose.msra.mxu0 0.0
    %383 = vmatprep.subr.mxu0 0.0
    %384 = vmatpush1.xpose.msra.mxu0 0.0
    %385 = vmatprep.subr.mxu0 0.0
    %386 = vmatpush1.xpose.msra.mxu0 0.0
    %387 = vmatprep.mubr.f32.mxu0 0.0
    %388 = vmatmul.mubr.f32.gmra.mrb[0].mxu0 %v319
    %v389 = vpop.f32.mrb[0].mxu0
    %v390 = vadd.f32 0.0, %v389
    %v391 = vpop.f32.mrb[0].mxu0
    %392 = vdwg.mxu0
    %v393 = vmul.f32 %v390, 0.35355338
    %vm394 = vcmask 36864
    %v395 = vsel %vm394, %v393, -inf
    %396 = vmax.xlane.f32.xlu0 %v395
    %v397 = vpop.xlane.xlu0 %396
    %v398 = vsub.f32 %v393, %v397
    %v399 = vmul.f32 %v398, 1.442695
    %v400 = vpow.pop %v399
    %v401 = vsel %vm394, %v400, 0.0
    %402 = vadd.xlane.f32.xlu0 %v401
    %v403 = vpop.xlane.xlu0 %402
    %v404 = vrcp.pop %v403
    %v405 = vmul.f32 %v400, %v404
    %406 = vrot.lane.b32.xlu0 %v303, 64
    %v407 = vpop.permute.xlu0 %406
    %vm408 = vcmask 39936
    %v410 = vsel %vm408, %v405, 0
    %vm412 = vcmask 1044480
    %v413 = vsel %vm412, %v407, 0
    %415 = vmatprep.subr.mxu0 0.0
    %416 = vmatpush1.msra.mxu0 %v413
    %417 = vmatprep.subr.mxu0 0.0
    %418 = vmatpush1.msra.mxu0 0.0
    %419 = vmatprep.subr.mxu0 0.0
    %420 = vmatpush1.msra.mxu0 0.0
    %421 = vmatprep.subr.mxu0 0.0
    %422 = vmatpush1.msra.mxu0 0.0
    %423 = vmatprep.subr.mxu0 0.0
    %424 = vmatpush1.msra.mxu0 0.0
    %425 = vmatprep.subr.mxu0 0.0
    %426 = vmatpush1.msra.mxu0 0.0
    %427 = vmatprep.subr.mxu0 0.0
    %428 = vmatpush1.msra.mxu0 0.0
    %429 = vmatprep.subr.mxu0 0.0
    %430 = vmatpush1.msra.mxu0 0.0
    %431 = vmatprep.subr.mxu0 0.0
    %432 = vmatpush1.msra.mxu0 0.0
    %433 = vmatprep.subr.mxu0 0.0
    %434 = vmatpush1.msra.mxu0 0.0
    %435 = vmatprep.subr.mxu0 0.0
    %436 = vmatpush1.msra.mxu0 0.0
    %437 = vmatprep.subr.mxu0 0.0
    %438 = vmatpush1.msra.mxu0 0.0
    %439 = vmatprep.subr.mxu0 0.0
    %440 = vmatpush1.msra.mxu0 0.0
    %441 = vmatprep.subr.mxu0 0.0
    %442 = vmatpush1.msra.mxu0 0.0
    %443 = vmatprep.subr.mxu0 0.0
    %444 = vmatpush1.msra.mxu0 0.0
    %445 = vmatprep.subr.mxu0 0.0
    %446 = vmatpush1.msra.mxu0 0.0
    %447 = vmatprep.subr.mxu0 0.0
    %448 = vmatpush1.msra.mxu0 0.0
    %449 = vmatprep.subr.mxu0 0.0
    %450 = vmatpush1.msra.mxu0 0.0
    %451 = vmatprep.subr.mxu0 0.0
    %452 = vmatpush1.msra.mxu0 0.0
    %453 = vmatprep.subr.mxu0 0.0
    %454 = vmatpush1.msra.mxu0 0.0
    %455 = vmatprep.subr.mxu0 0.0
    %456 = vmatpush1.msra.mxu0 0.0
    %457 = vmatprep.subr.mxu0 0.0
    %458 = vmatpush1.msra.mxu0 0.0
    %459 = vmatprep.subr.mxu0 0.0
    %460 = vmatpush1.msra.mxu0 0.0
    %461 = vmatprep.subr.mxu0 0.0
    %462 = vmatpush1.msra.mxu0 0.0
    %463 = vmatprep.subr.mxu0 0.0
    %464 = vmatpush1.msra.mxu0 0.0
    %465 = vmatprep.subr.mxu0 0.0
    %466 = vmatpush1.msra.mxu0 0.0
    %467 = vmatprep.subr.mxu0 0.0
    %468 = vmatpush1.msra.mxu0 0.0
    %469 = vmatprep.subr.mxu0 0.0
    %470 = vmatpush1.msra.mxu0 0.0
    %471 = vmatprep.subr.mxu0 0.0
    %472 = vmatpush1.msra.mxu0 0.0
    %473 = vmatprep.subr.mxu0 0.0
    %474 = vmatpush1.msra.mxu0 0.0
    %475 = vmatprep.subr.mxu0 0.0
    %476 = vmatpush1.msra.mxu0 0.0
    %477 = vmatprep.subr.mxu0 0.0
    %478 = vmatpush1.msra.mxu0 0.0
    %479 = vmatprep.mubr.f32.mxu0 0.0
    %480 = vmatmul.mubr.f32.gmra.mrb[0].mxu0 %v410
    %v481 = vpop.f32.mrb[0].mxu0
    %v482 = vadd.f32 0.0, %v481
    %v483 = vpop.f32.mrb[0].mxu0
    %484 = vdwg.mxu0
    %485 = vrot.lane.b32.xlu0 %v303, 120
    %v486 = vpop.permute.xlu0 %485
    %487 = vrot.lane.b32.xlu0 %v303, 88
    %v488 = vpop.permute.xlu0 %487
    %v489 = vsel %vm318, %v486, 0
    %v491 = vsel %vm318, %v488, 0
    %493 = vmatprep.subr.mxu0 0.0
    %494 = vmatpush1.xpose.msra.mxu0 %v491
    %495 = vmatprep.subr.mxu0 0.0
    %496 = vmatpush1.xpose.msra.mxu0 0.0
    %497 = vmatprep.subr.mxu0 0.0
    %498 = vmatpush1.xpose.msra.mxu0 0.0
    %499 = vmatprep.subr.mxu0 0.0
    %500 = vmatpush1.xpose.msra.mxu0 0.0
    %501 = vmatprep.subr.mxu0 0.0
    %502 = vmatpush1.xpose.msra.mxu0 0.0
    %503 = vmatprep.subr.mxu0 0.0
    %504 = vmatpush1.xpose.msra.mxu0 0.0
    %505 = vmatprep.subr.mxu0 0.0
    %506 = vmatpush1.xpose.msra.mxu0 0.0
    %507 = vmatprep.subr.mxu0 0.0
    %508 = vmatpush1.xpose.msra.mxu0 0.0
    %509 = vmatprep.subr.mxu0 0.0
    %510 = vmatpush1.xpose.msra.mxu0 0.0
    %511 = vmatprep.subr.mxu0 0.0
    %512 = vmatpush1.xpose.msra.mxu0 0.0
    %513 = vmatprep.subr.mxu0 0.0
    %514 = vmatpush1.xpose.msra.mxu0 0.0
    %515 = vmatprep.subr.mxu0 0.0
    %516 = vmatpush1.xpose.msra.mxu0 0.0
    %517 = vmatprep.subr.mxu0 0.0
    %518 = vmatpush1.xpose.msra.mxu0 0.0
    %519 = vmatprep.subr.mxu0 0.0
    %520 = vmatpush1.xpose.msra.mxu0 0.0
    %521 = vmatprep.subr.mxu0 0.0
    %522 = vmatpush1.xpose.msra.mxu0 0.0
    %523 = vmatprep.subr.mxu0 0.0
    %524 = vmatpush1.xpose.msra.mxu0 0.0
    %525 = vmatprep.subr.mxu0 0.0
    %526 = vmatpush1.xpose.msra.mxu0 0.0
    %527 = vmatprep.subr.mxu0 0.0
    %528 = vmatpush1.xpose.msra.mxu0 0.0
    %529 = vmatprep.subr.mxu0 0.0
    %530 = vmatpush1.xpose.msra.mxu0 0.0
    %531 = vmatprep.subr.mxu0 0.0
    %532 = vmatpush1.xpose.msra.mxu0 0.0
    %533 = vmatprep.subr.mxu0 0.0
    %534 = vmatpush1.xpose.msra.mxu0 0.0
    %535 = vmatprep.subr.mxu0 0.0
    %536 = vmatpush1.xpose.msra.mxu0 0.0
    %537 = vmatprep.subr.mxu0 0.0
    %538 = vmatpush1.xpose.msra.mxu0 0.0
    %539 = vmatprep.subr.mxu0 0.0
    %540 = vmatpush1.xpose.msra.mxu0 0.0
    %541 = vmatprep.subr.mxu0 0.0
    %542 = vmatpush1.xpose.msra.mxu0 0.0
    %543 = vmatprep.subr.mxu0 0.0
    %544 = vmatpush1.xpose.msra.mxu0 0.0
    %545 = vmatprep.subr.mxu0 0.0
    %546 = vmatpush1.xpose.msra.mxu0 0.0
    %547 = vmatprep.subr.mxu0 0.0
    %548 = vmatpush1.xpose.msra.mxu0 0.0
    %549 = vmatprep.subr.mxu0 0.0
    %550 = vmatpush1.xpose.msra.mxu0 0.0
    %551 = vmatprep.subr.mxu0 0.0
    %552 = vmatpush1.xpose.msra.mxu0 0.0
    %553 = vmatprep.subr.mxu0 0.0
    %554 = vmatpush1.xpose.msra.mxu0 0.0
    %555 = vmatprep.subr.mxu0 0.0
    %556 = vmatpush1.xpose.msra.mxu0 0.0
    %557 = vmatprep.mubr.f32.mxu0 0.0
    %558 = vmatmul.mubr.f32.gmra.mrb[0].mxu0 %v489
    %v559 = vpop.f32.mrb[0].mxu0
    %v560 = vadd.f32 0.0, %v559
    %v561 = vpop.f32.mrb[0].mxu0
    %562 = vdwg.mxu0
    %v563 = vmul.f32 %v560, 0.35355338
    %v564 = vsel %vm394, %v563, -inf
    %565 = vmax.xlane.f32.xlu0 %v564
    %v566 = vpop.xlane.xlu0 %565
    %v567 = vsub.f32 %v563, %v566
    %v568 = vmul.f32 %v567, 1.442695
    %v569 = vpow.pop %v568
    %v570 = vsel %vm394, %v569, 0.0
    %571 = vadd.xlane.f32.xlu0 %v570
    %v572 = vpop.xlane.xlu0 %571
    %v573 = vrcp.pop %v572
    %v574 = vmul.f32 %v569, %v573
    %575 = vrot.lane.b32.xlu0 %v303, 56
    %v576 = vpop.permute.xlu0 %575
    %v578 = vsel %vm408, %v574, 0
    %v580 = vsel %vm412, %v576, 0
    %582 = vmatprep.subr.mxu0 0.0
    %583 = vmatpush1.msra.mxu0 %v580
    %584 = vmatprep.subr.mxu0 0.0
    %585 = vmatpush1.msra.mxu0 0.0
    %586 = vmatprep.subr.mxu0 0.0
    %587 = vmatpush1.msra.mxu0 0.0
    %588 = vmatprep.subr.mxu0 0.0
    %589 = vmatpush1.msra.mxu0 0.0
    %590 = vmatprep.subr.mxu0 0.0
    %591 = vmatpush1.msra.mxu0 0.0
    %592 = vmatprep.subr.mxu0 0.0
    %593 = vmatpush1.msra.mxu0 0.0
    %594 = vmatprep.subr.mxu0 0.0
    %595 = vmatpush1.msra.mxu0 0.0
    %596 = vmatprep.subr.mxu0 0.0
    %597 = vmatpush1.msra.mxu0 0.0
    %598 = vmatprep.subr.mxu0 0.0
    %599 = vmatpush1.msra.mxu0 0.0
    %600 = vmatprep.subr.mxu0 0.0
    %601 = vmatpush1.msra.mxu0 0.0
    %602 = vmatprep.subr.mxu0 0.0
    %603 = vmatpush1.msra.mxu0 0.0
    %604 = vmatprep.subr.mxu0 0.0
    %605 = vmatpush1.msra.mxu0 0.0
    %606 = vmatprep.subr.mxu0 0.0
    %607 = vmatpush1.msra.mxu0 0.0
    %608 = vmatprep.subr.mxu0 0.0
    %609 = vmatpush1.msra.mxu0 0.0
    %610 = vmatprep.subr.mxu0 0.0
    %611 = vmatpush1.msra.mxu0 0.0
    %612 = vmatprep.subr.mxu0 0.0
    %613 = vmatpush1.msra.mxu0 0.0
    %614 = vmatprep.subr.mxu0 0.0
    %615 = vmatpush1.msra.mxu0 0.0
    %616 = vmatprep.subr.mxu0 0.0
    %617 = vmatpush1.msra.mxu0 0.0
    %618 = vmatprep.subr.mxu0 0.0
    %619 = vmatpush1.msra.mxu0 0.0
    %620 = vmatprep.subr.mxu0 0.0
    %621 = vmatpush1.msra.mxu0 0.0
    %622 = vmatprep.subr.mxu0 0.0
    %623 = vmatpush1.msra.mxu0 0.0
    %624 = vmatprep.subr.mxu0 0.0
    %625 = vmatpush1.msra.mxu0 0.0
    %626 = vmatprep.subr.mxu0 0.0
    %627 = vmatpush1.msra.mxu0 0.0
    %628 = vmatprep.subr.mxu0 0.0
    %629 = vmatpush1.msra.mxu0 0.0
    %630 = vmatprep.subr.mxu0 0.0
    %631 = vmatpush1.msra.mxu0 0.0
    %632 = vmatprep.subr.mxu0 0.0
    %633 = vmatpush1.msra.mxu0 0.0
    %634 = vmatprep.subr.mxu0 0.0
    %635 = vmatpush1.msra.mxu0 0.0
    %636 = vmatprep.subr.mxu0 0.0
    %637 = vmatpush1.msra.mxu0 0.0
    %638 = vmatprep.subr.mxu0 0.0
    %639 = vmatpush1.msra.mxu0 0.0
    %640 = vmatprep.subr.mxu0 0.0
    %641 = vmatpush1.msra.mxu0 0.0
    %642 = vmatprep.subr.mxu0 0.0
    %643 = vmatpush1.msra.mxu0 0.0
    %644 = vmatprep.subr.mxu0 0.0
    %645 = vmatpush1.msra.mxu0 0.0
    %646 = vmatprep.mubr.f32.mxu0 0.0
    %647 = vmatmul.mubr.f32.gmra.mrb[0].mxu0 %v578
    %v648 = vpop.f32.mrb[0].mxu0
    %v649 = vadd.f32 0.0, %v648
    %v650 = vpop.f32.mrb[0].mxu0
    %651 = vdwg.mxu0
    %v653 = vsel %vm318, %v649, 0
    %655 = vmatprep.subr.mxu0 0.0
    %656 = vmatpush1.msra.mxu0 %v312
    %657 = vmatprep.subr.mxu0 0.0
    %658 = vmatpush1.msra.mxu0 0.0
    %659 = vmatprep.subr.mxu0 0.0
    %660 = vmatpush1.msra.mxu0 0.0
    %661 = vmatprep.subr.mxu0 0.0
    %662 = vmatpush1.msra.mxu0 0.0
    %663 = vmatprep.subr.mxu0 0.0
    %664 = vmatpush1.msra.mxu0 0.0
    %665 = vmatprep.subr.mxu0 0.0
    %666 = vmatpush1.msra.mxu0 0.0
    %667 = vmatprep.subr.mxu0 0.0
    %668 = vmatpush1.msra.mxu0 0.0
    %669 = vmatprep.subr.mxu0 0.0
    %670 = vmatpush1.msra.mxu0 0.0
    %671 = vmatprep.subr.mxu0 0.0
    %672 = vmatpush1.msra.mxu0 0.0
    %673 = vmatprep.subr.mxu0 0.0
    %674 = vmatpush1.msra.mxu0 0.0
    %675 = vmatprep.subr.mxu0 0.0
    %676 = vmatpush1.msra.mxu0 0.0
    %677 = vmatprep.subr.mxu0 0.0
    %678 = vmatpush1.msra.mxu0 0.0
    %679 = vmatprep.subr.mxu0 0.0
    %680 = vmatpush1.msra.mxu0 0.0
    %681 = vmatprep.subr.mxu0 0.0
    %682 = vmatpush1.msra.mxu0 0.0
    %683 = vmatprep.subr.mxu0 0.0
    %684 = vmatpush1.msra.mxu0 0.0
    %685 = vmatprep.subr.mxu0 0.0
    %686 = vmatpush1.msra.mxu0 0.0
    %687 = vmatprep.subr.mxu0 0.0
    %688 = vmatpush1.msra.mxu0 0.0
    %689 = vmatprep.subr.mxu0 0.0
    %690 = vmatpush1.msra.mxu0 0.0
    %691 = vmatprep.subr.mxu0 0.0
    %692 = vmatpush1.msra.mxu0 0.0
    %693 = vmatprep.subr.mxu0 0.0
    %694 = vmatpush1.msra.mxu0 0.0
    %695 = vmatprep.subr.mxu0 0.0
    %696 = vmatpush1.msra.mxu0 0.0
    %697 = vmatprep.subr.mxu0 0.0
    %698 = vmatpush1.msra.mxu0 0.0
    %699 = vmatprep.subr.mxu0 0.0
    %700 = vmatpush1.msra.mxu0 0.0
    %701 = vmatprep.subr.mxu0 0.0
    %702 = vmatpush1.msra.mxu0 0.0
    %703 = vmatprep.subr.mxu0 0.0
    %704 = vmatpush1.msra.mxu0 0.0
    %705 = vmatprep.subr.mxu0 0.0
    %706 = vmatpush1.msra.mxu0 0.0
    %707 = vmatprep.subr.mxu0 0.0
    %708 = vmatpush1.msra.mxu0 0.0
    %709 = vmatprep.subr.mxu0 0.0
    %710 = vmatpush1.msra.mxu0 0.0
    %711 = vmatprep.subr.mxu0 0.0
    %712 = vmatpush1.msra.mxu0 0.0
    %713 = vmatprep.subr.mxu0 0.0
    %714 = vmatpush1.msra.mxu0 0.0
    %715 = vmatprep.subr.mxu0 0.0
    %716 = vmatpush1.msra.mxu0 0.0
    %717 = vmatprep.subr.mxu0 0.0
    %718 = vmatpush1.msra.mxu0 0.0
    %719 = vmatprep.mubr.f32.mxu0 0.0
    %720 = vmatmul.mubr.f32.gmra.mrb[0].mxu0 %v653
    %v721 = vpop.f32.mrb[0].mxu0
    %v722 = vadd.f32 0.0, %v721
    %v723 = vpop.f32.mrb[0].mxu0
    %724 = vdwg.mxu0
    %v726 = vsel %vm318, %v482, 0
    %728 = vmatprep.subr.mxu0 0.0
    %729 = vmatpush1.msra.mxu0 %v311
    %730 = vmatprep.subr.mxu0 0.0
    %731 = vmatpush1.msra.mxu0 0.0
    %732 = vmatprep.subr.mxu0 0.0
    %733 = vmatpush1.msra.mxu0 0.0
    %734 = vmatprep.subr.mxu0 0.0
    %735 = vmatpush1.msra.mxu0 0.0
    %736 = vmatprep.subr.mxu0 0.0
    %737 = vmatpush1.msra.mxu0 0.0
    %738 = vmatprep.subr.mxu0 0.0
    %739 = vmatpush1.msra.mxu0 0.0
    %740 = vmatprep.subr.mxu0 0.0
    %741 = vmatpush1.msra.mxu0 0.0
    %742 = vmatprep.subr.mxu0 0.0
    %743 = vmatpush1.msra.mxu0 0.0
    %744 = vmatprep.subr.mxu0 0.0
    %745 = vmatpush1.msra.mxu0 0.0
    %746 = vmatprep.subr.mxu0 0.0
    %747 = vmatpush1.msra.mxu0 0.0
    %748 = vmatprep.subr.mxu0 0.0
    %749 = vmatpush1.msra.mxu0 0.0
    %750 = vmatprep.subr.mxu0 0.0
    %751 = vmatpush1.msra.mxu0 0.0
    %752 = vmatprep.subr.mxu0 0.0
    %753 = vmatpush1.msra.mxu0 0.0
    %754 = vmatprep.subr.mxu0 0.0
    %755 = vmatpush1.msra.mxu0 0.0
    %756 = vmatprep.subr.mxu0 0.0
    %757 = vmatpush1.msra.mxu0 0.0
    %758 = vmatprep.subr.mxu0 0.0
    %759 = vmatpush1.msra.mxu0 0.0
    %760 = vmatprep.subr.mxu0 0.0
    %761 = vmatpush1.msra.mxu0 0.0
    %762 = vmatprep.subr.mxu0 0.0
    %763 = vmatpush1.msra.mxu0 0.0
    %764 = vmatprep.subr.mxu0 0.0
    %765 = vmatpush1.msra.mxu0 0.0
    %766 = vmatprep.subr.mxu0 0.0
    %767 = vmatpush1.msra.mxu0 0.0
    %768 = vmatprep.subr.mxu0 0.0
    %769 = vmatpush1.msra.mxu0 0.0
    %770 = vmatprep.subr.mxu0 0.0
    %771 = vmatpush1.msra.mxu0 0.0
    %772 = vmatprep.subr.mxu0 0.0
    %773 = vmatpush1.msra.mxu0 0.0
    %774 = vmatprep.subr.mxu0 0.0
    %775 = vmatpush1.msra.mxu0 0.0
    %776 = vmatprep.subr.mxu0 0.0
    %777 = vmatpush1.msra.mxu0 0.0
    %778 = vmatprep.subr.mxu0 0.0
    %779 = vmatpush1.msra.mxu0 0.0
    %780 = vmatprep.subr.mxu0 0.0
    %781 = vmatpush1.msra.mxu0 0.0
    %782 = vmatprep.subr.mxu0 0.0
    %783 = vmatpush1.msra.mxu0 0.0
    %784 = vmatprep.subr.mxu0 0.0
    %785 = vmatpush1.msra.mxu0 0.0
    %786 = vmatprep.subr.mxu0 0.0
    %787 = vmatpush1.msra.mxu0 0.0
    %788 = vmatprep.subr.mxu0 0.0
    %789 = vmatpush1.msra.mxu0 0.0
    %790 = vmatprep.subr.mxu0 0.0
    %791 = vmatpush1.msra.mxu0 0.0
    %792 = vmatprep.mubr.f32.mxu0 0.0
    %793 = vmatmul.mubr.f32.gmra.mrb[0].mxu0 %v726
    %v794 = vpop.f32.mrb[0].mxu0
    %v795 = vadd.f32 %v722, %v794
    %v796 = vpop.f32.mrb[0].mxu0
    %797 = vdwg.mxu0
    %798 = vrot.lane.b32.xlu0 %v303, 112
    %v799 = vpop.permute.xlu0 %798
    %800 = vrot.lane.b32.xlu0 %v303, 80
    %v801 = vpop.permute.xlu0 %800
    %v802 = vsel %vm318, %v799, 0
    %v804 = vsel %vm318, %v801, 0
    %806 = vmatprep.subr.mxu0 0.0
    %807 = vmatpush1.xpose.msra.mxu0 %v804
    %808 = vmatprep.subr.mxu0 0.0
    %809 = vmatpush1.xpose.msra.mxu0 0.0
    %810 = vmatprep.subr.mxu0 0.0
    %811 = vmatpush1.xpose.msra.mxu0 0.0
    %812 = vmatprep.subr.mxu0 0.0
    %813 = vmatpush1.xpose.msra.mxu0 0.0
    %814 = vmatprep.subr.mxu0 0.0
    %815 = vmatpush1.xpose.msra.mxu0 0.0
    %816 = vmatprep.subr.mxu0 0.0
    %817 = vmatpush1.xpose.msra.mxu0 0.0
    %818 = vmatprep.subr.mxu0 0.0
    %819 = vmatpush1.xpose.msra.mxu0 0.0
    %820 = vmatprep.subr.mxu0 0.0
    %821 = vmatpush1.xpose.msra.mxu0 0.0
    %822 = vmatprep.subr.mxu0 0.0
    %823 = vmatpush1.xpose.msra.mxu0 0.0
    %824 = vmatprep.subr.mxu0 0.0
    %825 = vmatpush1.xpose.msra.mxu0 0.0
    %826 = vmatprep.subr.mxu0 0.0
    %827 = vmatpush1.xpose.msra.mxu0 0.0
    %828 = vmatprep.subr.mxu0 0.0
    %829 = vmatpush1.xpose.msra.mxu0 0.0
    %830 = vmatprep.subr.mxu0 0.0
    %831 = vmatpush1.xpose.msra.mxu0 0.0
    %832 = vmatprep.subr.mxu0 0.0
    %833 = vmatpush1.xpose.msra.mxu0 0.0
    %834 = vmatprep.subr.mxu0 0.0
    %835 = vmatpush1.xpose.msra.mxu0 0.0
    %836 = vmatprep.subr.mxu0 0.0
    %837 = vmatpush1.xpose.msra.mxu0 0.0
    %838 = vmatprep.subr.mxu0 0.0
    %839 = vmatpush1.xpose.msra.mxu0 0.0
    %840 = vmatprep.subr.mxu0 0.0
    %841 = vmatpush1.xpose.msra.mxu0 0.0
    %842 = vmatprep.subr.mxu0 0.0
    %843 = vmatpush1.xpose.msra.mxu0 0.0
    %844 = vmatprep.subr.mxu0 0.0
    %845 = vmatpush1.xpose.msra.mxu0 0.0
    %846 = vmatprep.subr.mxu0 0.0
    %847 = vmatpush1.xpose.msra.mxu0 0.0
    %848 = vmatprep.subr.mxu0 0.0
    %849 = vmatpush1.xpose.msra.mxu0 0.0
    %850 = vmatprep.subr.mxu0 0.0
    %851 = vmatpush1.xpose.msra.mxu0 0.0
    %852 = vmatprep.subr.mxu0 0.0
    %853 = vmatpush1.xpose.msra.mxu0 0.0
    %854 = vmatprep.subr.mxu0 0.0
    %855 = vmatpush1.xpose.msra.mxu0 0.0
    %856 = vmatprep.subr.mxu0 0.0
    %857 = vmatpush1.xpose.msra.mxu0 0.0
    %858 = vmatprep.subr.mxu0 0.0
    %859 = vmatpush1.xpose.msra.mxu0 0.0
    %860 = vmatprep.subr.mxu0 0.0
    %861 = vmatpush1.xpose.msra.mxu0 0.0
    %862 = vmatprep.subr.mxu0 0.0
    %863 = vmatpush1.xpose.msra.mxu0 0.0
    %864 = vmatprep.subr.mxu0 0.0
    %865 = vmatpush1.xpose.msra.mxu0 0.0
    %866 = vmatprep.subr.mxu0 0.0
    %867 = vmatpush1.xpose.msra.mxu0 0.0
    %868 = vmatprep.subr.mxu0 0.0
    %869 = vmatpush1.xpose.msra.mxu0 0.0
    %870 = vmatprep.mubr.f32.mxu0 0.0
    %871 = vmatmul.mubr.f32.gmra.mrb[0].mxu0 %v802
    %v872 = vpop.f32.mrb[0].mxu0
    %v873 = vadd.f32 0.0, %v872
    %v874 = vpop.f32.mrb[0].mxu0
    %875 = vdwg.mxu0
    %v876 = vmul.f32 %v873, 0.35355338
    %v877 = vsel %vm394, %v876, -inf
    %878 = vmax.xlane.f32.xlu0 %v877
    %v879 = vpop.xlane.xlu0 %878
    %v880 = vsub.f32 %v876, %v879
    %v881 = vmul.f32 %v880, 1.442695
    %v882 = vpow.pop %v881
    %v883 = vsel %vm394, %v882, 0.0
    %884 = vadd.xlane.f32.xlu0 %v883
    %v885 = vpop.xlane.xlu0 %884
    %v886 = vrcp.pop %v885
    %v887 = vmul.f32 %v882, %v886
    %888 = vrot.lane.b32.xlu0 %v303, 48
    %v889 = vpop.permute.xlu0 %888
    %v891 = vsel %vm408, %v887, 0
    %v893 = vsel %vm412, %v889, 0
    %895 = vmatprep.subr.mxu0 0.0
    %896 = vmatpush1.msra.mxu0 %v893
    %897 = vmatprep.subr.mxu0 0.0
    %898 = vmatpush1.msra.mxu0 0.0
    %899 = vmatprep.subr.mxu0 0.0
    %900 = vmatpush1.msra.mxu0 0.0
    %901 = vmatprep.subr.mxu0 0.0
    %902 = vmatpush1.msra.mxu0 0.0
    %903 = vmatprep.subr.mxu0 0.0
    %904 = vmatpush1.msra.mxu0 0.0
    %905 = vmatprep.subr.mxu0 0.0
    %906 = vmatpush1.msra.mxu0 0.0
    %907 = vmatprep.subr.mxu0 0.0
    %908 = vmatpush1.msra.mxu0 0.0
    %909 = vmatprep.subr.mxu0 0.0
    %910 = vmatpush1.msra.mxu0 0.0
    %911 = vmatprep.subr.mxu0 0.0
    %912 = vmatpush1.msra.mxu0 0.0
    %913 = vmatprep.subr.mxu0 0.0
    %914 = vmatpush1.msra.mxu0 0.0
    %915 = vmatprep.subr.mxu0 0.0
    %916 = vmatpush1.msra.mxu0 0.0
    %917 = vmatprep.subr.mxu0 0.0
    %918 = vmatpush1.msra.mxu0 0.0
    %919 = vmatprep.subr.mxu0 0.0
    %920 = vmatpush1.msra.mxu0 0.0
    %921 = vmatprep.subr.mxu0 0.0
    %922 = vmatpush1.msra.mxu0 0.0
    %923 = vmatprep.subr.mxu0 0.0
    %924 = vmatpush1.msra.mxu0 0.0
    %925 = vmatprep.subr.mxu0 0.0
    %926 = vmatpush1.msra.mxu0 0.0
    %927 = vmatprep.subr.mxu0 0.0
    %928 = vmatpush1.msra.mxu0 0.0
    %929 = vmatprep.subr.mxu0 0.0
    %930 = vmatpush1.msra.mxu0 0.0
    %931 = vmatprep.subr.mxu0 0.0
    %932 = vmatpush1.msra.mxu0 0.0
    %933 = vmatprep.subr.mxu0 0.0
    %934 = vmatpush1.msra.mxu0 0.0
    %935 = vmatprep.subr.mxu0 0.0
    %936 = vmatpush1.msra.mxu0 0.0
    %937 = vmatprep.subr.mxu0 0.0
    %938 = vmatpush1.msra.mxu0 0.0
    %939 = vmatprep.subr.mxu0 0.0
    %940 = vmatpush1.msra.mxu0 0.0
    %941 = vmatprep.subr.mxu0 0.0
    %942 = vmatpush1.msra.mxu0 0.0
    %943 = vmatprep.subr.mxu0 0.0
    %944 = vmatpush1.msra.mxu0 0.0
    %945 = vmatprep.subr.mxu0 0.0
    %946 = vmatpush1.msra.mxu0 0.0
    %947 = vmatprep.subr.mxu0 0.0
    %948 = vmatpush1.msra.mxu0 0.0
    %949 = vmatprep.subr.mxu0 0.0
    %950 = vmatpush1.msra.mxu0 0.0
    %951 = vmatprep.subr.mxu0 0.0
    %952 = vmatpush1.msra.mxu0 0.0
    %953 = vmatprep.subr.mxu0 0.0
    %954 = vmatpush1.msra.mxu0 0.0
    %955 = vmatprep.subr.mxu0 0.0
    %956 = vmatpush1.msra.mxu0 0.0
    %957 = vmatprep.subr.mxu0 0.0
    %958 = vmatpush1.msra.mxu0 0.0
    %959 = vmatprep.mubr.f32.mxu0 0.0
    %960 = vmatmul.mubr.f32.gmra.mrb[0].mxu0 %v891
    %v961 = vpop.f32.mrb[0].mxu0
    %v962 = vadd.f32 0.0, %v961
    %v963 = vpop.f32.mrb[0].mxu0
    %964 = vdwg.mxu0
    %v966 = vsel %vm318, %v962, 0
    %968 = vmatprep.subr.mxu0 0.0
    %969 = vmatpush1.msra.mxu0 %v313
    %970 = vmatprep.subr.mxu0 0.0
    %971 = vmatpush1.msra.mxu0 0.0
    %972 = vmatprep.subr.mxu0 0.0
    %973 = vmatpush1.msra.mxu0 0.0
    %974 = vmatprep.subr.mxu0 0.0
    %975 = vmatpush1.msra.mxu0 0.0
    %976 = vmatprep.subr.mxu0 0.0
    %977 = vmatpush1.msra.mxu0 0.0
    %978 = vmatprep.subr.mxu0 0.0
    %979 = vmatpush1.msra.mxu0 0.0
    %980 = vmatprep.subr.mxu0 0.0
    %981 = vmatpush1.msra.mxu0 0.0
    %982 = vmatprep.subr.mxu0 0.0
    %983 = vmatpush1.msra.mxu0 0.0
    %984 = vmatprep.subr.mxu0 0.0
    %985 = vmatpush1.msra.mxu0 0.0
    %986 = vmatprep.subr.mxu0 0.0
    %987 = vmatpush1.msra.mxu0 0.0
    %988 = vmatprep.subr.mxu0 0.0
    %989 = vmatpush1.msra.mxu0 0.0
    %990 = vmatprep.subr.mxu0 0.0
    %991 = vmatpush1.msra.mxu0 0.0
    %992 = vmatprep.subr.mxu0 0.0
    %993 = vmatpush1.msra.mxu0 0.0
    %994 = vmatprep.subr.mxu0 0.0
    %995 = vmatpush1.msra.mxu0 0.0
    %996 = vmatprep.subr.mxu0 0.0
    %997 = vmatpush1.msra.mxu0 0.0
    %998 = vmatprep.subr.mxu0 0.0
    %999 = vmatpush1.msra.mxu0 0.0
    %1000 = vmatprep.subr.mxu0 0.0
    %1001 = vmatpush1.msra.mxu0 0.0
    %1002 = vmatprep.subr.mxu0 0.0
    %1003 = vmatpush1.msra.mxu0 0.0
    %1004 = vmatprep.subr.mxu0 0.0
    %1005 = vmatpush1.msra.mxu0 0.0
    %1006 = vmatprep.subr.mxu0 0.0
    %1007 = vmatpush1.msra.mxu0 0.0
    %1008 = vmatprep.subr.mxu0 0.0
    %1009 = vmatpush1.msra.mxu0 0.0
    %1010 = vmatprep.subr.mxu0 0.0
    %1011 = vmatpush1.msra.mxu0 0.0
    %1012 = vmatprep.subr.mxu0 0.0
    %1013 = vmatpush1.msra.mxu0 0.0
    %1014 = vmatprep.subr.mxu0 0.0
    %1015 = vmatpush1.msra.mxu0 0.0
    %1016 = vmatprep.subr.mxu0 0.0
    %1017 = vmatpush1.msra.mxu0 0.0
    %1018 = vmatprep.subr.mxu0 0.0
    %1019 = vmatpush1.msra.mxu0 0.0
    %1020 = vmatprep.subr.mxu0 0.0
    %1021 = vmatpush1.msra.mxu0 0.0
    %1022 = vmatprep.subr.mxu0 0.0
    %1023 = vmatpush1.msra.mxu0 0.0
    %1024 = vmatprep.subr.mxu0 0.0
    %1025 = vmatpush1.msra.mxu0 0.0
    %1026 = vmatprep.subr.mxu0 0.0
    %1027 = vmatpush1.msra.mxu0 0.0
    %1028 = vmatprep.subr.mxu0 0.0
    %1029 = vmatpush1.msra.mxu0 0.0
    %1030 = vmatprep.subr.mxu0 0.0
    %1031 = vmatpush1.msra.mxu0 0.0
    %1032 = vmatprep.mubr.f32.mxu0 0.0
    %1033 = vmatmul.mubr.f32.gmra.mrb[0].mxu0 %v966
    %v1034 = vpop.f32.mrb[0].mxu0
    %v1035 = vadd.f32 0.0, %v1034
    %v1036 = vpop.f32.mrb[0].mxu0
    %1037 = vdwg.mxu0
    %v1038 = vadd.f32 %v795, %v1035
    %1039 = vrot.lane.b32.xlu0 %v303, 104
    %v1040 = vpop.permute.xlu0 %1039
    %1041 = vrot.lane.b32.xlu0 %v303, 72
    %v1042 = vpop.permute.xlu0 %1041
    %v1043 = vsel %vm318, %v1040, 0
    %v1045 = vsel %vm318, %v1042, 0
    %1047 = vmatprep.subr.mxu0 0.0
    %1048 = vmatpush1.xpose.msra.mxu0 %v1045
    %1049 = vmatprep.subr.mxu0 0.0
    %1050 = vmatpush1.xpose.msra.mxu0 0.0
    %1051 = vmatprep.subr.mxu0 0.0
    %1052 = vmatpush1.xpose.msra.mxu0 0.0
    %1053 = vmatprep.subr.mxu0 0.0
    %1054 = vmatpush1.xpose.msra.mxu0 0.0
    %1055 = vmatprep.subr.mxu0 0.0
    %1056 = vmatpush1.xpose.msra.mxu0 0.0
    %1057 = vmatprep.subr.mxu0 0.0
    %1058 = vmatpush1.xpose.msra.mxu0 0.0
    %1059 = vmatprep.subr.mxu0 0.0
    %1060 = vmatpush1.xpose.msra.mxu0 0.0
    %1061 = vmatprep.subr.mxu0 0.0
    %1062 = vmatpush1.xpose.msra.mxu0 0.0
    %1063 = vmatprep.subr.mxu0 0.0
    %1064 = vmatpush1.xpose.msra.mxu0 0.0
    %1065 = vmatprep.subr.mxu0 0.0
    %1066 = vmatpush1.xpose.msra.mxu0 0.0
    %1067 = vmatprep.subr.mxu0 0.0
    %1068 = vmatpush1.xpose.msra.mxu0 0.0
    %1069 = vmatprep.subr.mxu0 0.0
    %1070 = vmatpush1.xpose.msra.mxu0 0.0
    %1071 = vmatprep.subr.mxu0 0.0
    %1072 = vmatpush1.xpose.msra.mxu0 0.0
    %1073 = vmatprep.subr.mxu0 0.0
    %1074 = vmatpush1.xpose.msra.mxu0 0.0
    %1075 = vmatprep.subr.mxu0 0.0
    %1076 = vmatpush1.xpose.msra.mxu0 0.0
    %1077 = vmatprep.subr.mxu0 0.0
    %1078 = vmatpush1.xpose.msra.mxu0 0.0
    %1079 = vmatprep.subr.mxu0 0.0
    %1080 = vmatpush1.xpose.msra.mxu0 0.0
    %1081 = vmatprep.subr.mxu0 0.0
    %1082 = vmatpush1.xpose.msra.mxu0 0.0
    %1083 = vmatprep.subr.mxu0 0.0
    %1084 = vmatpush1.xpose.msra.mxu0 0.0
    %1085 = vmatprep.subr.mxu0 0.0
    %1086 = vmatpush1.xpose.msra.mxu0 0.0
    %1087 = vmatprep.subr.mxu0 0.0
    %1088 = vmatpush1.xpose.msra.mxu0 0.0
    %1089 = vmatprep.subr.mxu0 0.0
    %1090 = vmatpush1.xpose.msra.mxu0 0.0
    %1091 = vmatprep.subr.mxu0 0.0
    %1092 = vmatpush1.xpose.msra.mxu0 0.0
    %1093 = vmatprep.subr.mxu0 0.0
    %1094 = vmatpush1.xpose.msra.mxu0 0.0
    %1095 = vmatprep.subr.mxu0 0.0
    %1096 = vmatpush1.xpose.msra.mxu0 0.0
    %1097 = vmatprep.subr.mxu0 0.0
    %1098 = vmatpush1.xpose.msra.mxu0 0.0
    %1099 = vmatprep.subr.mxu0 0.0
    %1100 = vmatpush1.xpose.msra.mxu0 0.0
    %1101 = vmatprep.subr.mxu0 0.0
    %1102 = vmatpush1.xpose.msra.mxu0 0.0
    %1103 = vmatprep.subr.mxu0 0.0
    %1104 = vmatpush1.xpose.msra.mxu0 0.0
    %1105 = vmatprep.subr.mxu0 0.0
    %1106 = vmatpush1.xpose.msra.mxu0 0.0
    %1107 = vmatprep.subr.mxu0 0.0
    %1108 = vmatpush1.xpose.msra.mxu0 0.0
    %1109 = vmatprep.subr.mxu0 0.0
    %1110 = vmatpush1.xpose.msra.mxu0 0.0
    %1111 = vmatprep.mubr.f32.mxu0 0.0
    %1112 = vmatmul.mubr.f32.gmra.mrb[0].mxu0 %v1043
    %v1113 = vpop.f32.mrb[0].mxu0
    %v1114 = vadd.f32 0.0, %v1113
    %v1115 = vpop.f32.mrb[0].mxu0
    %1116 = vdwg.mxu0
    %v1117 = vmul.f32 %v1114, 0.35355338
    %v1118 = vsel %vm394, %v1117, -inf
    %1119 = vmax.xlane.f32.xlu0 %v1118
    %v1120 = vpop.xlane.xlu0 %1119
    %v1121 = vsub.f32 %v1117, %v1120
    %v1122 = vmul.f32 %v1121, 1.442695
    %v1123 = vpow.pop %v1122
    %v1124 = vsel %vm394, %v1123, 0.0
    %1125 = vadd.xlane.f32.xlu0 %v1124
    %v1126 = vpop.xlane.xlu0 %1125
    %v1127 = vrcp.pop %v1126
    %v1128 = vmul.f32 %v1123, %v1127
    %1129 = vrot.lane.b32.xlu0 %v303, 40
    %v1130 = vpop.permute.xlu0 %1129
    %v1132 = vsel %vm408, %v1128, 0
    %v1134 = vsel %vm412, %v1130, 0
    %1136 = vmatprep.subr.mxu0 0.0
    %1137 = vmatpush1.msra.mxu0 %v1134
    %1138 = vmatprep.subr.mxu0 0.0
    %1139 = vmatpush1.msra.mxu0 0.0
    %1140 = vmatprep.subr.mxu0 0.0
    %1141 = vmatpush1.msra.mxu0 0.0
    %1142 = vmatprep.subr.mxu0 0.0
    %1143 = vmatpush1.msra.mxu0 0.0
    %1144 = vmatprep.subr.mxu0 0.0
    %1145 = vmatpush1.msra.mxu0 0.0
    %1146 = vmatprep.subr.mxu0 0.0
    %1147 = vmatpush1.msra.mxu0 0.0
    %1148 = vmatprep.subr.mxu0 0.0
    %1149 = vmatpush1.msra.mxu0 0.0
    %1150 = vmatprep.subr.mxu0 0.0
    %1151 = vmatpush1.msra.mxu0 0.0
    %1152 = vmatprep.subr.mxu0 0.0
    %1153 = vmatpush1.msra.mxu0 0.0
    %1154 = vmatprep.subr.mxu0 0.0
    %1155 = vmatpush1.msra.mxu0 0.0
    %1156 = vmatprep.subr.mxu0 0.0
    %1157 = vmatpush1.msra.mxu0 0.0
    %1158 = vmatprep.subr.mxu0 0.0
    %1159 = vmatpush1.msra.mxu0 0.0
    %1160 = vmatprep.subr.mxu0 0.0
    %1161 = vmatpush1.msra.mxu0 0.0
    %1162 = vmatprep.subr.mxu0 0.0
    %1163 = vmatpush1.msra.mxu0 0.0
    %1164 = vmatprep.subr.mxu0 0.0
    %1165 = vmatpush1.msra.mxu0 0.0
    %1166 = vmatprep.subr.mxu0 0.0
    %1167 = vmatpush1.msra.mxu0 0.0
    %1168 = vmatprep.subr.mxu0 0.0
    %1169 = vmatpush1.msra.mxu0 0.0
    %1170 = vmatprep.subr.mxu0 0.0
    %1171 = vmatpush1.msra.mxu0 0.0
    %1172 = vmatprep.subr.mxu0 0.0
    %1173 = vmatpush1.msra.mxu0 0.0
    %1174 = vmatprep.subr.mxu0 0.0
    %1175 = vmatpush1.msra.mxu0 0.0
    %1176 = vmatprep.subr.mxu0 0.0
    %1177 = vmatpush1.msra.mxu0 0.0
    %1178 = vmatprep.subr.mxu0 0.0
    %1179 = vmatpush1.msra.mxu0 0.0
    %1180 = vmatprep.subr.mxu0 0.0
    %1181 = vmatpush1.msra.mxu0 0.0
    %1182 = vmatprep.subr.mxu0 0.0
    %1183 = vmatpush1.msra.mxu0 0.0
    %1184 = vmatprep.subr.mxu0 0.0
    %1185 = vmatpush1.msra.mxu0 0.0
    %1186 = vmatprep.subr.mxu0 0.0
    %1187 = vmatpush1.msra.mxu0 0.0
    %1188 = vmatprep.subr.mxu0 0.0
    %1189 = vmatpush1.msra.mxu0 0.0
    %1190 = vmatprep.subr.mxu0 0.0
    %1191 = vmatpush1.msra.mxu0 0.0
    %1192 = vmatprep.subr.mxu0 0.0
    %1193 = vmatpush1.msra.mxu0 0.0
    %1194 = vmatprep.subr.mxu0 0.0
    %1195 = vmatpush1.msra.mxu0 0.0
    %1196 = vmatprep.subr.mxu0 0.0
    %1197 = vmatpush1.msra.mxu0 0.0
    %1198 = vmatprep.subr.mxu0 0.0
    %1199 = vmatpush1.msra.mxu0 0.0
    %1200 = vmatprep.mubr.f32.mxu0 0.0
    %1201 = vmatmul.mubr.f32.gmra.mrb[0].mxu0 %v1132
    %v1202 = vpop.f32.mrb[0].mxu0
    %v1203 = vadd.f32 0.0, %v1202
    %v1204 = vpop.f32.mrb[0].mxu0
    %1205 = vdwg.mxu0
    %v1207 = vsel %vm318, %v1203, 0
    %1209 = vmatprep.subr.mxu0 0.0
    %1210 = vmatpush1.msra.mxu0 %v314
    %1211 = vmatprep.subr.mxu0 0.0
    %1212 = vmatpush1.msra.mxu0 0.0
    %1213 = vmatprep.subr.mxu0 0.0
    %1214 = vmatpush1.msra.mxu0 0.0
    %1215 = vmatprep.subr.mxu0 0.0
    %1216 = vmatpush1.msra.mxu0 0.0
    %1217 = vmatprep.subr.mxu0 0.0
    %1218 = vmatpush1.msra.mxu0 0.0
    %1219 = vmatprep.subr.mxu0 0.0
    %1220 = vmatpush1.msra.mxu0 0.0
    %1221 = vmatprep.subr.mxu0 0.0
    %1222 = vmatpush1.msra.mxu0 0.0
    %1223 = vmatprep.subr.mxu0 0.0
    %1224 = vmatpush1.msra.mxu0 0.0
    %1225 = vmatprep.subr.mxu0 0.0
    %1226 = vmatpush1.msra.mxu0 0.0
    %1227 = vmatprep.subr.mxu0 0.0
    %1228 = vmatpush1.msra.mxu0 0.0
    %1229 = vmatprep.subr.mxu0 0.0
    %1230 = vmatpush1.msra.mxu0 0.0
    %1231 = vmatprep.subr.mxu0 0.0
    %1232 = vmatpush1.msra.mxu0 0.0
    %1233 = vmatprep.subr.mxu0 0.0
    %1234 = vmatpush1.msra.mxu0 0.0
    %1235 = vmatprep.subr.mxu0 0.0
    %1236 = vmatpush1.msra.mxu0 0.0
    %1237 = vmatprep.subr.mxu0 0.0
    %1238 = vmatpush1.msra.mxu0 0.0
    %1239 = vmatprep.subr.mxu0 0.0
    %1240 = vmatpush1.msra.mxu0 0.0
    %1241 = vmatprep.subr.mxu0 0.0
    %1242 = vmatpush1.msra.mxu0 0.0
    %1243 = vmatprep.subr.mxu0 0.0
    %1244 = vmatpush1.msra.mxu0 0.0
    %1245 = vmatprep.subr.mxu0 0.0
    %1246 = vmatpush1.msra.mxu0 0.0
    %1247 = vmatprep.subr.mxu0 0.0
    %1248 = vmatpush1.msra.mxu0 0.0
    %1249 = vmatprep.subr.mxu0 0.0
    %1250 = vmatpush1.msra.mxu0 0.0
    %1251 = vmatprep.subr.mxu0 0.0
    %1252 = vmatpush1.msra.mxu0 0.0
    %1253 = vmatprep.subr.mxu0 0.0
    %1254 = vmatpush1.msra.mxu0 0.0
    %1255 = vmatprep.subr.mxu0 0.0
    %1256 = vmatpush1.msra.mxu0 0.0
    %1257 = vmatprep.subr.mxu0 0.0
    %1258 = vmatpush1.msra.mxu0 0.0
    %1259 = vmatprep.subr.mxu0 0.0
    %1260 = vmatpush1.msra.mxu0 0.0
    %1261 = vmatprep.subr.mxu0 0.0
    %1262 = vmatpush1.msra.mxu0 0.0
    %1263 = vmatprep.subr.mxu0 0.0
    %1264 = vmatpush1.msra.mxu0 0.0
    %1265 = vmatprep.subr.mxu0 0.0
    %1266 = vmatpush1.msra.mxu0 0.0
    %1267 = vmatprep.subr.mxu0 0.0
    %1268 = vmatpush1.msra.mxu0 0.0
    %1269 = vmatprep.subr.mxu0 0.0
    %1270 = vmatpush1.msra.mxu0 0.0
    %1271 = vmatprep.subr.mxu0 0.0
    %1272 = vmatpush1.msra.mxu0 0.0
    %1273 = vmatprep.mubr.f32.mxu0 0.0
    %1274 = vmatmul.mubr.f32.gmra.mrb[0].mxu0 %v1207
    %v1275 = vpop.f32.mrb[0].mxu0
    %v1276 = vadd.f32 0.0, %v1275
    %v1277 = vpop.f32.mrb[0].mxu0
    %1278 = vdwg.mxu0
    %v1279 = vadd.f32 %v1038, %v1276
    %vm1280 = vcmask 258048
    %1281 = vst.msk [vmem:[#allocation2] sm:$0x1f] %vm1280, %v1279
    %vm1283 = vcmask 1042432
    %v1284 = vrot.slane %v303, 5
    %v1285 = vrot.slane %v308, 5
    %v1286 = vsel %vm1283, %v1284, %v1285
    %1287 = vrot.lane.b32.xlu0 %v1286, 96
    %v1288 = vpop.permute.xlu0 %1287
    %v1289 = vsel %vm318, %v1286, 0
    %v1291 = vsel %vm318, %v1288, 0
    %1293 = vmatprep.subr.mxu0 0.0
    %1294 = vmatpush1.xpose.msra.mxu0 %v1291
    %1295 = vmatprep.subr.mxu0 0.0
    %1296 = vmatpush1.xpose.msra.mxu0 0.0
    %1297 = vmatprep.subr.mxu0 0.0
    %1298 = vmatpush1.xpose.msra.mxu0 0.0
    %1299 = vmatprep.subr.mxu0 0.0
    %1300 = vmatpush1.xpose.msra.mxu0 0.0
    %1301 = vmatprep.subr.mxu0 0.0
    %1302 = vmatpush1.xpose.msra.mxu0 0.0
    %1303 = vmatprep.subr.mxu0 0.0
    %1304 = vmatpush1.xpose.msra.mxu0 0.0
    %1305 = vmatprep.subr.mxu0 0.0
    %1306 = vmatpush1.xpose.msra.mxu0 0.0
    %1307 = vmatprep.subr.mxu0 0.0
    %1308 = vmatpush1.xpose.msra.mxu0 0.0
    %1309 = vmatprep.subr.mxu0 0.0
    %1310 = vmatpush1.xpose.msra.mxu0 0.0
    %1311 = vmatprep.subr.mxu0 0.0
    %1312 = vmatpush1.xpose.msra.mxu0 0.0
    %1313 = vmatprep.subr.mxu0 0.0
    %1314 = vmatpush1.xpose.msra.mxu0 0.0
    %1315 = vmatprep.subr.mxu0 0.0
    %1316 = vmatpush1.xpose.msra.mxu0 0.0
    %1317 = vmatprep.subr.mxu0 0.0
    %1318 = vmatpush1.xpose.msra.mxu0 0.0
    %1319 = vmatprep.subr.mxu0 0.0
    %1320 = vmatpush1.xpose.msra.mxu0 0.0
    %1321 = vmatprep.subr.mxu0 0.0
    %1322 = vmatpush1.xpose.msra.mxu0 0.0
    %1323 = vmatprep.subr.mxu0 0.0
    %1324 = vmatpush1.xpose.msra.mxu0 0.0
    %1325 = vmatprep.subr.mxu0 0.0
    %1326 = vmatpush1.xpose.msra.mxu0 0.0
    %1327 = vmatprep.subr.mxu0 0.0
    %1328 = vmatpush1.xpose.msra.mxu0 0.0
    %1329 = vmatprep.subr.mxu0 0.0
    %1330 = vmatpush1.xpose.msra.mxu0 0.0
    %1331 = vmatprep.subr.mxu0 0.0
    %1332 = vmatpush1.xpose.msra.mxu0 0.0
    %1333 = vmatprep.subr.mxu0 0.0
    %1334 = vmatpush1.xpose.msra.mxu0 0.0
    %1335 = vmatprep.subr.mxu0 0.0
    %1336 = vmatpush1.xpose.msra.mxu0 0.0
    %1337 = vmatprep.subr.mxu0 0.0
    %1338 = vmatpush1.xpose.msra.mxu0 0.0
    %1339 = vmatprep.subr.mxu0 0.0
    %1340 = vmatpush1.xpose.msra.mxu0 0.0
    %1341 = vmatprep.subr.mxu0 0.0
    %1342 = vmatpush1.xpose.msra.mxu0 0.0
    %1343 = vmatprep.subr.mxu0 0.0
    %1344 = vmatpush1.xpose.msra.mxu0 0.0
    %1345 = vmatprep.subr.mxu0 0.0
    %1346 = vmatpush1.xpose.msra.mxu0 0.0
    %1347 = vmatprep.subr.mxu0 0.0
    %1348 = vmatpush1.xpose.msra.mxu0 0.0
    %1349 = vmatprep.subr.mxu0 0.0
    %1350 = vmatpush1.xpose.msra.mxu0 0.0
    %1351 = vmatprep.subr.mxu0 0.0
    %1352 = vmatpush1.xpose.msra.mxu0 0.0
    %1353 = vmatprep.subr.mxu0 0.0
    %1354 = vmatpush1.xpose.msra.mxu0 0.0
    %1355 = vmatprep.subr.mxu0 0.0
    %1356 = vmatpush1.xpose.msra.mxu0 0.0
    %1357 = vmatprep.mubr.f32.mxu0 0.0
    %1358 = vmatmul.mubr.f32.gmra.mrb[0].mxu0 %v1289
    %v1359 = vpop.f32.mrb[0].mxu0
    %v1360 = vadd.f32 0.0, %v1359
    %v1361 = vpop.f32.mrb[0].mxu0
    %1362 = vdwg.mxu0
    %v1363 = vmul.f32 %v1360, 0.35355338
    %v1364 = vsel %vm394, %v1363, -inf
    %1365 = vmax.xlane.f32.xlu0 %v1364
    %v1366 = vpop.xlane.xlu0 %1365
    %v1367 = vsub.f32 %v1363, %v1366
    %v1368 = vmul.f32 %v1367, 1.442695
    %v1369 = vpow.pop %v1368
    %v1370 = vsel %vm394, %v1369, 0.0
    %1371 = vadd.xlane.f32.xlu0 %v1370
    %v1372 = vpop.xlane.xlu0 %1371
    %v1373 = vrcp.pop %v1372
    %v1374 = vmul.f32 %v1369, %v1373
    %1375 = vrot.lane.b32.xlu0 %v1286, 64
    %v1376 = vpop.permute.xlu0 %1375
    %v1378 = vsel %vm408, %v1374, 0
    %v1380 = vsel %vm412, %v1376, 0
    %1382 = vmatprep.subr.mxu0 0.0
    %1383 = vmatpush1.msra.mxu0 %v1380
    %1384 = vmatprep.subr.mxu0 0.0
    %1385 = vmatpush1.msra.mxu0 0.0
    %1386 = vmatprep.subr.mxu0 0.0
    %1387 = vmatpush1.msra.mxu0 0.0
    %1388 = vmatprep.subr.mxu0 0.0
    %1389 = vmatpush1.msra.mxu0 0.0
    %1390 = vmatprep.subr.mxu0 0.0
    %1391 = vmatpush1.msra.mxu0 0.0
    %1392 = vmatprep.subr.mxu0 0.0
    %1393 = vmatpush1.msra.mxu0 0.0
    %1394 = vmatprep.subr.mxu0 0.0
    %1395 = vmatpush1.msra.mxu0 0.0
    %1396 = vmatprep.subr.mxu0 0.0
    %1397 = vmatpush1.msra.mxu0 0.0
    %1398 = vmatprep.subr.mxu0 0.0
    %1399 = vmatpush1.msra.mxu0 0.0
    %1400 = vmatprep.subr.mxu0 0.0
    %1401 = vmatpush1.msra.mxu0 0.0
    %1402 = vmatprep.subr.mxu0 0.0
    %1403 = vmatpush1.msra.mxu0 0.0
    %1404 = vmatprep.subr.mxu0 0.0
    %1405 = vmatpush1.msra.mxu0 0.0
    %1406 = vmatprep.subr.mxu0 0.0
    %1407 = vmatpush1.msra.mxu0 0.0
    %1408 = vmatprep.subr.mxu0 0.0
    %1409 = vmatpush1.msra.mxu0 0.0
    %1410 = vmatprep.subr.mxu0 0.0
    %1411 = vmatpush1.msra.mxu0 0.0
    %1412 = vmatprep.subr.mxu0 0.0
    %1413 = vmatpush1.msra.mxu0 0.0
    %1414 = vmatprep.subr.mxu0 0.0
    %1415 = vmatpush1.msra.mxu0 0.0
    %1416 = vmatprep.subr.mxu0 0.0
    %1417 = vmatpush1.msra.mxu0 0.0
    %1418 = vmatprep.subr.mxu0 0.0
    %1419 = vmatpush1.msra.mxu0 0.0
    %1420 = vmatprep.subr.mxu0 0.0
    %1421 = vmatpush1.msra.mxu0 0.0
    %1422 = vmatprep.subr.mxu0 0.0
    %1423 = vmatpush1.msra.mxu0 0.0
    %1424 = vmatprep.subr.mxu0 0.0
    %1425 = vmatpush1.msra.mxu0 0.0
    %1426 = vmatprep.subr.mxu0 0.0
    %1427 = vmatpush1.msra.mxu0 0.0
    %1428 = vmatprep.subr.mxu0 0.0
    %1429 = vmatpush1.msra.mxu0 0.0
    %1430 = vmatprep.subr.mxu0 0.0
    %1431 = vmatpush1.msra.mxu0 0.0
    %1432 = vmatprep.subr.mxu0 0.0
    %1433 = vmatpush1.msra.mxu0 0.0
    %1434 = vmatprep.subr.mxu0 0.0
    %1435 = vmatpush1.msra.mxu0 0.0
    %1436 = vmatprep.subr.mxu0 0.0
    %1437 = vmatpush1.msra.mxu0 0.0
    %1438 = vmatprep.subr.mxu0 0.0
    %1439 = vmatpush1.msra.mxu0 0.0
    %1440 = vmatprep.subr.mxu0 0.0
    %1441 = vmatpush1.msra.mxu0 0.0
    %1442 = vmatprep.subr.mxu0 0.0
    %1443 = vmatpush1.msra.mxu0 0.0
    %1444 = vmatprep.subr.mxu0 0.0
    %1445 = vmatpush1.msra.mxu0 0.0
    %1446 = vmatprep.mubr.f32.mxu0 0.0
    %1447 = vmatmul.mubr.f32.gmra.mrb[0].mxu0 %v1378
    %v1448 = vpop.f32.mrb[0].mxu0
    %v1449 = vadd.f32 0.0, %v1448
    %v1450 = vpop.f32.mrb[0].mxu0
    %1451 = vdwg.mxu0
    %1452 = vrot.lane.b32.xlu0 %v1286, 120
    %v1453 = vpop.permute.xlu0 %1452
    %1454 = vrot.lane.b32.xlu0 %v1286, 88
    %v1455 = vpop.permute.xlu0 %1454
    %v1456 = vsel %vm318, %v1453, 0
    %v1458 = vsel %vm318, %v1455, 0
    %1460 = vmatprep.subr.mxu0 0.0
    %1461 = vmatpush1.xpose.msra.mxu0 %v1458
    %1462 = vmatprep.subr.mxu0 0.0
    %1463 = vmatpush1.xpose.msra.mxu0 0.0
    %1464 = vmatprep.subr.mxu0 0.0
    %1465 = vmatpush1.xpose.msra.mxu0 0.0
    %1466 = vmatprep.subr.mxu0 0.0
    %1467 = vmatpush1.xpose.msra.mxu0 0.0
    %1468 = vmatprep.subr.mxu0 0.0
    %1469 = vmatpush1.xpose.msra.mxu0 0.0
    %1470 = vmatprep.subr.mxu0 0.0
    %1471 = vmatpush1.xpose.msra.mxu0 0.0
    %1472 = vmatprep.subr.mxu0 0.0
    %1473 = vmatpush1.xpose.msra.mxu0 0.0
    %1474 = vmatprep.subr.mxu0 0.0
    %1475 = vmatpush1.xpose.msra.mxu0 0.0
    %1476 = vmatprep.subr.mxu0 0.0
    %1477 = vmatpush1.xpose.msra.mxu0 0.0
    %1478 = vmatprep.subr.mxu0 0.0
    %1479 = vmatpush1.xpose.msra.mxu0 0.0
    %1480 = vmatprep.subr.mxu0 0.0
    %1481 = vmatpush1.xpose.msra.mxu0 0.0
    %1482 = vmatprep.subr.mxu0 0.0
    %1483 = vmatpush1.xpose.msra.mxu0 0.0
    %1484 = vmatprep.subr.mxu0 0.0
    %1485 = vmatpush1.xpose.msra.mxu0 0.0
    %1486 = vmatprep.subr.mxu0 0.0
    %1487 = vmatpush1.xpose.msra.mxu0 0.0
    %1488 = vmatprep.subr.mxu0 0.0
    %1489 = vmatpush1.xpose.msra.mxu0 0.0
    %1490 = vmatprep.subr.mxu0 0.0
    %1491 = vmatpush1.xpose.msra.mxu0 0.0
    %1492 = vmatprep.subr.mxu0 0.0
    %1493 = vmatpush1.xpose.msra.mxu0 0.0
    %1494 = vmatprep.subr.mxu0 0.0
    %1495 = vmatpush1.xpose.msra.mxu0 0.0
    %1496 = vmatprep.subr.mxu0 0.0
    %1497 = vmatpush1.xpose.msra.mxu0 0.0
    %1498 = vmatprep.subr.mxu0 0.0
    %1499 = vmatpush1.xpose.msra.mxu0 0.0
    %1500 = vmatprep.subr.mxu0 0.0
    %1501 = vmatpush1.xpose.msra.mxu0 0.0
    %1502 = vmatprep.subr.mxu0 0.0
    %1503 = vmatpush1.xpose.msra.mxu0 0.0
    %1504 = vmatprep.subr.mxu0 0.0
    %1505 = vmatpush1.xpose.msra.mxu0 0.0
    %1506 = vmatprep.subr.mxu0 0.0
    %1507 = vmatpush1.xpose.msra.mxu0 0.0
    %1508 = vmatprep.subr.mxu0 0.0
    %1509 = vmatpush1.xpose.msra.mxu0 0.0
    %1510 = vmatprep.subr.mxu0 0.0
    %1511 = vmatpush1.xpose.msra.mxu0 0.0
    %1512 = vmatprep.subr.mxu0 0.0
    %1513 = vmatpush1.xpose.msra.mxu0 0.0
    %1514 = vmatprep.subr.mxu0 0.0
    %1515 = vmatpush1.xpose.msra.mxu0 0.0
    %1516 = vmatprep.subr.mxu0 0.0
    %1517 = vmatpush1.xpose.msra.mxu0 0.0
    %1518 = vmatprep.subr.mxu0 0.0
    %1519 = vmatpush1.xpose.msra.mxu0 0.0
    %1520 = vmatprep.subr.mxu0 0.0
    %1521 = vmatpush1.xpose.msra.mxu0 0.0
    %1522 = vmatprep.subr.mxu0 0.0
    %1523 = vmatpush1.xpose.msra.mxu0 0.0
    %1524 = vmatprep.mubr.f32.mxu0 0.0
    %1525 = vmatmul.mubr.f32.gmra.mrb[0].mxu0 %v1456
    %v1526 = vpop.f32.mrb[0].mxu0
    %v1527 = vadd.f32 0.0, %v1526
    %v1528 = vpop.f32.mrb[0].mxu0
    %1529 = vdwg.mxu0
    %v1530 = vmul.f32 %v1527, 0.35355338
    %v1531 = vsel %vm394, %v1530, -inf
    %1532 = vmax.xlane.f32.xlu0 %v1531
    %v1533 = vpop.xlane.xlu0 %1532
    %v1534 = vsub.f32 %v1530, %v1533
    %v1535 = vmul.f32 %v1534, 1.442695
    %v1536 = vpow.pop %v1535
    %v1537 = vsel %vm394, %v1536, 0.0
    %1538 = vadd.xlane.f32.xlu0 %v1537
    %v1539 = vpop.xlane.xlu0 %1538
    %v1540 = vrcp.pop %v1539
    %v1541 = vmul.f32 %v1536, %v1540
    %1542 = vrot.lane.b32.xlu0 %v1286, 56
    %v1543 = vpop.permute.xlu0 %1542
    %v1545 = vsel %vm408, %v1541, 0
    %v1547 = vsel %vm412, %v1543, 0
    %1549 = vmatprep.subr.mxu0 0.0
    %1550 = vmatpush1.msra.mxu0 %v1547
    %1551 = vmatprep.subr.mxu0 0.0
    %1552 = vmatpush1.msra.mxu0 0.0
    %1553 = vmatprep.subr.mxu0 0.0
    %1554 = vmatpush1.msra.mxu0 0.0
    %1555 = vmatprep.subr.mxu0 0.0
    %1556 = vmatpush1.msra.mxu0 0.0
    %1557 = vmatprep.subr.mxu0 0.0
    %1558 = vmatpush1.msra.mxu0 0.0
    %1559 = vmatprep.subr.mxu0 0.0
    %1560 = vmatpush1.msra.mxu0 0.0
    %1561 = vmatprep.subr.mxu0 0.0
    %1562 = vmatpush1.msra.mxu0 0.0
    %1563 = vmatprep.subr.mxu0 0.0
    %1564 = vmatpush1.msra.mxu0 0.0
    %1565 = vmatprep.subr.mxu0 0.0
    %1566 = vmatpush1.msra.mxu0 0.0
    %1567 = vmatprep.subr.mxu0 0.0
    %1568 = vmatpush1.msra.mxu0 0.0
    %1569 = vmatprep.subr.mxu0 0.0
    %1570 = vmatpush1.msra.mxu0 0.0
    %1571 = vmatprep.subr.mxu0 0.0
    %1572 = vmatpush1.msra.mxu0 0.0
    %1573 = vmatprep.subr.mxu0 0.0
    %1574 = vmatpush1.msra.mxu0 0.0
    %1575 = vmatprep.subr.mxu0 0.0
    %1576 = vmatpush1.msra.mxu0 0.0
    %1577 = vmatprep.subr.mxu0 0.0
    %1578 = vmatpush1.msra.mxu0 0.0
    %1579 = vmatprep.subr.mxu0 0.0
    %1580 = vmatpush1.msra.mxu0 0.0
    %1581 = vmatprep.subr.mxu0 0.0
    %1582 = vmatpush1.msra.mxu0 0.0
    %1583 = vmatprep.subr.mxu0 0.0
    %1584 = vmatpush1.msra.mxu0 0.0
    %1585 = vmatprep.subr.mxu0 0.0
    %1586 = vmatpush1.msra.mxu0 0.0
    %1587 = vmatprep.subr.mxu0 0.0
    %1588 = vmatpush1.msra.mxu0 0.0
    %1589 = vmatprep.subr.mxu0 0.0
    %1590 = vmatpush1.msra.mxu0 0.0
    %1591 = vmatprep.subr.mxu0 0.0
    %1592 = vmatpush1.msra.mxu0 0.0
    %1593 = vmatprep.subr.mxu0 0.0
    %1594 = vmatpush1.msra.mxu0 0.0
    %1595 = vmatprep.subr.mxu0 0.0
    %1596 = vmatpush1.msra.mxu0 0.0
    %1597 = vmatprep.subr.mxu0 0.0
    %1598 = vmatpush1.msra.mxu0 0.0
    %1599 = vmatprep.subr.mxu0 0.0
    %1600 = vmatpush1.msra.mxu0 0.0
    %1601 = vmatprep.subr.mxu0 0.0
    %1602 = vmatpush1.msra.mxu0 0.0
    %1603 = vmatprep.subr.mxu0 0.0
    %1604 = vmatpush1.msra.mxu0 0.0
    %1605 = vmatprep.subr.mxu0 0.0
    %1606 = vmatpush1.msra.mxu0 0.0
    %1607 = vmatprep.subr.mxu0 0.0
    %1608 = vmatpush1.msra.mxu0 0.0
    %1609 = vmatprep.subr.mxu0 0.0
    %1610 = vmatpush1.msra.mxu0 0.0
    %1611 = vmatprep.subr.mxu0 0.0
    %1612 = vmatpush1.msra.mxu0 0.0
    %1613 = vmatprep.mubr.f32.mxu0 0.0
    %1614 = vmatmul.mubr.f32.gmra.mrb[0].mxu0 %v1545
    %v1615 = vpop.f32.mrb[0].mxu0
    %v1616 = vadd.f32 0.0, %v1615
    %v1617 = vpop.f32.mrb[0].mxu0
    %1618 = vdwg.mxu0
    %v1620 = vsel %vm318, %v1616, 0
    %1622 = vmatprep.subr.mxu0 0.0
    %1623 = vmatpush1.msra.mxu0 %v312
    %1624 = vmatprep.subr.mxu0 0.0
    %1625 = vmatpush1.msra.mxu0 0.0
    %1626 = vmatprep.subr.mxu0 0.0
    %1627 = vmatpush1.msra.mxu0 0.0
    %1628 = vmatprep.subr.mxu0 0.0
    %1629 = vmatpush1.msra.mxu0 0.0
    %1630 = vmatprep.subr.mxu0 0.0
    %1631 = vmatpush1.msra.mxu0 0.0
    %1632 = vmatprep.subr.mxu0 0.0
    %1633 = vmatpush1.msra.mxu0 0.0
    %1634 = vmatprep.subr.mxu0 0.0
    %1635 = vmatpush1.msra.mxu0 0.0
    %1636 = vmatprep.subr.mxu0 0.0
    %1637 = vmatpush1.msra.mxu0 0.0
    %1638 = vmatprep.subr.mxu0 0.0
    %1639 = vmatpush1.msra.mxu0 0.0
    %1640 = vmatprep.subr.mxu0 0.0
    %1641 = vmatpush1.msra.mxu0 0.0
    %1642 = vmatprep.subr.mxu0 0.0
    %1643 = vmatpush1.msra.mxu0 0.0
    %1644 = vmatprep.subr.mxu0 0.0
    %1645 = vmatpush1.msra.mxu0 0.0
    %1646 = vmatprep.subr.mxu0 0.0
    %1647 = vmatpush1.msra.mxu0 0.0
    %1648 = vmatprep.subr.mxu0 0.0
    %1649 = vmatpush1.msra.mxu0 0.0
    %1650 = vmatprep.subr.mxu0 0.0
    %1651 = vmatpush1.msra.mxu0 0.0
    %1652 = vmatprep.subr.mxu0 0.0
    %1653 = vmatpush1.msra.mxu0 0.0
    %1654 = vmatprep.subr.mxu0 0.0
    %1655 = vmatpush1.msra.mxu0 0.0
    %1656 = vmatprep.subr.mxu0 0.0
    %1657 = vmatpush1.msra.mxu0 0.0
    %1658 = vmatprep.subr.mxu0 0.0
    %1659 = vmatpush1.msra.mxu0 0.0
    %1660 = vmatprep.subr.mxu0 0.0
    %1661 = vmatpush1.msra.mxu0 0.0
    %1662 = vmatprep.subr.mxu0 0.0
    %1663 = vmatpush1.msra.mxu0 0.0
    %1664 = vmatprep.subr.mxu0 0.0
    %1665 = vmatpush1.msra.mxu0 0.0
    %1666 = vmatprep.subr.mxu0 0.0
    %1667 = vmatpush1.msra.mxu0 0.0
    %1668 = vmatprep.subr.mxu0 0.0
    %1669 = vmatpush1.msra.mxu0 0.0
    %1670 = vmatprep.subr.mxu0 0.0
    %1671 = vmatpush1.msra.mxu0 0.0
    %1672 = vmatprep.subr.mxu0 0.0
    %1673 = vmatpush1.msra.mxu0 0.0
    %1674 = vmatprep.subr.mxu0 0.0
    %1675 = vmatpush1.msra.mxu0 0.0
    %1676 = vmatprep.subr.mxu0 0.0
    %1677 = vmatpush1.msra.mxu0 0.0
    %1678 = vmatprep.subr.mxu0 0.0
    %1679 = vmatpush1.msra.mxu0 0.0
    %1680 = vmatprep.subr.mxu0 0.0
    %1681 = vmatpush1.msra.mxu0 0.0
    %1682 = vmatprep.subr.mxu0 0.0
    %1683 = vmatpush1.msra.mxu0 0.0
    %1684 = vmatprep.subr.mxu0 0.0
    %1685 = vmatpush1.msra.mxu0 0.0
    %1686 = vmatprep.mubr.f32.mxu0 0.0
    %1687 = vmatmul.mubr.f32.gmra.mrb[0].mxu0 %v1620
    %v1688 = vpop.f32.mrb[0].mxu0
    %v1689 = vadd.f32 0.0, %v1688
    %v1690 = vpop.f32.mrb[0].mxu0
    %1691 = vdwg.mxu0
    %v1693 = vsel %vm318, %v1449, 0
    %1695 = vmatprep.subr.mxu0 0.0
    %1696 = vmatpush1.msra.mxu0 %v311
    %1697 = vmatprep.subr.mxu0 0.0
    %1698 = vmatpush1.msra.mxu0 0.0
    %1699 = vmatprep.subr.mxu0 0.0
    %1700 = vmatpush1.msra.mxu0 0.0
    %1701 = vmatprep.subr.mxu0 0.0
    %1702 = vmatpush1.msra.mxu0 0.0
    %1703 = vmatprep.subr.mxu0 0.0
    %1704 = vmatpush1.msra.mxu0 0.0
    %1705 = vmatprep.subr.mxu0 0.0
    %1706 = vmatpush1.msra.mxu0 0.0
    %1707 = vmatprep.subr.mxu0 0.0
    %1708 = vmatpush1.msra.mxu0 0.0
    %1709 = vmatprep.subr.mxu0 0.0
    %1710 = vmatpush1.msra.mxu0 0.0
    %1711 = vmatprep.subr.mxu0 0.0
    %1712 = vmatpush1.msra.mxu0 0.0
    %1713 = vmatprep.subr.mxu0 0.0
    %1714 = vmatpush1.msra.mxu0 0.0
    %1715 = vmatprep.subr.mxu0 0.0
    %1716 = vmatpush1.msra.mxu0 0.0
    %1717 = vmatprep.subr.mxu0 0.0
    %1718 = vmatpush1.msra.mxu0 0.0
    %1719 = vmatprep.subr.mxu0 0.0
    %1720 = vmatpush1.msra.mxu0 0.0
    %1721 = vmatprep.subr.mxu0 0.0
    %1722 = vmatpush1.msra.mxu0 0.0
    %1723 = vmatprep.subr.mxu0 0.0
    %1724 = vmatpush1.msra.mxu0 0.0
    %1725 = vmatprep.subr.mxu0 0.0
    %1726 = vmatpush1.msra.mxu0 0.0
    %1727 = vmatprep.subr.mxu0 0.0
    %1728 = vmatpush1.msra.mxu0 0.0
    %1729 = vmatprep.subr.mxu0 0.0
    %1730 = vmatpush1.msra.mxu0 0.0
    %1731 = vmatprep.subr.mxu0 0.0
    %1732 = vmatpush1.msra.mxu0 0.0
    %1733 = vmatprep.subr.mxu0 0.0
    %1734 = vmatpush1.msra.mxu0 0.0
    %1735 = vmatprep.subr.mxu0 0.0
    %1736 = vmatpush1.msra.mxu0 0.0
    %1737 = vmatprep.subr.mxu0 0.0
    %1738 = vmatpush1.msra.mxu0 0.0
    %1739 = vmatprep.subr.mxu0 0.0
    %1740 = vmatpush1.msra.mxu0 0.0
    %1741 = vmatprep.subr.mxu0 0.0
    %1742 = vmatpush1.msra.mxu0 0.0
    %1743 = vmatprep.subr.mxu0 0.0
    %1744 = vmatpush1.msra.mxu0 0.0
    %1745 = vmatprep.subr.mxu0 0.0
    %1746 = vmatpush1.msra.mxu0 0.0
    %1747 = vmatprep.subr.mxu0 0.0
    %1748 = vmatpush1.msra.mxu0 0.0
    %1749 = vmatprep.subr.mxu0 0.0
    %1750 = vmatpush1.msra.mxu0 0.0
    %1751 = vmatprep.subr.mxu0 0.0
    %1752 = vmatpush1.msra.mxu0 0.0
    %1753 = vmatprep.subr.mxu0 0.0
    %1754 = vmatpush1.msra.mxu0 0.0
    %1755 = vmatprep.subr.mxu0 0.0
    %1756 = vmatpush1.msra.mxu0 0.0
    %1757 = vmatprep.subr.mxu0 0.0
    %1758 = vmatpush1.msra.mxu0 0.0
    %1759 = vmatprep.mubr.f32.mxu0 0.0
    %1760 = vmatmul.mubr.f32.gmra.mrb[0].mxu0 %v1693
    %v1761 = vpop.f32.mrb[0].mxu0
    %v1762 = vadd.f32 %v1689, %v1761
    %v1763 = vpop.f32.mrb[0].mxu0
    %1764 = vdwg.mxu0
    %1765 = vrot.lane.b32.xlu0 %v1286, 112
    %v1766 = vpop.permute.xlu0 %1765
    %1767 = vrot.lane.b32.xlu0 %v1286, 80
    %v1768 = vpop.permute.xlu0 %1767
    %v1769 = vsel %vm318, %v1766, 0
    %v1771 = vsel %vm318, %v1768, 0
    %1773 = vmatprep.subr.mxu0 0.0
    %1774 = vmatpush1.xpose.msra.mxu0 %v1771
    %1775 = vmatprep.subr.mxu0 0.0
    %1776 = vmatpush1.xpose.msra.mxu0 0.0
    %1777 = vmatprep.subr.mxu0 0.0
    %1778 = vmatpush1.xpose.msra.mxu0 0.0
    %1779 = vmatprep.subr.mxu0 0.0
    %1780 = vmatpush1.xpose.msra.mxu0 0.0
    %1781 = vmatprep.subr.mxu0 0.0
    %1782 = vmatpush1.xpose.msra.mxu0 0.0
    %1783 = vmatprep.subr.mxu0 0.0
    %1784 = vmatpush1.xpose.msra.mxu0 0.0
    %1785 = vmatprep.subr.mxu0 0.0
    %1786 = vmatpush1.xpose.msra.mxu0 0.0
    %1787 = vmatprep.subr.mxu0 0.0
    %1788 = vmatpush1.xpose.msra.mxu0 0.0
    %1789 = vmatprep.subr.mxu0 0.0
    %1790 = vmatpush1.xpose.msra.mxu0 0.0
    %1791 = vmatprep.subr.mxu0 0.0
    %1792 = vmatpush1.xpose.msra.mxu0 0.0
    %1793 = vmatprep.subr.mxu0 0.0
    %1794 = vmatpush1.xpose.msra.mxu0 0.0
    %1795 = vmatprep.subr.mxu0 0.0
    %1796 = vmatpush1.xpose.msra.mxu0 0.0
    %1797 = vmatprep.subr.mxu0 0.0
    %1798 = vmatpush1.xpose.msra.mxu0 0.0
    %1799 = vmatprep.subr.mxu0 0.0
    %1800 = vmatpush1.xpose.msra.mxu0 0.0
    %1801 = vmatprep.subr.mxu0 0.0
    %1802 = vmatpush1.xpose.msra.mxu0 0.0
    %1803 = vmatprep.subr.mxu0 0.0
    %1804 = vmatpush1.xpose.msra.mxu0 0.0
    %1805 = vmatprep.subr.mxu0 0.0
    %1806 = vmatpush1.xpose.msra.mxu0 0.0
    %1807 = vmatprep.subr.mxu0 0.0
    %1808 = vmatpush1.xpose.msra.mxu0 0.0
    %1809 = vmatprep.subr.mxu0 0.0
    %1810 = vmatpush1.xpose.msra.mxu0 0.0
    %1811 = vmatprep.subr.mxu0 0.0
    %1812 = vmatpush1.xpose.msra.mxu0 0.0
    %1813 = vmatprep.subr.mxu0 0.0
    %1814 = vmatpush1.xpose.msra.mxu0 0.0
    %1815 = vmatprep.subr.mxu0 0.0
    %1816 = vmatpush1.xpose.msra.mxu0 0.0
    %1817 = vmatprep.subr.mxu0 0.0
    %1818 = vmatpush1.xpose.msra.mxu0 0.0
    %1819 = vmatprep.subr.mxu0 0.0
    %1820 = vmatpush1.xpose.msra.mxu0 0.0
    %1821 = vmatprep.subr.mxu0 0.0
    %1822 = vmatpush1.xpose.msra.mxu0 0.0
    %1823 = vmatprep.subr.mxu0 0.0
    %1824 = vmatpush1.xpose.msra.mxu0 0.0
    %1825 = vmatprep.subr.mxu0 0.0
    %1826 = vmatpush1.xpose.msra.mxu0 0.0
    %1827 = vmatprep.subr.mxu0 0.0
    %1828 = vmatpush1.xpose.msra.mxu0 0.0
    %1829 = vmatprep.subr.mxu0 0.0
    %1830 = vmatpush1.xpose.msra.mxu0 0.0
    %1831 = vmatprep.subr.mxu0 0.0
    %1832 = vmatpush1.xpose.msra.mxu0 0.0
    %1833 = vmatprep.subr.mxu0 0.0
    %1834 = vmatpush1.xpose.msra.mxu0 0.0
    %1835 = vmatprep.subr.mxu0 0.0
    %1836 = vmatpush1.xpose.msra.mxu0 0.0
    %1837 = vmatprep.mubr.f32.mxu0 0.0
    %1838 = vmatmul.mubr.f32.gmra.mrb[0].mxu0 %v1769
    %v1839 = vpop.f32.mrb[0].mxu0
    %v1840 = vadd.f32 0.0, %v1839
    %v1841 = vpop.f32.mrb[0].mxu0
    %1842 = vdwg.mxu0
    %v1843 = vmul.f32 %v1840, 0.35355338
    %v1844 = vsel %vm394, %v1843, -inf
    %1845 = vmax.xlane.f32.xlu0 %v1844
    %v1846 = vpop.xlane.xlu0 %1845
    %v1847 = vsub.f32 %v1843, %v1846
    %v1848 = vmul.f32 %v1847, 1.442695
    %v1849 = vpow.pop %v1848
    %v1850 = vsel %vm394, %v1849, 0.0
    %1851 = vadd.xlane.f32.xlu0 %v1850
    %v1852 = vpop.xlane.xlu0 %1851
    %v1853 = vrcp.pop %v1852
    %v1854 = vmul.f32 %v1849, %v1853
    %1855 = vrot.lane.b32.xlu0 %v1286, 48
    %v1856 = vpop.permute.xlu0 %1855
    %v1858 = vsel %vm408, %v1854, 0
    %v1860 = vsel %vm412, %v1856, 0
    %1862 = vmatprep.subr.mxu0 0.0
    %1863 = vmatpush1.msra.mxu0 %v1860
    %1864 = vmatprep.subr.mxu0 0.0
    %1865 = vmatpush1.msra.mxu0 0.0
    %1866 = vmatprep.subr.mxu0 0.0
    %1867 = vmatpush1.msra.mxu0 0.0
    %1868 = vmatprep.subr.mxu0 0.0
    %1869 = vmatpush1.msra.mxu0 0.0
    %1870 = vmatprep.subr.mxu0 0.0
    %1871 = vmatpush1.msra.mxu0 0.0
    %1872 = vmatprep.subr.mxu0 0.0
    %1873 = vmatpush1.msra.mxu0 0.0
    %1874 = vmatprep.subr.mxu0 0.0
    %1875 = vmatpush1.msra.mxu0 0.0
    %1876 = vmatprep.subr.mxu0 0.0
    %1877 = vmatpush1.msra.mxu0 0.0
    %1878 = vmatprep.subr.mxu0 0.0
    %1879 = vmatpush1.msra.mxu0 0.0
    %1880 = vmatprep.subr.mxu0 0.0
    %1881 = vmatpush1.msra.mxu0 0.0
    %1882 = vmatprep.subr.mxu0 0.0
    %1883 = vmatpush1.msra.mxu0 0.0
    %1884 = vmatprep.subr.mxu0 0.0
    %1885 = vmatpush1.msra.mxu0 0.0
    %1886 = vmatprep.subr.mxu0 0.0
    %1887 = vmatpush1.msra.mxu0 0.0
    %1888 = vmatprep.subr.mxu0 0.0
    %1889 = vmatpush1.msra.mxu0 0.0
    %1890 = vmatprep.subr.mxu0 0.0
    %1891 = vmatpush1.msra.mxu0 0.0
    %1892 = vmatprep.subr.mxu0 0.0
    %1893 = vmatpush1.msra.mxu0 0.0
    %1894 = vmatprep.subr.mxu0 0.0
    %1895 = vmatpush1.msra.mxu0 0.0
    %1896 = vmatprep.subr.mxu0 0.0
    %1897 = vmatpush1.msra.mxu0 0.0
    %1898 = vmatprep.subr.mxu0 0.0
    %1899 = vmatpush1.msra.mxu0 0.0
    %1900 = vmatprep.subr.mxu0 0.0
    %1901 = vmatpush1.msra.mxu0 0.0
    %1902 = vmatprep.subr.mxu0 0.0
    %1903 = vmatpush1.msra.mxu0 0.0
    %1904 = vmatprep.subr.mxu0 0.0
    %1905 = vmatpush1.msra.mxu0 0.0
    %1906 = vmatprep.subr.mxu0 0.0
    %1907 = vmatpush1.msra.mxu0 0.0
    %1908 = vmatprep.subr.mxu0 0.0
    %1909 = vmatpush1.msra.mxu0 0.0
    %1910 = vmatprep.subr.mxu0 0.0
    %1911 = vmatpush1.msra.mxu0 0.0
    %1912 = vmatprep.subr.mxu0 0.0
    %1913 = vmatpush1.msra.mxu0 0.0
    %1914 = vmatprep.subr.mxu0 0.0
    %1915 = vmatpush1.msra.mxu0 0.0
    %1916 = vmatprep.subr.mxu0 0.0
    %1917 = vmatpush1.msra.mxu0 0.0
    %1918 = vmatprep.subr.mxu0 0.0
    %1919 = vmatpush1.msra.mxu0 0.0
    %1920 = vmatprep.subr.mxu0 0.0
    %1921 = vmatpush1.msra.mxu0 0.0
    %1922 = vmatprep.subr.mxu0 0.0
    %1923 = vmatpush1.msra.mxu0 0.0
    %1924 = vmatprep.subr.mxu0 0.0
    %1925 = vmatpush1.msra.mxu0 0.0
    %1926 = vmatprep.mubr.f32.mxu0 0.0
    %1927 = vmatmul.mubr.f32.gmra.mrb[0].mxu0 %v1858
    %v1928 = vpop.f32.mrb[0].mxu0
    %v1929 = vadd.f32 0.0, %v1928
    %v1930 = vpop.f32.mrb[0].mxu0
    %1931 = vdwg.mxu0
    %v1933 = vsel %vm318, %v1929, 0
    %1935 = vmatprep.subr.mxu0 0.0
    %1936 = vmatpush1.msra.mxu0 %v313
    %1937 = vmatprep.subr.mxu0 0.0
    %1938 = vmatpush1.msra.mxu0 0.0
    %1939 = vmatprep.subr.mxu0 0.0
    %1940 = vmatpush1.msra.mxu0 0.0
    %1941 = vmatprep.subr.mxu0 0.0
    %1942 = vmatpush1.msra.mxu0 0.0
    %1943 = vmatprep.subr.mxu0 0.0
    %1944 = vmatpush1.msra.mxu0 0.0
    %1945 = vmatprep.subr.mxu0 0.0
    %1946 = vmatpush1.msra.mxu0 0.0
    %1947 = vmatprep.subr.mxu0 0.0
    %1948 = vmatpush1.msra.mxu0 0.0
    %1949 = vmatprep.subr.mxu0 0.0
    %1950 = vmatpush1.msra.mxu0 0.0
    %1951 = vmatprep.subr.mxu0 0.0
    %1952 = vmatpush1.msra.mxu0 0.0
    %1953 = vmatprep.subr.mxu0 0.0
    %1954 = vmatpush1.msra.mxu0 0.0
    %1955 = vmatprep.subr.mxu0 0.0
    %1956 = vmatpush1.msra.mxu0 0.0
    %1957 = vmatprep.subr.mxu0 0.0
    %1958 = vmatpush1.msra.mxu0 0.0
    %1959 = vmatprep.subr.mxu0 0.0
    %1960 = vmatpush1.msra.mxu0 0.0
    %1961 = vmatprep.subr.mxu0 0.0
    %1962 = vmatpush1.msra.mxu0 0.0
    %1963 = vmatprep.subr.mxu0 0.0
    %1964 = vmatpush1.msra.mxu0 0.0
    %1965 = vmatprep.subr.mxu0 0.0
    %1966 = vmatpush1.msra.mxu0 0.0
    %1967 = vmatprep.subr.mxu0 0.0
    %1968 = vmatpush1.msra.mxu0 0.0
    %1969 = vmatprep.subr.mxu0 0.0
    %1970 = vmatpush1.msra.mxu0 0.0
    %1971 = vmatprep.subr.mxu0 0.0
    %1972 = vmatpush1.msra.mxu0 0.0
    %1973 = vmatprep.subr.mxu0 0.0
    %1974 = vmatpush1.msra.mxu0 0.0
    %1975 = vmatprep.subr.mxu0 0.0
    %1976 = vmatpush1.msra.mxu0 0.0
    %1977 = vmatprep.subr.mxu0 0.0
    %1978 = vmatpush1.msra.mxu0 0.0
    %1979 = vmatprep.subr.mxu0 0.0
    %1980 = vmatpush1.msra.mxu0 0.0
    %1981 = vmatprep.subr.mxu0 0.0
    %1982 = vmatpush1.msra.mxu0 0.0
    %1983 = vmatprep.subr.mxu0 0.0
    %1984 = vmatpush1.msra.mxu0 0.0
    %1985 = vmatprep.subr.mxu0 0.0
    %1986 = vmatpush1.msra.mxu0 0.0
    %1987 = vmatprep.subr.mxu0 0.0
    %1988 = vmatpush1.msra.mxu0 0.0
    %1989 = vmatprep.subr.mxu0 0.0
    %1990 = vmatpush1.msra.mxu0 0.0
    %1991 = vmatprep.subr.mxu0 0.0
    %1992 = vmatpush1.msra.mxu0 0.0
    %1993 = vmatprep.subr.mxu0 0.0
    %1994 = vmatpush1.msra.mxu0 0.0
    %1995 = vmatprep.subr.mxu0 0.0
    %1996 = vmatpush1.msra.mxu0 0.0
    %1997 = vmatprep.subr.mxu0 0.0
    %1998 = vmatpush1.msra.mxu0 0.0
    %1999 = vmatprep.mubr.f32.mxu0 0.0
    %2000 = vmatmul.mubr.f32.gmra.mrb[0].mxu0 %v1933
    %v2001 = vpop.f32.mrb[0].mxu0
    %v2002 = vadd.f32 0.0, %v2001
    %v2003 = vpop.f32.mrb[0].mxu0
    %2004 = vdwg.mxu0
    %v2005 = vadd.f32 %v1762, %v2002
    %2006 = vrot.lane.b32.xlu0 %v1286, 104
    %v2007 = vpop.permute.xlu0 %2006
    %2008 = vrot.lane.b32.xlu0 %v1286, 72
    %v2009 = vpop.permute.xlu0 %2008
    %v2010 = vsel %vm318, %v2007, 0
    %v2012 = vsel %vm318, %v2009, 0
    %2014 = vmatprep.subr.mxu0 0.0
    %2015 = vmatpush1.xpose.msra.mxu0 %v2012
    %2016 = vmatprep.subr.mxu0 0.0
    %2017 = vmatpush1.xpose.msra.mxu0 0.0
    %2018 = vmatprep.subr.mxu0 0.0
    %2019 = vmatpush1.xpose.msra.mxu0 0.0
    %2020 = vmatprep.subr.mxu0 0.0
    %2021 = vmatpush1.xpose.msra.mxu0 0.0
    %2022 = vmatprep.subr.mxu0 0.0
    %2023 = vmatpush1.xpose.msra.mxu0 0.0
    %2024 = vmatprep.subr.mxu0 0.0
    %2025 = vmatpush1.xpose.msra.mxu0 0.0
    %2026 = vmatprep.subr.mxu0 0.0
    %2027 = vmatpush1.xpose.msra.mxu0 0.0
    %2028 = vmatprep.subr.mxu0 0.0
    %2029 = vmatpush1.xpose.msra.mxu0 0.0
    %2030 = vmatprep.subr.mxu0 0.0
    %2031 = vmatpush1.xpose.msra.mxu0 0.0
    %2032 = vmatprep.subr.mxu0 0.0
    %2033 = vmatpush1.xpose.msra.mxu0 0.0
    %2034 = vmatprep.subr.mxu0 0.0
    %2035 = vmatpush1.xpose.msra.mxu0 0.0
    %2036 = vmatprep.subr.mxu0 0.0
    %2037 = vmatpush1.xpose.msra.mxu0 0.0
    %2038 = vmatprep.subr.mxu0 0.0
    %2039 = vmatpush1.xpose.msra.mxu0 0.0
    %2040 = vmatprep.subr.mxu0 0.0
    %2041 = vmatpush1.xpose.msra.mxu0 0.0
    %2042 = vmatprep.subr.mxu0 0.0
    %2043 = vmatpush1.xpose.msra.mxu0 0.0
    %2044 = vmatprep.subr.mxu0 0.0
    %2045 = vmatpush1.xpose.msra.mxu0 0.0
    %2046 = vmatprep.subr.mxu0 0.0
    %2047 = vmatpush1.xpose.msra.mxu0 0.0
    %2048 = vmatprep.subr.mxu0 0.0
    %2049 = vmatpush1.xpose.msra.mxu0 0.0
    %2050 = vmatprep.subr.mxu0 0.0
    %2051 = vmatpush1.xpose.msra.mxu0 0.0
    %2052 = vmatprep.subr.mxu0 0.0
    %2053 = vmatpush1.xpose.msra.mxu0 0.0
    %2054 = vmatprep.subr.mxu0 0.0
    %2055 = vmatpush1.xpose.msra.mxu0 0.0
    %2056 = vmatprep.subr.mxu0 0.0
    %2057 = vmatpush1.xpose.msra.mxu0 0.0
    %2058 = vmatprep.subr.mxu0 0.0
    %2059 = vmatpush1.xpose.msra.mxu0 0.0
    %2060 = vmatprep.subr.mxu0 0.0
    %2061 = vmatpush1.xpose.msra.mxu0 0.0
    %2062 = vmatprep.subr.mxu0 0.0
    %2063 = vmatpush1.xpose.msra.mxu0 0.0
    %2064 = vmatprep.subr.mxu0 0.0
    %2065 = vmatpush1.xpose.msra.mxu0 0.0
    %2066 = vmatprep.subr.mxu0 0.0
    %2067 = vmatpush1.xpose.msra.mxu0 0.0
    %2068 = vmatprep.subr.mxu0 0.0
    %2069 = vmatpush1.xpose.msra.mxu0 0.0
    %2070 = vmatprep.subr.mxu0 0.0
    %2071 = vmatpush1.xpose.msra.mxu0 0.0
    %2072 = vmatprep.subr.mxu0 0.0
    %2073 = vmatpush1.xpose.msra.mxu0 0.0
    %2074 = vmatprep.subr.mxu0 0.0
    %2075 = vmatpush1.xpose.msra.mxu0 0.0
    %2076 = vmatprep.subr.mxu0 0.0
    %2077 = vmatpush1.xpose.msra.mxu0 0.0
    %2078 = vmatprep.mubr.f32.mxu0 0.0
    %2079 = vmatmul.mubr.f32.gmra.mrb[0].mxu0 %v2010
    %v2080 = vpop.f32.mrb[0].mxu0
    %v2081 = vadd.f32 0.0, %v2080
    %v2082 = vpop.f32.mrb[0].mxu0
    %2083 = vdwg.mxu0
    %v2084 = vmul.f32 %v2081, 0.35355338
    %v2085 = vsel %vm394, %v2084, -inf
    %2086 = vmax.xlane.f32.xlu0 %v2085
    %v2087 = vpop.xlane.xlu0 %2086
    %v2088 = vsub.f32 %v2084, %v2087
    %v2089 = vmul.f32 %v2088, 1.442695
    %v2090 = vpow.pop %v2089
    %v2091 = vsel %vm394, %v2090, 0.0
    %2092 = vadd.xlane.f32.xlu0 %v2091
    %v2093 = vpop.xlane.xlu0 %2092
    %v2094 = vrcp.pop %v2093
    %v2095 = vmul.f32 %v2090, %v2094
    %2096 = vrot.lane.b32.xlu0 %v1286, 40
    %v2097 = vpop.permute.xlu0 %2096
    %v2099 = vsel %vm408, %v2095, 0
    %v2101 = vsel %vm412, %v2097, 0
    %2103 = vmatprep.subr.mxu0 0.0
    %2104 = vmatpush1.msra.mxu0 %v2101
    %2105 = vmatprep.subr.mxu0 0.0
    %2106 = vmatpush1.msra.mxu0 0.0
    %2107 = vmatprep.subr.mxu0 0.0
    %2108 = vmatpush1.msra.mxu0 0.0
    %2109 = vmatprep.subr.mxu0 0.0
    %2110 = vmatpush1.msra.mxu0 0.0
    %2111 = vmatprep.subr.mxu0 0.0
    %2112 = vmatpush1.msra.mxu0 0.0
    %2113 = vmatprep.subr.mxu0 0.0
    %2114 = vmatpush1.msra.mxu0 0.0
    %2115 = vmatprep.subr.mxu0 0.0
    %2116 = vmatpush1.msra.mxu0 0.0
    %2117 = vmatprep.subr.mxu0 0.0
    %2118 = vmatpush1.msra.mxu0 0.0
    %2119 = vmatprep.subr.mxu0 0.0
    %2120 = vmatpush1.msra.mxu0 0.0
    %2121 = vmatprep.subr.mxu0 0.0
    %2122 = vmatpush1.msra.mxu0 0.0
    %2123 = vmatprep.subr.mxu0 0.0
    %2124 = vmatpush1.msra.mxu0 0.0
    %2125 = vmatprep.subr.mxu0 0.0
    %2126 = vmatpush1.msra.mxu0 0.0
    %2127 = vmatprep.subr.mxu0 0.0
    %2128 = vmatpush1.msra.mxu0 0.0
    %2129 = vmatprep.subr.mxu0 0.0
    %2130 = vmatpush1.msra.mxu0 0.0
    %2131 = vmatprep.subr.mxu0 0.0
    %2132 = vmatpush1.msra.mxu0 0.0
    %2133 = vmatprep.subr.mxu0 0.0
    %2134 = vmatpush1.msra.mxu0 0.0
    %2135 = vmatprep.subr.mxu0 0.0
    %2136 = vmatpush1.msra.mxu0 0.0
    %2137 = vmatprep.subr.mxu0 0.0
    %2138 = vmatpush1.msra.mxu0 0.0
    %2139 = vmatprep.subr.mxu0 0.0
    %2140 = vmatpush1.msra.mxu0 0.0
    %2141 = vmatprep.subr.mxu0 0.0
    %2142 = vmatpush1.msra.mxu0 0.0
    %2143 = vmatprep.subr.mxu0 0.0
    %2144 = vmatpush1.msra.mxu0 0.0
    %2145 = vmatprep.subr.mxu0 0.0
    %2146 = vmatpush1.msra.mxu0 0.0
    %2147 = vmatprep.subr.mxu0 0.0
    %2148 = vmatpush1.msra.mxu0 0.0
    %2149 = vmatprep.subr.mxu0 0.0
    %2150 = vmatpush1.msra.mxu0 0.0
    %2151 = vmatprep.subr.mxu0 0.0
    %2152 = vmatpush1.msra.mxu0 0.0
    %2153 = vmatprep.subr.mxu0 0.0
    %2154 = vmatpush1.msra.mxu0 0.0
    %2155 = vmatprep.subr.mxu0 0.0
    %2156 = vmatpush1.msra.mxu0 0.0
    %2157 = vmatprep.subr.mxu0 0.0
    %2158 = vmatpush1.msra.mxu0 0.0
    %2159 = vmatprep.subr.mxu0 0.0
    %2160 = vmatpush1.msra.mxu0 0.0
    %2161 = vmatprep.subr.mxu0 0.0
    %2162 = vmatpush1.msra.mxu0 0.0
    %2163 = vmatprep.subr.mxu0 0.0
    %2164 = vmatpush1.msra.mxu0 0.0
    %2165 = vmatprep.subr.mxu0 0.0
    %2166 = vmatpush1.msra.mxu0 0.0
    %2167 = vmatprep.mubr.f32.mxu0 0.0
    %2168 = vmatmul.mubr.f32.gmra.mrb[0].mxu0 %v2099
    %v2169 = vpop.f32.mrb[0].mxu0
    %v2170 = vadd.f32 0.0, %v2169
    %v2171 = vpop.f32.mrb[0].mxu0
    %2172 = vdwg.mxu0
    %v2174 = vsel %vm318, %v2170, 0
    %2176 = vmatprep.subr.mxu0 0.0
    %2177 = vmatpush1.msra.mxu0 %v314
    %2178 = vmatprep.subr.mxu0 0.0
    %2179 = vmatpush1.msra.mxu0 0.0
    %2180 = vmatprep.subr.mxu0 0.0
    %2181 = vmatpush1.msra.mxu0 0.0
    %2182 = vmatprep.subr.mxu0 0.0
    %2183 = vmatpush1.msra.mxu0 0.0
    %2184 = vmatprep.subr.mxu0 0.0
    %2185 = vmatpush1.msra.mxu0 0.0
    %2186 = vmatprep.subr.mxu0 0.0
    %2187 = vmatpush1.msra.mxu0 0.0
    %2188 = vmatprep.subr.mxu0 0.0
    %2189 = vmatpush1.msra.mxu0 0.0
    %2190 = vmatprep.subr.mxu0 0.0
    %2191 = vmatpush1.msra.mxu0 0.0
    %2192 = vmatprep.subr.mxu0 0.0
    %2193 = vmatpush1.msra.mxu0 0.0
    %2194 = vmatprep.subr.mxu0 0.0
    %2195 = vmatpush1.msra.mxu0 0.0
    %2196 = vmatprep.subr.mxu0 0.0
    %2197 = vmatpush1.msra.mxu0 0.0
    %2198 = vmatprep.subr.mxu0 0.0
    %2199 = vmatpush1.msra.mxu0 0.0
    %2200 = vmatprep.subr.mxu0 0.0
    %2201 = vmatpush1.msra.mxu0 0.0
    %2202 = vmatprep.subr.mxu0 0.0
    %2203 = vmatpush1.msra.mxu0 0.0
    %2204 = vmatprep.subr.mxu0 0.0
    %2205 = vmatpush1.msra.mxu0 0.0
    %2206 = vmatprep.subr.mxu0 0.0
    %2207 = vmatpush1.msra.mxu0 0.0
    %2208 = vmatprep.subr.mxu0 0.0
    %2209 = vmatpush1.msra.mxu0 0.0
    %2210 = vmatprep.subr.mxu0 0.0
    %2211 = vmatpush1.msra.mxu0 0.0
    %2212 = vmatprep.subr.mxu0 0.0
    %2213 = vmatpush1.msra.mxu0 0.0
    %2214 = vmatprep.subr.mxu0 0.0
    %2215 = vmatpush1.msra.mxu0 0.0
    %2216 = vmatprep.subr.mxu0 0.0
    %2217 = vmatpush1.msra.mxu0 0.0
    %2218 = vmatprep.subr.mxu0 0.0
    %2219 = vmatpush1.msra.mxu0 0.0
    %2220 = vmatprep.subr.mxu0 0.0
    %2221 = vmatpush1.msra.mxu0 0.0
    %2222 = vmatprep.subr.mxu0 0.0
    %2223 = vmatpush1.msra.mxu0 0.0
    %2224 = vmatprep.subr.mxu0 0.0
    %2225 = vmatpush1.msra.mxu0 0.0
    %2226 = vmatprep.subr.mxu0 0.0
    %2227 = vmatpush1.msra.mxu0 0.0
    %2228 = vmatprep.subr.mxu0 0.0
    %2229 = vmatpush1.msra.mxu0 0.0
    %2230 = vmatprep.subr.mxu0 0.0
    %2231 = vmatpush1.msra.mxu0 0.0
    %2232 = vmatprep.subr.mxu0 0.0
    %2233 = vmatpush1.msra.mxu0 0.0
    %2234 = vmatprep.subr.mxu0 0.0
    %2235 = vmatpush1.msra.mxu0 0.0
    %2236 = vmatprep.subr.mxu0 0.0
    %2237 = vmatpush1.msra.mxu0 0.0
    %2238 = vmatprep.subr.mxu0 0.0
    %2239 = vmatpush1.msra.mxu0 0.0
    %2240 = vmatprep.mubr.f32.mxu0 0.0
    %2241 = vmatmul.mubr.f32.gmra.mrb[0].mxu0 %v2174
    %v2242 = vpop.f32.mrb[0].mxu0
    %v2243 = vadd.f32 0.0, %v2242
    %v2244 = vpop.f32.mrb[0].mxu0
    %2245 = vdwg.mxu0
    %v2246 = vadd.f32 %v2005, %v2243
    %2247 = vst.msk [vmem:[#allocation2 + $0x5] sm:$0x1f] %vm1280, %v2246
    %v2248 = vld [vmem:[#allocation2] sm:$0xff]
    %v2249 = vld [vmem:[#allocation2 + $0x8] sm:$0x3]
    %v2250 = vadd.f32 %v176, %v2248
    %v2251 = vadd.f32 %v177, %v2249
    %v2252 = vld [vmem:[%s10] sm:$0x1]
    %v2253 = vlaneseq
    %v2254 = vshrl.u32 %v2253, 7
    %v2255 = vsub.s32 0, %v2254
    %v2256 = vrot.slane %v2252, %v2255
    %v2257 = vadd.f32 %v2250, %v2256
    %v2258 = vadd.f32 %v2251, %v2256
    %v2259 = vld [vmem:[%s11] sm:$0x1]
    %v2260 = vld [vmem:[%s12] sm:$0x1]
    %v2261 = vsel %vm180, %v2257, 0.0
    %2262 = vadd.xlane.f32.xlu0 %v2261
    %v2263 = vpop.xlane.xlu0 %2262
    %v2264 = vsel %vm184, %v2258, 0.0
    %2265 = vadd.xlane.f32.xlu0 %v2264
    %v2266 = vpop.xlane.xlu0 %2265
    %v2267 = vmul.f32 %v2263, %v188
    %v2268 = vmul.f32 %v2266, %v188
    %v2269 = vsub.f32 %v2257, %v2267
    %v2270 = vsub.f32 %v2258, %v2268
    %v2271 = vmul.f32 %v2269, %v2269
    %v2272 = vmul.f32 %v2270, %v2270
    %v2273 = vsel %vm180, %v2271, 0.0
    %2274 = vadd.xlane.f32.xlu0 %v2273
    %v2275 = vpop.xlane.xlu0 %2274
    %v2276 = vsel %vm184, %v2272, 0.0
    %2277 = vadd.xlane.f32.xlu0 %v2276
    %v2278 = vpop.xlane.xlu0 %2277
    %v2279 = vmul.f32 %v2275, %v188
    %v2280 = vmul.f32 %v2278, %v188
    %v2281 = vadd.f32 %v2279, 1e-06
    %v2282 = vadd.f32 %v2280, 1e-06
    %v2283 = vrsqrt.pop %v2281
    %v2284 = vrsqrt.pop %v2282
    %v2285 = vmul.f32 %v2269, %v2283
    %v2286 = vmul.f32 %v2270, %v2284
    %v2287 = vlaneseq
    %v2288 = vshrl.u32 %v2287, 7
    %v2289 = vsub.s32 0, %v2288
    %v2290 = vrot.slane %v2259, %v2289
    %v2291 = vmul.f32 %v2285, %v2290
    %v2292 = vmul.f32 %v2286, %v2290
    %v2293 = vlaneseq
    %v2294 = vshrl.u32 %v2293, 7
    %v2295 = vsub.s32 0, %v2294
    %v2296 = vrot.slane %v2260, %v2295
    %v2297 = vadd.f32 %v2291, %v2296
    %v2298 = vadd.f32 %v2292, %v2296
    %v2299 = vld [vmem:[%s13] sm:$0xff]
    %v2300 = vld [vmem:[%s13 + $0x8] sm:$0xff]
    %v2301 = vld [vmem:[%s13 + $0x10] sm:$0xff]
    %v2302 = vld [vmem:[%s13 + $0x18] sm:$0xff]
    %v2303 = vld [vmem:[%s14] sm:$0x1]
    %v2304 = vlaneseq
    %v2305 = vshrl.u32 %v2304, 7
    %v2306 = vsub.s32 0, %v2305
    %v2307 = vrot.slane %v2303, %v2306
    %v2309 = vsel %vm180, %v2297, 0
    %v2312 = vsel %vm180, %v2298, 0
    %2314 = vmatprep.subr.mxu0 0.0
    %2315 = vmatpush1.msra.mxu0 %v2299
    %2316 = vmatprep.subr.mxu0 0.0
    %2317 = vmatpush1.msra.mxu0 %v2300
    %2318 = vmatprep.subr.mxu0 0.0
    %2319 = vmatpush1.msra.mxu0 %v2301
    %2320 = vmatprep.subr.mxu0 0.0
    %2321 = vmatpush1.msra.mxu0 %v2302
    %2322 = vmatprep.subr.mxu0 0.0
    %2323 = vmatpush1.msra.mxu0 0.0
    %2324 = vmatprep.subr.mxu0 0.0
    %2325 = vmatpush1.msra.mxu0 0.0
    %2326 = vmatprep.subr.mxu0 0.0
    %2327 = vmatpush1.msra.mxu0 0.0
    %2328 = vmatprep.subr.mxu0 0.0
    %2329 = vmatpush1.msra.mxu0 0.0
    %2330 = vmatprep.subr.mxu0 0.0
    %2331 = vmatpush1.msra.mxu0 0.0
    %2332 = vmatprep.subr.mxu0 0.0
    %2333 = vmatpush1.msra.mxu0 0.0
    %2334 = vmatprep.subr.mxu0 0.0
    %2335 = vmatpush1.msra.mxu0 0.0
    %2336 = vmatprep.subr.mxu0 0.0
    %2337 = vmatpush1.msra.mxu0 0.0
    %2338 = vmatprep.subr.mxu0 0.0
    %2339 = vmatpush1.msra.mxu0 0.0
    %2340 = vmatprep.subr.mxu0 0.0
    %2341 = vmatpush1.msra.mxu0 0.0
    %2342 = vmatprep.subr.mxu0 0.0
    %2343 = vmatpush1.msra.mxu0 0.0
    %2344 = vmatprep.subr.mxu0 0.0
    %2345 = vmatpush1.msra.mxu0 0.0
    %2346 = vmatprep.subr.mxu0 0.0
    %2347 = vmatpush1.msra.mxu0 0.0
    %2348 = vmatprep.subr.mxu0 0.0
    %2349 = vmatpush1.msra.mxu0 0.0
    %2350 = vmatprep.subr.mxu0 0.0
    %2351 = vmatpush1.msra.mxu0 0.0
    %2352 = vmatprep.subr.mxu0 0.0
    %2353 = vmatpush1.msra.mxu0 0.0
    %2354 = vmatprep.subr.mxu0 0.0
    %2355 = vmatpush1.msra.mxu0 0.0
    %2356 = vmatprep.subr.mxu0 0.0
    %2357 = vmatpush1.msra.mxu0 0.0
    %2358 = vmatprep.subr.mxu0 0.0
    %2359 = vmatpush1.msra.mxu0 0.0
    %2360 = vmatprep.subr.mxu0 0.0
    %2361 = vmatpush1.msra.mxu0 0.0
    %2362 = vmatprep.subr.mxu0 0.0
    %2363 = vmatpush1.msra.mxu0 0.0
    %2364 = vmatprep.subr.mxu0 0.0
    %2365 = vmatpush1.msra.mxu0 0.0
    %2366 = vmatprep.subr.mxu0 0.0
    %2367 = vmatpush1.msra.mxu0 0.0
    %2368 = vmatprep.subr.mxu0 0.0
    %2369 = vmatpush1.msra.mxu0 0.0
    %2370 = vmatprep.subr.mxu0 0.0
    %2371 = vmatpush1.msra.mxu0 0.0
    %2372 = vmatprep.subr.mxu0 0.0
    %2373 = vmatpush1.msra.mxu0 0.0
    %2374 = vmatprep.subr.mxu0 0.0
    %2375 = vmatpush1.msra.mxu0 0.0
    %2376 = vmatprep.subr.mxu0 0.0
    %2377 = vmatpush1.msra.mxu0 0.0
    %2378 = vmatprep.mubr.f32.mxu0 0.0
    %2379 = vmatmul.mubr.f32.gmra.mrb[0].mxu0 %v2309
    %v2380 = vpop.f32.mrb[0].mxu0
    %v2381 = vadd.f32 %v2307, %v2380
    %v2382 = vpop.f32.mrb[0].mxu0
    %2383 = vmatprep.mubr.f32.mxu0 0.0
    %2384 = vmatmul.mubr.f32.gmra.mrb[0].mxu0 %v2312
    %v2385 = vpop.f32.mrb[0].mxu0
    %v2386 = vadd.f32 %v2307, %v2385
    %v2387 = vpop.f32.mrb[0].mxu0
    %2388 = vdwg.mxu0
    %v2389 = vmul.f32 %v2381, 0.5
    %v2390 = vmul.f32 %v2386, 0.5
    %v2391 = vmul.f32 %v2381, 0.70710677
    %v2392 = vmul.f32 %v2386, 0.70710677
    %v2393 = vand.u32 2147483647, %v2391
    %v2394 = vand.u32 2147483647, %v2392
    %v2395 = vmul.f32 %v2393, 0.3275911
    %v2396 = vmul.f32 %v2394, 0.3275911
    %v2397 = vadd.f32 %v2395, 1.0
    %v2398 = vadd.f32 %v2396, 1.0
    %v2399 = vrcp.pop %v2397
    %v2400 = vmul.f32 1.0, %v2399
    %v2401 = vrcp.pop %v2398
    %v2402 = vmul.f32 1.0, %v2401
    %v2403 = vmul.f32 %v2400, 1.0614054
    %v2404 = vmul.f32 %v2402, 1.0614054
    %v2405 = vadd.f32 %v2403, -1.4531521
    %v2406 = vadd.f32 %v2404, -1.4531521
    %v2407 = vmul.f32 %v2400, %v2405
    %v2408 = vmul.f32 %v2402, %v2406
    %v2409 = vadd.f32 %v2407, 1.4214138
    %v2410 = vadd.f32 %v2408, 1.4214138
    %v2411 = vmul.f32 %v2400, %v2409
    %v2412 = vmul.f32 %v2402, %v2410
    %v2413 = vadd.f32 %v2411, -0.28449672
    %v2414 = vadd.f32 %v2412, -0.28449672
    %v2415 = vmul.f32 %v2400, %v2413
    %v2416 = vmul.f32 %v2402, %v2414
    %v2417 = vadd.f32 %v2415, 0.2548296
    %v2418 = vadd.f32 %v2416, 0.2548296
    %v2419 = vmul.f32 %v2400, %v2417
    %v2420 = vmul.f32 %v2402, %v2418
    %v2421 = vsub.f32 0.0, %v2391
    %v2422 = vsub.f32 0.0, %v2392
    %v2423 = vmul.f32 %v2421, %v2391
    %v2424 = vmul.f32 %v2422, %v2392
    %v2425 = vmul.f32 %v2423, 1.442695
    %v2426 = vpow.pop %v2425
    %v2427 = vmul.f32 %v2424, 1.442695
    %v2428 = vpow.pop %v2427
    %v2429 = vmul.f32 %v2419, %v2426
    %v2430 = vmul.f32 %v2420, %v2428
    %v2431 = vsub.f32 1.0, %v2429
    %v2432 = vsub.f32 1.0, %v2430
    %vm2433 = vcmp.ge.f32.partialorder %v2391, 0.0
    %vm2434 = vcmp.ge.f32.partialorder %v2392, 0.0
    %v2435 = vsub.f32 0.0, %v2431
    %v2436 = vsub.f32 0.0, %v2432
    %v2437 = vsel %vm2433, %v2431, %v2435
    %v2438 = vsel %vm2434, %v2432, %v2436
    %v2439 = vadd.f32 %v2437, 1.0
    %v2440 = vadd.f32 %v2438, 1.0
    %v2441 = vmul.f32 %v2389, %v2439
    %v2442 = vmul.f32 %v2390, %v2440
    %v2443 = vld [vmem:[%s15] sm:$0xff]
    %v2444 = vld [vmem:[%s15 + $0x8] sm:$0xff]
    %v2445 = vld [vmem:[%s15 + $0x10] sm:$0xff]
    %v2446 = vld [vmem:[%s15 + $0x18] sm:$0xff]
    %v2447 = vld [vmem:[%s15 + $0x20] sm:$0xff]
    %v2448 = vld [vmem:[%s15 + $0x28] sm:$0xff]
    %v2449 = vld [vmem:[%s15 + $0x30] sm:$0xff]
    %v2450 = vld [vmem:[%s15 + $0x38] sm:$0xff]
    %v2452 = vsel %vm85, %v2441, 0
    %v2455 = vsel %vm85, %v2442, 0
    %2457 = vmatprep.subr.mxu0 0.0
    %2458 = vmatpush1.msra.mxu0 %v2443
    %2459 = vmatprep.subr.mxu0 0.0
    %2460 = vmatpush1.msra.mxu0 %v2444
    %2461 = vmatprep.subr.mxu0 0.0
    %2462 = vmatpush1.msra.mxu0 %v2445
    %2463 = vmatprep.subr.mxu0 0.0
    %2464 = vmatpush1.msra.mxu0 %v2446
    %2465 = vmatprep.subr.mxu0 0.0
    %2466 = vmatpush1.msra.mxu0 %v2447
    %2467 = vmatprep.subr.mxu0 0.0
    %2468 = vmatpush1.msra.mxu0 %v2448
    %2469 = vmatprep.subr.mxu0 0.0
    %2470 = vmatpush1.msra.mxu0 %v2449
    %2471 = vmatprep.subr.mxu0 0.0
    %2472 = vmatpush1.msra.mxu0 %v2450
    %2473 = vmatprep.subr.mxu0 0.0
    %2474 = vmatpush1.msra.mxu0 0.0
    %2475 = vmatprep.subr.mxu0 0.0
    %2476 = vmatpush1.msra.mxu0 0.0
    %2477 = vmatprep.subr.mxu0 0.0
    %2478 = vmatpush1.msra.mxu0 0.0
    %2479 = vmatprep.subr.mxu0 0.0
    %2480 = vmatpush1.msra.mxu0 0.0
    %2481 = vmatprep.subr.mxu0 0.0
    %2482 = vmatpush1.msra.mxu0 0.0
    %2483 = vmatprep.subr.mxu0 0.0
    %2484 = vmatpush1.msra.mxu0 0.0
    %2485 = vmatprep.subr.mxu0 0.0
    %2486 = vmatpush1.msra.mxu0 0.0
    %2487 = vmatprep.subr.mxu0 0.0
    %2488 = vmatpush1.msra.mxu0 0.0
    %2489 = vmatprep.subr.mxu0 0.0
    %2490 = vmatpush1.msra.mxu0 0.0
    %2491 = vmatprep.subr.mxu0 0.0
    %2492 = vmatpush1.msra.mxu0 0.0
    %2493 = vmatprep.subr.mxu0 0.0
    %2494 = vmatpush1.msra.mxu0 0.0
    %2495 = vmatprep.subr.mxu0 0.0
    %2496 = vmatpush1.msra.mxu0 0.0
    %2497 = vmatprep.subr.mxu0 0.0
    %2498 = vmatpush1.msra.mxu0 0.0
    %2499 = vmatprep.subr.mxu0 0.0
    %2500 = vmatpush1.msra.mxu0 0.0
    %2501 = vmatprep.subr.mxu0 0.0
    %2502 = vmatpush1.msra.mxu0 0.0
    %2503 = vmatprep.subr.mxu0 0.0
    %2504 = vmatpush1.msra.mxu0 0.0
    %2505 = vmatprep.subr.mxu0 0.0
    %2506 = vmatpush1.msra.mxu0 0.0
    %2507 = vmatprep.subr.mxu0 0.0
    %2508 = vmatpush1.msra.mxu0 0.0
    %2509 = vmatprep.subr.mxu0 0.0
    %2510 = vmatpush1.msra.mxu0 0.0
    %2511 = vmatprep.subr.mxu0 0.0
    %2512 = vmatpush1.msra.mxu0 0.0
    %2513 = vmatprep.subr.mxu0 0.0
    %2514 = vmatpush1.msra.mxu0 0.0
    %2515 = vmatprep.subr.mxu0 0.0
    %2516 = vmatpush1.msra.mxu0 0.0
    %2517 = vmatprep.subr.mxu0 0.0
    %2518 = vmatpush1.msra.mxu0 0.0
    %2519 = vmatprep.subr.mxu0 0.0
    %2520 = vmatpush1.msra.mxu0 0.0
    %2521 = vmatprep.mubr.f32.mxu0 0.0
    %2522 = vmatmul.mubr.f32.gmra.mrb[0].mxu0 %v2452
    %v2523 = vpop.f32.mrb[0].mxu0
    %v2524 = vadd.f32 0.0, %v2523
    %v2525 = vpop.f32.mrb[0].mxu0
    %2526 = vmatprep.mubr.f32.mxu0 0.0
    %2527 = vmatmul.mubr.f32.gmra.mrb[0].mxu0 %v2455
    %v2528 = vpop.f32.mrb[0].mxu0
    %v2529 = vadd.f32 0.0, %v2528
    %v2530 = vpop.f32.mrb[0].mxu0
    %2531 = vdwg.mxu0
    %v2532 = vadd.f32 %v2257, %v2524
    %v2533 = vadd.f32 %v2258, %v2529
    %v2534 = vld [vmem:[%s16] sm:$0x1]
    %v2535 = vlaneseq
    %v2536 = vshrl.u32 %v2535, 7
    %v2537 = vsub.s32 0, %v2536
    %v2538 = vrot.slane %v2534, %v2537
    %v2539 = vadd.f32 %v2532, %v2538
    %v2540 = vadd.f32 %v2533, %v2538
    %v2541 = vld [vmem:[%s5 + $0x1] sm:$0x1]
    %v2542 = vld [vmem:[%s6 + $0x1] sm:$0x1]
    %v2543 = vsel %vm180, %v2539, 0.0
    %2544 = vadd.xlane.f32.xlu0 %v2543
    %v2545 = vpop.xlane.xlu0 %2544
    %v2546 = vsel %vm184, %v2540, 0.0
    %2547 = vadd.xlane.f32.xlu0 %v2546
    %v2548 = vpop.xlane.xlu0 %2547
    %v2549 = vmul.f32 %v2545, %v188
    %v2550 = vmul.f32 %v2548, %v188
    %v2551 = vsub.f32 %v2539, %v2549
    %v2552 = vsub.f32 %v2540, %v2550
    %v2553 = vmul.f32 %v2551, %v2551
    %v2554 = vmul.f32 %v2552, %v2552
    %v2555 = vsel %vm180, %v2553, 0.0
    %2556 = vadd.xlane.f32.xlu0 %v2555
    %v2557 = vpop.xlane.xlu0 %2556
    %v2558 = vsel %vm184, %v2554, 0.0
    %2559 = vadd.xlane.f32.xlu0 %v2558
    %v2560 = vpop.xlane.xlu0 %2559
    %v2561 = vmul.f32 %v2557, %v188
    %v2562 = vmul.f32 %v2560, %v188
    %v2563 = vadd.f32 %v2561, 1e-06
    %v2564 = vadd.f32 %v2562, 1e-06
    %v2565 = vrsqrt.pop %v2563
    %v2566 = vrsqrt.pop %v2564
    %v2567 = vmul.f32 %v2551, %v2565
    %v2568 = vmul.f32 %v2552, %v2566
    %v2569 = vlaneseq
    %v2570 = vshrl.u32 %v2569, 7
    %v2571 = vsub.s32 0, %v2570
    %v2572 = vrot.slane %v2541, %v2571
    %v2573 = vmul.f32 %v2567, %v2572
    %v2574 = vmul.f32 %v2568, %v2572
    %v2575 = vlaneseq
    %v2576 = vshrl.u32 %v2575, 7
    %v2577 = vsub.s32 0, %v2576
    %v2578 = vrot.slane %v2542, %v2577
    %v2579 = vadd.f32 %v2573, %v2578
    %v2580 = vadd.f32 %v2574, %v2578
    %s2581 = scalar_lea.vmem %s7, 32
    %v2582 = vld [vmem:[%s2581] sm:$0xff]
    %v2583 = vld [vmem:[%s2581 + $0x8] sm:$0xff]
    %v2584 = vld [vmem:[%s2581 + $0x10] sm:$0xff]
    %v2585 = vld [vmem:[%s2581 + $0x18] sm:$0xff]
    %v2586 = vld [vmem:[%s8 + $0x1] sm:$0x1]
    %v2587 = vlaneseq
    %v2588 = vshrl.u32 %v2587, 7
    %v2589 = vsub.s32 0, %v2588
    %v2590 = vrot.slane %v2586, %v2589
    %v2592 = vsel %vm180, %v2579, 0
    %v2595 = vsel %vm180, %v2580, 0
    %2597 = vmatprep.subr.mxu0 0.0
    %2598 = vmatpush1.msra.mxu0 %v2582
    %2599 = vmatprep.subr.mxu0 0.0
    %2600 = vmatpush1.msra.mxu0 %v2583
    %2601 = vmatprep.subr.mxu0 0.0
    %2602 = vmatpush1.msra.mxu0 %v2584
    %2603 = vmatprep.subr.mxu0 0.0
    %2604 = vmatpush1.msra.mxu0 %v2585
    %2605 = vmatprep.subr.mxu0 0.0
    %2606 = vmatpush1.msra.mxu0 0.0
    %2607 = vmatprep.subr.mxu0 0.0
    %2608 = vmatpush1.msra.mxu0 0.0
    %2609 = vmatprep.subr.mxu0 0.0
    %2610 = vmatpush1.msra.mxu0 0.0
    %2611 = vmatprep.subr.mxu0 0.0
    %2612 = vmatpush1.msra.mxu0 0.0
    %2613 = vmatprep.subr.mxu0 0.0
    %2614 = vmatpush1.msra.mxu0 0.0
    %2615 = vmatprep.subr.mxu0 0.0
    %2616 = vmatpush1.msra.mxu0 0.0
    %2617 = vmatprep.subr.mxu0 0.0
    %2618 = vmatpush1.msra.mxu0 0.0
    %2619 = vmatprep.subr.mxu0 0.0
    %2620 = vmatpush1.msra.mxu0 0.0
    %2621 = vmatprep.subr.mxu0 0.0
    %2622 = vmatpush1.msra.mxu0 0.0
    %2623 = vmatprep.subr.mxu0 0.0
    %2624 = vmatpush1.msra.mxu0 0.0
    %2625 = vmatprep.subr.mxu0 0.0
    %2626 = vmatpush1.msra.mxu0 0.0
    %2627 = vmatprep.subr.mxu0 0.0
    %2628 = vmatpush1.msra.mxu0 0.0
    %2629 = vmatprep.subr.mxu0 0.0
    %2630 = vmatpush1.msra.mxu0 0.0
    %2631 = vmatprep.subr.mxu0 0.0
    %2632 = vmatpush1.msra.mxu0 0.0
    %2633 = vmatprep.subr.mxu0 0.0
    %2634 = vmatpush1.msra.mxu0 0.0
    %2635 = vmatprep.subr.mxu0 0.0
    %2636 = vmatpush1.msra.mxu0 0.0
    %2637 = vmatprep.subr.mxu0 0.0
    %2638 = vmatpush1.msra.mxu0 0.0
    %2639 = vmatprep.subr.mxu0 0.0
    %2640 = vmatpush1.msra.mxu0 0.0
    %2641 = vmatprep.subr.mxu0 0.0
    %2642 = vmatpush1.msra.mxu0 0.0
    %2643 = vmatprep.subr.mxu0 0.0
    %2644 = vmatpush1.msra.mxu0 0.0
    %2645 = vmatprep.subr.mxu0 0.0
    %2646 = vmatpush1.msra.mxu0 0.0
    %2647 = vmatprep.subr.mxu0 0.0
    %2648 = vmatpush1.msra.mxu0 0.0
    %2649 = vmatprep.subr.mxu0 0.0
    %2650 = vmatpush1.msra.mxu0 0.0
    %2651 = vmatprep.subr.mxu0 0.0
    %2652 = vmatpush1.msra.mxu0 0.0
    %2653 = vmatprep.subr.mxu0 0.0
    %2654 = vmatpush1.msra.mxu0 0.0
    %2655 = vmatprep.subr.mxu0 0.0
    %2656 = vmatpush1.msra.mxu0 0.0
    %2657 = vmatprep.subr.mxu0 0.0
    %2658 = vmatpush1.msra.mxu0 0.0
    %2659 = vmatprep.subr.mxu0 0.0
    %2660 = vmatpush1.msra.mxu0 0.0
    %2661 = vmatprep.mubr.f32.mxu0 0.0
    %2662 = vmatmul.mubr.f32.gmra.mrb[0].mxu0 %v2592
    %v2663 = vpop.f32.mrb[0].mxu0
    %v2664 = vadd.f32 %v2590, %v2663
    %v2665 = vpop.f32.mrb[0].mxu0
    %2666 = vmatprep.mubr.f32.mxu0 0.0
    %2667 = vmatmul.mubr.f32.gmra.mrb[0].mxu0 %v2595
    %v2668 = vpop.f32.mrb[0].mxu0
    %v2669 = vadd.f32 %v2590, %v2668
    %v2670 = vpop.f32.mrb[0].mxu0
    %2671 = vdwg.mxu0
    %s2672 = scalar_lea.vmem %s9, 32
    %v2673 = vld [vmem:[%s2672] sm:$0xff]
    %v2674 = vld [vmem:[%s2672 + $0x8] sm:$0xff]
    %v2675 = vld [vmem:[%s2672 + $0x10] sm:$0xff]
    %v2676 = vld [vmem:[%s2672 + $0x18] sm:$0xff]
    %2678 = vrot.lane.b32.xlu0 %v2664, 96
    %v2679 = vpop.permute.xlu0 %2678
    %v2680 = vsel %vm318, %v2664, 0
    %v2682 = vsel %vm318, %v2679, 0
    %2684 = vmatprep.subr.mxu0 0.0
    %2685 = vmatpush1.xpose.msra.mxu0 %v2682
    %2686 = vmatprep.subr.mxu0 0.0
    %2687 = vmatpush1.xpose.msra.mxu0 0.0
    %2688 = vmatprep.subr.mxu0 0.0
    %2689 = vmatpush1.xpose.msra.mxu0 0.0
    %2690 = vmatprep.subr.mxu0 0.0
    %2691 = vmatpush1.xpose.msra.mxu0 0.0
    %2692 = vmatprep.subr.mxu0 0.0
    %2693 = vmatpush1.xpose.msra.mxu0 0.0
    %2694 = vmatprep.subr.mxu0 0.0
    %2695 = vmatpush1.xpose.msra.mxu0 0.0
    %2696 = vmatprep.subr.mxu0 0.0
    %2697 = vmatpush1.xpose.msra.mxu0 0.0
    %2698 = vmatprep.subr.mxu0 0.0
    %2699 = vmatpush1.xpose.msra.mxu0 0.0
    %2700 = vmatprep.subr.mxu0 0.0
    %2701 = vmatpush1.xpose.msra.mxu0 0.0
    %2702 = vmatprep.subr.mxu0 0.0
    %2703 = vmatpush1.xpose.msra.mxu0 0.0
    %2704 = vmatprep.subr.mxu0 0.0
    %2705 = vmatpush1.xpose.msra.mxu0 0.0
    %2706 = vmatprep.subr.mxu0 0.0
    %2707 = vmatpush1.xpose.msra.mxu0 0.0
    %2708 = vmatprep.subr.mxu0 0.0
    %2709 = vmatpush1.xpose.msra.mxu0 0.0
    %2710 = vmatprep.subr.mxu0 0.0
    %2711 = vmatpush1.xpose.msra.mxu0 0.0
    %2712 = vmatprep.subr.mxu0 0.0
    %2713 = vmatpush1.xpose.msra.mxu0 0.0
    %2714 = vmatprep.subr.mxu0 0.0
    %2715 = vmatpush1.xpose.msra.mxu0 0.0
    %2716 = vmatprep.subr.mxu0 0.0
    %2717 = vmatpush1.xpose.msra.mxu0 0.0
    %2718 = vmatprep.subr.mxu0 0.0
    %2719 = vmatpush1.xpose.msra.mxu0 0.0
    %2720 = vmatprep.subr.mxu0 0.0
    %2721 = vmatpush1.xpose.msra.mxu0 0.0
    %2722 = vmatprep.subr.mxu0 0.0
    %2723 = vmatpush1.xpose.msra.mxu0 0.0
    %2724 = vmatprep.subr.mxu0 0.0
    %2725 = vmatpush1.xpose.msra.mxu0 0.0
    %2726 = vmatprep.subr.mxu0 0.0
    %2727 = vmatpush1.xpose.msra.mxu0 0.0
    %2728 = vmatprep.subr.mxu0 0.0
    %2729 = vmatpush1.xpose.msra.mxu0 0.0
    %2730 = vmatprep.subr.mxu0 0.0
    %2731 = vmatpush1.xpose.msra.mxu0 0.0
    %2732 = vmatprep.subr.mxu0 0.0
    %2733 = vmatpush1.xpose.msra.mxu0 0.0
    %2734 = vmatprep.subr.mxu0 0.0
    %2735 = vmatpush1.xpose.msra.mxu0 0.0
    %2736 = vmatprep.subr.mxu0 0.0
    %2737 = vmatpush1.xpose.msra.mxu0 0.0
    %2738 = vmatprep.subr.mxu0 0.0
    %2739 = vmatpush1.xpose.msra.mxu0 0.0
    %2740 = vmatprep.subr.mxu0 0.0
    %2741 = vmatpush1.xpose.msra.mxu0 0.0
    %2742 = vmatprep.subr.mxu0 0.0
    %2743 = vmatpush1.xpose.msra.mxu0 0.0
    %2744 = vmatprep.subr.mxu0 0.0
    %2745 = vmatpush1.xpose.msra.mxu0 0.0
    %2746 = vmatprep.subr.mxu0 0.0
    %2747 = vmatpush1.xpose.msra.mxu0 0.0
    %2748 = vmatprep.mubr.f32.mxu0 0.0
    %2749 = vmatmul.mubr.f32.gmra.mrb[0].mxu0 %v2680
    %v2750 = vpop.f32.mrb[0].mxu0
    %v2751 = vadd.f32 0.0, %v2750
    %v2752 = vpop.f32.mrb[0].mxu0
    %2753 = vdwg.mxu0
    %v2754 = vmul.f32 %v2751, 0.35355338
    %v2755 = vsel %vm394, %v2754, -inf
    %2756 = vmax.xlane.f32.xlu0 %v2755
    %v2757 = vpop.xlane.xlu0 %2756
    %v2758 = vsub.f32 %v2754, %v2757
    %v2759 = vmul.f32 %v2758, 1.442695
    %v2760 = vpow.pop %v2759
    %v2761 = vsel %vm394, %v2760, 0.0
    %2762 = vadd.xlane.f32.xlu0 %v2761
    %v2763 = vpop.xlane.xlu0 %2762
    %v2764 = vrcp.pop %v2763
    %v2765 = vmul.f32 %v2760, %v2764
    %2766 = vrot.lane.b32.xlu0 %v2664, 64
    %v2767 = vpop.permute.xlu0 %2766
    %v2769 = vsel %vm408, %v2765, 0
    %v2771 = vsel %vm412, %v2767, 0
    %2773 = vmatprep.subr.mxu0 0.0
    %2774 = vmatpush1.msra.mxu0 %v2771
    %2775 = vmatprep.subr.mxu0 0.0
    %2776 = vmatpush1.msra.mxu0 0.0
    %2777 = vmatprep.subr.mxu0 0.0
    %2778 = vmatpush1.msra.mxu0 0.0
    %2779 = vmatprep.subr.mxu0 0.0
    %2780 = vmatpush1.msra.mxu0 0.0
    %2781 = vmatprep.subr.mxu0 0.0
    %2782 = vmatpush1.msra.mxu0 0.0
    %2783 = vmatprep.subr.mxu0 0.0
    %2784 = vmatpush1.msra.mxu0 0.0
    %2785 = vmatprep.subr.mxu0 0.0
    %2786 = vmatpush1.msra.mxu0 0.0
    %2787 = vmatprep.subr.mxu0 0.0
    %2788 = vmatpush1.msra.mxu0 0.0
    %2789 = vmatprep.subr.mxu0 0.0
    %2790 = vmatpush1.msra.mxu0 0.0
    %2791 = vmatprep.subr.mxu0 0.0
    %2792 = vmatpush1.msra.mxu0 0.0
    %2793 = vmatprep.subr.mxu0 0.0
    %2794 = vmatpush1.msra.mxu0 0.0
    %2795 = vmatprep.subr.mxu0 0.0
    %2796 = vmatpush1.msra.mxu0 0.0
    %2797 = vmatprep.subr.mxu0 0.0
    %2798 = vmatpush1.msra.mxu0 0.0
    %2799 = vmatprep.subr.mxu0 0.0
    %2800 = vmatpush1.msra.mxu0 0.0
    %2801 = vmatprep.subr.mxu0 0.0
    %2802 = vmatpush1.msra.mxu0 0.0
    %2803 = vmatprep.subr.mxu0 0.0
    %2804 = vmatpush1.msra.mxu0 0.0
    %2805 = vmatprep.subr.mxu0 0.0
    %2806 = vmatpush1.msra.mxu0 0.0
    %2807 = vmatprep.subr.mxu0 0.0
    %2808 = vmatpush1.msra.mxu0 0.0
    %2809 = vmatprep.subr.mxu0 0.0
    %2810 = vmatpush1.msra.mxu0 0.0
    %2811 = vmatprep.subr.mxu0 0.0
    %2812 = vmatpush1.msra.mxu0 0.0
    %2813 = vmatprep.subr.mxu0 0.0
    %2814 = vmatpush1.msra.mxu0 0.0
    %2815 = vmatprep.subr.mxu0 0.0
    %2816 = vmatpush1.msra.mxu0 0.0
    %2817 = vmatprep.subr.mxu0 0.0
    %2818 = vmatpush1.msra.mxu0 0.0
    %2819 = vmatprep.subr.mxu0 0.0
    %2820 = vmatpush1.msra.mxu0 0.0
    %2821 = vmatprep.subr.mxu0 0.0
    %2822 = vmatpush1.msra.mxu0 0.0
    %2823 = vmatprep.subr.mxu0 0.0
    %2824 = vmatpush1.msra.mxu0 0.0
    %2825 = vmatprep.subr.mxu0 0.0
    %2826 = vmatpush1.msra.mxu0 0.0
    %2827 = vmatprep.subr.mxu0 0.0
    %2828 = vmatpush1.msra.mxu0 0.0
    %2829 = vmatprep.subr.mxu0 0.0
    %2830 = vmatpush1.msra.mxu0 0.0
    %2831 = vmatprep.subr.mxu0 0.0
    %2832 = vmatpush1.msra.mxu0 0.0
    %2833 = vmatprep.subr.mxu0 0.0
    %2834 = vmatpush1.msra.mxu0 0.0
    %2835 = vmatprep.subr.mxu0 0.0
    %2836 = vmatpush1.msra.mxu0 0.0
    %2837 = vmatprep.mubr.f32.mxu0 0.0
    %2838 = vmatmul.mubr.f32.gmra.mrb[0].mxu0 %v2769
    %v2839 = vpop.f32.mrb[0].mxu0
    %v2840 = vadd.f32 0.0, %v2839
    %v2841 = vpop.f32.mrb[0].mxu0
    %2842 = vdwg.mxu0
    %2843 = vrot.lane.b32.xlu0 %v2664, 120
    %v2844 = vpop.permute.xlu0 %2843
    %2845 = vrot.lane.b32.xlu0 %v2664, 88
    %v2846 = vpop.permute.xlu0 %2845
    %v2847 = vsel %vm318, %v2844, 0
    %v2849 = vsel %vm318, %v2846, 0
    %2851 = vmatprep.subr.mxu0 0.0
    %2852 = vmatpush1.xpose.msra.mxu0 %v2849
    %2853 = vmatprep.subr.mxu0 0.0
    %2854 = vmatpush1.xpose.msra.mxu0 0.0
    %2855 = vmatprep.subr.mxu0 0.0
    %2856 = vmatpush1.xpose.msra.mxu0 0.0
    %2857 = vmatprep.subr.mxu0 0.0
    %2858 = vmatpush1.xpose.msra.mxu0 0.0
    %2859 = vmatprep.subr.mxu0 0.0
    %2860 = vmatpush1.xpose.msra.mxu0 0.0
    %2861 = vmatprep.subr.mxu0 0.0
    %2862 = vmatpush1.xpose.msra.mxu0 0.0
    %2863 = vmatprep.subr.mxu0 0.0
    %2864 = vmatpush1.xpose.msra.mxu0 0.0
    %2865 = vmatprep.subr.mxu0 0.0
    %2866 = vmatpush1.xpose.msra.mxu0 0.0
    %2867 = vmatprep.subr.mxu0 0.0
    %2868 = vmatpush1.xpose.msra.mxu0 0.0
    %2869 = vmatprep.subr.mxu0 0.0
    %2870 = vmatpush1.xpose.msra.mxu0 0.0
    %2871 = vmatprep.subr.mxu0 0.0
    %2872 = vmatpush1.xpose.msra.mxu0 0.0
    %2873 = vmatprep.subr.mxu0 0.0
    %2874 = vmatpush1.xpose.msra.mxu0 0.0
    %2875 = vmatprep.subr.mxu0 0.0
    %2876 = vmatpush1.xpose.msra.mxu0 0.0
    %2877 = vmatprep.subr.mxu0 0.0
    %2878 = vmatpush1.xpose.msra.mxu0 0.0
    %2879 = vmatprep.subr.mxu0 0.0
    %2880 = vmatpush1.xpose.msra.mxu0 0.0
    %2881 = vmatprep.subr.mxu0 0.0
    %2882 = vmatpush1.xpose.msra.mxu0 0.0
    %2883 = vmatprep.subr.mxu0 0.0
    %2884 = vmatpush1.xpose.msra.mxu0 0.0
    %2885 = vmatprep.subr.mxu0 0.0
    %2886 = vmatpush1.xpose.msra.mxu0 0.0
    %2887 = vmatprep.subr.mxu0 0.0
    %2888 = vmatpush1.xpose.msra.mxu0 0.0
    %2889 = vmatprep.subr.mxu0 0.0
    %2890 = vmatpush1.xpose.msra.mxu0 0.0
    %2891 = vmatprep.subr.mxu0 0.0
    %2892 = vmatpush1.xpose.msra.mxu0 0.0
    %2893 = vmatprep.subr.mxu0 0.0
    %2894 = vmatpush1.xpose.msra.mxu0 0.0
    %2895 = vmatprep.subr.mxu0 0.0
    %2896 = vmatpush1.xpose.msra.mxu0 0.0
    %2897 = vmatprep.subr.mxu0 0.0
    %2898 = vmatpush1.xpose.msra.mxu0 0.0
    %2899 = vmatprep.subr.mxu0 0.0
    %2900 = vmatpush1.xpose.msra.mxu0 0.0
    %2901 = vmatprep.subr.mxu0 0.0
    %2902 = vmatpush1.xpose.msra.mxu0 0.0
    %2903 = vmatprep.subr.mxu0 0.0
    %2904 = vmatpush1.xpose.msra.mxu0 0.0
    %2905 = vmatprep.subr.mxu0 0.0
    %2906 = vmatpush1.xpose.msra.mxu0 0.0
    %2907 = vmatprep.subr.mxu0 0.0
    %2908 = vmatpush1.xpose.msra.mxu0 0.0
    %2909 = vmatprep.subr.mxu0 0.0
    %2910 = vmatpush1.xpose.msra.mxu0 0.0
    %2911 = vmatprep.subr.mxu0 0.0
    %2912 = vmatpush1.xpose.msra.mxu0 0.0
    %2913 = vmatprep.subr.mxu0 0.0
    %2914 = vmatpush1.xpose.msra.mxu0 0.0
    %2915 = vmatprep.mubr.f32.mxu0 0.0
    %2916 = vmatmul.mubr.f32.gmra.mrb[0].mxu0 %v2847
    %v2917 = vpop.f32.mrb[0].mxu0
    %v2918 = vadd.f32 0.0, %v2917
    %v2919 = vpop.f32.mrb[0].mxu0
    %2920 = vdwg.mxu0
    %v2921 = vmul.f32 %v2918, 0.35355338
    %v2922 = vsel %vm394, %v2921, -inf
    %2923 = vmax.xlane.f32.xlu0 %v2922
    %v2924 = vpop.xlane.xlu0 %2923
    %v2925 = vsub.f32 %v2921, %v2924
    %v2926 = vmul.f32 %v2925, 1.442695
    %v2927 = vpow.pop %v2926
    %v2928 = vsel %vm394, %v2927, 0.0
    %2929 = vadd.xlane.f32.xlu0 %v2928
    %v2930 = vpop.xlane.xlu0 %2929
    %v2931 = vrcp.pop %v2930
    %v2932 = vmul.f32 %v2927, %v2931
    %2933 = vrot.lane.b32.xlu0 %v2664, 56
    %v2934 = vpop.permute.xlu0 %2933
    %v2936 = vsel %vm408, %v2932, 0
    %v2938 = vsel %vm412, %v2934, 0
    %2940 = vmatprep.subr.mxu0 0.0
    %2941 = vmatpush1.msra.mxu0 %v2938
    %2942 = vmatprep.subr.mxu0 0.0
    %2943 = vmatpush1.msra.mxu0 0.0
    %2944 = vmatprep.subr.mxu0 0.0
    %2945 = vmatpush1.msra.mxu0 0.0
    %2946 = vmatprep.subr.mxu0 0.0
    %2947 = vmatpush1.msra.mxu0 0.0
    %2948 = vmatprep.subr.mxu0 0.0
    %2949 = vmatpush1.msra.mxu0 0.0
    %2950 = vmatprep.subr.mxu0 0.0
    %2951 = vmatpush1.msra.mxu0 0.0
    %2952 = vmatprep.subr.mxu0 0.0
    %2953 = vmatpush1.msra.mxu0 0.0
    %2954 = vmatprep.subr.mxu0 0.0
    %2955 = vmatpush1.msra.mxu0 0.0
    %2956 = vmatprep.subr.mxu0 0.0
    %2957 = vmatpush1.msra.mxu0 0.0
    %2958 = vmatprep.subr.mxu0 0.0
    %2959 = vmatpush1.msra.mxu0 0.0
    %2960 = vmatprep.subr.mxu0 0.0
    %2961 = vmatpush1.msra.mxu0 0.0
    %2962 = vmatprep.subr.mxu0 0.0
    %2963 = vmatpush1.msra.mxu0 0.0
    %2964 = vmatprep.subr.mxu0 0.0
    %2965 = vmatpush1.msra.mxu0 0.0
    %2966 = vmatprep.subr.mxu0 0.0
    %2967 = vmatpush1.msra.mxu0 0.0
    %2968 = vmatprep.subr.mxu0 0.0
    %2969 = vmatpush1.msra.mxu0 0.0
    %2970 = vmatprep.subr.mxu0 0.0
    %2971 = vmatpush1.msra.mxu0 0.0
    %2972 = vmatprep.subr.mxu0 0.0
    %2973 = vmatpush1.msra.mxu0 0.0
    %2974 = vmatprep.subr.mxu0 0.0
    %2975 = vmatpush1.msra.mxu0 0.0
    %2976 = vmatprep.subr.mxu0 0.0
    %2977 = vmatpush1.msra.mxu0 0.0
    %2978 = vmatprep.subr.mxu0 0.0
    %2979 = vmatpush1.msra.mxu0 0.0
    %2980 = vmatprep.subr.mxu0 0.0
    %2981 = vmatpush1.msra.mxu0 0.0
    %2982 = vmatprep.subr.mxu0 0.0
    %2983 = vmatpush1.msra.mxu0 0.0
    %2984 = vmatprep.subr.mxu0 0.0
    %2985 = vmatpush1.msra.mxu0 0.0
    %2986 = vmatprep.subr.mxu0 0.0
    %2987 = vmatpush1.msra.mxu0 0.0
    %2988 = vmatprep.subr.mxu0 0.0
    %2989 = vmatpush1.msra.mxu0 0.0
    %2990 = vmatprep.subr.mxu0 0.0
    %2991 = vmatpush1.msra.mxu0 0.0
    %2992 = vmatprep.subr.mxu0 0.0
    %2993 = vmatpush1.msra.mxu0 0.0
    %2994 = vmatprep.subr.mxu0 0.0
    %2995 = vmatpush1.msra.mxu0 0.0
    %2996 = vmatprep.subr.mxu0 0.0
    %2997 = vmatpush1.msra.mxu0 0.0
    %2998 = vmatprep.subr.mxu0 0.0
    %2999 = vmatpush1.msra.mxu0 0.0
    %3000 = vmatprep.subr.mxu0 0.0
    %3001 = vmatpush1.msra.mxu0 0.0
    %3002 = vmatprep.subr.mxu0 0.0
    %3003 = vmatpush1.msra.mxu0 0.0
    %3004 = vmatprep.mubr.f32.mxu0 0.0
    %3005 = vmatmul.mubr.f32.gmra.mrb[0].mxu0 %v2936
    %v3006 = vpop.f32.mrb[0].mxu0
    %v3007 = vadd.f32 0.0, %v3006
    %v3008 = vpop.f32.mrb[0].mxu0
    %3009 = vdwg.mxu0
    %v3011 = vsel %vm318, %v3007, 0
    %3013 = vmatprep.subr.mxu0 0.0
    %3014 = vmatpush1.msra.mxu0 %v2674
    %3015 = vmatprep.subr.mxu0 0.0
    %3016 = vmatpush1.msra.mxu0 0.0
    %3017 = vmatprep.subr.mxu0 0.0
    %3018 = vmatpush1.msra.mxu0 0.0
    %3019 = vmatprep.subr.mxu0 0.0
    %3020 = vmatpush1.msra.mxu0 0.0
    %3021 = vmatprep.subr.mxu0 0.0
    %3022 = vmatpush1.msra.mxu0 0.0
    %3023 = vmatprep.subr.mxu0 0.0
    %3024 = vmatpush1.msra.mxu0 0.0
    %3025 = vmatprep.subr.mxu0 0.0
    %3026 = vmatpush1.msra.mxu0 0.0
    %3027 = vmatprep.subr.mxu0 0.0
    %3028 = vmatpush1.msra.mxu0 0.0
    %3029 = vmatprep.subr.mxu0 0.0
    %3030 = vmatpush1.msra.mxu0 0.0
    %3031 = vmatprep.subr.mxu0 0.0
    %3032 = vmatpush1.msra.mxu0 0.0
    %3033 = vmatprep.subr.mxu0 0.0
    %3034 = vmatpush1.msra.mxu0 0.0
    %3035 = vmatprep.subr.mxu0 0.0
    %3036 = vmatpush1.msra.mxu0 0.0
    %3037 = vmatprep.subr.mxu0 0.0
    %3038 = vmatpush1.msra.mxu0 0.0
    %3039 = vmatprep.subr.mxu0 0.0
    %3040 = vmatpush1.msra.mxu0 0.0
    %3041 = vmatprep.subr.mxu0 0.0
    %3042 = vmatpush1.msra.mxu0 0.0
    %3043 = vmatprep.subr.mxu0 0.0
    %3044 = vmatpush1.msra.mxu0 0.0
    %3045 = vmatprep.subr.mxu0 0.0
    %3046 = vmatpush1.msra.mxu0 0.0
    %3047 = vmatprep.subr.mxu0 0.0
    %3048 = vmatpush1.msra.mxu0 0.0
    %3049 = vmatprep.subr.mxu0 0.0
    %3050 = vmatpush1.msra.mxu0 0.0
    %3051 = vmatprep.subr.mxu0 0.0
    %3052 = vmatpush1.msra.mxu0 0.0
    %3053 = vmatprep.subr.mxu0 0.0
    %3054 = vmatpush1.msra.mxu0 0.0
    %3055 = vmatprep.subr.mxu0 0.0
    %3056 = vmatpush1.msra.mxu0 0.0
    %3057 = vmatprep.subr.mxu0 0.0
    %3058 = vmatpush1.msra.mxu0 0.0
    %3059 = vmatprep.subr.mxu0 0.0
    %3060 = vmatpush1.msra.mxu0 0.0
    %3061 = vmatprep.subr.mxu0 0.0
    %3062 = vmatpush1.msra.mxu0 0.0
    %3063 = vmatprep.subr.mxu0 0.0
    %3064 = vmatpush1.msra.mxu0 0.0
    %3065 = vmatprep.subr.mxu0 0.0
    %3066 = vmatpush1.msra.mxu0 0.0
    %3067 = vmatprep.subr.mxu0 0.0
    %3068 = vmatpush1.msra.mxu0 0.0
    %3069 = vmatprep.subr.mxu0 0.0
    %3070 = vmatpush1.msra.mxu0 0.0
    %3071 = vmatprep.subr.mxu0 0.0
    %3072 = vmatpush1.msra.mxu0 0.0
    %3073 = vmatprep.subr.mxu0 0.0
    %3074 = vmatpush1.msra.mxu0 0.0
    %3075 = vmatprep.subr.mxu0 0.0
    %3076 = vmatpush1.msra.mxu0 0.0
    %3077 = vmatprep.mubr.f32.mxu0 0.0
    %3078 = vmatmul.mubr.f32.gmra.mrb[0].mxu0 %v3011
    %v3079 = vpop.f32.mrb[0].mxu0
    %v3080 = vadd.f32 0.0, %v3079
    %v3081 = vpop.f32.mrb[0].mxu0
    %3082 = vdwg.mxu0
    %v3084 = vsel %vm318, %v2840, 0
    %3086 = vmatprep.subr.mxu0 0.0
    %3087 = vmatpush1.msra.mxu0 %v2673
    %3088 = vmatprep.subr.mxu0 0.0
    %3089 = vmatpush1.msra.mxu0 0.0
    %3090 = vmatprep.subr.mxu0 0.0
    %3091 = vmatpush1.msra.mxu0 0.0
    %3092 = vmatprep.subr.mxu0 0.0
    %3093 = vmatpush1.msra.mxu0 0.0
    %3094 = vmatprep.subr.mxu0 0.0
    %3095 = vmatpush1.msra.mxu0 0.0
    %3096 = vmatprep.subr.mxu0 0.0
    %3097 = vmatpush1.msra.mxu0 0.0
    %3098 = vmatprep.subr.mxu0 0.0
    %3099 = vmatpush1.msra.mxu0 0.0
    %3100 = vmatprep.subr.mxu0 0.0
    %3101 = vmatpush1.msra.mxu0 0.0
    %3102 = vmatprep.subr.mxu0 0.0
    %3103 = vmatpush1.msra.mxu0 0.0
    %3104 = vmatprep.subr.mxu0 0.0
    %3105 = vmatpush1.msra.mxu0 0.0
    %3106 = vmatprep.subr.mxu0 0.0
    %3107 = vmatpush1.msra.mxu0 0.0
    %3108 = vmatprep.subr.mxu0 0.0
    %3109 = vmatpush1.msra.mxu0 0.0
    %3110 = vmatprep.subr.mxu0 0.0
    %3111 = vmatpush1.msra.mxu0 0.0
    %3112 = vmatprep.subr.mxu0 0.0
    %3113 = vmatpush1.msra.mxu0 0.0
    %3114 = vmatprep.subr.mxu0 0.0
    %3115 = vmatpush1.msra.mxu0 0.0
    %3116 = vmatprep.subr.mxu0 0.0
    %3117 = vmatpush1.msra.mxu0 0.0
    %3118 = vmatprep.subr.mxu0 0.0
    %3119 = vmatpush1.msra.mxu0 0.0
    %3120 = vmatprep.subr.mxu0 0.0
    %3121 = vmatpush1.msra.mxu0 0.0
    %3122 = vmatprep.subr.mxu0 0.0
    %3123 = vmatpush1.msra.mxu0 0.0
    %3124 = vmatprep.subr.mxu0 0.0
    %3125 = vmatpush1.msra.mxu0 0.0
    %3126 = vmatprep.subr.mxu0 0.0
    %3127 = vmatpush1.msra.mxu0 0.0
    %3128 = vmatprep.subr.mxu0 0.0
    %3129 = vmatpush1.msra.mxu0 0.0
    %3130 = vmatprep.subr.mxu0 0.0
    %3131 = vmatpush1.msra.mxu0 0.0
    %3132 = vmatprep.subr.mxu0 0.0
    %3133 = vmatpush1.msra.mxu0 0.0
    %3134 = vmatprep.subr.mxu0 0.0
    %3135 = vmatpush1.msra.mxu0 0.0
    %3136 = vmatprep.subr.mxu0 0.0
    %3137 = vmatpush1.msra.mxu0 0.0
    %3138 = vmatprep.subr.mxu0 0.0
    %3139 = vmatpush1.msra.mxu0 0.0
    %3140 = vmatprep.subr.mxu0 0.0
    %3141 = vmatpush1.msra.mxu0 0.0
    %3142 = vmatprep.subr.mxu0 0.0
    %3143 = vmatpush1.msra.mxu0 0.0
    %3144 = vmatprep.subr.mxu0 0.0
    %3145 = vmatpush1.msra.mxu0 0.0
    %3146 = vmatprep.subr.mxu0 0.0
    %3147 = vmatpush1.msra.mxu0 0.0
    %3148 = vmatprep.subr.mxu0 0.0
    %3149 = vmatpush1.msra.mxu0 0.0
    %3150 = vmatprep.mubr.f32.mxu0 0.0
    %3151 = vmatmul.mubr.f32.gmra.mrb[0].mxu0 %v3084
    %v3152 = vpop.f32.mrb[0].mxu0
    %v3153 = vadd.f32 %v3080, %v3152
    %v3154 = vpop.f32.mrb[0].mxu0
    %3155 = vdwg.mxu0
    %3156 = vrot.lane.b32.xlu0 %v2664, 112
    %v3157 = vpop.permute.xlu0 %3156
    %3158 = vrot.lane.b32.xlu0 %v2664, 80
    %v3159 = vpop.permute.xlu0 %3158
    %v3160 = vsel %vm318, %v3157, 0
    %v3162 = vsel %vm318, %v3159, 0
    %3164 = vmatprep.subr.mxu0 0.0
    %3165 = vmatpush1.xpose.msra.mxu0 %v3162
    %3166 = vmatprep.subr.mxu0 0.0
    %3167 = vmatpush1.xpose.msra.mxu0 0.0
    %3168 = vmatprep.subr.mxu0 0.0
    %3169 = vmatpush1.xpose.msra.mxu0 0.0
    %3170 = vmatprep.subr.mxu0 0.0
    %3171 = vmatpush1.xpose.msra.mxu0 0.0
    %3172 = vmatprep.subr.mxu0 0.0
    %3173 = vmatpush1.xpose.msra.mxu0 0.0
    %3174 = vmatprep.subr.mxu0 0.0
    %3175 = vmatpush1.xpose.msra.mxu0 0.0
    %3176 = vmatprep.subr.mxu0 0.0
    %3177 = vmatpush1.xpose.msra.mxu0 0.0
    %3178 = vmatprep.subr.mxu0 0.0
    %3179 = vmatpush1.xpose.msra.mxu0 0.0
    %3180 = vmatprep.subr.mxu0 0.0
    %3181 = vmatpush1.xpose.msra.mxu0 0.0
    %3182 = vmatprep.subr.mxu0 0.0
    %3183 = vmatpush1.xpose.msra.mxu0 0.0
    %3184 = vmatprep.subr.mxu0 0.0
    %3185 = vmatpush1.xpose.msra.mxu0 0.0
    %3186 = vmatprep.subr.mxu0 0.0
    %3187 = vmatpush1.xpose.msra.mxu0 0.0
    %3188 = vmatprep.subr.mxu0 0.0
    %3189 = vmatpush1.xpose.msra.mxu0 0.0
    %3190 = vmatprep.subr.mxu0 0.0
    %3191 = vmatpush1.xpose.msra.mxu0 0.0
    %3192 = vmatprep.subr.mxu0 0.0
    %3193 = vmatpush1.xpose.msra.mxu0 0.0
    %3194 = vmatprep.subr.mxu0 0.0
    %3195 = vmatpush1.xpose.msra.mxu0 0.0
    %3196 = vmatprep.subr.mxu0 0.0
    %3197 = vmatpush1.xpose.msra.mxu0 0.0
    %3198 = vmatprep.subr.mxu0 0.0
    %3199 = vmatpush1.xpose.msra.mxu0 0.0
    %3200 = vmatprep.subr.mxu0 0.0
    %3201 = vmatpush1.xpose.msra.mxu0 0.0
    %3202 = vmatprep.subr.mxu0 0.0
    %3203 = vmatpush1.xpose.msra.mxu0 0.0
    %3204 = vmatprep.subr.mxu0 0.0
    %3205 = vmatpush1.xpose.msra.mxu0 0.0
    %3206 = vmatprep.subr.mxu0 0.0
    %3207 = vmatpush1.xpose.msra.mxu0 0.0
    %3208 = vmatprep.subr.mxu0 0.0
    %3209 = vmatpush1.xpose.msra.mxu0 0.0
    %3210 = vmatprep.subr.mxu0 0.0
    %3211 = vmatpush1.xpose.msra.mxu0 0.0
    %3212 = vmatprep.subr.mxu0 0.0
    %3213 = vmatpush1.xpose.msra.mxu0 0.0
    %3214 = vmatprep.subr.mxu0 0.0
    %3215 = vmatpush1.xpose.msra.mxu0 0.0
    %3216 = vmatprep.subr.mxu0 0.0
    %3217 = vmatpush1.xpose.msra.mxu0 0.0
    %3218 = vmatprep.subr.mxu0 0.0
    %3219 = vmatpush1.xpose.msra.mxu0 0.0
    %3220 = vmatprep.subr.mxu0 0.0
    %3221 = vmatpush1.xpose.msra.mxu0 0.0
    %3222 = vmatprep.subr.mxu0 0.0
    %3223 = vmatpush1.xpose.msra.mxu0 0.0
    %3224 = vmatprep.subr.mxu0 0.0
    %3225 = vmatpush1.xpose.msra.mxu0 0.0
    %3226 = vmatprep.subr.mxu0 0.0
    %3227 = vmatpush1.xpose.msra.mxu0 0.0
    %3228 = vmatprep.mubr.f32.mxu0 0.0
    %3229 = vmatmul.mubr.f32.gmra.mrb[0].mxu0 %v3160
    %v3230 = vpop.f32.mrb[0].mxu0
    %v3231 = vadd.f32 0.0, %v3230
    %v3232 = vpop.f32.mrb[0].mxu0
    %3233 = vdwg.mxu0
    %v3234 = vmul.f32 %v3231, 0.35355338
    %v3235 = vsel %vm394, %v3234, -inf
    %3236 = vmax.xlane.f32.xlu0 %v3235
    %v3237 = vpop.xlane.xlu0 %3236
    %v3238 = vsub.f32 %v3234, %v3237
    %v3239 = vmul.f32 %v3238, 1.442695
    %v3240 = vpow.pop %v3239
    %v3241 = vsel %vm394, %v3240, 0.0
    %3242 = vadd.xlane.f32.xlu0 %v3241
    %v3243 = vpop.xlane.xlu0 %3242
    %v3244 = vrcp.pop %v3243
    %v3245 = vmul.f32 %v3240, %v3244
    %3246 = vrot.lane.b32.xlu0 %v2664, 48
    %v3247 = vpop.permute.xlu0 %3246
    %v3249 = vsel %vm408, %v3245, 0
    %v3251 = vsel %vm412, %v3247, 0
    %3253 = vmatprep.subr.mxu0 0.0
    %3254 = vmatpush1.msra.mxu0 %v3251
    %3255 = vmatprep.subr.mxu0 0.0
    %3256 = vmatpush1.msra.mxu0 0.0
    %3257 = vmatprep.subr.mxu0 0.0
    %3258 = vmatpush1.msra.mxu0 0.0
    %3259 = vmatprep.subr.mxu0 0.0
    %3260 = vmatpush1.msra.mxu0 0.0
    %3261 = vmatprep.subr.mxu0 0.0
    %3262 = vmatpush1.msra.mxu0 0.0
    %3263 = vmatprep.subr.mxu0 0.0
    %3264 = vmatpush1.msra.mxu0 0.0
    %3265 = vmatprep.subr.mxu0 0.0
    %3266 = vmatpush1.msra.mxu0 0.0
    %3267 = vmatprep.subr.mxu0 0.0
    %3268 = vmatpush1.msra.mxu0 0.0
    %3269 = vmatprep.subr.mxu0 0.0
    %3270 = vmatpush1.msra.mxu0 0.0
    %3271 = vmatprep.subr.mxu0 0.0
    %3272 = vmatpush1.msra.mxu0 0.0
    %3273 = vmatprep.subr.mxu0 0.0
    %3274 = vmatpush1.msra.mxu0 0.0
    %3275 = vmatprep.subr.mxu0 0.0
    %3276 = vmatpush1.msra.mxu0 0.0
    %3277 = vmatprep.subr.mxu0 0.0
    %3278 = vmatpush1.msra.mxu0 0.0
    %3279 = vmatprep.subr.mxu0 0.0
    %3280 = vmatpush1.msra.mxu0 0.0
    %3281 = vmatprep.subr.mxu0 0.0
    %3282 = vmatpush1.msra.mxu0 0.0
    %3283 = vmatprep.subr.mxu0 0.0
    %3284 = vmatpush1.msra.mxu0 0.0
    %3285 = vmatprep.subr.mxu0 0.0
    %3286 = vmatpush1.msra.mxu0 0.0
    %3287 = vmatprep.subr.mxu0 0.0
    %3288 = vmatpush1.msra.mxu0 0.0
    %3289 = vmatprep.subr.mxu0 0.0
    %3290 = vmatpush1.msra.mxu0 0.0
    %3291 = vmatprep.subr.mxu0 0.0
    %3292 = vmatpush1.msra.mxu0 0.0
    %3293 = vmatprep.subr.mxu0 0.0
    %3294 = vmatpush1.msra.mxu0 0.0
    %3295 = vmatprep.subr.mxu0 0.0
    %3296 = vmatpush1.msra.mxu0 0.0
    %3297 = vmatprep.subr.mxu0 0.0
    %3298 = vmatpush1.msra.mxu0 0.0
    %3299 = vmatprep.subr.mxu0 0.0
    %3300 = vmatpush1.msra.mxu0 0.0
    %3301 = vmatprep.subr.mxu0 0.0
    %3302 = vmatpush1.msra.mxu0 0.0
    %3303 = vmatprep.subr.mxu0 0.0
    %3304 = vmatpush1.msra.mxu0 0.0
    %3305 = vmatprep.subr.mxu0 0.0
    %3306 = vmatpush1.msra.mxu0 0.0
    %3307 = vmatprep.subr.mxu0 0.0
    %3308 = vmatpush1.msra.mxu0 0.0
    %3309 = vmatprep.subr.mxu0 0.0
    %3310 = vmatpush1.msra.mxu0 0.0
    %3311 = vmatprep.subr.mxu0 0.0
    %3312 = vmatpush1.msra.mxu0 0.0
    %3313 = vmatprep.subr.mxu0 0.0
    %3314 = vmatpush1.msra.mxu0 0.0
    %3315 = vmatprep.subr.mxu0 0.0
    %3316 = vmatpush1.msra.mxu0 0.0
    %3317 = vmatprep.mubr.f32.mxu0 0.0
    %3318 = vmatmul.mubr.f32.gmra.mrb[0].mxu0 %v3249
    %v3319 = vpop.f32.mrb[0].mxu0
    %v3320 = vadd.f32 0.0, %v3319
    %v3321 = vpop.f32.mrb[0].mxu0
    %3322 = vdwg.mxu0
    %v3324 = vsel %vm318, %v3320, 0
    %3326 = vmatprep.subr.mxu0 0.0
    %3327 = vmatpush1.msra.mxu0 %v2675
    %3328 = vmatprep.subr.mxu0 0.0
    %3329 = vmatpush1.msra.mxu0 0.0
    %3330 = vmatprep.subr.mxu0 0.0
    %3331 = vmatpush1.msra.mxu0 0.0
    %3332 = vmatprep.subr.mxu0 0.0
    %3333 = vmatpush1.msra.mxu0 0.0
    %3334 = vmatprep.subr.mxu0 0.0
    %3335 = vmatpush1.msra.mxu0 0.0
    %3336 = vmatprep.subr.mxu0 0.0
    %3337 = vmatpush1.msra.mxu0 0.0
    %3338 = vmatprep.subr.mxu0 0.0
    %3339 = vmatpush1.msra.mxu0 0.0
    %3340 = vmatprep.subr.mxu0 0.0
    %3341 = vmatpush1.msra.mxu0 0.0
    %3342 = vmatprep.subr.mxu0 0.0
    %3343 = vmatpush1.msra.mxu0 0.0
    %3344 = vmatprep.subr.mxu0 0.0
    %3345 = vmatpush1.msra.mxu0 0.0
    %3346 = vmatprep.subr.mxu0 0.0
    %3347 = vmatpush1.msra.mxu0 0.0
    %3348 = vmatprep.subr.mxu0 0.0
    %3349 = vmatpush1.msra.mxu0 0.0
    %3350 = vmatprep.subr.mxu0 0.0
    %3351 = vmatpush1.msra.mxu0 0.0
    %3352 = vmatprep.subr.mxu0 0.0
    %3353 = vmatpush1.msra.mxu0 0.0
    %3354 = vmatprep.subr.mxu0 0.0
    %3355 = vmatpush1.msra.mxu0 0.0
    %3356 = vmatprep.subr.mxu0 0.0
    %3357 = vmatpush1.msra.mxu0 0.0
    %3358 = vmatprep.subr.mxu0 0.0
    %3359 = vmatpush1.msra.mxu0 0.0
    %3360 = vmatprep.subr.mxu0 0.0
    %3361 = vmatpush1.msra.mxu0 0.0
    %3362 = vmatprep.subr.mxu0 0.0
    %3363 = vmatpush1.msra.mxu0 0.0
    %3364 = vmatprep.subr.mxu0 0.0
    %3365 = vmatpush1.msra.mxu0 0.0
    %3366 = vmatprep.subr.mxu0 0.0
    %3367 = vmatpush1.msra.mxu0 0.0
    %3368 = vmatprep.subr.mxu0 0.0
    %3369 = vmatpush1.msra.mxu0 0.0
    %3370 = vmatprep.subr.mxu0 0.0
    %3371 = vmatpush1.msra.mxu0 0.0
    %3372 = vmatprep.subr.mxu0 0.0
    %3373 = vmatpush1.msra.mxu0 0.0
    %3374 = vmatprep.subr.mxu0 0.0
    %3375 = vmatpush1.msra.mxu0 0.0
    %3376 = vmatprep.subr.mxu0 0.0
    %3377 = vmatpush1.msra.mxu0 0.0
    %3378 = vmatprep.subr.mxu0 0.0
    %3379 = vmatpush1.msra.mxu0 0.0
    %3380 = vmatprep.subr.mxu0 0.0
    %3381 = vmatpush1.msra.mxu0 0.0
    %3382 = vmatprep.subr.mxu0 0.0
    %3383 = vmatpush1.msra.mxu0 0.0
    %3384 = vmatprep.subr.mxu0 0.0
    %3385 = vmatpush1.msra.mxu0 0.0
    %3386 = vmatprep.subr.mxu0 0.0
    %3387 = vmatpush1.msra.mxu0 0.0
    %3388 = vmatprep.subr.mxu0 0.0
    %3389 = vmatpush1.msra.mxu0 0.0
    %3390 = vmatprep.mubr.f32.mxu0 0.0
    %3391 = vmatmul.mubr.f32.gmra.mrb[0].mxu0 %v3324
    %v3392 = vpop.f32.mrb[0].mxu0
    %v3393 = vadd.f32 0.0, %v3392
    %v3394 = vpop.f32.mrb[0].mxu0
    %3395 = vdwg.mxu0
    %v3396 = vadd.f32 %v3153, %v3393
    %3397 = vrot.lane.b32.xlu0 %v2664, 104
    %v3398 = vpop.permute.xlu0 %3397
    %3399 = vrot.lane.b32.xlu0 %v2664, 72
    %v3400 = vpop.permute.xlu0 %3399
    %v3401 = vsel %vm318, %v3398, 0
    %v3403 = vsel %vm318, %v3400, 0
    %3405 = vmatprep.subr.mxu0 0.0
    %3406 = vmatpush1.xpose.msra.mxu0 %v3403
    %3407 = vmatprep.subr.mxu0 0.0
    %3408 = vmatpush1.xpose.msra.mxu0 0.0
    %3409 = vmatprep.subr.mxu0 0.0
    %3410 = vmatpush1.xpose.msra.mxu0 0.0
    %3411 = vmatprep.subr.mxu0 0.0
    %3412 = vmatpush1.xpose.msra.mxu0 0.0
    %3413 = vmatprep.subr.mxu0 0.0
    %3414 = vmatpush1.xpose.msra.mxu0 0.0
    %3415 = vmatprep.subr.mxu0 0.0
    %3416 = vmatpush1.xpose.msra.mxu0 0.0
    %3417 = vmatprep.subr.mxu0 0.0
    %3418 = vmatpush1.xpose.msra.mxu0 0.0
    %3419 = vmatprep.subr.mxu0 0.0
    %3420 = vmatpush1.xpose.msra.mxu0 0.0
    %3421 = vmatprep.subr.mxu0 0.0
    %3422 = vmatpush1.xpose.msra.mxu0 0.0
    %3423 = vmatprep.subr.mxu0 0.0
    %3424 = vmatpush1.xpose.msra.mxu0 0.0
    %3425 = vmatprep.subr.mxu0 0.0
    %3426 = vmatpush1.xpose.msra.mxu0 0.0
    %3427 = vmatprep.subr.mxu0 0.0
    %3428 = vmatpush1.xpose.msra.mxu0 0.0
    %3429 = vmatprep.subr.mxu0 0.0
    %3430 = vmatpush1.xpose.msra.mxu0 0.0
    %3431 = vmatprep.subr.mxu0 0.0
    %3432 = vmatpush1.xpose.msra.mxu0 0.0
    %3433 = vmatprep.subr.mxu0 0.0
    %3434 = vmatpush1.xpose.msra.mxu0 0.0
    %3435 = vmatprep.subr.mxu0 0.0
    %3436 = vmatpush1.xpose.msra.mxu0 0.0
    %3437 = vmatprep.subr.mxu0 0.0
    %3438 = vmatpush1.xpose.msra.mxu0 0.0
    %3439 = vmatprep.subr.mxu0 0.0
    %3440 = vmatpush1.xpose.msra.mxu0 0.0
    %3441 = vmatprep.subr.mxu0 0.0
    %3442 = vmatpush1.xpose.msra.mxu0 0.0
    %3443 = vmatprep.subr.mxu0 0.0
    %3444 = vmatpush1.xpose.msra.mxu0 0.0
    %3445 = vmatprep.subr.mxu0 0.0
    %3446 = vmatpush1.xpose.msra.mxu0 0.0
    %3447 = vmatprep.subr.mxu0 0.0
    %3448 = vmatpush1.xpose.msra.mxu0 0.0
    %3449 = vmatprep.subr.mxu0 0.0
    %3450 = vmatpush1.xpose.msra.mxu0 0.0
    %3451 = vmatprep.subr.mxu0 0.0
    %3452 = vmatpush1.xpose.msra.mxu0 0.0
    %3453 = vmatprep.subr.mxu0 0.0
    %3454 = vmatpush1.xpose.msra.mxu0 0.0
    %3455 = vmatprep.subr.mxu0 0.0
    %3456 = vmatpush1.xpose.msra.mxu0 0.0
    %3457 = vmatprep.subr.mxu0 0.0
    %3458 = vmatpush1.xpose.msra.mxu0 0.0
    %3459 = vmatprep.subr.mxu0 0.0
    %3460 = vmatpush1.xpose.msra.mxu0 0.0
    %3461 = vmatprep.subr.mxu0 0.0
    %3462 = vmatpush1.xpose.msra.mxu0 0.0
    %3463 = vmatprep.subr.mxu0 0.0
    %3464 = vmatpush1.xpose.msra.mxu0 0.0
    %3465 = vmatprep.subr.mxu0 0.0
    %3466 = vmatpush1.xpose.msra.mxu0 0.0
    %3467 = vmatprep.subr.mxu0 0.0
    %3468 = vmatpush1.xpose.msra.mxu0 0.0
    %3469 = vmatprep.mubr.f32.mxu0 0.0
    %3470 = vmatmul.mubr.f32.gmra.mrb[0].mxu0 %v3401
    %v3471 = vpop.f32.mrb[0].mxu0
    %v3472 = vadd.f32 0.0, %v3471
    %v3473 = vpop.f32.mrb[0].mxu0
    %3474 = vdwg.mxu0
    %v3475 = vmul.f32 %v3472, 0.35355338
    %v3476 = vsel %vm394, %v3475, -inf
    %3477 = vmax.xlane.f32.xlu0 %v3476
    %v3478 = vpop.xlane.xlu0 %3477
    %v3479 = vsub.f32 %v3475, %v3478
    %v3480 = vmul.f32 %v3479, 1.442695
    %v3481 = vpow.pop %v3480
    %v3482 = vsel %vm394, %v3481, 0.0
    %3483 = vadd.xlane.f32.xlu0 %v3482
    %v3484 = vpop.xlane.xlu0 %3483
    %v3485 = vrcp.pop %v3484
    %v3486 = vmul.f32 %v3481, %v3485
    %3487 = vrot.lane.b32.xlu0 %v2664, 40
    %v3488 = vpop.permute.xlu0 %3487
    %v3490 = vsel %vm408, %v3486, 0
    %v3492 = vsel %vm412, %v3488, 0
    %3494 = vmatprep.subr.mxu0 0.0
    %3495 = vmatpush1.msra.mxu0 %v3492
    %3496 = vmatprep.subr.mxu0 0.0
    %3497 = vmatpush1.msra.mxu0 0.0
    %3498 = vmatprep.subr.mxu0 0.0
    %3499 = vmatpush1.msra.mxu0 0.0
    %3500 = vmatprep.subr.mxu0 0.0
    %3501 = vmatpush1.msra.mxu0 0.0
    %3502 = vmatprep.subr.mxu0 0.0
    %3503 = vmatpush1.msra.mxu0 0.0
    %3504 = vmatprep.subr.mxu0 0.0
    %3505 = vmatpush1.msra.mxu0 0.0
    %3506 = vmatprep.subr.mxu0 0.0
    %3507 = vmatpush1.msra.mxu0 0.0
    %3508 = vmatprep.subr.mxu0 0.0
    %3509 = vmatpush1.msra.mxu0 0.0
    %3510 = vmatprep.subr.mxu0 0.0
    %3511 = vmatpush1.msra.mxu0 0.0
    %3512 = vmatprep.subr.mxu0 0.0
    %3513 = vmatpush1.msra.mxu0 0.0
    %3514 = vmatprep.subr.mxu0 0.0
    %3515 = vmatpush1.msra.mxu0 0.0
    %3516 = vmatprep.subr.mxu0 0.0
    %3517 = vmatpush1.msra.mxu0 0.0
    %3518 = vmatprep.subr.mxu0 0.0
    %3519 = vmatpush1.msra.mxu0 0.0
    %3520 = vmatprep.subr.mxu0 0.0
    %3521 = vmatpush1.msra.mxu0 0.0
    %3522 = vmatprep.subr.mxu0 0.0
    %3523 = vmatpush1.msra.mxu0 0.0
    %3524 = vmatprep.subr.mxu0 0.0
    %3525 = vmatpush1.msra.mxu0 0.0
    %3526 = vmatprep.subr.mxu0 0.0
    %3527 = vmatpush1.msra.mxu0 0.0
    %3528 = vmatprep.subr.mxu0 0.0
    %3529 = vmatpush1.msra.mxu0 0.0
    %3530 = vmatprep.subr.mxu0 0.0
    %3531 = vmatpush1.msra.mxu0 0.0
    %3532 = vmatprep.subr.mxu0 0.0
    %3533 = vmatpush1.msra.mxu0 0.0
    %3534 = vmatprep.subr.mxu0 0.0
    %3535 = vmatpush1.msra.mxu0 0.0
    %3536 = vmatprep.subr.mxu0 0.0
    %3537 = vmatpush1.msra.mxu0 0.0
    %3538 = vmatprep.subr.mxu0 0.0
    %3539 = vmatpush1.msra.mxu0 0.0
    %3540 = vmatprep.subr.mxu0 0.0
    %3541 = vmatpush1.msra.mxu0 0.0
    %3542 = vmatprep.subr.mxu0 0.0
    %3543 = vmatpush1.msra.mxu0 0.0
    %3544 = vmatprep.subr.mxu0 0.0
    %3545 = vmatpush1.msra.mxu0 0.0
    %3546 = vmatprep.subr.mxu0 0.0
    %3547 = vmatpush1.msra.mxu0 0.0
    %3548 = vmatprep.subr.mxu0 0.0
    %3549 = vmatpush1.msra.mxu0 0.0
    %3550 = vmatprep.subr.mxu0 0.0
    %3551 = vmatpush1.msra.mxu0 0.0
    %3552 = vmatprep.subr.mxu0 0.0
    %3553 = vmatpush1.msra.mxu0 0.0
    %3554 = vmatprep.subr.mxu0 0.0
    %3555 = vmatpush1.msra.mxu0 0.0
    %3556 = vmatprep.subr.mxu0 0.0
    %3557 = vmatpush1.msra.mxu0 0.0
    %3558 = vmatprep.mubr.f32.mxu0 0.0
    %3559 = vmatmul.mubr.f32.gmra.mrb[0].mxu0 %v3490
    %v3560 = vpop.f32.mrb[0].mxu0
    %v3561 = vadd.f32 0.0, %v3560
    %v3562 = vpop.f32.mrb[0].mxu0
    %3563 = vdwg.mxu0
    %v3565 = vsel %vm318, %v3561, 0
    %3567 = vmatprep.subr.mxu0 0.0
    %3568 = vmatpush1.msra.mxu0 %v2676
    %3569 = vmatprep.subr.mxu0 0.0
    %3570 = vmatpush1.msra.mxu0 0.0
    %3571 = vmatprep.subr.mxu0 0.0
    %3572 = vmatpush1.msra.mxu0 0.0
    %3573 = vmatprep.subr.mxu0 0.0
    %3574 = vmatpush1.msra.mxu0 0.0
    %3575 = vmatprep.subr.mxu0 0.0
    %3576 = vmatpush1.msra.mxu0 0.0
    %3577 = vmatprep.subr.mxu0 0.0
    %3578 = vmatpush1.msra.mxu0 0.0
    %3579 = vmatprep.subr.mxu0 0.0
    %3580 = vmatpush1.msra.mxu0 0.0
    %3581 = vmatprep.subr.mxu0 0.0
    %3582 = vmatpush1.msra.mxu0 0.0
    %3583 = vmatprep.subr.mxu0 0.0
    %3584 = vmatpush1.msra.mxu0 0.0
    %3585 = vmatprep.subr.mxu0 0.0
    %3586 = vmatpush1.msra.mxu0 0.0
    %3587 = vmatprep.subr.mxu0 0.0
    %3588 = vmatpush1.msra.mxu0 0.0
    %3589 = vmatprep.subr.mxu0 0.0
    %3590 = vmatpush1.msra.mxu0 0.0
    %3591 = vmatprep.subr.mxu0 0.0
    %3592 = vmatpush1.msra.mxu0 0.0
    %3593 = vmatprep.subr.mxu0 0.0
    %3594 = vmatpush1.msra.mxu0 0.0
    %3595 = vmatprep.subr.mxu0 0.0
    %3596 = vmatpush1.msra.mxu0 0.0
    %3597 = vmatprep.subr.mxu0 0.0
    %3598 = vmatpush1.msra.mxu0 0.0
    %3599 = vmatprep.subr.mxu0 0.0
    %3600 = vmatpush1.msra.mxu0 0.0
    %3601 = vmatprep.subr.mxu0 0.0
    %3602 = vmatpush1.msra.mxu0 0.0
    %3603 = vmatprep.subr.mxu0 0.0
    %3604 = vmatpush1.msra.mxu0 0.0
    %3605 = vmatprep.subr.mxu0 0.0
    %3606 = vmatpush1.msra.mxu0 0.0
    %3607 = vmatprep.subr.mxu0 0.0
    %3608 = vmatpush1.msra.mxu0 0.0
    %3609 = vmatprep.subr.mxu0 0.0
    %3610 = vmatpush1.msra.mxu0 0.0
    %3611 = vmatprep.subr.mxu0 0.0
    %3612 = vmatpush1.msra.mxu0 0.0
    %3613 = vmatprep.subr.mxu0 0.0
    %3614 = vmatpush1.msra.mxu0 0.0
    %3615 = vmatprep.subr.mxu0 0.0
    %3616 = vmatpush1.msra.mxu0 0.0
    %3617 = vmatprep.subr.mxu0 0.0
    %3618 = vmatpush1.msra.mxu0 0.0
    %3619 = vmatprep.subr.mxu0 0.0
    %3620 = vmatpush1.msra.mxu0 0.0
    %3621 = vmatprep.subr.mxu0 0.0
    %3622 = vmatpush1.msra.mxu0 0.0
    %3623 = vmatprep.subr.mxu0 0.0
    %3624 = vmatpush1.msra.mxu0 0.0
    %3625 = vmatprep.subr.mxu0 0.0
    %3626 = vmatpush1.msra.mxu0 0.0
    %3627 = vmatprep.subr.mxu0 0.0
    %3628 = vmatpush1.msra.mxu0 0.0
    %3629 = vmatprep.subr.mxu0 0.0
    %3630 = vmatpush1.msra.mxu0 0.0
    %3631 = vmatprep.mubr.f32.mxu0 0.0
    %3632 = vmatmul.mubr.f32.gmra.mrb[0].mxu0 %v3565
    %v3633 = vpop.f32.mrb[0].mxu0
    %v3634 = vadd.f32 0.0, %v3633
    %v3635 = vpop.f32.mrb[0].mxu0
    %3636 = vdwg.mxu0
    %v3637 = vadd.f32 %v3396, %v3634
    %3638 = vst.msk [vmem:[#allocation2] sm:$0x1f] %vm1280, %v3637
    %v3640 = vrot.slane %v2664, 5
    %v3641 = vrot.slane %v2669, 5
    %v3642 = vsel %vm1283, %v3640, %v3641
    %3643 = vrot.lane.b32.xlu0 %v3642, 96
    %v3644 = vpop.permute.xlu0 %3643
    %v3645 = vsel %vm318, %v3642, 0
    %v3647 = vsel %vm318, %v3644, 0
    %3649 = vmatprep.subr.mxu0 0.0
    %3650 = vmatpush1.xpose.msra.mxu0 %v3647
    %3651 = vmatprep.subr.mxu0 0.0
    %3652 = vmatpush1.xpose.msra.mxu0 0.0
    %3653 = vmatprep.subr.mxu0 0.0
    %3654 = vmatpush1.xpose.msra.mxu0 0.0
    %3655 = vmatprep.subr.mxu0 0.0
    %3656 = vmatpush1.xpose.msra.mxu0 0.0
    %3657 = vmatprep.subr.mxu0 0.0
    %3658 = vmatpush1.xpose.msra.mxu0 0.0
    %3659 = vmatprep.subr.mxu0 0.0
    %3660 = vmatpush1.xpose.msra.mxu0 0.0
    %3661 = vmatprep.subr.mxu0 0.0
    %3662 = vmatpush1.xpose.msra.mxu0 0.0
    %3663 = vmatprep.subr.mxu0 0.0
    %3664 = vmatpush1.xpose.msra.mxu0 0.0
    %3665 = vmatprep.subr.mxu0 0.0
    %3666 = vmatpush1.xpose.msra.mxu0 0.0
    %3667 = vmatprep.subr.mxu0 0.0
    %3668 = vmatpush1.xpose.msra.mxu0 0.0
    %3669 = vmatprep.subr.mxu0 0.0
    %3670 = vmatpush1.xpose.msra.mxu0 0.0
    %3671 = vmatprep.subr.mxu0 0.0
    %3672 = vmatpush1.xpose.msra.mxu0 0.0
    %3673 = vmatprep.subr.mxu0 0.0
    %3674 = vmatpush1.xpose.msra.mxu0 0.0
    %3675 = vmatprep.subr.mxu0 0.0
    %3676 = vmatpush1.xpose.msra.mxu0 0.0
    %3677 = vmatprep.subr.mxu0 0.0
    %3678 = vmatpush1.xpose.msra.mxu0 0.0
    %3679 = vmatprep.subr.mxu0 0.0
    %3680 = vmatpush1.xpose.msra.mxu0 0.0
    %3681 = vmatprep.subr.mxu0 0.0
    %3682 = vmatpush1.xpose.msra.mxu0 0.0
    %3683 = vmatprep.subr.mxu0 0.0
    %3684 = vmatpush1.xpose.msra.mxu0 0.0
    %3685 = vmatprep.subr.mxu0 0.0
    %3686 = vmatpush1.xpose.msra.mxu0 0.0
    %3687 = vmatprep.subr.mxu0 0.0
    %3688 = vmatpush1.xpose.msra.mxu0 0.0
    %3689 = vmatprep.subr.mxu0 0.0
    %3690 = vmatpush1.xpose.msra.mxu0 0.0
    %3691 = vmatprep.subr.mxu0 0.0
    %3692 = vmatpush1.xpose.msra.mxu0 0.0
    %3693 = vmatprep.subr.mxu0 0.0
    %3694 = vmatpush1.xpose.msra.mxu0 0.0
    %3695 = vmatprep.subr.mxu0 0.0
    %3696 = vmatpush1.xpose.msra.mxu0 0.0
    %3697 = vmatprep.subr.mxu0 0.0
    %3698 = vmatpush1.xpose.msra.mxu0 0.0
    %3699 = vmatprep.subr.mxu0 0.0
    %3700 = vmatpush1.xpose.msra.mxu0 0.0
    %3701 = vmatprep.subr.mxu0 0.0
    %3702 = vmatpush1.xpose.msra.mxu0 0.0
    %3703 = vmatprep.subr.mxu0 0.0
    %3704 = vmatpush1.xpose.msra.mxu0 0.0
    %3705 = vmatprep.subr.mxu0 0.0
    %3706 = vmatpush1.xpose.msra.mxu0 0.0
    %3707 = vmatprep.subr.mxu0 0.0
    %3708 = vmatpush1.xpose.msra.mxu0 0.0
    %3709 = vmatprep.subr.mxu0 0.0
    %3710 = vmatpush1.xpose.msra.mxu0 0.0
    %3711 = vmatprep.subr.mxu0 0.0
    %3712 = vmatpush1.xpose.msra.mxu0 0.0
    %3713 = vmatprep.mubr.f32.mxu0 0.0
    %3714 = vmatmul.mubr.f32.gmra.mrb[0].mxu0 %v3645
    %v3715 = vpop.f32.mrb[0].mxu0
    %v3716 = vadd.f32 0.0, %v3715
    %v3717 = vpop.f32.mrb[0].mxu0
    %3718 = vdwg.mxu0
    %v3719 = vmul.f32 %v3716, 0.35355338
    %v3720 = vsel %vm394, %v3719, -inf
    %3721 = vmax.xlane.f32.xlu0 %v3720
    %v3722 = vpop.xlane.xlu0 %3721
    %v3723 = vsub.f32 %v3719, %v3722
    %v3724 = vmul.f32 %v3723, 1.442695
    %v3725 = vpow.pop %v3724
    %v3726 = vsel %vm394, %v3725, 0.0
    %3727 = vadd.xlane.f32.xlu0 %v3726
    %v3728 = vpop.xlane.xlu0 %3727
    %v3729 = vrcp.pop %v3728
    %v3730 = vmul.f32 %v3725, %v3729
    %3731 = vrot.lane.b32.xlu0 %v3642, 64
    %v3732 = vpop.permute.xlu0 %3731
    %v3734 = vsel %vm408, %v3730, 0
    %v3736 = vsel %vm412, %v3732, 0
    %3738 = vmatprep.subr.mxu0 0.0
    %3739 = vmatpush1.msra.mxu0 %v3736
    %3740 = vmatprep.subr.mxu0 0.0
    %3741 = vmatpush1.msra.mxu0 0.0
    %3742 = vmatprep.subr.mxu0 0.0
    %3743 = vmatpush1.msra.mxu0 0.0
    %3744 = vmatprep.subr.mxu0 0.0
    %3745 = vmatpush1.msra.mxu0 0.0
    %3746 = vmatprep.subr.mxu0 0.0
    %3747 = vmatpush1.msra.mxu0 0.0
    %3748 = vmatprep.subr.mxu0 0.0
    %3749 = vmatpush1.msra.mxu0 0.0
    %3750 = vmatprep.subr.mxu0 0.0
    %3751 = vmatpush1.msra.mxu0 0.0
    %3752 = vmatprep.subr.mxu0 0.0
    %3753 = vmatpush1.msra.mxu0 0.0
    %3754 = vmatprep.subr.mxu0 0.0
    %3755 = vmatpush1.msra.mxu0 0.0
    %3756 = vmatprep.subr.mxu0 0.0
    %3757 = vmatpush1.msra.mxu0 0.0
    %3758 = vmatprep.subr.mxu0 0.0
    %3759 = vmatpush1.msra.mxu0 0.0
    %3760 = vmatprep.subr.mxu0 0.0
    %3761 = vmatpush1.msra.mxu0 0.0
    %3762 = vmatprep.subr.mxu0 0.0
    %3763 = vmatpush1.msra.mxu0 0.0
    %3764 = vmatprep.subr.mxu0 0.0
    %3765 = vmatpush1.msra.mxu0 0.0
    %3766 = vmatprep.subr.mxu0 0.0
    %3767 = vmatpush1.msra.mxu0 0.0
    %3768 = vmatprep.subr.mxu0 0.0
    %3769 = vmatpush1.msra.mxu0 0.0
    %3770 = vmatprep.subr.mxu0 0.0
    %3771 = vmatpush1.msra.mxu0 0.0
    %3772 = vmatprep.subr.mxu0 0.0
    %3773 = vmatpush1.msra.mxu0 0.0
    %3774 = vmatprep.subr.mxu0 0.0
    %3775 = vmatpush1.msra.mxu0 0.0
    %3776 = vmatprep.subr.mxu0 0.0
    %3777 = vmatpush1.msra.mxu0 0.0
    %3778 = vmatprep.subr.mxu0 0.0
    %3779 = vmatpush1.msra.mxu0 0.0
    %3780 = vmatprep.subr.mxu0 0.0
    %3781 = vmatpush1.msra.mxu0 0.0
    %3782 = vmatprep.subr.mxu0 0.0
    %3783 = vmatpush1.msra.mxu0 0.0
    %3784 = vmatprep.subr.mxu0 0.0
    %3785 = vmatpush1.msra.mxu0 0.0
    %3786 = vmatprep.subr.mxu0 0.0
    %3787 = vmatpush1.msra.mxu0 0.0
    %3788 = vmatprep.subr.mxu0 0.0
    %3789 = vmatpush1.msra.mxu0 0.0
    %3790 = vmatprep.subr.mxu0 0.0
    %3791 = vmatpush1.msra.mxu0 0.0
    %3792 = vmatprep.subr.mxu0 0.0
    %3793 = vmatpush1.msra.mxu0 0.0
    %3794 = vmatprep.subr.mxu0 0.0
    %3795 = vmatpush1.msra.mxu0 0.0
    %3796 = vmatprep.subr.mxu0 0.0
    %3797 = vmatpush1.msra.mxu0 0.0
    %3798 = vmatprep.subr.mxu0 0.0
    %3799 = vmatpush1.msra.mxu0 0.0
    %3800 = vmatprep.subr.mxu0 0.0
    %3801 = vmatpush1.msra.mxu0 0.0
    %3802 = vmatprep.mubr.f32.mxu0 0.0
    %3803 = vmatmul.mubr.f32.gmra.mrb[0].mxu0 %v3734
    %v3804 = vpop.f32.mrb[0].mxu0
    %v3805 = vadd.f32 0.0, %v3804
    %v3806 = vpop.f32.mrb[0].mxu0
    %3807 = vdwg.mxu0
    %3808 = vrot.lane.b32.xlu0 %v3642, 120
    %v3809 = vpop.permute.xlu0 %3808
    %3810 = vrot.lane.b32.xlu0 %v3642, 88
    %v3811 = vpop.permute.xlu0 %3810
    %v3812 = vsel %vm318, %v3809, 0
    %v3814 = vsel %vm318, %v3811, 0
    %3816 = vmatprep.subr.mxu0 0.0
    %3817 = vmatpush1.xpose.msra.mxu0 %v3814
    %3818 = vmatprep.subr.mxu0 0.0
    %3819 = vmatpush1.xpose.msra.mxu0 0.0
    %3820 = vmatprep.subr.mxu0 0.0
    %3821 = vmatpush1.xpose.msra.mxu0 0.0
    %3822 = vmatprep.subr.mxu0 0.0
    %3823 = vmatpush1.xpose.msra.mxu0 0.0
    %3824 = vmatprep.subr.mxu0 0.0
    %3825 = vmatpush1.xpose.msra.mxu0 0.0
    %3826 = vmatprep.subr.mxu0 0.0
    %3827 = vmatpush1.xpose.msra.mxu0 0.0
    %3828 = vmatprep.subr.mxu0 0.0
    %3829 = vmatpush1.xpose.msra.mxu0 0.0
    %3830 = vmatprep.subr.mxu0 0.0
    %3831 = vmatpush1.xpose.msra.mxu0 0.0
    %3832 = vmatprep.subr.mxu0 0.0
    %3833 = vmatpush1.xpose.msra.mxu0 0.0
    %3834 = vmatprep.subr.mxu0 0.0
    %3835 = vmatpush1.xpose.msra.mxu0 0.0
    %3836 = vmatprep.subr.mxu0 0.0
    %3837 = vmatpush1.xpose.msra.mxu0 0.0
    %3838 = vmatprep.subr.mxu0 0.0
    %3839 = vmatpush1.xpose.msra.mxu0 0.0
    %3840 = vmatprep.subr.mxu0 0.0
    %3841 = vmatpush1.xpose.msra.mxu0 0.0
    %3842 = vmatprep.subr.mxu0 0.0
    %3843 = vmatpush1.xpose.msra.mxu0 0.0
    %3844 = vmatprep.subr.mxu0 0.0
    %3845 = vmatpush1.xpose.msra.mxu0 0.0
    %3846 = vmatprep.subr.mxu0 0.0
    %3847 = vmatpush1.xpose.msra.mxu0 0.0
    %3848 = vmatprep.subr.mxu0 0.0
    %3849 = vmatpush1.xpose.msra.mxu0 0.0
    %3850 = vmatprep.subr.mxu0 0.0
    %3851 = vmatpush1.xpose.msra.mxu0 0.0
    %3852 = vmatprep.subr.mxu0 0.0
    %3853 = vmatpush1.xpose.msra.mxu0 0.0
    %3854 = vmatprep.subr.mxu0 0.0
    %3855 = vmatpush1.xpose.msra.mxu0 0.0
    %3856 = vmatprep.subr.mxu0 0.0
    %3857 = vmatpush1.xpose.msra.mxu0 0.0
    %3858 = vmatprep.subr.mxu0 0.0
    %3859 = vmatpush1.xpose.msra.mxu0 0.0
    %3860 = vmatprep.subr.mxu0 0.0
    %3861 = vmatpush1.xpose.msra.mxu0 0.0
    %3862 = vmatprep.subr.mxu0 0.0
    %3863 = vmatpush1.xpose.msra.mxu0 0.0
    %3864 = vmatprep.subr.mxu0 0.0
    %3865 = vmatpush1.xpose.msra.mxu0 0.0
    %3866 = vmatprep.subr.mxu0 0.0
    %3867 = vmatpush1.xpose.msra.mxu0 0.0
    %3868 = vmatprep.subr.mxu0 0.0
    %3869 = vmatpush1.xpose.msra.mxu0 0.0
    %3870 = vmatprep.subr.mxu0 0.0
    %3871 = vmatpush1.xpose.msra.mxu0 0.0
    %3872 = vmatprep.subr.mxu0 0.0
    %3873 = vmatpush1.xpose.msra.mxu0 0.0
    %3874 = vmatprep.subr.mxu0 0.0
    %3875 = vmatpush1.xpose.msra.mxu0 0.0
    %3876 = vmatprep.subr.mxu0 0.0
    %3877 = vmatpush1.xpose.msra.mxu0 0.0
    %3878 = vmatprep.subr.mxu0 0.0
    %3879 = vmatpush1.xpose.msra.mxu0 0.0
    %3880 = vmatprep.mubr.f32.mxu0 0.0
    %3881 = vmatmul.mubr.f32.gmra.mrb[0].mxu0 %v3812
    %v3882 = vpop.f32.mrb[0].mxu0
    %v3883 = vadd.f32 0.0, %v3882
    %v3884 = vpop.f32.mrb[0].mxu0
    %3885 = vdwg.mxu0
    %v3886 = vmul.f32 %v3883, 0.35355338
    %v3887 = vsel %vm394, %v3886, -inf
    %3888 = vmax.xlane.f32.xlu0 %v3887
    %v3889 = vpop.xlane.xlu0 %3888
    %v3890 = vsub.f32 %v3886, %v3889
    %v3891 = vmul.f32 %v3890, 1.442695
    %v3892 = vpow.pop %v3891
    %v3893 = vsel %vm394, %v3892, 0.0
    %3894 = vadd.xlane.f32.xlu0 %v3893
    %v3895 = vpop.xlane.xlu0 %3894
    %v3896 = vrcp.pop %v3895
    %v3897 = vmul.f32 %v3892, %v3896
    %3898 = vrot.lane.b32.xlu0 %v3642, 56
    %v3899 = vpop.permute.xlu0 %3898
    %v3901 = vsel %vm408, %v3897, 0
    %v3903 = vsel %vm412, %v3899, 0
    %3905 = vmatprep.subr.mxu0 0.0
    %3906 = vmatpush1.msra.mxu0 %v3903
    %3907 = vmatprep.subr.mxu0 0.0
    %3908 = vmatpush1.msra.mxu0 0.0
    %3909 = vmatprep.subr.mxu0 0.0
    %3910 = vmatpush1.msra.mxu0 0.0
    %3911 = vmatprep.subr.mxu0 0.0
    %3912 = vmatpush1.msra.mxu0 0.0
    %3913 = vmatprep.subr.mxu0 0.0
    %3914 = vmatpush1.msra.mxu0 0.0
    %3915 = vmatprep.subr.mxu0 0.0
    %3916 = vmatpush1.msra.mxu0 0.0
    %3917 = vmatprep.subr.mxu0 0.0
    %3918 = vmatpush1.msra.mxu0 0.0
    %3919 = vmatprep.subr.mxu0 0.0
    %3920 = vmatpush1.msra.mxu0 0.0
    %3921 = vmatprep.subr.mxu0 0.0
    %3922 = vmatpush1.msra.mxu0 0.0
    %3923 = vmatprep.subr.mxu0 0.0
    %3924 = vmatpush1.msra.mxu0 0.0
    %3925 = vmatprep.subr.mxu0 0.0
    %3926 = vmatpush1.msra.mxu0 0.0
    %3927 = vmatprep.subr.mxu0 0.0
    %3928 = vmatpush1.msra.mxu0 0.0
    %3929 = vmatprep.subr.mxu0 0.0
    %3930 = vmatpush1.msra.mxu0 0.0
    %3931 = vmatprep.subr.mxu0 0.0
    %3932 = vmatpush1.msra.mxu0 0.0
    %3933 = vmatprep.subr.mxu0 0.0
    %3934 = vmatpush1.msra.mxu0 0.0
    %3935 = vmatprep.subr.mxu0 0.0
    %3936 = vmatpush1.msra.mxu0 0.0
    %3937 = vmatprep.subr.mxu0 0.0
    %3938 = vmatpush1.msra.mxu0 0.0
    %3939 = vmatprep.subr.mxu0 0.0
    %3940 = vmatpush1.msra.mxu0 0.0
    %3941 = vmatprep.subr.mxu0 0.0
    %3942 = vmatpush1.msra.mxu0 0.0
    %3943 = vmatprep.subr.mxu0 0.0
    %3944 = vmatpush1.msra.mxu0 0.0
    %3945 = vmatprep.subr.mxu0 0.0
    %3946 = vmatpush1.msra.mxu0 0.0
    %3947 = vmatprep.subr.mxu0 0.0
    %3948 = vmatpush1.msra.mxu0 0.0
    %3949 = vmatprep.subr.mxu0 0.0
    %3950 = vmatpush1.msra.mxu0 0.0
    %3951 = vmatprep.subr.mxu0 0.0
    %3952 = vmatpush1.msra.mxu0 0.0
    %3953 = vmatprep.subr.mxu0 0.0
    %3954 = vmatpush1.msra.mxu0 0.0
    %3955 = vmatprep.subr.mxu0 0.0
    %3956 = vmatpush1.msra.mxu0 0.0
    %3957 = vmatprep.subr.mxu0 0.0
    %3958 = vmatpush1.msra.mxu0 0.0
    %3959 = vmatprep.subr.mxu0 0.0
    %3960 = vmatpush1.msra.mxu0 0.0
    %3961 = vmatprep.subr.mxu0 0.0
    %3962 = vmatpush1.msra.mxu0 0.0
    %3963 = vmatprep.subr.mxu0 0.0
    %3964 = vmatpush1.msra.mxu0 0.0
    %3965 = vmatprep.subr.mxu0 0.0
    %3966 = vmatpush1.msra.mxu0 0.0
    %3967 = vmatprep.subr.mxu0 0.0
    %3968 = vmatpush1.msra.mxu0 0.0
    %3969 = vmatprep.mubr.f32.mxu0 0.0
    %3970 = vmatmul.mubr.f32.gmra.mrb[0].mxu0 %v3901
    %v3971 = vpop.f32.mrb[0].mxu0
    %v3972 = vadd.f32 0.0, %v3971
    %v3973 = vpop.f32.mrb[0].mxu0
    %3974 = vdwg.mxu0
    %v3976 = vsel %vm318, %v3972, 0
    %3978 = vmatprep.subr.mxu0 0.0
    %3979 = vmatpush1.msra.mxu0 %v2674
    %3980 = vmatprep.subr.mxu0 0.0
    %3981 = vmatpush1.msra.mxu0 0.0
    %3982 = vmatprep.subr.mxu0 0.0
    %3983 = vmatpush1.msra.mxu0 0.0
    %3984 = vmatprep.subr.mxu0 0.0
    %3985 = vmatpush1.msra.mxu0 0.0
    %3986 = vmatprep.subr.mxu0 0.0
    %3987 = vmatpush1.msra.mxu0 0.0
    %3988 = vmatprep.subr.mxu0 0.0
    %3989 = vmatpush1.msra.mxu0 0.0
    %3990 = vmatprep.subr.mxu0 0.0
    %3991 = vmatpush1.msra.mxu0 0.0
    %3992 = vmatprep.subr.mxu0 0.0
    %3993 = vmatpush1.msra.mxu0 0.0
    %3994 = vmatprep.subr.mxu0 0.0
    %3995 = vmatpush1.msra.mxu0 0.0
    %3996 = vmatprep.subr.mxu0 0.0
    %3997 = vmatpush1.msra.mxu0 0.0
    %3998 = vmatprep.subr.mxu0 0.0
    %3999 = vmatpush1.msra.mxu0 0.0
    %4000 = vmatprep.subr.mxu0 0.0
    %4001 = vmatpush1.msra.mxu0 0.0
    %4002 = vmatprep.subr.mxu0 0.0
    %4003 = vmatpush1.msra.mxu0 0.0
    %4004 = vmatprep.subr.mxu0 0.0
    %4005 = vmatpush1.msra.mxu0 0.0
    %4006 = vmatprep.subr.mxu0 0.0
    %4007 = vmatpush1.msra.mxu0 0.0
    %4008 = vmatprep.subr.mxu0 0.0
    %4009 = vmatpush1.msra.mxu0 0.0
    %4010 = vmatprep.subr.mxu0 0.0
    %4011 = vmatpush1.msra.mxu0 0.0
    %4012 = vmatprep.subr.mxu0 0.0
    %4013 = vmatpush1.msra.mxu0 0.0
    %4014 = vmatprep.subr.mxu0 0.0
    %4015 = vmatpush1.msra.mxu0 0.0
    %4016 = vmatprep.subr.mxu0 0.0
    %4017 = vmatpush1.msra.mxu0 0.0
    %4018 = vmatprep.subr.mxu0 0.0
    %4019 = vmatpush1.msra.mxu0 0.0
    %4020 = vmatprep.subr.mxu0 0.0
    %4021 = vmatpush1.msra.mxu0 0.0
    %4022 = vmatprep.subr.mxu0 0.0
    %4023 = vmatpush1.msra.mxu0 0.0
    %4024 = vmatprep.subr.mxu0 0.0
    %4025 = vmatpush1.msra.mxu0 0.0
    %4026 = vmatprep.subr.mxu0 0.0
    %4027 = vmatpush1.msra.mxu0 0.0
    %4028 = vmatprep.subr.mxu0 0.0
    %4029 = vmatpush1.msra.mxu0 0.0
    %4030 = vmatprep.subr.mxu0 0.0
    %4031 = vmatpush1.msra.mxu0 0.0
    %4032 = vmatprep.subr.mxu0 0.0
    %4033 = vmatpush1.msra.mxu0 0.0
    %4034 = vmatprep.subr.mxu0 0.0
    %4035 = vmatpush1.msra.mxu0 0.0
    %4036 = vmatprep.subr.mxu0 0.0
    %4037 = vmatpush1.msra.mxu0 0.0
    %4038 = vmatprep.subr.mxu0 0.0
    %4039 = vmatpush1.msra.mxu0 0.0
    %4040 = vmatprep.subr.mxu0 0.0
    %4041 = vmatpush1.msra.mxu0 0.0
    %4042 = vmatprep.mubr.f32.mxu0 0.0
    %4043 = vmatmul.mubr.f32.gmra.mrb[0].mxu0 %v3976
    %v4044 = vpop.f32.mrb[0].mxu0
    %v4045 = vadd.f32 0.0, %v4044
    %v4046 = vpop.f32.mrb[0].mxu0
    %4047 = vdwg.mxu0
    %v4049 = vsel %vm318, %v3805, 0
    %4051 = vmatprep.subr.mxu0 0.0
    %4052 = vmatpush1.msra.mxu0 %v2673
    %4053 = vmatprep.subr.mxu0 0.0
    %4054 = vmatpush1.msra.mxu0 0.0
    %4055 = vmatprep.subr.mxu0 0.0
    %4056 = vmatpush1.msra.mxu0 0.0
    %4057 = vmatprep.subr.mxu0 0.0
    %4058 = vmatpush1.msra.mxu0 0.0
    %4059 = vmatprep.subr.mxu0 0.0
    %4060 = vmatpush1.msra.mxu0 0.0
    %4061 = vmatprep.subr.mxu0 0.0
    %4062 = vmatpush1.msra.mxu0 0.0
    %4063 = vmatprep.subr.mxu0 0.0
    %4064 = vmatpush1.msra.mxu0 0.0
    %4065 = vmatprep.subr.mxu0 0.0
    %4066 = vmatpush1.msra.mxu0 0.0
    %4067 = vmatprep.subr.mxu0 0.0
    %4068 = vmatpush1.msra.mxu0 0.0
    %4069 = vmatprep.subr.mxu0 0.0
    %4070 = vmatpush1.msra.mxu0 0.0
    %4071 = vmatprep.subr.mxu0 0.0
    %4072 = vmatpush1.msra.mxu0 0.0
    %4073 = vmatprep.subr.mxu0 0.0
    %4074 = vmatpush1.msra.mxu0 0.0
    %4075 = vmatprep.subr.mxu0 0.0
    %4076 = vmatpush1.msra.mxu0 0.0
    %4077 = vmatprep.subr.mxu0 0.0
    %4078 = vmatpush1.msra.mxu0 0.0
    %4079 = vmatprep.subr.mxu0 0.0
    %4080 = vmatpush1.msra.mxu0 0.0
    %4081 = vmatprep.subr.mxu0 0.0
    %4082 = vmatpush1.msra.mxu0 0.0
    %4083 = vmatprep.subr.mxu0 0.0
    %4084 = vmatpush1.msra.mxu0 0.0
    %4085 = vmatprep.subr.mxu0 0.0
    %4086 = vmatpush1.msra.mxu0 0.0
    %4087 = vmatprep.subr.mxu0 0.0
    %4088 = vmatpush1.msra.mxu0 0.0
    %4089 = vmatprep.subr.mxu0 0.0
    %4090 = vmatpush1.msra.mxu0 0.0
    %4091 = vmatprep.subr.mxu0 0.0
    %4092 = vmatpush1.msra.mxu0 0.0
    %4093 = vmatprep.subr.mxu0 0.0
    %4094 = vmatpush1.msra.mxu0 0.0
    %4095 = vmatprep.subr.mxu0 0.0
    %4096 = vmatpush1.msra.mxu0 0.0
    %4097 = vmatprep.subr.mxu0 0.0
    %4098 = vmatpush1.msra.mxu0 0.0
    %4099 = vmatprep.subr.mxu0 0.0
    %4100 = vmatpush1.msra.mxu0 0.0
    %4101 = vmatprep.subr.mxu0 0.0
    %4102 = vmatpush1.msra.mxu0 0.0
    %4103 = vmatprep.subr.mxu0 0.0
    %4104 = vmatpush1.msra.mxu0 0.0
    %4105 = vmatprep.subr.mxu0 0.0
    %4106 = vmatpush1.msra.mxu0 0.0
    %4107 = vmatprep.subr.mxu0 0.0
    %4108 = vmatpush1.msra.mxu0 0.0
    %4109 = vmatprep.subr.mxu0 0.0
    %4110 = vmatpush1.msra.mxu0 0.0
    %4111 = vmatprep.subr.mxu0 0.0
    %4112 = vmatpush1.msra.mxu0 0.0
    %4113 = vmatprep.subr.mxu0 0.0
    %4114 = vmatpush1.msra.mxu0 0.0
    %4115 = vmatprep.mubr.f32.mxu0 0.0
    %4116 = vmatmul.mubr.f32.gmra.mrb[0].mxu0 %v4049
    %v4117 = vpop.f32.mrb[0].mxu0
    %v4118 = vadd.f32 %v4045, %v4117
    %v4119 = vpop.f32.mrb[0].mxu0
    %4120 = vdwg.mxu0
    %4121 = vrot.lane.b32.xlu0 %v3642, 112
    %v4122 = vpop.permute.xlu0 %4121
    %4123 = vrot.lane.b32.xlu0 %v3642, 80
    %v4124 = vpop.permute.xlu0 %4123
    %v4125 = vsel %vm318, %v4122, 0
    %v4127 = vsel %vm318, %v4124, 0
    %4129 = vmatprep.subr.mxu0 0.0
    %4130 = vmatpush1.xpose.msra.mxu0 %v4127
    %4131 = vmatprep.subr.mxu0 0.0
    %4132 = vmatpush1.xpose.msra.mxu0 0.0
    %4133 = vmatprep.subr.mxu0 0.0
    %4134 = vmatpush1.xpose.msra.mxu0 0.0
    %4135 = vmatprep.subr.mxu0 0.0
    %4136 = vmatpush1.xpose.msra.mxu0 0.0
    %4137 = vmatprep.subr.mxu0 0.0
    %4138 = vmatpush1.xpose.msra.mxu0 0.0
    %4139 = vmatprep.subr.mxu0 0.0
    %4140 = vmatpush1.xpose.msra.mxu0 0.0
    %4141 = vmatprep.subr.mxu0 0.0
    %4142 = vmatpush1.xpose.msra.mxu0 0.0
    %4143 = vmatprep.subr.mxu0 0.0
    %4144 = vmatpush1.xpose.msra.mxu0 0.0
    %4145 = vmatprep.subr.mxu0 0.0
    %4146 = vmatpush1.xpose.msra.mxu0 0.0
    %4147 = vmatprep.subr.mxu0 0.0
    %4148 = vmatpush1.xpose.msra.mxu0 0.0
    %4149 = vmatprep.subr.mxu0 0.0
    %4150 = vmatpush1.xpose.msra.mxu0 0.0
    %4151 = vmatprep.subr.mxu0 0.0
    %4152 = vmatpush1.xpose.msra.mxu0 0.0
    %4153 = vmatprep.subr.mxu0 0.0
    %4154 = vmatpush1.xpose.msra.mxu0 0.0
    %4155 = vmatprep.subr.mxu0 0.0
    %4156 = vmatpush1.xpose.msra.mxu0 0.0
    %4157 = vmatprep.subr.mxu0 0.0
    %4158 = vmatpush1.xpose.msra.mxu0 0.0
    %4159 = vmatprep.subr.mxu0 0.0
    %4160 = vmatpush1.xpose.msra.mxu0 0.0
    %4161 = vmatprep.subr.mxu0 0.0
    %4162 = vmatpush1.xpose.msra.mxu0 0.0
    %4163 = vmatprep.subr.mxu0 0.0
    %4164 = vmatpush1.xpose.msra.mxu0 0.0
    %4165 = vmatprep.subr.mxu0 0.0
    %4166 = vmatpush1.xpose.msra.mxu0 0.0
    %4167 = vmatprep.subr.mxu0 0.0
    %4168 = vmatpush1.xpose.msra.mxu0 0.0
    %4169 = vmatprep.subr.mxu0 0.0
    %4170 = vmatpush1.xpose.msra.mxu0 0.0
    %4171 = vmatprep.subr.mxu0 0.0
    %4172 = vmatpush1.xpose.msra.mxu0 0.0
    %4173 = vmatprep.subr.mxu0 0.0
    %4174 = vmatpush1.xpose.msra.mxu0 0.0
    %4175 = vmatprep.subr.mxu0 0.0
    %4176 = vmatpush1.xpose.msra.mxu0 0.0
    %4177 = vmatprep.subr.mxu0 0.0
    %4178 = vmatpush1.xpose.msra.mxu0 0.0
    %4179 = vmatprep.subr.mxu0 0.0
    %4180 = vmatpush1.xpose.msra.mxu0 0.0
    %4181 = vmatprep.subr.mxu0 0.0
    %4182 = vmatpush1.xpose.msra.mxu0 0.0
    %4183 = vmatprep.subr.mxu0 0.0
    %4184 = vmatpush1.xpose.msra.mxu0 0.0
    %4185 = vmatprep.subr.mxu0 0.0
    %4186 = vmatpush1.xpose.msra.mxu0 0.0
    %4187 = vmatprep.subr.mxu0 0.0
    %4188 = vmatpush1.xpose.msra.mxu0 0.0
    %4189 = vmatprep.subr.mxu0 0.0
    %4190 = vmatpush1.xpose.msra.mxu0 0.0
    %4191 = vmatprep.subr.mxu0 0.0
    %4192 = vmatpush1.xpose.msra.mxu0 0.0
    %4193 = vmatprep.mubr.f32.mxu0 0.0
    %4194 = vmatmul.mubr.f32.gmra.mrb[0].mxu0 %v4125
    %v4195 = vpop.f32.mrb[0].mxu0
    %v4196 = vadd.f32 0.0, %v4195
    %v4197 = vpop.f32.mrb[0].mxu0
    %4198 = vdwg.mxu0
    %v4199 = vmul.f32 %v4196, 0.35355338
    %v4200 = vsel %vm394, %v4199, -inf
    %4201 = vmax.xlane.f32.xlu0 %v4200
    %v4202 = vpop.xlane.xlu0 %4201
    %v4203 = vsub.f32 %v4199, %v4202
    %v4204 = vmul.f32 %v4203, 1.442695
    %v4205 = vpow.pop %v4204
    %v4206 = vsel %vm394, %v4205, 0.0
    %4207 = vadd.xlane.f32.xlu0 %v4206
    %v4208 = vpop.xlane.xlu0 %4207
    %v4209 = vrcp.pop %v4208
    %v4210 = vmul.f32 %v4205, %v4209
    %4211 = vrot.lane.b32.xlu0 %v3642, 48
    %v4212 = vpop.permute.xlu0 %4211
    %v4214 = vsel %vm408, %v4210, 0
    %v4216 = vsel %vm412, %v4212, 0
    %4218 = vmatprep.subr.mxu0 0.0
    %4219 = vmatpush1.msra.mxu0 %v4216
    %4220 = vmatprep.subr.mxu0 0.0
    %4221 = vmatpush1.msra.mxu0 0.0
    %4222 = vmatprep.subr.mxu0 0.0
    %4223 = vmatpush1.msra.mxu0 0.0
    %4224 = vmatprep.subr.mxu0 0.0
    %4225 = vmatpush1.msra.mxu0 0.0
    %4226 = vmatprep.subr.mxu0 0.0
    %4227 = vmatpush1.msra.mxu0 0.0
    %4228 = vmatprep.subr.mxu0 0.0
    %4229 = vmatpush1.msra.mxu0 0.0
    %4230 = vmatprep.subr.mxu0 0.0
    %4231 = vmatpush1.msra.mxu0 0.0
    %4232 = vmatprep.subr.mxu0 0.0
    %4233 = vmatpush1.msra.mxu0 0.0
    %4234 = vmatprep.subr.mxu0 0.0
    %4235 = vmatpush1.msra.mxu0 0.0
    %4236 = vmatprep.subr.mxu0 0.0
    %4237 = vmatpush1.msra.mxu0 0.0
    %4238 = vmatprep.subr.mxu0 0.0
    %4239 = vmatpush1.msra.mxu0 0.0
    %4240 = vmatprep.subr.mxu0 0.0
    %4241 = vmatpush1.msra.mxu0 0.0
    %4242 = vmatprep.subr.mxu0 0.0
    %4243 = vmatpush1.msra.mxu0 0.0
    %4244 = vmatprep.subr.mxu0 0.0
    %4245 = vmatpush1.msra.mxu0 0.0
    %4246 = vmatprep.subr.mxu0 0.0
    %4247 = vmatpush1.msra.mxu0 0.0
    %4248 = vmatprep.subr.mxu0 0.0
    %4249 = vmatpush1.msra.mxu0 0.0
    %4250 = vmatprep.subr.mxu0 0.0
    %4251 = vmatpush1.msra.mxu0 0.0
    %4252 = vmatprep.subr.mxu0 0.0
    %4253 = vmatpush1.msra.mxu0 0.0
    %4254 = vmatprep.subr.mxu0 0.0
    %4255 = vmatpush1.msra.mxu0 0.0
    %4256 = vmatprep.subr.mxu0 0.0
    %4257 = vmatpush1.msra.mxu0 0.0
    %4258 = vmatprep.subr.mxu0 0.0
    %4259 = vmatpush1.msra.mxu0 0.0
    %4260 = vmatprep.subr.mxu0 0.0
    %4261 = vmatpush1.msra.mxu0 0.0
    %4262 = vmatprep.subr.mxu0 0.0
    %4263 = vmatpush1.msra.mxu0 0.0
    %4264 = vmatprep.subr.mxu0 0.0
    %4265 = vmatpush1.msra.mxu0 0.0
    %4266 = vmatprep.subr.mxu0 0.0
    %4267 = vmatpush1.msra.mxu0 0.0
    %4268 = vmatprep.subr.mxu0 0.0
    %4269 = vmatpush1.msra.mxu0 0.0
    %4270 = vmatprep.subr.mxu0 0.0
    %4271 = vmatpush1.msra.mxu0 0.0
    %4272 = vmatprep.subr.mxu0 0.0
    %4273 = vmatpush1.msra.mxu0 0.0
    %4274 = vmatprep.subr.mxu0 0.0
    %4275 = vmatpush1.msra.mxu0 0.0
    %4276 = vmatprep.subr.mxu0 0.0
    %4277 = vmatpush1.msra.mxu0 0.0
    %4278 = vmatprep.subr.mxu0 0.0
    %4279 = vmatpush1.msra.mxu0 0.0
    %4280 = vmatprep.subr.mxu0 0.0
    %4281 = vmatpush1.msra.mxu0 0.0
    %4282 = vmatprep.mubr.f32.mxu0 0.0
    %4283 = vmatmul.mubr.f32.gmra.mrb[0].mxu0 %v4214
    %v4284 = vpop.f32.mrb[0].mxu0
    %v4285 = vadd.f32 0.0, %v4284
    %v4286 = vpop.f32.mrb[0].mxu0
    %4287 = vdwg.mxu0
    %v4289 = vsel %vm318, %v4285, 0
    %4291 = vmatprep.subr.mxu0 0.0
    %4292 = vmatpush1.msra.mxu0 %v2675
    %4293 = vmatprep.subr.mxu0 0.0
    %4294 = vmatpush1.msra.mxu0 0.0
    %4295 = vmatprep.subr.mxu0 0.0
    %4296 = vmatpush1.msra.mxu0 0.0
    %4297 = vmatprep.subr.mxu0 0.0
    %4298 = vmatpush1.msra.mxu0 0.0
    %4299 = vmatprep.subr.mxu0 0.0
    %4300 = vmatpush1.msra.mxu0 0.0
    %4301 = vmatprep.subr.mxu0 0.0
    %4302 = vmatpush1.msra.mxu0 0.0
    %4303 = vmatprep.subr.mxu0 0.0
    %4304 = vmatpush1.msra.mxu0 0.0
    %4305 = vmatprep.subr.mxu0 0.0
    %4306 = vmatpush1.msra.mxu0 0.0
    %4307 = vmatprep.subr.mxu0 0.0
    %4308 = vmatpush1.msra.mxu0 0.0
    %4309 = vmatprep.subr.mxu0 0.0
    %4310 = vmatpush1.msra.mxu0 0.0
    %4311 = vmatprep.subr.mxu0 0.0
    %4312 = vmatpush1.msra.mxu0 0.0
    %4313 = vmatprep.subr.mxu0 0.0
    %4314 = vmatpush1.msra.mxu0 0.0
    %4315 = vmatprep.subr.mxu0 0.0
    %4316 = vmatpush1.msra.mxu0 0.0
    %4317 = vmatprep.subr.mxu0 0.0
    %4318 = vmatpush1.msra.mxu0 0.0
    %4319 = vmatprep.subr.mxu0 0.0
    %4320 = vmatpush1.msra.mxu0 0.0
    %4321 = vmatprep.subr.mxu0 0.0
    %4322 = vmatpush1.msra.mxu0 0.0
    %4323 = vmatprep.subr.mxu0 0.0
    %4324 = vmatpush1.msra.mxu0 0.0
    %4325 = vmatprep.subr.mxu0 0.0
    %4326 = vmatpush1.msra.mxu0 0.0
    %4327 = vmatprep.subr.mxu0 0.0
    %4328 = vmatpush1.msra.mxu0 0.0
    %4329 = vmatprep.subr.mxu0 0.0
    %4330 = vmatpush1.msra.mxu0 0.0
    %4331 = vmatprep.subr.mxu0 0.0
    %4332 = vmatpush1.msra.mxu0 0.0
    %4333 = vmatprep.subr.mxu0 0.0
    %4334 = vmatpush1.msra.mxu0 0.0
    %4335 = vmatprep.subr.mxu0 0.0
    %4336 = vmatpush1.msra.mxu0 0.0
    %4337 = vmatprep.subr.mxu0 0.0
    %4338 = vmatpush1.msra.mxu0 0.0
    %4339 = vmatprep.subr.mxu0 0.0
    %4340 = vmatpush1.msra.mxu0 0.0
    %4341 = vmatprep.subr.mxu0 0.0
    %4342 = vmatpush1.msra.mxu0 0.0
    %4343 = vmatprep.subr.mxu0 0.0
    %4344 = vmatpush1.msra.mxu0 0.0
    %4345 = vmatprep.subr.mxu0 0.0
    %4346 = vmatpush1.msra.mxu0 0.0
    %4347 = vmatprep.subr.mxu0 0.0
    %4348 = vmatpush1.msra.mxu0 0.0
    %4349 = vmatprep.subr.mxu0 0.0
    %4350 = vmatpush1.msra.mxu0 0.0
    %4351 = vmatprep.subr.mxu0 0.0
    %4352 = vmatpush1.msra.mxu0 0.0
    %4353 = vmatprep.subr.mxu0 0.0
    %4354 = vmatpush1.msra.mxu0 0.0
    %4355 = vmatprep.mubr.f32.mxu0 0.0
    %4356 = vmatmul.mubr.f32.gmra.mrb[0].mxu0 %v4289
    %v4357 = vpop.f32.mrb[0].mxu0
    %v4358 = vadd.f32 0.0, %v4357
    %v4359 = vpop.f32.mrb[0].mxu0
    %4360 = vdwg.mxu0
    %v4361 = vadd.f32 %v4118, %v4358
    %4362 = vrot.lane.b32.xlu0 %v3642, 104
    %v4363 = vpop.permute.xlu0 %4362
    %4364 = vrot.lane.b32.xlu0 %v3642, 72
    %v4365 = vpop.permute.xlu0 %4364
    %v4366 = vsel %vm318, %v4363, 0
    %v4368 = vsel %vm318, %v4365, 0
    %4370 = vmatprep.subr.mxu0 0.0
    %4371 = vmatpush1.xpose.msra.mxu0 %v4368
    %4372 = vmatprep.subr.mxu0 0.0
    %4373 = vmatpush1.xpose.msra.mxu0 0.0
    %4374 = vmatprep.subr.mxu0 0.0
    %4375 = vmatpush1.xpose.msra.mxu0 0.0
    %4376 = vmatprep.subr.mxu0 0.0
    %4377 = vmatpush1.xpose.msra.mxu0 0.0
    %4378 = vmatprep.subr.mxu0 0.0
    %4379 = vmatpush1.xpose.msra.mxu0 0.0
    %4380 = vmatprep.subr.mxu0 0.0
    %4381 = vmatpush1.xpose.msra.mxu0 0.0
    %4382 = vmatprep.subr.mxu0 0.0
    %4383 = vmatpush1.xpose.msra.mxu0 0.0
    %4384 = vmatprep.subr.mxu0 0.0
    %4385 = vmatpush1.xpose.msra.mxu0 0.0
    %4386 = vmatprep.subr.mxu0 0.0
    %4387 = vmatpush1.xpose.msra.mxu0 0.0
    %4388 = vmatprep.subr.mxu0 0.0
    %4389 = vmatpush1.xpose.msra.mxu0 0.0
    %4390 = vmatprep.subr.mxu0 0.0
    %4391 = vmatpush1.xpose.msra.mxu0 0.0
    %4392 = vmatprep.subr.mxu0 0.0
    %4393 = vmatpush1.xpose.msra.mxu0 0.0
    %4394 = vmatprep.subr.mxu0 0.0
    %4395 = vmatpush1.xpose.msra.mxu0 0.0
    %4396 = vmatprep.subr.mxu0 0.0
    %4397 = vmatpush1.xpose.msra.mxu0 0.0
    %4398 = vmatprep.subr.mxu0 0.0
    %4399 = vmatpush1.xpose.msra.mxu0 0.0
    %4400 = vmatprep.subr.mxu0 0.0
    %4401 = vmatpush1.xpose.msra.mxu0 0.0
    %4402 = vmatprep.subr.mxu0 0.0
    %4403 = vmatpush1.xpose.msra.mxu0 0.0
    %4404 = vmatprep.subr.mxu0 0.0
    %4405 = vmatpush1.xpose.msra.mxu0 0.0
    %4406 = vmatprep.subr.mxu0 0.0
    %4407 = vmatpush1.xpose.msra.mxu0 0.0
    %4408 = vmatprep.subr.mxu0 0.0
    %4409 = vmatpush1.xpose.msra.mxu0 0.0
    %4410 = vmatprep.subr.mxu0 0.0
    %4411 = vmatpush1.xpose.msra.mxu0 0.0
    %4412 = vmatprep.subr.mxu0 0.0
    %4413 = vmatpush1.xpose.msra.mxu0 0.0
    %4414 = vmatprep.subr.mxu0 0.0
    %4415 = vmatpush1.xpose.msra.mxu0 0.0
    %4416 = vmatprep.subr.mxu0 0.0
    %4417 = vmatpush1.xpose.msra.mxu0 0.0
    %4418 = vmatprep.subr.mxu0 0.0
    %4419 = vmatpush1.xpose.msra.mxu0 0.0
    %4420 = vmatprep.subr.mxu0 0.0
    %4421 = vmatpush1.xpose.msra.mxu0 0.0
    %4422 = vmatprep.subr.mxu0 0.0
    %4423 = vmatpush1.xpose.msra.mxu0 0.0
    %4424 = vmatprep.subr.mxu0 0.0
    %4425 = vmatpush1.xpose.msra.mxu0 0.0
    %4426 = vmatprep.subr.mxu0 0.0
    %4427 = vmatpush1.xpose.msra.mxu0 0.0
    %4428 = vmatprep.subr.mxu0 0.0
    %4429 = vmatpush1.xpose.msra.mxu0 0.0
    %4430 = vmatprep.subr.mxu0 0.0
    %4431 = vmatpush1.xpose.msra.mxu0 0.0
    %4432 = vmatprep.subr.mxu0 0.0
    %4433 = vmatpush1.xpose.msra.mxu0 0.0
    %4434 = vmatprep.mubr.f32.mxu0 0.0
    %4435 = vmatmul.mubr.f32.gmra.mrb[0].mxu0 %v4366
    %v4436 = vpop.f32.mrb[0].mxu0
    %v4437 = vadd.f32 0.0, %v4436
    %v4438 = vpop.f32.mrb[0].mxu0
    %4439 = vdwg.mxu0
    %v4440 = vmul.f32 %v4437, 0.35355338
    %v4441 = vsel %vm394, %v4440, -inf
    %4442 = vmax.xlane.f32.xlu0 %v4441
    %v4443 = vpop.xlane.xlu0 %4442
    %v4444 = vsub.f32 %v4440, %v4443
    %v4445 = vmul.f32 %v4444, 1.442695
    %v4446 = vpow.pop %v4445
    %v4447 = vsel %vm394, %v4446, 0.0
    %4448 = vadd.xlane.f32.xlu0 %v4447
    %v4449 = vpop.xlane.xlu0 %4448
    %v4450 = vrcp.pop %v4449
    %v4451 = vmul.f32 %v4446, %v4450
    %4452 = vrot.lane.b32.xlu0 %v3642, 40
    %v4453 = vpop.permute.xlu0 %4452
    %v4455 = vsel %vm408, %v4451, 0
    %v4457 = vsel %vm412, %v4453, 0
    %4459 = vmatprep.subr.mxu0 0.0
    %4460 = vmatpush1.msra.mxu0 %v4457
    %4461 = vmatprep.subr.mxu0 0.0
    %4462 = vmatpush1.msra.mxu0 0.0
    %4463 = vmatprep.subr.mxu0 0.0
    %4464 = vmatpush1.msra.mxu0 0.0
    %4465 = vmatprep.subr.mxu0 0.0
    %4466 = vmatpush1.msra.mxu0 0.0
    %4467 = vmatprep.subr.mxu0 0.0
    %4468 = vmatpush1.msra.mxu0 0.0
    %4469 = vmatprep.subr.mxu0 0.0
    %4470 = vmatpush1.msra.mxu0 0.0
    %4471 = vmatprep.subr.mxu0 0.0
    %4472 = vmatpush1.msra.mxu0 0.0
    %4473 = vmatprep.subr.mxu0 0.0
    %4474 = vmatpush1.msra.mxu0 0.0
    %4475 = vmatprep.subr.mxu0 0.0
    %4476 = vmatpush1.msra.mxu0 0.0
    %4477 = vmatprep.subr.mxu0 0.0
    %4478 = vmatpush1.msra.mxu0 0.0
    %4479 = vmatprep.subr.mxu0 0.0
    %4480 = vmatpush1.msra.mxu0 0.0
    %4481 = vmatprep.subr.mxu0 0.0
    %4482 = vmatpush1.msra.mxu0 0.0
    %4483 = vmatprep.subr.mxu0 0.0
    %4484 = vmatpush1.msra.mxu0 0.0
    %4485 = vmatprep.subr.mxu0 0.0
    %4486 = vmatpush1.msra.mxu0 0.0
    %4487 = vmatprep.subr.mxu0 0.0
    %4488 = vmatpush1.msra.mxu0 0.0
    %4489 = vmatprep.subr.mxu0 0.0
    %4490 = vmatpush1.msra.mxu0 0.0
    %4491 = vmatprep.subr.mxu0 0.0
    %4492 = vmatpush1.msra.mxu0 0.0
    %4493 = vmatprep.subr.mxu0 0.0
    %4494 = vmatpush1.msra.mxu0 0.0
    %4495 = vmatprep.subr.mxu0 0.0
    %4496 = vmatpush1.msra.mxu0 0.0
    %4497 = vmatprep.subr.mxu0 0.0
    %4498 = vmatpush1.msra.mxu0 0.0
    %4499 = vmatprep.subr.mxu0 0.0
    %4500 = vmatpush1.msra.mxu0 0.0
    %4501 = vmatprep.subr.mxu0 0.0
    %4502 = vmatpush1.msra.mxu0 0.0
    %4503 = vmatprep.subr.mxu0 0.0
    %4504 = vmatpush1.msra.mxu0 0.0
    %4505 = vmatprep.subr.mxu0 0.0
    %4506 = vmatpush1.msra.mxu0 0.0
    %4507 = vmatprep.subr.mxu0 0.0
    %4508 = vmatpush1.msra.mxu0 0.0
    %4509 = vmatprep.subr.mxu0 0.0
    %4510 = vmatpush1.msra.mxu0 0.0
    %4511 = vmatprep.subr.mxu0 0.0
    %4512 = vmatpush1.msra.mxu0 0.0
    %4513 = vmatprep.subr.mxu0 0.0
    %4514 = vmatpush1.msra.mxu0 0.0
    %4515 = vmatprep.subr.mxu0 0.0
    %4516 = vmatpush1.msra.mxu0 0.0
    %4517 = vmatprep.subr.mxu0 0.0
    %4518 = vmatpush1.msra.mxu0 0.0
    %4519 = vmatprep.subr.mxu0 0.0
    %4520 = vmatpush1.msra.mxu0 0.0
    %4521 = vmatprep.subr.mxu0 0.0
    %4522 = vmatpush1.msra.mxu0 0.0
    %4523 = vmatprep.mubr.f32.mxu0 0.0
    %4524 = vmatmul.mubr.f32.gmra.mrb[0].mxu0 %v4455
    %v4525 = vpop.f32.mrb[0].mxu0
    %v4526 = vadd.f32 0.0, %v4525
    %v4527 = vpop.f32.mrb[0].mxu0
    %4528 = vdwg.mxu0
    %v4530 = vsel %vm318, %v4526, 0
    %4532 = vmatprep.subr.mxu0 0.0
    %4533 = vmatpush1.msra.mxu0 %v2676
    %4534 = vmatprep.subr.mxu0 0.0
    %4535 = vmatpush1.msra.mxu0 0.0
    %4536 = vmatprep.subr.mxu0 0.0
    %4537 = vmatpush1.msra.mxu0 0.0
    %4538 = vmatprep.subr.mxu0 0.0
    %4539 = vmatpush1.msra.mxu0 0.0
    %4540 = vmatprep.subr.mxu0 0.0
    %4541 = vmatpush1.msra.mxu0 0.0
    %4542 = vmatprep.subr.mxu0 0.0
    %4543 = vmatpush1.msra.mxu0 0.0
    %4544 = vmatprep.subr.mxu0 0.0
    %4545 = vmatpush1.msra.mxu0 0.0
    %4546 = vmatprep.subr.mxu0 0.0
    %4547 = vmatpush1.msra.mxu0 0.0
    %4548 = vmatprep.subr.mxu0 0.0
    %4549 = vmatpush1.msra.mxu0 0.0
    %4550 = vmatprep.subr.mxu0 0.0
    %4551 = vmatpush1.msra.mxu0 0.0
    %4552 = vmatprep.subr.mxu0 0.0
    %4553 = vmatpush1.msra.mxu0 0.0
    %4554 = vmatprep.subr.mxu0 0.0
    %4555 = vmatpush1.msra.mxu0 0.0
    %4556 = vmatprep.subr.mxu0 0.0
    %4557 = vmatpush1.msra.mxu0 0.0
    %4558 = vmatprep.subr.mxu0 0.0
    %4559 = vmatpush1.msra.mxu0 0.0
    %4560 = vmatprep.subr.mxu0 0.0
    %4561 = vmatpush1.msra.mxu0 0.0
    %4562 = vmatprep.subr.mxu0 0.0
    %4563 = vmatpush1.msra.mxu0 0.0
    %4564 = vmatprep.subr.mxu0 0.0
    %4565 = vmatpush1.msra.mxu0 0.0
    %4566 = vmatprep.subr.mxu0 0.0
    %4567 = vmatpush1.msra.mxu0 0.0
    %4568 = vmatprep.subr.mxu0 0.0
    %4569 = vmatpush1.msra.mxu0 0.0
    %4570 = vmatprep.subr.mxu0 0.0
    %4571 = vmatpush1.msra.mxu0 0.0
    %4572 = vmatprep.subr.mxu0 0.0
    %4573 = vmatpush1.msra.mxu0 0.0
    %4574 = vmatprep.subr.mxu0 0.0
    %4575 = vmatpush1.msra.mxu0 0.0
    %4576 = vmatprep.subr.mxu0 0.0
    %4577 = vmatpush1.msra.mxu0 0.0
    %4578 = vmatprep.subr.mxu0 0.0
    %4579 = vmatpush1.msra.mxu0 0.0
    %4580 = vmatprep.subr.mxu0 0.0
    %4581 = vmatpush1.msra.mxu0 0.0
    %4582 = vmatprep.subr.mxu0 0.0
    %4583 = vmatpush1.msra.mxu0 0.0
    %4584 = vmatprep.subr.mxu0 0.0
    %4585 = vmatpush1.msra.mxu0 0.0
    %4586 = vmatprep.subr.mxu0 0.0
    %4587 = vmatpush1.msra.mxu0 0.0
    %4588 = vmatprep.subr.mxu0 0.0
    %4589 = vmatpush1.msra.mxu0 0.0
    %4590 = vmatprep.subr.mxu0 0.0
    %4591 = vmatpush1.msra.mxu0 0.0
    %4592 = vmatprep.subr.mxu0 0.0
    %4593 = vmatpush1.msra.mxu0 0.0
    %4594 = vmatprep.subr.mxu0 0.0
    %4595 = vmatpush1.msra.mxu0 0.0
    %4596 = vmatprep.mubr.f32.mxu0 0.0
    %4597 = vmatmul.mubr.f32.gmra.mrb[0].mxu0 %v4530
    %v4598 = vpop.f32.mrb[0].mxu0
    %v4599 = vadd.f32 0.0, %v4598
    %v4600 = vpop.f32.mrb[0].mxu0
    %4601 = vdwg.mxu0
    %v4602 = vadd.f32 %v4361, %v4599
    %4603 = vst.msk [vmem:[#allocation2 + $0x5] sm:$0x1f] %vm1280, %v4602
    %v4604 = vld [vmem:[#allocation2] sm:$0xff]
    %v4605 = vld [vmem:[#allocation2 + $0x8] sm:$0x3]
    %v4606 = vadd.f32 %v2539, %v4604
    %v4607 = vadd.f32 %v2540, %v4605
    %v4608 = vld [vmem:[%s10 + $0x1] sm:$0x1]
    %v4609 = vlaneseq
    %v4610 = vshrl.u32 %v4609, 7
    %v4611 = vsub.s32 0, %v4610
    %v4612 = vrot.slane %v4608, %v4611
    %v4613 = vadd.f32 %v4606, %v4612
    %v4614 = vadd.f32 %v4607, %v4612
    %v4615 = vld [vmem:[%s11 + $0x1] sm:$0x1]
    %v4616 = vld [vmem:[%s12 + $0x1] sm:$0x1]
    %v4617 = vsel %vm180, %v4613, 0.0
    %4618 = vadd.xlane.f32.xlu0 %v4617
    %v4619 = vpop.xlane.xlu0 %4618
    %v4620 = vsel %vm184, %v4614, 0.0
    %4621 = vadd.xlane.f32.xlu0 %v4620
    %v4622 = vpop.xlane.xlu0 %4621
    %v4623 = vmul.f32 %v4619, %v188
    %v4624 = vmul.f32 %v4622, %v188
    %v4625 = vsub.f32 %v4613, %v4623
    %v4626 = vsub.f32 %v4614, %v4624
    %v4627 = vmul.f32 %v4625, %v4625
    %v4628 = vmul.f32 %v4626, %v4626
    %v4629 = vsel %vm180, %v4627, 0.0
    %4630 = vadd.xlane.f32.xlu0 %v4629
    %v4631 = vpop.xlane.xlu0 %4630
    %v4632 = vsel %vm184, %v4628, 0.0
    %4633 = vadd.xlane.f32.xlu0 %v4632
    %v4634 = vpop.xlane.xlu0 %4633
    %v4635 = vmul.f32 %v4631, %v188
    %v4636 = vmul.f32 %v4634, %v188
    %v4637 = vadd.f32 %v4635, 1e-06
    %v4638 = vadd.f32 %v4636, 1e-06
    %v4639 = vrsqrt.pop %v4637
    %v4640 = vrsqrt.pop %v4638
    %v4641 = vmul.f32 %v4625, %v4639
    %v4642 = vmul.f32 %v4626, %v4640
    %v4643 = vlaneseq
    %v4644 = vshrl.u32 %v4643, 7
    %v4645 = vsub.s32 0, %v4644
    %v4646 = vrot.slane %v4615, %v4645
    %v4647 = vmul.f32 %v4641, %v4646
    %v4648 = vmul.f32 %v4642, %v4646
    %v4649 = vlaneseq
    %v4650 = vshrl.u32 %v4649, 7
    %v4651 = vsub.s32 0, %v4650
    %v4652 = vrot.slane %v4616, %v4651
    %v4653 = vadd.f32 %v4647, %v4652
    %v4654 = vadd.f32 %v4648, %v4652
    %s4655 = scalar_lea.vmem %s13, 32
    %v4656 = vld [vmem:[%s4655] sm:$0xff]
    %v4657 = vld [vmem:[%s4655 + $0x8] sm:$0xff]
    %v4658 = vld [vmem:[%s4655 + $0x10] sm:$0xff]
    %v4659 = vld [vmem:[%s4655 + $0x18] sm:$0xff]
    %v4660 = vld [vmem:[%s14 + $0x1] sm:$0x1]
    %v4661 = vlaneseq
    %v4662 = vshrl.u32 %v4661, 7
    %v4663 = vsub.s32 0, %v4662
    %v4664 = vrot.slane %v4660, %v4663
    %v4666 = vsel %vm180, %v4653, 0
    %v4669 = vsel %vm180, %v4654, 0
    %4671 = vmatprep.subr.mxu0 0.0
    %4672 = vmatpush1.msra.mxu0 %v4656
    %4673 = vmatprep.subr.mxu0 0.0
    %4674 = vmatpush1.msra.mxu0 %v4657
    %4675 = vmatprep.subr.mxu0 0.0
    %4676 = vmatpush1.msra.mxu0 %v4658
    %4677 = vmatprep.subr.mxu0 0.0
    %4678 = vmatpush1.msra.mxu0 %v4659
    %4679 = vmatprep.subr.mxu0 0.0
    %4680 = vmatpush1.msra.mxu0 0.0
    %4681 = vmatprep.subr.mxu0 0.0
    %4682 = vmatpush1.msra.mxu0 0.0
    %4683 = vmatprep.subr.mxu0 0.0
    %4684 = vmatpush1.msra.mxu0 0.0
    %4685 = vmatprep.subr.mxu0 0.0
    %4686 = vmatpush1.msra.mxu0 0.0
    %4687 = vmatprep.subr.mxu0 0.0
    %4688 = vmatpush1.msra.mxu0 0.0
    %4689 = vmatprep.subr.mxu0 0.0
    %4690 = vmatpush1.msra.mxu0 0.0
    %4691 = vmatprep.subr.mxu0 0.0
    %4692 = vmatpush1.msra.mxu0 0.0
    %4693 = vmatprep.subr.mxu0 0.0
    %4694 = vmatpush1.msra.mxu0 0.0
    %4695 = vmatprep.subr.mxu0 0.0
    %4696 = vmatpush1.msra.mxu0 0.0
    %4697 = vmatprep.subr.mxu0 0.0
    %4698 = vmatpush1.msra.mxu0 0.0
    %4699 = vmatprep.subr.mxu0 0.0
    %4700 = vmatpush1.msra.mxu0 0.0
    %4701 = vmatprep.subr.mxu0 0.0
    %4702 = vmatpush1.msra.mxu0 0.0
    %4703 = vmatprep.subr.mxu0 0.0
    %4704 = vmatpush1.msra.mxu0 0.0
    %4705 = vmatprep.subr.mxu0 0.0
    %4706 = vmatpush1.msra.mxu0 0.0
    %4707 = vmatprep.subr.mxu0 0.0
    %4708 = vmatpush1.msra.mxu0 0.0
    %4709 = vmatprep.subr.mxu0 0.0
    %4710 = vmatpush1.msra.mxu0 0.0
    %4711 = vmatprep.subr.mxu0 0.0
    %4712 = vmatpush1.msra.mxu0 0.0
    %4713 = vmatprep.subr.mxu0 0.0
    %4714 = vmatpush1.msra.mxu0 0.0
    %4715 = vmatprep.subr.mxu0 0.0
    %4716 = vmatpush1.msra.mxu0 0.0
    %4717 = vmatprep.subr.mxu0 0.0
    %4718 = vmatpush1.msra.mxu0 0.0
    %4719 = vmatprep.subr.mxu0 0.0
    %4720 = vmatpush1.msra.mxu0 0.0
    %4721 = vmatprep.subr.mxu0 0.0
    %4722 = vmatpush1.msra.mxu0 0.0
    %4723 = vmatprep.subr.mxu0 0.0
    %4724 = vmatpush1.msra.mxu0 0.0
    %4725 = vmatprep.subr.mxu0 0.0
    %4726 = vmatpush1.msra.mxu0 0.0
    %4727 = vmatprep.subr.mxu0 0.0
    %4728 = vmatpush1.msra.mxu0 0.0
    %4729 = vmatprep.subr.mxu0 0.0
    %4730 = vmatpush1.msra.mxu0 0.0
    %4731 = vmatprep.subr.mxu0 0.0
    %4732 = vmatpush1.msra.mxu0 0.0
    %4733 = vmatprep.subr.mxu0 0.0
    %4734 = vmatpush1.msra.mxu0 0.0
    %4735 = vmatprep.mubr.f32.mxu0 0.0
    %4736 = vmatmul.mubr.f32.gmra.mrb[0].mxu0 %v4666
    %v4737 = vpop.f32.mrb[0].mxu0
    %v4738 = vadd.f32 %v4664, %v4737
    %v4739 = vpop.f32.mrb[0].mxu0
    %4740 = vmatprep.mubr.f32.mxu0 0.0
    %4741 = vmatmul.mubr.f32.gmra.mrb[0].mxu0 %v4669
    %v4742 = vpop.f32.mrb[0].mxu0
    %v4743 = vadd.f32 %v4664, %v4742
    %v4744 = vpop.f32.mrb[0].mxu0
    %4745 = vdwg.mxu0
    %v4746 = vmul.f32 %v4738, 0.5
    %v4747 = vmul.f32 %v4743, 0.5
    %v4748 = vmul.f32 %v4738, 0.70710677
    %v4749 = vmul.f32 %v4743, 0.70710677
    %v4750 = vand.u32 2147483647, %v4748
    %v4751 = vand.u32 2147483647, %v4749
    %v4752 = vmul.f32 %v4750, 0.3275911
    %v4753 = vmul.f32 %v4751, 0.3275911
    %v4754 = vadd.f32 %v4752, 1.0
    %v4755 = vadd.f32 %v4753, 1.0
    %v4756 = vrcp.pop %v4754
    %v4757 = vmul.f32 1.0, %v4756
    %v4758 = vrcp.pop %v4755
    %v4759 = vmul.f32 1.0, %v4758
    %v4760 = vmul.f32 %v4757, 1.0614054
    %v4761 = vmul.f32 %v4759, 1.0614054
    %v4762 = vadd.f32 %v4760, -1.4531521
    %v4763 = vadd.f32 %v4761, -1.4531521
    %v4764 = vmul.f32 %v4757, %v4762
    %v4765 = vmul.f32 %v4759, %v4763
    %v4766 = vadd.f32 %v4764, 1.4214138
    %v4767 = vadd.f32 %v4765, 1.4214138
    %v4768 = vmul.f32 %v4757, %v4766
    %v4769 = vmul.f32 %v4759, %v4767
    %v4770 = vadd.f32 %v4768, -0.28449672
    %v4771 = vadd.f32 %v4769, -0.28449672
    %v4772 = vmul.f32 %v4757, %v4770
    %v4773 = vmul.f32 %v4759, %v4771
    %v4774 = vadd.f32 %v4772, 0.2548296
    %v4775 = vadd.f32 %v4773, 0.2548296
    %v4776 = vmul.f32 %v4757, %v4774
    %v4777 = vmul.f32 %v4759, %v4775
    %v4778 = vsub.f32 0.0, %v4748
    %v4779 = vsub.f32 0.0, %v4749
    %v4780 = vmul.f32 %v4778, %v4748
    %v4781 = vmul.f32 %v4779, %v4749
    %v4782 = vmul.f32 %v4780, 1.442695
    %v4783 = vpow.pop %v4782
    %v4784 = vmul.f32 %v4781, 1.442695
    %v4785 = vpow.pop %v4784
    %v4786 = vmul.f32 %v4776, %v4783
    %v4787 = vmul.f32 %v4777, %v4785
    %v4788 = vsub.f32 1.0, %v4786
    %v4789 = vsub.f32 1.0, %v4787
    %vm4790 = vcmp.ge.f32.partialorder %v4748, 0.0
    %vm4791 = vcmp.ge.f32.partialorder %v4749, 0.0
    %v4792 = vsub.f32 0.0, %v4788
    %v4793 = vsub.f32 0.0, %v4789
    %v4794 = vsel %vm4790, %v4788, %v4792
    %v4795 = vsel %vm4791, %v4789, %v4793
    %v4796 = vadd.f32 %v4794, 1.0
    %v4797 = vadd.f32 %v4795, 1.0
    %v4798 = vmul.f32 %v4746, %v4796
    %v4799 = vmul.f32 %v4747, %v4797
    %s4800 = scalar_lea.vmem %s15, 64
    %v4801 = vld [vmem:[%s4800] sm:$0xff]
    %v4802 = vld [vmem:[%s4800 + $0x8] sm:$0xff]
    %v4803 = vld [vmem:[%s4800 + $0x10] sm:$0xff]
    %v4804 = vld [vmem:[%s4800 + $0x18] sm:$0xff]
    %v4805 = vld [vmem:[%s4800 + $0x20] sm:$0xff]
    %v4806 = vld [vmem:[%s4800 + $0x28] sm:$0xff]
    %v4807 = vld [vmem:[%s4800 + $0x30] sm:$0xff]
    %v4808 = vld [vmem:[%s4800 + $0x38] sm:$0xff]
    %v4810 = vsel %vm85, %v4798, 0
    %v4813 = vsel %vm85, %v4799, 0
    %4815 = vmatprep.subr.mxu0 0.0
    %4816 = vmatpush1.msra.mxu0 %v4801
    %4817 = vmatprep.subr.mxu0 0.0
    %4818 = vmatpush1.msra.mxu0 %v4802
    %4819 = vmatprep.subr.mxu0 0.0
    %4820 = vmatpush1.msra.mxu0 %v4803
    %4821 = vmatprep.subr.mxu0 0.0
    %4822 = vmatpush1.msra.mxu0 %v4804
    %4823 = vmatprep.subr.mxu0 0.0
    %4824 = vmatpush1.msra.mxu0 %v4805
    %4825 = vmatprep.subr.mxu0 0.0
    %4826 = vmatpush1.msra.mxu0 %v4806
    %4827 = vmatprep.subr.mxu0 0.0
    %4828 = vmatpush1.msra.mxu0 %v4807
    %4829 = vmatprep.subr.mxu0 0.0
    %4830 = vmatpush1.msra.mxu0 %v4808
    %4831 = vmatprep.subr.mxu0 0.0
    %4832 = vmatpush1.msra.mxu0 0.0
    %4833 = vmatprep.subr.mxu0 0.0
    %4834 = vmatpush1.msra.mxu0 0.0
    %4835 = vmatprep.subr.mxu0 0.0
    %4836 = vmatpush1.msra.mxu0 0.0
    %4837 = vmatprep.subr.mxu0 0.0
    %4838 = vmatpush1.msra.mxu0 0.0
    %4839 = vmatprep.subr.mxu0 0.0
    %4840 = vmatpush1.msra.mxu0 0.0
    %4841 = vmatprep.subr.mxu0 0.0
    %4842 = vmatpush1.msra.mxu0 0.0
    %4843 = vmatprep.subr.mxu0 0.0
    %4844 = vmatpush1.msra.mxu0 0.0
    %4845 = vmatprep.subr.mxu0 0.0
    %4846 = vmatpush1.msra.mxu0 0.0
    %4847 = vmatprep.subr.mxu0 0.0
    %4848 = vmatpush1.msra.mxu0 0.0
    %4849 = vmatprep.subr.mxu0 0.0
    %4850 = vmatpush1.msra.mxu0 0.0
    %4851 = vmatprep.subr.mxu0 0.0
    %4852 = vmatpush1.msra.mxu0 0.0
    %4853 = vmatprep.subr.mxu0 0.0
    %4854 = vmatpush1.msra.mxu0 0.0
    %4855 = vmatprep.subr.mxu0 0.0
    %4856 = vmatpush1.msra.mxu0 0.0
    %4857 = vmatprep.subr.mxu0 0.0
    %4858 = vmatpush1.msra.mxu0 0.0
    %4859 = vmatprep.subr.mxu0 0.0
    %4860 = vmatpush1.msra.mxu0 0.0
    %4861 = vmatprep.subr.mxu0 0.0
    %4862 = vmatpush1.msra.mxu0 0.0
    %4863 = vmatprep.subr.mxu0 0.0
    %4864 = vmatpush1.msra.mxu0 0.0
    %4865 = vmatprep.subr.mxu0 0.0
    %4866 = vmatpush1.msra.mxu0 0.0
    %4867 = vmatprep.subr.mxu0 0.0
    %4868 = vmatpush1.msra.mxu0 0.0
    %4869 = vmatprep.subr.mxu0 0.0
    %4870 = vmatpush1.msra.mxu0 0.0
    %4871 = vmatprep.subr.mxu0 0.0
    %4872 = vmatpush1.msra.mxu0 0.0
    %4873 = vmatprep.subr.mxu0 0.0
    %4874 = vmatpush1.msra.mxu0 0.0
    %4875 = vmatprep.subr.mxu0 0.0
    %4876 = vmatpush1.msra.mxu0 0.0
    %4877 = vmatprep.subr.mxu0 0.0
    %4878 = vmatpush1.msra.mxu0 0.0
    %4879 = vmatprep.mubr.f32.mxu0 0.0
    %4880 = vmatmul.mubr.f32.gmra.mrb[0].mxu0 %v4810
    %v4881 = vpop.f32.mrb[0].mxu0
    %v4882 = vadd.f32 0.0, %v4881
    %v4883 = vpop.f32.mrb[0].mxu0
    %4884 = vmatprep.mubr.f32.mxu0 0.0
    %4885 = vmatmul.mubr.f32.gmra.mrb[0].mxu0 %v4813
    %v4886 = vpop.f32.mrb[0].mxu0
    %v4887 = vadd.f32 0.0, %v4886
    %v4888 = vpop.f32.mrb[0].mxu0
    %4889 = vdwg.mxu0
    %v4890 = vadd.f32 %v4613, %v4882
    %v4891 = vadd.f32 %v4614, %v4887
    %v4892 = vld [vmem:[%s16 + $0x1] sm:$0x1]
    %v4893 = vlaneseq
    %v4894 = vshrl.u32 %v4893, 7
    %v4895 = vsub.s32 0, %v4894
    %v4896 = vrot.slane %v4892, %v4895
    %v4897 = vadd.f32 %v4890, %v4896
    %v4898 = vadd.f32 %v4891, %v4896
    %v4899 = vld [vmem:[%s17] sm:$0x1]
    %v4900 = vld [vmem:[%s18] sm:$0x1]
    %v4901 = vsel %vm180, %v4897, 0.0
    %4902 = vadd.xlane.f32.xlu0 %v4901
    %v4903 = vpop.xlane.xlu0 %4902
    %v4904 = vsel %vm184, %v4898, 0.0
    %4905 = vadd.xlane.f32.xlu0 %v4904
    %v4906 = vpop.xlane.xlu0 %4905
    %v4907 = vmul.f32 %v4903, %v188
    %v4908 = vmul.f32 %v4906, %v188
    %v4909 = vsub.f32 %v4897, %v4907
    %v4910 = vsub.f32 %v4898, %v4908
    %v4911 = vmul.f32 %v4909, %v4909
    %v4912 = vmul.f32 %v4910, %v4910
    %v4913 = vsel %vm180, %v4911, 0.0
    %4914 = vadd.xlane.f32.xlu0 %v4913
    %v4915 = vpop.xlane.xlu0 %4914
    %v4916 = vsel %vm184, %v4912, 0.0
    %4917 = vadd.xlane.f32.xlu0 %v4916
    %v4918 = vpop.xlane.xlu0 %4917
    %v4919 = vmul.f32 %v4915, %v188
    %v4920 = vmul.f32 %v4918, %v188
    %v4921 = vadd.f32 %v4919, 1e-06
    %v4922 = vadd.f32 %v4920, 1e-06
    %v4923 = vrsqrt.pop %v4921
    %v4924 = vrsqrt.pop %v4922
    %v4925 = vmul.f32 %v4909, %v4923
    %v4926 = vmul.f32 %v4910, %v4924
    %v4928 = vlaneseq
    %v4929 = vshrl.u32 %v4928, 7
    %v4930 = vsub.s32 0, %v4929
    %v4931 = vrot.slane %v4899, %v4930
    %v4933 = vmul.f32 %v4925, %v4931
    %v4934 = vmul.f32 %v4926, %v4931
    %v4936 = vlaneseq
    %v4937 = vshrl.u32 %v4936, 7
    %v4938 = vsub.s32 0, %v4937
    %v4939 = vrot.slane %v4900, %v4938
    %v4941 = vadd.f32 %v4933, %v4939
    %v4942 = vadd.f32 %v4934, %v4939
    %v4943 = vld [vmem:[%s19] sm:$0xff]
    %v4944 = vld [vmem:[%s19 + $0x8] sm:$0xff]
    %v4945 = vld [vmem:[%s19 + $0x10] sm:$0xff]
    %v4946 = vld [vmem:[%s19 + $0x18] sm:$0xff]
    %v4948 = vsel %vm180, %v4941, 0
    %v4951 = vsel %vm180, %v4942, 0
    %4953 = vmatprep.subr.mxu0 0.0
    %4954 = vmatpush1.msra.mxu0 %v4943
    %4955 = vmatprep.subr.mxu0 0.0
    %4956 = vmatpush1.msra.mxu0 %v4944
    %4957 = vmatprep.subr.mxu0 0.0
    %4958 = vmatpush1.msra.mxu0 %v4945
    %4959 = vmatprep.subr.mxu0 0.0
    %4960 = vmatpush1.msra.mxu0 %v4946
    %4961 = vmatprep.subr.mxu0 0.0
    %4962 = vmatpush1.msra.mxu0 0.0
    %4963 = vmatprep.subr.mxu0 0.0
    %4964 = vmatpush1.msra.mxu0 0.0
    %4965 = vmatprep.subr.mxu0 0.0
    %4966 = vmatpush1.msra.mxu0 0.0
    %4967 = vmatprep.subr.mxu0 0.0
    %4968 = vmatpush1.msra.mxu0 0.0
    %4969 = vmatprep.subr.mxu0 0.0
    %4970 = vmatpush1.msra.mxu0 0.0
    %4971 = vmatprep.subr.mxu0 0.0
    %4972 = vmatpush1.msra.mxu0 0.0
    %4973 = vmatprep.subr.mxu0 0.0
    %4974 = vmatpush1.msra.mxu0 0.0
    %4975 = vmatprep.subr.mxu0 0.0
    %4976 = vmatpush1.msra.mxu0 0.0
    %4977 = vmatprep.subr.mxu0 0.0
    %4978 = vmatpush1.msra.mxu0 0.0
    %4979 = vmatprep.subr.mxu0 0.0
    %4980 = vmatpush1.msra.mxu0 0.0
    %4981 = vmatprep.subr.mxu0 0.0
    %4982 = vmatpush1.msra.mxu0 0.0
    %4983 = vmatprep.subr.mxu0 0.0
    %4984 = vmatpush1.msra.mxu0 0.0
    %4985 = vmatprep.subr.mxu0 0.0
    %4986 = vmatpush1.msra.mxu0 0.0
    %4987 = vmatprep.subr.mxu0 0.0
    %4988 = vmatpush1.msra.mxu0 0.0
    %4989 = vmatprep.subr.mxu0 0.0
    %4990 = vmatpush1.msra.mxu0 0.0
    %4991 = vmatprep.subr.mxu0 0.0
    %4992 = vmatpush1.msra.mxu0 0.0
    %4993 = vmatprep.subr.mxu0 0.0
    %4994 = vmatpush1.msra.mxu0 0.0
    %4995 = vmatprep.subr.mxu0 0.0
    %4996 = vmatpush1.msra.mxu0 0.0
    %4997 = vmatprep.subr.mxu0 0.0
    %4998 = vmatpush1.msra.mxu0 0.0
    %4999 = vmatprep.subr.mxu0 0.0
    %5000 = vmatpush1.msra.mxu0 0.0
    %5001 = vmatprep.subr.mxu0 0.0
    %5002 = vmatpush1.msra.mxu0 0.0
    %5003 = vmatprep.subr.mxu0 0.0
    %5004 = vmatpush1.msra.mxu0 0.0
    %5005 = vmatprep.subr.mxu0 0.0
    %5006 = vmatpush1.msra.mxu0 0.0
    %5007 = vmatprep.subr.mxu0 0.0
    %5008 = vmatpush1.msra.mxu0 0.0
    %5009 = vmatprep.subr.mxu0 0.0
    %5010 = vmatpush1.msra.mxu0 0.0
    %5011 = vmatprep.subr.mxu0 0.0
    %5012 = vmatpush1.msra.mxu0 0.0
    %5013 = vmatprep.subr.mxu0 0.0
    %5014 = vmatpush1.msra.mxu0 0.0
    %5015 = vmatprep.subr.mxu0 0.0
    %5016 = vmatpush1.msra.mxu0 0.0
    %5017 = vmatprep.mubr.f32.mxu0 0.0
    %5018 = vmatmul.mubr.f32.gmra.mrb[0].mxu0 %v4948
    %v5019 = vpop.f32.mrb[0].mxu0
    %v5020 = vadd.f32 0.0, %v5019
    %v5021 = vpop.f32.mrb[0].mxu0
    %5022 = vmatprep.mubr.f32.mxu0 0.0
    %5023 = vmatmul.mubr.f32.gmra.mrb[0].mxu0 %v4951
    %v5024 = vpop.f32.mrb[0].mxu0
    %v5025 = vadd.f32 0.0, %v5024
    %v5026 = vpop.f32.mrb[0].mxu0
    %5027 = vdwg.mxu0
    %v5028 = vld [vmem:[%s20] sm:$0xff]
    %v5029 = vld [vmem:[%s20 + $0x8] sm:$0xff]
    %v5030 = vld [vmem:[%s20 + $0x10] sm:$0xff]
    %v5031 = vld [vmem:[%s20 + $0x18] sm:$0xff]
    %v5033 = vsel %vm180, %v5020, 0
    %v5036 = vsel %vm180, %v5025, 0
    %5038 = vmatprep.subr.mxu0 0.0
    %5039 = vmatpush1.msra.mxu0 %v5028
    %5040 = vmatprep.subr.mxu0 0.0
    %5041 = vmatpush1.msra.mxu0 %v5029
    %5042 = vmatprep.subr.mxu0 0.0
    %5043 = vmatpush1.msra.mxu0 %v5030
    %5044 = vmatprep.subr.mxu0 0.0
    %5045 = vmatpush1.msra.mxu0 %v5031
    %5046 = vmatprep.subr.mxu0 0.0
    %5047 = vmatpush1.msra.mxu0 0.0
    %5048 = vmatprep.subr.mxu0 0.0
    %5049 = vmatpush1.msra.mxu0 0.0
    %5050 = vmatprep.subr.mxu0 0.0
    %5051 = vmatpush1.msra.mxu0 0.0
    %5052 = vmatprep.subr.mxu0 0.0
    %5053 = vmatpush1.msra.mxu0 0.0
    %5054 = vmatprep.subr.mxu0 0.0
    %5055 = vmatpush1.msra.mxu0 0.0
    %5056 = vmatprep.subr.mxu0 0.0
    %5057 = vmatpush1.msra.mxu0 0.0
    %5058 = vmatprep.subr.mxu0 0.0
    %5059 = vmatpush1.msra.mxu0 0.0
    %5060 = vmatprep.subr.mxu0 0.0
    %5061 = vmatpush1.msra.mxu0 0.0
    %5062 = vmatprep.subr.mxu0 0.0
    %5063 = vmatpush1.msra.mxu0 0.0
    %5064 = vmatprep.subr.mxu0 0.0
    %5065 = vmatpush1.msra.mxu0 0.0
    %5066 = vmatprep.subr.mxu0 0.0
    %5067 = vmatpush1.msra.mxu0 0.0
    %5068 = vmatprep.subr.mxu0 0.0
    %5069 = vmatpush1.msra.mxu0 0.0
    %5070 = vmatprep.subr.mxu0 0.0
    %5071 = vmatpush1.msra.mxu0 0.0
    %5072 = vmatprep.subr.mxu0 0.0
    %5073 = vmatpush1.msra.mxu0 0.0
    %5074 = vmatprep.subr.mxu0 0.0
    %5075 = vmatpush1.msra.mxu0 0.0
    %5076 = vmatprep.subr.mxu0 0.0
    %5077 = vmatpush1.msra.mxu0 0.0
    %5078 = vmatprep.subr.mxu0 0.0
    %5079 = vmatpush1.msra.mxu0 0.0
    %5080 = vmatprep.subr.mxu0 0.0
    %5081 = vmatpush1.msra.mxu0 0.0
    %5082 = vmatprep.subr.mxu0 0.0
    %5083 = vmatpush1.msra.mxu0 0.0
    %5084 = vmatprep.subr.mxu0 0.0
    %5085 = vmatpush1.msra.mxu0 0.0
    %5086 = vmatprep.subr.mxu0 0.0
    %5087 = vmatpush1.msra.mxu0 0.0
    %5088 = vmatprep.subr.mxu0 0.0
    %5089 = vmatpush1.msra.mxu0 0.0
    %5090 = vmatprep.subr.mxu0 0.0
    %5091 = vmatpush1.msra.mxu0 0.0
    %5092 = vmatprep.subr.mxu0 0.0
    %5093 = vmatpush1.msra.mxu0 0.0
    %5094 = vmatprep.subr.mxu0 0.0
    %5095 = vmatpush1.msra.mxu0 0.0
    %5096 = vmatprep.subr.mxu0 0.0
    %5097 = vmatpush1.msra.mxu0 0.0
    %5098 = vmatprep.subr.mxu0 0.0
    %5099 = vmatpush1.msra.mxu0 0.0
    %5100 = vmatprep.subr.mxu0 0.0
    %5101 = vmatpush1.msra.mxu0 0.0
    %5102 = vmatprep.mubr.f32.mxu0 0.0
    %5103 = vmatmul.mubr.f32.gmra.mrb[0].mxu0 %v5033
    %v5104 = vpop.f32.mrb[0].mxu0
    %v5105 = vadd.f32 0.0, %v5104
    %v5106 = vpop.f32.mrb[0].mxu0
    %5107 = vmatprep.mubr.f32.mxu0 0.0
    %5108 = vmatmul.mubr.f32.gmra.mrb[0].mxu0 %v5036
    %v5109 = vpop.f32.mrb[0].mxu0
    %v5110 = vpop.f32.mrb[0].mxu0
    %5111 = vdwg.mxu0
    %5112 = vst [vmem:[#allocation3] sm:$0x1] %v5105
    %5113 = vst [vmem:[#allocation3 - $0x4] sm:$0x20] %v5105
    // Predicated region
    $region86: #{simclr_vit_fc_forward.1} parent=1 // pred_check
      _
    $region87: #{simclr_vit_fc_forward.1} parent=1 // pred_check_branch
      %5115 = sbr.rel (0) target = $region89
    $region88: #{simclr_vit_fc_forward.1} parent=1 // pred_region
      %s5117 = ssub.s32 32, 32
      %5118 = vsyncadd [#allocation4], %s5117
      %s5120 = sshll.u32 [#allocation3], 4
      %s5121 = int_to_ptr.vmem [resolvable:$true] %s5120
      %5123 = dma.vmem_to_hbm [thread:$0]  %s5121, 32, %s21, [#allocation4]
    $region89: #{simclr_vit_fc_forward.1} parent=1 // pred_fallthru
      _
    // Predicated region
    $region90: #{simclr_vit_fc_forward.1} parent=1 // pred_check
      _
    $region91: #{simclr_vit_fc_forward.1} parent=1 // pred_check_branch
      %5125 = sbr.rel (0) target = $region93
    $region92: #{simclr_vit_fc_forward.1} parent=1 // pred_region
      %5126 = dma.done [#allocation4], 32
    $region93: #{simclr_vit_fc_forward.1} parent=1 // pred_fallthru
      _
    %5127 = vsyncpa [#allocation4], 1

</llo_original>
